<compile_context>
chip_gen: v5e
topology: v5e:2x2
jax: 0.10.0
libtpu: 0.0.40
codegen_flags: <defaults>
</compile_context>

<pallas_src>
import functools

import jax
import jax.numpy as jnp
from jax import lax
from jax.experimental import pallas as pl
from jax.experimental.pallas import tpu as pltpu

KERNEL_SIZE = 5
NUM_LAYERS = 8


def _fused_encoder_kernel(w0_ref, wr_ref, b_ref, x_ref, o_ref, pad_ref,
                          *, C, K, H, W, pad):
    """All 8 layers for one batch element.

    w0_ref : SMEM (C*K*K,) f32              layer-0 weights (flat, OIHW order)
    wr_ref : SMEM ((NUM_LAYERS-1)*K*K,) f32 layers 1..7 weights (flat)
    b_ref  : SMEM (NUM_LAYERS,) f32         per-layer bias
    x_ref  : VMEM (1, C, H, W)              unpadded input block
    o_ref  : VMEM (1, 1, H, W)              output block
    pad_ref: VMEM scratch (C, H+2*pad, W+2*pad)  zero-padded activations
    """
    # ---- in-kernel zero padding (no jnp.pad / extra HBM traffic) ----
    pad_ref[...] = jnp.zeros_like(pad_ref)
    for c in range(C):
        pad_ref[c, pad:pad + H, pad:pad + W] = x_ref[0, c]

    def conv_taps(plane, acc, w_flat_ref, base):
        # Hoist lane-axis shifts: K lane-shifted planes per input plane,
        # inner loops only do sublane-offset slices of those planes.
        shifted = [plane[:, kw:kw + W] for kw in range(K)]       # each (Hp, W)
        for kh in range(K):                                      # keep original
            for kw in range(K):                                  # (kh, kw) order
                w_sc = w_flat_ref[base + kh * K + kw]
                acc = acc + w_sc * shifted[kw][kh:kh + H, :]
        return acc

    def discretize(acc, n):
        # tanh_discr forward: round(_n + _n*tanh(x)) / _n - 1, _n = (n-1)/2
        half = (n - 1) / 2.0
        return jnp.round(half + half * jnp.tanh(acc)) / half - 1.0

    # ---- layer 0: C -> 1 ----
    acc = jnp.full((H, W), b_ref[0], dtype=jnp.float32)
    for c in range(C):
        acc = conv_taps(pad_ref[c], acc, w0_ref, c * K * K)
    y = discretize(acc, 2 ** 8)
    # Activation stays in VMEM: reuse plane 0 of the padded scratch
    # (its border is already zero; only the interior is rewritten).
    pad_ref[0, pad:pad + H, pad:pad + W] = y

    # ---- layers 1..7: 1 -> 1 ----
    for l in range(1, NUM_LAYERS):
        acc = jnp.full((H, W), b_ref[l], dtype=jnp.float32)
        acc = conv_taps(pad_ref[0], acc, wr_ref, (l - 1) * K * K)
        y = discretize(acc, 2 ** (8 - l))
        if l < NUM_LAYERS - 1:
            pad_ref[0, pad:pad + H, pad:pad + W] = y

    o_ref[0, 0] = y.astype(o_ref.dtype)


def down_discretization_encoder(x, params):
    """Fused Pallas forward: 8 x (conv2d 'same' -> tanh_discr(2**(8-i))).

    x: (N, C, H, W) f32; params: list of (w, b) with w0 (1,C,K,K), rest (1,1,K,K).
    Returns (N, 1, H, W) f32.
    """
    N, C, H, W = x.shape
    K = params[0][0].shape[-1]
    pad = K // 2                         # padding='same', stride 1, odd K
    Hp, Wp = H + 2 * pad, W + 2 * pad

    w0 = params[0][0].reshape(-1).astype(jnp.float32)                      # (C*K*K,)
    wr = jnp.concatenate([w.reshape(-1) for w, _ in params[1:]]            # (7*K*K,)
                         ).astype(jnp.float32)
    bias = jnp.concatenate([b for _, b in params]).astype(jnp.float32)     # (8,)

    kernel = functools.partial(_fused_encoder_kernel,
                               C=C, K=K, H=H, W=W, pad=pad)
    return pl.pallas_call(
        kernel,
        out_shape=jax.ShapeDtypeStruct((N, 1, H, W), jnp.float32),
        grid_spec=pltpu.PrefetchScalarGridSpec(
            num_scalar_prefetch=0,
            grid=(N,),
            in_specs=[
                pl.BlockSpec(memory_space=pltpu.SMEM),                    # w0
                pl.BlockSpec(memory_space=pltpu.SMEM),                    # w rest
                pl.BlockSpec(memory_space=pltpu.SMEM),                    # bias
                pl.BlockSpec((1, C, H, W), lambda b: (b, 0, 0, 0)),       # x
            ],
            out_specs=pl.BlockSpec((1, 1, H, W), lambda b: (b, 0, 0, 0)),
            scratch_shapes=[pltpu.VMEM((C, Hp, Wp), jnp.float32)],
        ),
        compiler_params=pltpu.CompilerParams(
            dimension_semantics=("parallel",)),
    )(w0, wr, bias, x.astype(jnp.float32))


def init_params(key, input_channels, kernel_size=KERNEL_SIZE):
    """Deterministic synthetic params with the shapes nn.Conv2d would have."""
    params = []
    c_in = input_channels
    for _ in range(NUM_LAYERS):
        key, kw, kb = jax.random.split(key, 3)
        fan_in = c_in * kernel_size * kernel_size
        bound = 1.0 / jnp.sqrt(fan_in)
        w = jax.random.uniform(kw, (1, c_in, kernel_size, kernel_size),
                               jnp.float32, -bound, bound)
        b = jax.random.uniform(kb, (1,), jnp.float32, -bound, bound)
        params.append((w, b))
        c_in = 1
    return params


# ---- pure-JAX reference (sanity check only) ----
def _ref_forward(x, params):
    for removed_bits, (w, b) in enumerate(params):
        y = lax.conv_general_dilated(
            x, w, window_strides=(1, 1), padding="SAME",
            dimension_numbers=("NCHW", "OIHW", "NCHW"))
        y = y + b.reshape(1, 1, 1, 1)
        n = 2 ** (8 - removed_bits)
        half = (n - 1) / 2.0
        x = jnp.round(half + half * jnp.tanh(y)) / half - 1.0
    return x


# TODO(synk): tanh_discr's custom backward (straight-through tanh gradient) is
# not implemented; this script covers the forward pass only.

if __name__ == "__main__":
    key = jax.random.PRNGKey(0)
    k_x, k_p = jax.random.split(key)

    N, C, H, W = 2, 4, 16, 16  # small shapes; input_channels=4
    x = jax.random.normal(k_x, (N, C, H, W), jnp.float32)
    params = init_params(k_p, input_channels=C)

    out = down_discretization_encoder(x, params)
    out = jax.block_until_ready(out)
    assert out.shape == (N, 1, H, W), out.shape

    ref = jax.block_until_ready(_ref_forward(x, params))
    assert jnp.allclose(out, ref, atol=1e-5), float(jnp.max(jnp.abs(out - ref)))

    print("KERNEL_OK")
</pallas_src>

<mosaic_0001>
module attributes {stable_mosaic.version = 11 : i64} {
  func.func @_fused_encoder_kernel(%arg0: i32, %arg1: memref<100xf32, #tpu.memory_space<smem>>, %arg2: memref<175xf32, #tpu.memory_space<smem>>, %arg3: memref<8xf32, #tpu.memory_space<smem>>, %arg4: memref<1x4x16x16xf32, #tpu.memory_space<vmem>>, %arg5: memref<1x1x16x16xf32, #tpu.memory_space<vmem>>, %arg6: memref<4x20x20xf32, #tpu.memory_space<vmem>>) attributes {dimension_semantics = [#tpu.dimension_semantics<parallel>], iteration_bounds = array<i64: 2>, scalar_prefetch = 0 : i64, scratch_operands = 1 : i64, tpu.core_type = #tpu.core_type<tc>, window_params = [{transform_indices = @transform_0, window_bounds = array<i64: 100>}, {transform_indices = @transform_1, window_bounds = array<i64: 175>}, {transform_indices = @transform_2, window_bounds = array<i64: 8>}, {transform_indices = @transform_3, window_bounds = array<i64: 1, 4, 16, 16>}, {transform_indices = @transform_4, window_bounds = array<i64: 1, 1, 16, 16>}]} {
    %cst = arith.constant 0.000000e+00 : f32
    %0 = vector.broadcast %cst : f32 to vector<4x20x20xf32>
    %c0 = arith.constant 0 : index
    %c0_0 = arith.constant 0 : index
    %c0_1 = arith.constant 0 : index
    %1 = vector.load %arg6[%c0, %c0_0, %c0_1] : memref<4x20x20xf32, #tpu.memory_space<vmem>>, vector<4x20x20xf32>
    tpu.vector_store %arg6[%c0, %c0_0, %c0_1], %0 {strides = array<i32>} : memref<4x20x20xf32, #tpu.memory_space<vmem>>, vector<4x20x20xf32>,
    %c0_2 = arith.constant 0 : index
    %c0_3 = arith.constant 0 : index
    %c0_4 = arith.constant 0 : index
    %c0_5 = arith.constant 0 : index
    %2 = vector.load %arg4[%c0_2, %c0_3, %c0_4, %c0_5] : memref<1x4x16x16xf32, #tpu.memory_space<vmem>>, vector<1x1x16x16xf32>
    %3 = vector.shape_cast %2 : vector<1x1x16x16xf32> to vector<16x16xf32>
    %c0_6 = arith.constant 0 : index
    %c2 = arith.constant 2 : index
    %c2_7 = arith.constant 2 : index
    %4 = vector.load %arg6[%c0_6, %c2, %c2_7] : memref<4x20x20xf32, #tpu.memory_space<vmem>>, vector<1x16x16xf32>
    %5 = vector.shape_cast %4 : vector<1x16x16xf32> to vector<16x16xf32>
    %6 = vector.shape_cast %3 : vector<16x16xf32> to vector<1x16x16xf32>
    tpu.vector_store %arg6[%c0_6, %c2, %c2_7], %6 {strides = array<i32>} : memref<4x20x20xf32, #tpu.memory_space<vmem>>, vector<1x16x16xf32>,
    %c0_8 = arith.constant 0 : index
    %c1 = arith.constant 1 : index
    %c0_9 = arith.constant 0 : index
    %c0_10 = arith.constant 0 : index
    %7 = vector.load %arg4[%c0_8, %c1, %c0_9, %c0_10] : memref<1x4x16x16xf32, #tpu.memory_space<vmem>>, vector<1x1x16x16xf32>
    %8 = vector.shape_cast %7 : vector<1x1x16x16xf32> to vector<16x16xf32>
    %c1_11 = arith.constant 1 : index
    %c2_12 = arith.constant 2 : index
    %c2_13 = arith.constant 2 : index
    %9 = vector.load %arg6[%c1_11, %c2_12, %c2_13] : memref<4x20x20xf32, #tpu.memory_space<vmem>>, vector<1x16x16xf32>
    %10 = vector.shape_cast %9 : vector<1x16x16xf32> to vector<16x16xf32>
    %11 = vector.shape_cast %8 : vector<16x16xf32> to vector<1x16x16xf32>
    tpu.vector_store %arg6[%c1_11, %c2_12, %c2_13], %11 {strides = array<i32>} : memref<4x20x20xf32, #tpu.memory_space<vmem>>, vector<1x16x16xf32>,
    %c0_14 = arith.constant 0 : index
    %c2_15 = arith.constant 2 : index
    %c0_16 = arith.constant 0 : index
    %c0_17 = arith.constant 0 : index
    %12 = vector.load %arg4[%c0_14, %c2_15, %c0_16, %c0_17] : memref<1x4x16x16xf32, #tpu.memory_space<vmem>>, vector<1x1x16x16xf32>
    %13 = vector.shape_cast %12 : vector<1x1x16x16xf32> to vector<16x16xf32>
    %c2_18 = arith.constant 2 : index
    %c2_19 = arith.constant 2 : index
    %c2_20 = arith.constant 2 : index
    %14 = vector.load %arg6[%c2_18, %c2_19, %c2_20] : memref<4x20x20xf32, #tpu.memory_space<vmem>>, vector<1x16x16xf32>
    %15 = vector.shape_cast %14 : vector<1x16x16xf32> to vector<16x16xf32>
    %16 = vector.shape_cast %13 : vector<16x16xf32> to vector<1x16x16xf32>
    tpu.vector_store %arg6[%c2_18, %c2_19, %c2_20], %16 {strides = array<i32>} : memref<4x20x20xf32, #tpu.memory_space<vmem>>, vector<1x16x16xf32>,
    %c0_21 = arith.constant 0 : index
    %c3 = arith.constant 3 : index
    %c0_22 = arith.constant 0 : index
    %c0_23 = arith.constant 0 : index
    %17 = vector.load %arg4[%c0_21, %c3, %c0_22, %c0_23] : memref<1x4x16x16xf32, #tpu.memory_space<vmem>>, vector<1x1x16x16xf32>
    %18 = vector.shape_cast %17 : vector<1x1x16x16xf32> to vector<16x16xf32>
    %c3_24 = arith.constant 3 : index
    %c2_25 = arith.constant 2 : index
    %c2_26 = arith.constant 2 : index
    %19 = vector.load %arg6[%c3_24, %c2_25, %c2_26] : memref<4x20x20xf32, #tpu.memory_space<vmem>>, vector<1x16x16xf32>
    %20 = vector.shape_cast %19 : vector<1x16x16xf32> to vector<16x16xf32>
    %21 = vector.shape_cast %18 : vector<16x16xf32> to vector<1x16x16xf32>
    tpu.vector_store %arg6[%c3_24, %c2_25, %c2_26], %21 {strides = array<i32>} : memref<4x20x20xf32, #tpu.memory_space<vmem>>, vector<1x16x16xf32>,
    %c0_27 = arith.constant 0 : index
    %22 = memref.load %arg3[%c0_27] : memref<8xf32, #tpu.memory_space<smem>>
    %23 = vector.broadcast %22 : f32 to vector<16x16xf32>
    %c0_28 = arith.constant 0 : index
    %c0_29 = arith.constant 0 : index
    %c0_30 = arith.constant 0 : index
    %24 = vector.load %arg6[%c0_28, %c0_29, %c0_30] : memref<4x20x20xf32, #tpu.memory_space<vmem>>, vector<1x20x20xf32>
    %25 = vector.shape_cast %24 : vector<1x20x20xf32> to vector<20x20xf32>
    %26 = vector.extract_strided_slice %25 {offsets = [0, 0], sizes = [20, 16], strides = [1, 1]} : vector<20x20xf32> to vector<20x16xf32>
    %27 = vector.extract_strided_slice %25 {offsets = [0, 1], sizes = [20, 16], strides = [1, 1]} : vector<20x20xf32> to vector<20x16xf32>
    %28 = vector.extract_strided_slice %25 {offsets = [0, 2], sizes = [20, 16], strides = [1, 1]} : vector<20x20xf32> to vector<20x16xf32>
    %29 = vector.extract_strided_slice %25 {offsets = [0, 3], sizes = [20, 16], strides = [1, 1]} : vector<20x20xf32> to vector<20x16xf32>
    %30 = vector.extract_strided_slice %25 {offsets = [0, 4], sizes = [20, 16], strides = [1, 1]} : vector<20x20xf32> to vector<20x16xf32>
    %c0_31 = arith.constant 0 : index
    %31 = memref.load %arg1[%c0_31] : memref<100xf32, #tpu.memory_space<smem>>
    %32 = vector.extract_strided_slice %26 {offsets = [0, 0], sizes = [16, 16], strides = [1, 1]} : vector<20x16xf32> to vector<16x16xf32>
    %33 = vector.broadcast %31 : f32 to vector<16x16xf32>
    %34 = arith.mulf %33, %32 : vector<16x16xf32>
    %35 = arith.addf %23, %34 : vector<16x16xf32>
    %c1_32 = arith.constant 1 : index
    %36 = memref.load %arg1[%c1_32] : memref<100xf32, #tpu.memory_space<smem>>
    %37 = vector.extract_strided_slice %27 {offsets = [0, 0], sizes = [16, 16], strides = [1, 1]} : vector<20x16xf32> to vector<16x16xf32>
    %38 = vector.broadcast %36 : f32 to vector<16x16xf32>
    %39 = arith.mulf %38, %37 : vector<16x16xf32>
    %40 = arith.addf %35, %39 : vector<16x16xf32>
    %c2_33 = arith.constant 2 : index
    %41 = memref.load %arg1[%c2_33] : memref<100xf32, #tpu.memory_space<smem>>
    %42 = vector.extract_strided_slice %28 {offsets = [0, 0], sizes = [16, 16], strides = [1, 1]} : vector<20x16xf32> to vector<16x16xf32>
    %43 = vector.broadcast %41 : f32 to vector<16x16xf32>
    %44 = arith.mulf %43, %42 : vector<16x16xf32>
    %45 = arith.addf %40, %44 : vector<16x16xf32>
    %c3_34 = arith.constant 3 : index
    %46 = memref.load %arg1[%c3_34] : memref<100xf32, #tpu.memory_space<smem>>
    %47 = vector.extract_strided_slice %29 {offsets = [0, 0], sizes = [16, 16], strides = [1, 1]} : vector<20x16xf32> to vector<16x16xf32>
    %48 = vector.broadcast %46 : f32 to vector<16x16xf32>
    %49 = arith.mulf %48, %47 : vector<16x16xf32>
    %50 = arith.addf %45, %49 : vector<16x16xf32>
    %c4 = arith.constant 4 : index
    %51 = memref.load %arg1[%c4] : memref<100xf32, #tpu.memory_space<smem>>
    %52 = vector.extract_strided_slice %30 {offsets = [0, 0], sizes = [16, 16], strides = [1, 1]} : vector<20x16xf32> to vector<16x16xf32>
    %53 = vector.broadcast %51 : f32 to vector<16x16xf32>
    %54 = arith.mulf %53, %52 : vector<16x16xf32>
    %55 = arith.addf %50, %54 : vector<16x16xf32>
    %c5 = arith.constant 5 : index
    %56 = memref.load %arg1[%c5] : memref<100xf32, #tpu.memory_space<smem>>
    %57 = vector.extract_strided_slice %26 {offsets = [1, 0], sizes = [16, 16], strides = [1, 1]} : vector<20x16xf32> to vector<16x16xf32>
    %58 = vector.broadcast %56 : f32 to vector<16x16xf32>
    %59 = arith.mulf %58, %57 : vector<16x16xf32>
    %60 = arith.addf %55, %59 : vector<16x16xf32>
    %c6 = arith.constant 6 : index
    %61 = memref.load %arg1[%c6] : memref<100xf32, #tpu.memory_space<smem>>
    %62 = vector.extract_strided_slice %27 {offsets = [1, 0], sizes = [16, 16], strides = [1, 1]} : vector<20x16xf32> to vector<16x16xf32>
    %63 = vector.broadcast %61 : f32 to vector<16x16xf32>
    %64 = arith.mulf %63, %62 : vector<16x16xf32>
    %65 = arith.addf %60, %64 : vector<16x16xf32>
    %c7 = arith.constant 7 : index
    %66 = memref.load %arg1[%c7] : memref<100xf32, #tpu.memory_space<smem>>
    %67 = vector.extract_strided_slice %28 {offsets = [1, 0], sizes = [16, 16], strides = [1, 1]} : vector<20x16xf32> to vector<16x16xf32>
    %68 = vector.broadcast %66 : f32 to vector<16x16xf32>
    %69 = arith.mulf %68, %67 : vector<16x16xf32>
    %70 = arith.addf %65, %69 : vector<16x16xf32>
    %c8 = arith.constant 8 : index
    %71 = memref.load %arg1[%c8] : memref<100xf32, #tpu.memory_space<smem>>
    %72 = vector.extract_strided_slice %29 {offsets = [1, 0], sizes = [16, 16], strides = [1, 1]} : vector<20x16xf32> to vector<16x16xf32>
    %73 = vector.broadcast %71 : f32 to vector<16x16xf32>
    %74 = arith.mulf %73, %72 : vector<16x16xf32>
    %75 = arith.addf %70, %74 : vector<16x16xf32>
    %c9 = arith.constant 9 : index
    %76 = memref.load %arg1[%c9] : memref<100xf32, #tpu.memory_space<smem>>
    %77 = vector.extract_strided_slice %30 {offsets = [1, 0], sizes = [16, 16], strides = [1, 1]} : vector<20x16xf32> to vector<16x16xf32>
    %78 = vector.broadcast %76 : f32 to vector<16x16xf32>
    %79 = arith.mulf %78, %77 : vector<16x16xf32>
    %80 = arith.addf %75, %79 : vector<16x16xf32>
    %c10 = arith.constant 10 : index
    %81 = memref.load %arg1[%c10] : memref<100xf32, #tpu.memory_space<smem>>
    %82 = vector.extract_strided_slice %26 {offsets = [2, 0], sizes = [16, 16], strides = [1, 1]} : vector<20x16xf32> to vector<16x16xf32>
    %83 = vector.broadcast %81 : f32 to vector<16x16xf32>
    %84 = arith.mulf %83, %82 : vector<16x16xf32>
    %85 = arith.addf %80, %84 : vector<16x16xf32>
    %c11 = arith.constant 11 : index
    %86 = memref.load %arg1[%c11] : memref<100xf32, #tpu.memory_space<smem>>
    %87 = vector.extract_strided_slice %27 {offsets = [2, 0], sizes = [16, 16], strides = [1, 1]} : vector<20x16xf32> to vector<16x16xf32>
    %88 = vector.broadcast %86 : f32 to vector<16x16xf32>
    %89 = arith.mulf %88, %87 : vector<16x16xf32>
    %90 = arith.addf %85, %89 : vector<16x16xf32>
    %c12 = arith.constant 12 : index
    %91 = memref.load %arg1[%c12] : memref<100xf32, #tpu.memory_space<smem>>
    %92 = vector.extract_strided_slice %28 {offsets = [2, 0], sizes = [16, 16], strides = [1, 1]} : vector<20x16xf32> to vector<16x16xf32>
    %93 = vector.broadcast %91 : f32 to vector<16x16xf32>
    %94 = arith.mulf %93, %92 : vector<16x16xf32>
    %95 = arith.addf %90, %94 : vector<16x16xf32>
    %c13 = arith.constant 13 : index
    %96 = memref.load %arg1[%c13] : memref<100xf32, #tpu.memory_space<smem>>
    %97 = vector.extract_strided_slice %29 {offsets = [2, 0], sizes = [16, 16], strides = [1, 1]} : vector<20x16xf32> to vector<16x16xf32>
    %98 = vector.broadcast %96 : f32 to vector<16x16xf32>
    %99 = arith.mulf %98, %97 : vector<16x16xf32>
    %100 = arith.addf %95, %99 : vector<16x16xf32>
    %c14 = arith.constant 14 : index
    %101 = memref.load %arg1[%c14] : memref<100xf32, #tpu.memory_space<smem>>
    %102 = vector.extract_strided_slice %30 {offsets = [2, 0], sizes = [16, 16], strides = [1, 1]} : vector<20x16xf32> to vector<16x16xf32>
    %103 = vector.broadcast %101 : f32 to vector<16x16xf32>
    %104 = arith.mulf %103, %102 : vector<16x16xf32>
    %105 = arith.addf %100, %104 : vector<16x16xf32>
    %c15 = arith.constant 15 : index
    %106 = memref.load %arg1[%c15] : memref<100xf32, #tpu.memory_space<smem>>
    %107 = vector.extract_strided_slice %26 {offsets = [3, 0], sizes = [16, 16], strides = [1, 1]} : vector<20x16xf32> to vector<16x16xf32>
    %108 = vector.broadcast %106 : f32 to vector<16x16xf32>
    %109 = arith.mulf %108, %107 : vector<16x16xf32>
    %110 = arith.addf %105, %109 : vector<16x16xf32>
    %c16 = arith.constant 16 : index
    %111 = memref.load %arg1[%c16] : memref<100xf32, #tpu.memory_space<smem>>
    %112 = vector.extract_strided_slice %27 {offsets = [3, 0], sizes = [16, 16], strides = [1, 1]} : vector<20x16xf32> to vector<16x16xf32>
    %113 = vector.broadcast %111 : f32 to vector<16x16xf32>
    %114 = arith.mulf %113, %112 : vector<16x16xf32>
    %115 = arith.addf %110, %114 : vector<16x16xf32>
    %c17 = arith.constant 17 : index
    %116 = memref.load %arg1[%c17] : memref<100xf32, #tpu.memory_space<smem>>
    %117 = vector.extract_strided_slice %28 {offsets = [3, 0], sizes = [16, 16], strides = [1, 1]} : vector<20x16xf32> to vector<16x16xf32>
    %118 = vector.broadcast %116 : f32 to vector<16x16xf32>
    %119 = arith.mulf %118, %117 : vector<16x16xf32>
    %120 = arith.addf %115, %119 : vector<16x16xf32>
    %c18 = arith.constant 18 : index
    %121 = memref.load %arg1[%c18] : memref<100xf32, #tpu.memory_space<smem>>
    %122 = vector.extract_strided_slice %29 {offsets = [3, 0], sizes = [16, 16], strides = [1, 1]} : vector<20x16xf32> to vector<16x16xf32>
    %123 = vector.broadcast %121 : f32 to vector<16x16xf32>
    %124 = arith.mulf %123, %122 : vector<16x16xf32>
    %125 = arith.addf %120, %124 : vector<16x16xf32>
    %c19 = arith.constant 19 : index
    %126 = memref.load %arg1[%c19] : memref<100xf32, #tpu.memory_space<smem>>
    %127 = vector.extract_strided_slice %30 {offsets = [3, 0], sizes = [16, 16], strides = [1, 1]} : vector<20x16xf32> to vector<16x16xf32>
    %128 = vector.broadcast %126 : f32 to vector<16x16xf32>
    %129 = arith.mulf %128, %127 : vector<16x16xf32>
    %130 = arith.addf %125, %129 : vector<16x16xf32>
    %c20 = arith.constant 20 : index
    %131 = memref.load %arg1[%c20] : memref<100xf32, #tpu.memory_space<smem>>
    %132 = vector.extract_strided_slice %26 {offsets = [4, 0], sizes = [16, 16], strides = [1, 1]} : vector<20x16xf32> to vector<16x16xf32>
    %133 = vector.broadcast %131 : f32 to vector<16x16xf32>
    %134 = arith.mulf %133, %132 : vector<16x16xf32>
    %135 = arith.addf %130, %134 : vector<16x16xf32>
    %c21 = arith.constant 21 : index
    %136 = memref.load %arg1[%c21] : memref<100xf32, #tpu.memory_space<smem>>
    %137 = vector.extract_strided_slice %27 {offsets = [4, 0], sizes = [16, 16], strides = [1, 1]} : vector<20x16xf32> to vector<16x16xf32>
    %138 = vector.broadcast %136 : f32 to vector<16x16xf32>
    %139 = arith.mulf %138, %137 : vector<16x16xf32>
    %140 = arith.addf %135, %139 : vector<16x16xf32>
    %c22 = arith.constant 22 : index
    %141 = memref.load %arg1[%c22] : memref<100xf32, #tpu.memory_space<smem>>
    %142 = vector.extract_strided_slice %28 {offsets = [4, 0], sizes = [16, 16], strides = [1, 1]} : vector<20x16xf32> to vector<16x16xf32>
    %143 = vector.broadcast %141 : f32 to vector<16x16xf32>
    %144 = arith.mulf %143, %142 : vector<16x16xf32>
    %145 = arith.addf %140, %144 : vector<16x16xf32>
    %c23 = arith.constant 23 : index
    %146 = memref.load %arg1[%c23] : memref<100xf32, #tpu.memory_space<smem>>
    %147 = vector.extract_strided_slice %29 {offsets = [4, 0], sizes = [16, 16], strides = [1, 1]} : vector<20x16xf32> to vector<16x16xf32>
    %148 = vector.broadcast %146 : f32 to vector<16x16xf32>
    %149 = arith.mulf %148, %147 : vector<16x16xf32>
    %150 = arith.addf %145, %149 : vector<16x16xf32>
    %c24 = arith.constant 24 : index
    %151 = memref.load %arg1[%c24] : memref<100xf32, #tpu.memory_space<smem>>
    %152 = vector.extract_strided_slice %30 {offsets = [4, 0], sizes = [16, 16], strides = [1, 1]} : vector<20x16xf32> to vector<16x16xf32>
    %153 = vector.broadcast %151 : f32 to vector<16x16xf32>
    %154 = arith.mulf %153, %152 : vector<16x16xf32>
    %155 = arith.addf %150, %154 : vector<16x16xf32>
    %c1_35 = arith.constant 1 : index
    %c0_36 = arith.constant 0 : index
    %c0_37 = arith.constant 0 : index
    %156 = vector.load %arg6[%c1_35, %c0_36, %c0_37] : memref<4x20x20xf32, #tpu.memory_space<vmem>>, vector<1x20x20xf32>
    %157 = vector.shape_cast %156 : vector<1x20x20xf32> to vector<20x20xf32>
    %158 = vector.extract_strided_slice %157 {offsets = [0, 0], sizes = [20, 16], strides = [1, 1]} : vector<20x20xf32> to vector<20x16xf32>
    %159 = vector.extract_strided_slice %157 {offsets = [0, 1], sizes = [20, 16], strides = [1, 1]} : vector<20x20xf32> to vector<20x16xf32>
    %160 = vector.extract_strided_slice %157 {offsets = [0, 2], sizes = [20, 16], strides = [1, 1]} : vector<20x20xf32> to vector<20x16xf32>
    %161 = vector.extract_strided_slice %157 {offsets = [0, 3], sizes = [20, 16], strides = [1, 1]} : vector<20x20xf32> to vector<20x16xf32>
    %162 = vector.extract_strided_slice %157 {offsets = [0, 4], sizes = [20, 16], strides = [1, 1]} : vector<20x20xf32> to vector<20x16xf32>
    %c25 = arith.constant 25 : index
    %163 = memref.load %arg1[%c25] : memref<100xf32, #tpu.memory_space<smem>>
    %164 = vector.extract_strided_slice %158 {offsets = [0, 0], sizes = [16, 16], strides = [1, 1]} : vector<20x16xf32> to vector<16x16xf32>
    %165 = vector.broadcast %163 : f32 to vector<16x16xf32>
    %166 = arith.mulf %165, %164 : vector<16x16xf32>
    %167 = arith.addf %155, %166 : vector<16x16xf32>
    %c26 = arith.constant 26 : index
    %168 = memref.load %arg1[%c26] : memref<100xf32, #tpu.memory_space<smem>>
    %169 = vector.extract_strided_slice %159 {offsets = [0, 0], sizes = [16, 16], strides = [1, 1]} : vector<20x16xf32> to vector<16x16xf32>
    %170 = vector.broadcast %168 : f32 to vector<16x16xf32>
    %171 = arith.mulf %170, %169 : vector<16x16xf32>
    %172 = arith.addf %167, %171 : vector<16x16xf32>
    %c27 = arith.constant 27 : index
    %173 = memref.load %arg1[%c27] : memref<100xf32, #tpu.memory_space<smem>>
    %174 = vector.extract_strided_slice %160 {offsets = [0, 0], sizes = [16, 16], strides = [1, 1]} : vector<20x16xf32> to vector<16x16xf32>
    %175 = vector.broadcast %173 : f32 to vector<16x16xf32>
    %176 = arith.mulf %175, %174 : vector<16x16xf32>
    %177 = arith.addf %172, %176 : vector<16x16xf32>
    %c28 = arith.constant 28 : index
    %178 = memref.load %arg1[%c28] : memref<100xf32, #tpu.memory_space<smem>>
    %179 = vector.extract_strided_slice %161 {offsets = [0, 0], sizes = [16, 16], strides = [1, 1]} : vector<20x16xf32> to vector<16x16xf32>
    %180 = vector.broadcast %178 : f32 to vector<16x16xf32>
    %181 = arith.mulf %180, %179 : vector<16x16xf32>
    %182 = arith.addf %177, %181 : vector<16x16xf32>
    %c29 = arith.constant 29 : index
    %183 = memref.load %arg1[%c29] : memref<100xf32, #tpu.memory_space<smem>>
    %184 = vector.extract_strided_slice %162 {offsets = [0, 0], sizes = [16, 16], strides = [1, 1]} : vector<20x16xf32> to vector<16x16xf32>
    %185 = vector.broadcast %183 : f32 to vector<16x16xf32>
    %186 = arith.mulf %185, %184 : vector<16x16xf32>
    %187 = arith.addf %182, %186 : vector<16x16xf32>
    %c30 = arith.constant 30 : index
    %188 = memref.load %arg1[%c30] : memref<100xf32, #tpu.memory_space<smem>>
    %189 = vector.extract_strided_slice %158 {offsets = [1, 0], sizes = [16, 16], strides = [1, 1]} : vector<20x16xf32> to vector<16x16xf32>
    %190 = vector.broadcast %188 : f32 to vector<16x16xf32>
    %191 = arith.mulf %190, %189 : vector<16x16xf32>
    %192 = arith.addf %187, %191 : vector<16x16xf32>
    %c31 = arith.constant 31 : index
    %193 = memref.load %arg1[%c31] : memref<100xf32, #tpu.memory_space<smem>>
    %194 = vector.extract_strided_slice %159 {offsets = [1, 0], sizes = [16, 16], strides = [1, 1]} : vector<20x16xf32> to vector<16x16xf32>
    %195 = vector.broadcast %193 : f32 to vector<16x16xf32>
    %196 = arith.mulf %195, %194 : vector<16x16xf32>
    %197 = arith.addf %192, %196 : vector<16x16xf32>
    %c32 = arith.constant 32 : index
    %198 = memref.load %arg1[%c32] : memref<100xf32, #tpu.memory_space<smem>>
    %199 = vector.extract_strided_slice %160 {offsets = [1, 0], sizes = [16, 16], strides = [1, 1]} : vector<20x16xf32> to vector<16x16xf32>
    %200 = vector.broadcast %198 : f32 to vector<16x16xf32>
    %201 = arith.mulf %200, %199 : vector<16x16xf32>
    %202 = arith.addf %197, %201 : vector<16x16xf32>
    %c33 = arith.constant 33 : index
    %203 = memref.load %arg1[%c33] : memref<100xf32, #tpu.memory_space<smem>>
    %204 = vector.extract_strided_slice %161 {offsets = [1, 0], sizes = [16, 16], strides = [1, 1]} : vector<20x16xf32> to vector<16x16xf32>
    %205 = vector.broadcast %203 : f32 to vector<16x16xf32>
    %206 = arith.mulf %205, %204 : vector<16x16xf32>
    %207 = arith.addf %202, %206 : vector<16x16xf32>
    %c34 = arith.constant 34 : index
    %208 = memref.load %arg1[%c34] : memref<100xf32, #tpu.memory_space<smem>>
    %209 = vector.extract_strided_slice %162 {offsets = [1, 0], sizes = [16, 16], strides = [1, 1]} : vector<20x16xf32> to vector<16x16xf32>
    %210 = vector.broadcast %208 : f32 to vector<16x16xf32>
    %211 = arith.mulf %210, %209 : vector<16x16xf32>
    %212 = arith.addf %207, %211 : vector<16x16xf32>
    %c35 = arith.constant 35 : index
    %213 = memref.load %arg1[%c35] : memref<100xf32, #tpu.memory_space<smem>>
    %214 = vector.extract_strided_slice %158 {offsets = [2, 0], sizes = [16, 16], strides = [1, 1]} : vector<20x16xf32> to vector<16x16xf32>
    %215 = vector.broadcast %213 : f32 to vector<16x16xf32>
    %216 = arith.mulf %215, %214 : vector<16x16xf32>
    %217 = arith.addf %212, %216 : vector<16x16xf32>
    %c36 = arith.constant 36 : index
    %218 = memref.load %arg1[%c36] : memref<100xf32, #tpu.memory_space<smem>>
    %219 = vector.extract_strided_slice %159 {offsets = [2, 0], sizes = [16, 16], strides = [1, 1]} : vector<20x16xf32> to vector<16x16xf32>
    %220 = vector.broadcast %218 : f32 to vector<16x16xf32>
    %221 = arith.mulf %220, %219 : vector<16x16xf32>
    %222 = arith.addf %217, %221 : vector<16x16xf32>
    %c37 = arith.constant 37 : index
    %223 = memref.load %arg1[%c37] : memref<100xf32, #tpu.memory_space<smem>>
    %224 = vector.extract_strided_slice %160 {offsets = [2, 0], sizes = [16, 16], strides = [1, 1]} : vector<20x16xf32> to vector<16x16xf32>
    %225 = vector.broadcast %223 : f32 to vector<16x16xf32>
    %226 = arith.mulf %225, %224 : vector<16x16xf32>
    %227 = arith.addf %222, %226 : vector<16x16xf32>
    %c38 = arith.constant 38 : index
    %228 = memref.load %arg1[%c38] : memref<100xf32, #tpu.memory_space<smem>>
    %229 = vector.extract_strided_slice %161 {offsets = [2, 0], sizes = [16, 16], strides = [1, 1]} : vector<20x16xf32> to vector<16x16xf32>
    %230 = vector.broadcast %228 : f32 to vector<16x16xf32>
    %231 = arith.mulf %230, %229 : vector<16x16xf32>
    %232 = arith.addf %227, %231 : vector<16x16xf32>
    %c39 = arith.constant 39 : index
    %233 = memref.load %arg1[%c39] : memref<100xf32, #tpu.memory_space<smem>>
    %234 = vector.extract_strided_slice %162 {offsets = [2, 0], sizes = [16, 16], strides = [1, 1]} : vector<20x16xf32> to vector<16x16xf32>
    %235 = vector.broadcast %233 : f32 to vector<16x16xf32>
    %236 = arith.mulf %235, %234 : vector<16x16xf32>
    %237 = arith.addf %232, %236 : vector<16x16xf32>
    %c40 = arith.constant 40 : index
    %238 = memref.load %arg1[%c40] : memref<100xf32, #tpu.memory_space<smem>>
    %239 = vector.extract_strided_slice %158 {offsets = [3, 0], sizes = [16, 16], strides = [1, 1]} : vector<20x16xf32> to vector<16x16xf32>
    %240 = vector.broadcast %238 : f32 to vector<16x16xf32>
    %241 = arith.mulf %240, %239 : vector<16x16xf32>
    %242 = arith.addf %237, %241 : vector<16x16xf32>
    %c41 = arith.constant 41 : index
    %243 = memref.load %arg1[%c41] : memref<100xf32, #tpu.memory_space<smem>>
    %244 = vector.extract_strided_slice %159 {offsets = [3, 0], sizes = [16, 16], strides = [1, 1]} : vector<20x16xf32> to vector<16x16xf32>
    %245 = vector.broadcast %243 : f32 to vector<16x16xf32>
    %246 = arith.mulf %245, %244 : vector<16x16xf32>
    %247 = arith.addf %242, %246 : vector<16x16xf32>
    %c42 = arith.constant 42 : index
    %248 = memref.load %arg1[%c42] : memref<100xf32, #tpu.memory_space<smem>>
    %249 = vector.extract_strided_slice %160 {offsets = [3, 0], sizes = [16, 16], strides = [1, 1]} : vector<20x16xf32> to vector<16x16xf32>
    %250 = vector.broadcast %248 : f32 to vector<16x16xf32>
    %251 = arith.mulf %250, %249 : vector<16x16xf32>
    %252 = arith.addf %247, %251 : vector<16x16xf32>
    %c43 = arith.constant 43 : index
    %253 = memref.load %arg1[%c43] : memref<100xf32, #tpu.memory_space<smem>>
    %254 = vector.extract_strided_slice %161 {offsets = [3, 0], sizes = [16, 16], strides = [1, 1]} : vector<20x16xf32> to vector<16x16xf32>
    %255 = vector.broadcast %253 : f32 to vector<16x16xf32>
    %256 = arith.mulf %255, %254 : vector<16x16xf32>
    %257 = arith.addf %252, %256 : vector<16x16xf32>
    %c44 = arith.constant 44 : index
    %258 = memref.load %arg1[%c44] : memref<100xf32, #tpu.memory_space<smem>>
    %259 = vector.extract_strided_slice %162 {offsets = [3, 0], sizes = [16, 16], strides = [1, 1]} : vector<20x16xf32> to vector<16x16xf32>
    %260 = vector.broadcast %258 : f32 to vector<16x16xf32>
    %261 = arith.mulf %260, %259 : vector<16x16xf32>
    %262 = arith.addf %257, %261 : vector<16x16xf32>
    %c45 = arith.constant 45 : index
    %263 = memref.load %arg1[%c45] : memref<100xf32, #tpu.memory_space<smem>>
    %264 = vector.extract_strided_slice %158 {offsets = [4, 0], sizes = [16, 16], strides = [1, 1]} : vector<20x16xf32> to vector<16x16xf32>
    %265 = vector.broadcast %263 : f32 to vector<16x16xf32>
    %266 = arith.mulf %265, %264 : vector<16x16xf32>
    %267 = arith.addf %262, %266 : vector<16x16xf32>
    %c46 = arith.constant 46 : index
    %268 = memref.load %arg1[%c46] : memref<100xf32, #tpu.memory_space<smem>>
    %269 = vector.extract_strided_slice %159 {offsets = [4, 0], sizes = [16, 16], strides = [1, 1]} : vector<20x16xf32> to vector<16x16xf32>
    %270 = vector.broadcast %268 : f32 to vector<16x16xf32>
    %271 = arith.mulf %270, %269 : vector<16x16xf32>
    %272 = arith.addf %267, %271 : vector<16x16xf32>
    %c47 = arith.constant 47 : index
    %273 = memref.load %arg1[%c47] : memref<100xf32, #tpu.memory_space<smem>>
    %274 = vector.extract_strided_slice %160 {offsets = [4, 0], sizes = [16, 16], strides = [1, 1]} : vector<20x16xf32> to vector<16x16xf32>
    %275 = vector.broadcast %273 : f32 to vector<16x16xf32>
    %276 = arith.mulf %275, %274 : vector<16x16xf32>
    %277 = arith.addf %272, %276 : vector<16x16xf32>
    %c48 = arith.constant 48 : index
    %278 = memref.load %arg1[%c48] : memref<100xf32, #tpu.memory_space<smem>>
    %279 = vector.extract_strided_slice %161 {offsets = [4, 0], sizes = [16, 16], strides = [1, 1]} : vector<20x16xf32> to vector<16x16xf32>
    %280 = vector.broadcast %278 : f32 to vector<16x16xf32>
    %281 = arith.mulf %280, %279 : vector<16x16xf32>
    %282 = arith.addf %277, %281 : vector<16x16xf32>
    %c49 = arith.constant 49 : index
    %283 = memref.load %arg1[%c49] : memref<100xf32, #tpu.memory_space<smem>>
    %284 = vector.extract_strided_slice %162 {offsets = [4, 0], sizes = [16, 16], strides = [1, 1]} : vector<20x16xf32> to vector<16x16xf32>
    %285 = vector.broadcast %283 : f32 to vector<16x16xf32>
    %286 = arith.mulf %285, %284 : vector<16x16xf32>
    %287 = arith.addf %282, %286 : vector<16x16xf32>
    %c2_38 = arith.constant 2 : index
    %c0_39 = arith.constant 0 : index
    %c0_40 = arith.constant 0 : index
    %288 = vector.load %arg6[%c2_38, %c0_39, %c0_40] : memref<4x20x20xf32, #tpu.memory_space<vmem>>, vector<1x20x20xf32>
    %289 = vector.shape_cast %288 : vector<1x20x20xf32> to vector<20x20xf32>
    %290 = vector.extract_strided_slice %289 {offsets = [0, 0], sizes = [20, 16], strides = [1, 1]} : vector<20x20xf32> to vector<20x16xf32>
    %291 = vector.extract_strided_slice %289 {offsets = [0, 1], sizes = [20, 16], strides = [1, 1]} : vector<20x20xf32> to vector<20x16xf32>
    %292 = vector.extract_strided_slice %289 {offsets = [0, 2], sizes = [20, 16], strides = [1, 1]} : vector<20x20xf32> to vector<20x16xf32>
    %293 = vector.extract_strided_slice %289 {offsets = [0, 3], sizes = [20, 16], strides = [1, 1]} : vector<20x20xf32> to vector<20x16xf32>
    %294 = vector.extract_strided_slice %289 {offsets = [0, 4], sizes = [20, 16], strides = [1, 1]} : vector<20x20xf32> to vector<20x16xf32>
    %c50 = arith.constant 50 : index
    %295 = memref.load %arg1[%c50] : memref<100xf32, #tpu.memory_space<smem>>
    %296 = vector.extract_strided_slice %290 {offsets = [0, 0], sizes = [16, 16], strides = [1, 1]} : vector<20x16xf32> to vector<16x16xf32>
    %297 = vector.broadcast %295 : f32 to vector<16x16xf32>
    %298 = arith.mulf %297, %296 : vector<16x16xf32>
    %299 = arith.addf %287, %298 : vector<16x16xf32>
    %c51 = arith.constant 51 : index
    %300 = memref.load %arg1[%c51] : memref<100xf32, #tpu.memory_space<smem>>
    %301 = vector.extract_strided_slice %291 {offsets = [0, 0], sizes = [16, 16], strides = [1, 1]} : vector<20x16xf32> to vector<16x16xf32>
    %302 = vector.broadcast %300 : f32 to vector<16x16xf32>
    %303 = arith.mulf %302, %301 : vector<16x16xf32>
    %304 = arith.addf %299, %303 : vector<16x16xf32>
    %c52 = arith.constant 52 : index
    %305 = memref.load %arg1[%c52] : memref<100xf32, #tpu.memory_space<smem>>
    %306 = vector.extract_strided_slice %292 {offsets = [0, 0], sizes = [16, 16], strides = [1, 1]} : vector<20x16xf32> to vector<16x16xf32>
    %307 = vector.broadcast %305 : f32 to vector<16x16xf32>
    %308 = arith.mulf %307, %306 : vector<16x16xf32>
    %309 = arith.addf %304, %308 : vector<16x16xf32>
    %c53 = arith.constant 53 : index
    %310 = memref.load %arg1[%c53] : memref<100xf32, #tpu.memory_space<smem>>
    %311 = vector.extract_strided_slice %293 {offsets = [0, 0], sizes = [16, 16], strides = [1, 1]} : vector<20x16xf32> to vector<16x16xf32>
    %312 = vector.broadcast %310 : f32 to vector<16x16xf32>
    %313 = arith.mulf %312, %311 : vector<16x16xf32>
    %314 = arith.addf %309, %313 : vector<16x16xf32>
    %c54 = arith.constant 54 : index
    %315 = memref.load %arg1[%c54] : memref<100xf32, #tpu.memory_space<smem>>
    %316 = vector.extract_strided_slice %294 {offsets = [0, 0], sizes = [16, 16], strides = [1, 1]} : vector<20x16xf32> to vector<16x16xf32>
    %317 = vector.broadcast %315 : f32 to vector<16x16xf32>
    %318 = arith.mulf %317, %316 : vector<16x16xf32>
    %319 = arith.addf %314, %318 : vector<16x16xf32>
    %c55 = arith.constant 55 : index
    %320 = memref.load %arg1[%c55] : memref<100xf32, #tpu.memory_space<smem>>
    %321 = vector.extract_strided_slice %290 {offsets = [1, 0], sizes = [16, 16], strides = [1, 1]} : vector<20x16xf32> to vector<16x16xf32>
    %322 = vector.broadcast %320 : f32 to vector<16x16xf32>
    %323 = arith.mulf %322, %321 : vector<16x16xf32>
    %324 = arith.addf %319, %323 : vector<16x16xf32>
    %c56 = arith.constant 56 : index
    %325 = memref.load %arg1[%c56] : memref<100xf32, #tpu.memory_space<smem>>
    %326 = vector.extract_strided_slice %291 {offsets = [1, 0], sizes = [16, 16], strides = [1, 1]} : vector<20x16xf32> to vector<16x16xf32>
    %327 = vector.broadcast %325 : f32 to vector<16x16xf32>
    %328 = arith.mulf %327, %326 : vector<16x16xf32>
    %329 = arith.addf %324, %328 : vector<16x16xf32>
    %c57 = arith.constant 57 : index
    %330 = memref.load %arg1[%c57] : memref<100xf32, #tpu.memory_space<smem>>
    %331 = vector.extract_strided_slice %292 {offsets = [1, 0], sizes = [16, 16], strides = [1, 1]} : vector<20x16xf32> to vector<16x16xf32>
    %332 = vector.broadcast %330 : f32 to vector<16x16xf32>
    %333 = arith.mulf %332, %331 : vector<16x16xf32>
    %334 = arith.addf %329, %333 : vector<16x16xf32>
    %c58 = arith.constant 58 : index
    %335 = memref.load %arg1[%c58] : memref<100xf32, #tpu.memory_space<smem>>
    %336 = vector.extract_strided_slice %293 {offsets = [1, 0], sizes = [16, 16], strides = [1, 1]} : vector<20x16xf32> to vector<16x16xf32>
    %337 = vector.broadcast %335 : f32 to vector<16x16xf32>
    %338 = arith.mulf %337, %336 : vector<16x16xf32>
    %339 = arith.addf %334, %338 : vector<16x16xf32>
    %c59 = arith.constant 59 : index
    %340 = memref.load %arg1[%c59] : memref<100xf32, #tpu.memory_space<smem>>
    %341 = vector.extract_strided_slice %294 {offsets = [1, 0], sizes = [16, 16], strides = [1, 1]} : vector<20x16xf32> to vector<16x16xf32>
    %342 = vector.broadcast %340 : f32 to vector<16x16xf32>
    %343 = arith.mulf %342, %341 : vector<16x16xf32>
    %344 = arith.addf %339, %343 : vector<16x16xf32>
    %c60 = arith.constant 60 : index
    %345 = memref.load %arg1[%c60] : memref<100xf32, #tpu.memory_space<smem>>
    %346 = vector.extract_strided_slice %290 {offsets = [2, 0], sizes = [16, 16], strides = [1, 1]} : vector<20x16xf32> to vector<16x16xf32>
    %347 = vector.broadcast %345 : f32 to vector<16x16xf32>
    %348 = arith.mulf %347, %346 : vector<16x16xf32>
    %349 = arith.addf %344, %348 : vector<16x16xf32>
    %c61 = arith.constant 61 : index
    %350 = memref.load %arg1[%c61] : memref<100xf32, #tpu.memory_space<smem>>
    %351 = vector.extract_strided_slice %291 {offsets = [2, 0], sizes = [16, 16], strides = [1, 1]} : vector<20x16xf32> to vector<16x16xf32>
    %352 = vector.broadcast %350 : f32 to vector<16x16xf32>
    %353 = arith.mulf %352, %351 : vector<16x16xf32>
    %354 = arith.addf %349, %353 : vector<16x16xf32>
    %c62 = arith.constant 62 : index
    %355 = memref.load %arg1[%c62] : memref<100xf32, #tpu.memory_space<smem>>
    %356 = vector.extract_strided_slice %292 {offsets = [2, 0], sizes = [16, 16], strides = [1, 1]} : vector<20x16xf32> to vector<16x16xf32>
    %357 = vector.broadcast %355 : f32 to vector<16x16xf32>
    %358 = arith.mulf %357, %356 : vector<16x16xf32>
    %359 = arith.addf %354, %358 : vector<16x16xf32>
    %c63 = arith.constant 63 : index
    %360 = memref.load %arg1[%c63] : memref<100xf32, #tpu.memory_space<smem>>
    %361 = vector.extract_strided_slice %293 {offsets = [2, 0], sizes = [16, 16], strides = [1, 1]} : vector<20x16xf32> to vector<16x16xf32>
    %362 = vector.broadcast %360 : f32 to vector<16x16xf32>
    %363 = arith.mulf %362, %361 : vector<16x16xf32>
    %364 = arith.addf %359, %363 : vector<16x16xf32>
    %c64 = arith.constant 64 : index
    %365 = memref.load %arg1[%c64] : memref<100xf32, #tpu.memory_space<smem>>
    %366 = vector.extract_strided_slice %294 {offsets = [2, 0], sizes = [16, 16], strides = [1, 1]} : vector<20x16xf32> to vector<16x16xf32>
    %367 = vector.broadcast %365 : f32 to vector<16x16xf32>
    %368 = arith.mulf %367, %366 : vector<16x16xf32>
    %369 = arith.addf %364, %368 : vector<16x16xf32>
    %c65 = arith.constant 65 : index
    %370 = memref.load %arg1[%c65] : memref<100xf32, #tpu.memory_space<smem>>
    %371 = vector.extract_strided_slice %290 {offsets = [3, 0], sizes = [16, 16], strides = [1, 1]} : vector<20x16xf32> to vector<16x16xf32>
    %372 = vector.broadcast %370 : f32 to vector<16x16xf32>
    %373 = arith.mulf %372, %371 : vector<16x16xf32>
    %374 = arith.addf %369, %373 : vector<16x16xf32>
    %c66 = arith.constant 66 : index
    %375 = memref.load %arg1[%c66] : memref<100xf32, #tpu.memory_space<smem>>
    %376 = vector.extract_strided_slice %291 {offsets = [3, 0], sizes = [16, 16], strides = [1, 1]} : vector<20x16xf32> to vector<16x16xf32>
    %377 = vector.broadcast %375 : f32 to vector<16x16xf32>
    %378 = arith.mulf %377, %376 : vector<16x16xf32>
    %379 = arith.addf %374, %378 : vector<16x16xf32>
    %c67 = arith.constant 67 : index
    %380 = memref.load %arg1[%c67] : memref<100xf32, #tpu.memory_space<smem>>
    %381 = vector.extract_strided_slice %292 {offsets = [3, 0], sizes = [16, 16], strides = [1, 1]} : vector<20x16xf32> to vector<16x16xf32>
    %382 = vector.broadcast %380 : f32 to vector<16x16xf32>
    %383 = arith.mulf %382, %381 : vector<16x16xf32>
    %384 = arith.addf %379, %383 : vector<16x16xf32>
    %c68 = arith.constant 68 : index
    %385 = memref.load %arg1[%c68] : memref<100xf32, #tpu.memory_space<smem>>
    %386 = vector.extract_strided_slice %293 {offsets = [3, 0], sizes = [16, 16], strides = [1, 1]} : vector<20x16xf32> to vector<16x16xf32>
    %387 = vector.broadcast %385 : f32 to vector<16x16xf32>
    %388 = arith.mulf %387, %386 : vector<16x16xf32>
    %389 = arith.addf %384, %388 : vector<16x16xf32>
    %c69 = arith.constant 69 : index
    %390 = memref.load %arg1[%c69] : memref<100xf32, #tpu.memory_space<smem>>
    %391 = vector.extract_strided_slice %294 {offsets = [3, 0], sizes = [16, 16], strides = [1, 1]} : vector<20x16xf32> to vector<16x16xf32>
    %392 = vector.broadcast %390 : f32 to vector<16x16xf32>
    %393 = arith.mulf %392, %391 : vector<16x16xf32>
    %394 = arith.addf %389, %393 : vector<16x16xf32>
    %c70 = arith.constant 70 : index
    %395 = memref.load %arg1[%c70] : memref<100xf32, #tpu.memory_space<smem>>
    %396 = vector.extract_strided_slice %290 {offsets = [4, 0], sizes = [16, 16], strides = [1, 1]} : vector<20x16xf32> to vector<16x16xf32>
    %397 = vector.broadcast %395 : f32 to vector<16x16xf32>
    %398 = arith.mulf %397, %396 : vector<16x16xf32>
    %399 = arith.addf %394, %398 : vector<16x16xf32>
    %c71 = arith.constant 71 : index
    %400 = memref.load %arg1[%c71] : memref<100xf32, #tpu.memory_space<smem>>
    %401 = vector.extract_strided_slice %291 {offsets = [4, 0], sizes = [16, 16], strides = [1, 1]} : vector<20x16xf32> to vector<16x16xf32>
    %402 = vector.broadcast %400 : f32 to vector<16x16xf32>
    %403 = arith.mulf %402, %401 : vector<16x16xf32>
    %404 = arith.addf %399, %403 : vector<16x16xf32>
    %c72 = arith.constant 72 : index
    %405 = memref.load %arg1[%c72] : memref<100xf32, #tpu.memory_space<smem>>
    %406 = vector.extract_strided_slice %292 {offsets = [4, 0], sizes = [16, 16], strides = [1, 1]} : vector<20x16xf32> to vector<16x16xf32>
    %407 = vector.broadcast %405 : f32 to vector<16x16xf32>
    %408 = arith.mulf %407, %406 : vector<16x16xf32>
    %409 = arith.addf %404, %408 : vector<16x16xf32>
    %c73 = arith.constant 73 : index
    %410 = memref.load %arg1[%c73] : memref<100xf32, #tpu.memory_space<smem>>
    %411 = vector.extract_strided_slice %293 {offsets = [4, 0], sizes = [16, 16], strides = [1, 1]} : vector<20x16xf32> to vector<16x16xf32>
    %412 = vector.broadcast %410 : f32 to vector<16x16xf32>
    %413 = arith.mulf %412, %411 : vector<16x16xf32>
    %414 = arith.addf %409, %413 : vector<16x16xf32>
    %c74 = arith.constant 74 : index
    %415 = memref.load %arg1[%c74] : memref<100xf32, #tpu.memory_space<smem>>
    %416 = vector.extract_strided_slice %294 {offsets = [4, 0], sizes = [16, 16], strides = [1, 1]} : vector<20x16xf32> to vector<16x16xf32>
    %417 = vector.broadcast %415 : f32 to vector<16x16xf32>
    %418 = arith.mulf %417, %416 : vector<16x16xf32>
    %419 = arith.addf %414, %418 : vector<16x16xf32>
    %c3_41 = arith.constant 3 : index
    %c0_42 = arith.constant 0 : index
    %c0_43 = arith.constant 0 : index
    %420 = vector.load %arg6[%c3_41, %c0_42, %c0_43] : memref<4x20x20xf32, #tpu.memory_space<vmem>>, vector<1x20x20xf32>
    %421 = vector.shape_cast %420 : vector<1x20x20xf32> to vector<20x20xf32>
    %422 = vector.extract_strided_slice %421 {offsets = [0, 0], sizes = [20, 16], strides = [1, 1]} : vector<20x20xf32> to vector<20x16xf32>
    %423 = vector.extract_strided_slice %421 {offsets = [0, 1], sizes = [20, 16], strides = [1, 1]} : vector<20x20xf32> to vector<20x16xf32>
    %424 = vector.extract_strided_slice %421 {offsets = [0, 2], sizes = [20, 16], strides = [1, 1]} : vector<20x20xf32> to vector<20x16xf32>
    %425 = vector.extract_strided_slice %421 {offsets = [0, 3], sizes = [20, 16], strides = [1, 1]} : vector<20x20xf32> to vector<20x16xf32>
    %426 = vector.extract_strided_slice %421 {offsets = [0, 4], sizes = [20, 16], strides = [1, 1]} : vector<20x20xf32> to vector<20x16xf32>
    %c75 = arith.constant 75 : index
    %427 = memref.load %arg1[%c75] : memref<100xf32, #tpu.memory_space<smem>>
    %428 = vector.extract_strided_slice %422 {offsets = [0, 0], sizes = [16, 16], strides = [1, 1]} : vector<20x16xf32> to vector<16x16xf32>
    %429 = vector.broadcast %427 : f32 to vector<16x16xf32>
    %430 = arith.mulf %429, %428 : vector<16x16xf32>
    %431 = arith.addf %419, %430 : vector<16x16xf32>
    %c76 = arith.constant 76 : index
    %432 = memref.load %arg1[%c76] : memref<100xf32, #tpu.memory_space<smem>>
    %433 = vector.extract_strided_slice %423 {offsets = [0, 0], sizes = [16, 16], strides = [1, 1]} : vector<20x16xf32> to vector<16x16xf32>
    %434 = vector.broadcast %432 : f32 to vector<16x16xf32>
    %435 = arith.mulf %434, %433 : vector<16x16xf32>
    %436 = arith.addf %431, %435 : vector<16x16xf32>
    %c77 = arith.constant 77 : index
    %437 = memref.load %arg1[%c77] : memref<100xf32, #tpu.memory_space<smem>>
    %438 = vector.extract_strided_slice %424 {offsets = [0, 0], sizes = [16, 16], strides = [1, 1]} : vector<20x16xf32> to vector<16x16xf32>
    %439 = vector.broadcast %437 : f32 to vector<16x16xf32>
    %440 = arith.mulf %439, %438 : vector<16x16xf32>
    %441 = arith.addf %436, %440 : vector<16x16xf32>
    %c78 = arith.constant 78 : index
    %442 = memref.load %arg1[%c78] : memref<100xf32, #tpu.memory_space<smem>>
    %443 = vector.extract_strided_slice %425 {offsets = [0, 0], sizes = [16, 16], strides = [1, 1]} : vector<20x16xf32> to vector<16x16xf32>
    %444 = vector.broadcast %442 : f32 to vector<16x16xf32>
    %445 = arith.mulf %444, %443 : vector<16x16xf32>
    %446 = arith.addf %441, %445 : vector<16x16xf32>
    %c79 = arith.constant 79 : index
    %447 = memref.load %arg1[%c79] : memref<100xf32, #tpu.memory_space<smem>>
    %448 = vector.extract_strided_slice %426 {offsets = [0, 0], sizes = [16, 16], strides = [1, 1]} : vector<20x16xf32> to vector<16x16xf32>
    %449 = vector.broadcast %447 : f32 to vector<16x16xf32>
    %450 = arith.mulf %449, %448 : vector<16x16xf32>
    %451 = arith.addf %446, %450 : vector<16x16xf32>
    %c80 = arith.constant 80 : index
    %452 = memref.load %arg1[%c80] : memref<100xf32, #tpu.memory_space<smem>>
    %453 = vector.extract_strided_slice %422 {offsets = [1, 0], sizes = [16, 16], strides = [1, 1]} : vector<20x16xf32> to vector<16x16xf32>
    %454 = vector.broadcast %452 : f32 to vector<16x16xf32>
    %455 = arith.mulf %454, %453 : vector<16x16xf32>
    %456 = arith.addf %451, %455 : vector<16x16xf32>
    %c81 = arith.constant 81 : index
    %457 = memref.load %arg1[%c81] : memref<100xf32, #tpu.memory_space<smem>>
    %458 = vector.extract_strided_slice %423 {offsets = [1, 0], sizes = [16, 16], strides = [1, 1]} : vector<20x16xf32> to vector<16x16xf32>
    %459 = vector.broadcast %457 : f32 to vector<16x16xf32>
    %460 = arith.mulf %459, %458 : vector<16x16xf32>
    %461 = arith.addf %456, %460 : vector<16x16xf32>
    %c82 = arith.constant 82 : index
    %462 = memref.load %arg1[%c82] : memref<100xf32, #tpu.memory_space<smem>>
    %463 = vector.extract_strided_slice %424 {offsets = [1, 0], sizes = [16, 16], strides = [1, 1]} : vector<20x16xf32> to vector<16x16xf32>
    %464 = vector.broadcast %462 : f32 to vector<16x16xf32>
    %465 = arith.mulf %464, %463 : vector<16x16xf32>
    %466 = arith.addf %461, %465 : vector<16x16xf32>
    %c83 = arith.constant 83 : index
    %467 = memref.load %arg1[%c83] : memref<100xf32, #tpu.memory_space<smem>>
    %468 = vector.extract_strided_slice %425 {offsets = [1, 0], sizes = [16, 16], strides = [1, 1]} : vector<20x16xf32> to vector<16x16xf32>
    %469 = vector.broadcast %467 : f32 to vector<16x16xf32>
    %470 = arith.mulf %469, %468 : vector<16x16xf32>
    %471 = arith.addf %466, %470 : vector<16x16xf32>
    %c84 = arith.constant 84 : index
    %472 = memref.load %arg1[%c84] : memref<100xf32, #tpu.memory_space<smem>>
    %473 = vector.extract_strided_slice %426 {offsets = [1, 0], sizes = [16, 16], strides = [1, 1]} : vector<20x16xf32> to vector<16x16xf32>
    %474 = vector.broadcast %472 : f32 to vector<16x16xf32>
    %475 = arith.mulf %474, %473 : vector<16x16xf32>
    %476 = arith.addf %471, %475 : vector<16x16xf32>
    %c85 = arith.constant 85 : index
    %477 = memref.load %arg1[%c85] : memref<100xf32, #tpu.memory_space<smem>>
    %478 = vector.extract_strided_slice %422 {offsets = [2, 0], sizes = [16, 16], strides = [1, 1]} : vector<20x16xf32> to vector<16x16xf32>
    %479 = vector.broadcast %477 : f32 to vector<16x16xf32>
    %480 = arith.mulf %479, %478 : vector<16x16xf32>
    %481 = arith.addf %476, %480 : vector<16x16xf32>
    %c86 = arith.constant 86 : index
    %482 = memref.load %arg1[%c86] : memref<100xf32, #tpu.memory_space<smem>>
    %483 = vector.extract_strided_slice %423 {offsets = [2, 0], sizes = [16, 16], strides = [1, 1]} : vector<20x16xf32> to vector<16x16xf32>
    %484 = vector.broadcast %482 : f32 to vector<16x16xf32>
    %485 = arith.mulf %484, %483 : vector<16x16xf32>
    %486 = arith.addf %481, %485 : vector<16x16xf32>
    %c87 = arith.constant 87 : index
    %487 = memref.load %arg1[%c87] : memref<100xf32, #tpu.memory_space<smem>>
    %488 = vector.extract_strided_slice %424 {offsets = [2, 0], sizes = [16, 16], strides = [1, 1]} : vector<20x16xf32> to vector<16x16xf32>
    %489 = vector.broadcast %487 : f32 to vector<16x16xf32>
    %490 = arith.mulf %489, %488 : vector<16x16xf32>
    %491 = arith.addf %486, %490 : vector<16x16xf32>
    %c88 = arith.constant 88 : index
    %492 = memref.load %arg1[%c88] : memref<100xf32, #tpu.memory_space<smem>>
    %493 = vector.extract_strided_slice %425 {offsets = [2, 0], sizes = [16, 16], strides = [1, 1]} : vector<20x16xf32> to vector<16x16xf32>
    %494 = vector.broadcast %492 : f32 to vector<16x16xf32>
    %495 = arith.mulf %494, %493 : vector<16x16xf32>
    %496 = arith.addf %491, %495 : vector<16x16xf32>
    %c89 = arith.constant 89 : index
    %497 = memref.load %arg1[%c89] : memref<100xf32, #tpu.memory_space<smem>>
    %498 = vector.extract_strided_slice %426 {offsets = [2, 0], sizes = [16, 16], strides = [1, 1]} : vector<20x16xf32> to vector<16x16xf32>
    %499 = vector.broadcast %497 : f32 to vector<16x16xf32>
    %500 = arith.mulf %499, %498 : vector<16x16xf32>
    %501 = arith.addf %496, %500 : vector<16x16xf32>
    %c90 = arith.constant 90 : index
    %502 = memref.load %arg1[%c90] : memref<100xf32, #tpu.memory_space<smem>>
    %503 = vector.extract_strided_slice %422 {offsets = [3, 0], sizes = [16, 16], strides = [1, 1]} : vector<20x16xf32> to vector<16x16xf32>
    %504 = vector.broadcast %502 : f32 to vector<16x16xf32>
    %505 = arith.mulf %504, %503 : vector<16x16xf32>
    %506 = arith.addf %501, %505 : vector<16x16xf32>
    %c91 = arith.constant 91 : index
    %507 = memref.load %arg1[%c91] : memref<100xf32, #tpu.memory_space<smem>>
    %508 = vector.extract_strided_slice %423 {offsets = [3, 0], sizes = [16, 16], strides = [1, 1]} : vector<20x16xf32> to vector<16x16xf32>
    %509 = vector.broadcast %507 : f32 to vector<16x16xf32>
    %510 = arith.mulf %509, %508 : vector<16x16xf32>
    %511 = arith.addf %506, %510 : vector<16x16xf32>
    %c92 = arith.constant 92 : index
    %512 = memref.load %arg1[%c92] : memref<100xf32, #tpu.memory_space<smem>>
    %513 = vector.extract_strided_slice %424 {offsets = [3, 0], sizes = [16, 16], strides = [1, 1]} : vector<20x16xf32> to vector<16x16xf32>
    %514 = vector.broadcast %512 : f32 to vector<16x16xf32>
    %515 = arith.mulf %514, %513 : vector<16x16xf32>
    %516 = arith.addf %511, %515 : vector<16x16xf32>
    %c93 = arith.constant 93 : index
    %517 = memref.load %arg1[%c93] : memref<100xf32, #tpu.memory_space<smem>>
    %518 = vector.extract_strided_slice %425 {offsets = [3, 0], sizes = [16, 16], strides = [1, 1]} : vector<20x16xf32> to vector<16x16xf32>
    %519 = vector.broadcast %517 : f32 to vector<16x16xf32>
    %520 = arith.mulf %519, %518 : vector<16x16xf32>
    %521 = arith.addf %516, %520 : vector<16x16xf32>
    %c94 = arith.constant 94 : index
    %522 = memref.load %arg1[%c94] : memref<100xf32, #tpu.memory_space<smem>>
    %523 = vector.extract_strided_slice %426 {offsets = [3, 0], sizes = [16, 16], strides = [1, 1]} : vector<20x16xf32> to vector<16x16xf32>
    %524 = vector.broadcast %522 : f32 to vector<16x16xf32>
    %525 = arith.mulf %524, %523 : vector<16x16xf32>
    %526 = arith.addf %521, %525 : vector<16x16xf32>
    %c95 = arith.constant 95 : index
    %527 = memref.load %arg1[%c95] : memref<100xf32, #tpu.memory_space<smem>>
    %528 = vector.extract_strided_slice %422 {offsets = [4, 0], sizes = [16, 16], strides = [1, 1]} : vector<20x16xf32> to vector<16x16xf32>
    %529 = vector.broadcast %527 : f32 to vector<16x16xf32>
    %530 = arith.mulf %529, %528 : vector<16x16xf32>
    %531 = arith.addf %526, %530 : vector<16x16xf32>
    %c96 = arith.constant 96 : index
    %532 = memref.load %arg1[%c96] : memref<100xf32, #tpu.memory_space<smem>>
    %533 = vector.extract_strided_slice %423 {offsets = [4, 0], sizes = [16, 16], strides = [1, 1]} : vector<20x16xf32> to vector<16x16xf32>
    %534 = vector.broadcast %532 : f32 to vector<16x16xf32>
    %535 = arith.mulf %534, %533 : vector<16x16xf32>
    %536 = arith.addf %531, %535 : vector<16x16xf32>
    %c97 = arith.constant 97 : index
    %537 = memref.load %arg1[%c97] : memref<100xf32, #tpu.memory_space<smem>>
    %538 = vector.extract_strided_slice %424 {offsets = [4, 0], sizes = [16, 16], strides = [1, 1]} : vector<20x16xf32> to vector<16x16xf32>
    %539 = vector.broadcast %537 : f32 to vector<16x16xf32>
    %540 = arith.mulf %539, %538 : vector<16x16xf32>
    %541 = arith.addf %536, %540 : vector<16x16xf32>
    %c98 = arith.constant 98 : index
    %542 = memref.load %arg1[%c98] : memref<100xf32, #tpu.memory_space<smem>>
    %543 = vector.extract_strided_slice %425 {offsets = [4, 0], sizes = [16, 16], strides = [1, 1]} : vector<20x16xf32> to vector<16x16xf32>
    %544 = vector.broadcast %542 : f32 to vector<16x16xf32>
    %545 = arith.mulf %544, %543 : vector<16x16xf32>
    %546 = arith.addf %541, %545 : vector<16x16xf32>
    %c99 = arith.constant 99 : index
    %547 = memref.load %arg1[%c99] : memref<100xf32, #tpu.memory_space<smem>>
    %548 = vector.extract_strided_slice %426 {offsets = [4, 0], sizes = [16, 16], strides = [1, 1]} : vector<20x16xf32> to vector<16x16xf32>
    %549 = vector.broadcast %547 : f32 to vector<16x16xf32>
    %550 = arith.mulf %549, %548 : vector<16x16xf32>
    %551 = arith.addf %546, %550 : vector<16x16xf32>
    %552 = math.tanh %551 : vector<16x16xf32>
    %cst_44 = arith.constant 1.275000e+02 : f32
    %553 = vector.broadcast %cst_44 : f32 to vector<16x16xf32>
    %554 = arith.mulf %553, %552 : vector<16x16xf32>
    %cst_45 = arith.constant 1.275000e+02 : f32
    %555 = vector.broadcast %cst_45 : f32 to vector<16x16xf32>
    %556 = arith.addf %555, %554 : vector<16x16xf32>
    %557 = math.roundeven %556 : vector<16x16xf32>
    %cst_46 = arith.constant 1.275000e+02 : f32
    %558 = vector.broadcast %cst_46 : f32 to vector<16x16xf32>
    %559 = arith.divf %557, %558 : vector<16x16xf32>
    %cst_47 = arith.constant 1.000000e+00 : f32
    %560 = vector.broadcast %cst_47 : f32 to vector<16x16xf32>
    %561 = arith.subf %559, %560 : vector<16x16xf32>
    %c0_48 = arith.constant 0 : index
    %c2_49 = arith.constant 2 : index
    %c2_50 = arith.constant 2 : index
    %562 = vector.load %arg6[%c0_48, %c2_49, %c2_50] : memref<4x20x20xf32, #tpu.memory_space<vmem>>, vector<1x16x16xf32>
    %563 = vector.shape_cast %562 : vector<1x16x16xf32> to vector<16x16xf32>
    %564 = vector.shape_cast %561 : vector<16x16xf32> to vector<1x16x16xf32>
    tpu.vector_store %arg6[%c0_48, %c2_49, %c2_50], %564 {strides = array<i32>} : memref<4x20x20xf32, #tpu.memory_space<vmem>>, vector<1x16x16xf32>,
    %c1_51 = arith.constant 1 : index
    %565 = memref.load %arg3[%c1_51] : memref<8xf32, #tpu.memory_space<smem>>
    %566 = vector.broadcast %565 : f32 to vector<16x16xf32>
    %c0_52 = arith.constant 0 : index
    %c0_53 = arith.constant 0 : index
    %c0_54 = arith.constant 0 : index
    %567 = vector.load %arg6[%c0_52, %c0_53, %c0_54] : memref<4x20x20xf32, #tpu.memory_space<vmem>>, vector<1x20x20xf32>
    %568 = vector.shape_cast %567 : vector<1x20x20xf32> to vector<20x20xf32>
    %569 = vector.extract_strided_slice %568 {offsets = [0, 0], sizes = [20, 16], strides = [1, 1]} : vector<20x20xf32> to vector<20x16xf32>
    %570 = vector.extract_strided_slice %568 {offsets = [0, 1], sizes = [20, 16], strides = [1, 1]} : vector<20x20xf32> to vector<20x16xf32>
    %571 = vector.extract_strided_slice %568 {offsets = [0, 2], sizes = [20, 16], strides = [1, 1]} : vector<20x20xf32> to vector<20x16xf32>
    %572 = vector.extract_strided_slice %568 {offsets = [0, 3], sizes = [20, 16], strides = [1, 1]} : vector<20x20xf32> to vector<20x16xf32>
    %573 = vector.extract_strided_slice %568 {offsets = [0, 4], sizes = [20, 16], strides = [1, 1]} : vector<20x20xf32> to vector<20x16xf32>
    %c0_55 = arith.constant 0 : index
    %574 = memref.load %arg2[%c0_55] : memref<175xf32, #tpu.memory_space<smem>>
    %575 = vector.extract_strided_slice %569 {offsets = [0, 0], sizes = [16, 16], strides = [1, 1]} : vector<20x16xf32> to vector<16x16xf32>
    %576 = vector.broadcast %574 : f32 to vector<16x16xf32>
    %577 = arith.mulf %576, %575 : vector<16x16xf32>
    %578 = arith.addf %566, %577 : vector<16x16xf32>
    %c1_56 = arith.constant 1 : index
    %579 = memref.load %arg2[%c1_56] : memref<175xf32, #tpu.memory_space<smem>>
    %580 = vector.extract_strided_slice %570 {offsets = [0, 0], sizes = [16, 16], strides = [1, 1]} : vector<20x16xf32> to vector<16x16xf32>
    %581 = vector.broadcast %579 : f32 to vector<16x16xf32>
    %582 = arith.mulf %581, %580 : vector<16x16xf32>
    %583 = arith.addf %578, %582 : vector<16x16xf32>
    %c2_57 = arith.constant 2 : index
    %584 = memref.load %arg2[%c2_57] : memref<175xf32, #tpu.memory_space<smem>>
    %585 = vector.extract_strided_slice %571 {offsets = [0, 0], sizes = [16, 16], strides = [1, 1]} : vector<20x16xf32> to vector<16x16xf32>
    %586 = vector.broadcast %584 : f32 to vector<16x16xf32>
    %587 = arith.mulf %586, %585 : vector<16x16xf32>
    %588 = arith.addf %583, %587 : vector<16x16xf32>
    %c3_58 = arith.constant 3 : index
    %589 = memref.load %arg2[%c3_58] : memref<175xf32, #tpu.memory_space<smem>>
    %590 = vector.extract_strided_slice %572 {offsets = [0, 0], sizes = [16, 16], strides = [1, 1]} : vector<20x16xf32> to vector<16x16xf32>
    %591 = vector.broadcast %589 : f32 to vector<16x16xf32>
    %592 = arith.mulf %591, %590 : vector<16x16xf32>
    %593 = arith.addf %588, %592 : vector<16x16xf32>
    %c4_59 = arith.constant 4 : index
    %594 = memref.load %arg2[%c4_59] : memref<175xf32, #tpu.memory_space<smem>>
    %595 = vector.extract_strided_slice %573 {offsets = [0, 0], sizes = [16, 16], strides = [1, 1]} : vector<20x16xf32> to vector<16x16xf32>
    %596 = vector.broadcast %594 : f32 to vector<16x16xf32>
    %597 = arith.mulf %596, %595 : vector<16x16xf32>
    %598 = arith.addf %593, %597 : vector<16x16xf32>
    %c5_60 = arith.constant 5 : index
    %599 = memref.load %arg2[%c5_60] : memref<175xf32, #tpu.memory_space<smem>>
    %600 = vector.extract_strided_slice %569 {offsets = [1, 0], sizes = [16, 16], strides = [1, 1]} : vector<20x16xf32> to vector<16x16xf32>
    %601 = vector.broadcast %599 : f32 to vector<16x16xf32>
    %602 = arith.mulf %601, %600 : vector<16x16xf32>
    %603 = arith.addf %598, %602 : vector<16x16xf32>
    %c6_61 = arith.constant 6 : index
    %604 = memref.load %arg2[%c6_61] : memref<175xf32, #tpu.memory_space<smem>>
    %605 = vector.extract_strided_slice %570 {offsets = [1, 0], sizes = [16, 16], strides = [1, 1]} : vector<20x16xf32> to vector<16x16xf32>
    %606 = vector.broadcast %604 : f32 to vector<16x16xf32>
    %607 = arith.mulf %606, %605 : vector<16x16xf32>
    %608 = arith.addf %603, %607 : vector<16x16xf32>
    %c7_62 = arith.constant 7 : index
    %609 = memref.load %arg2[%c7_62] : memref<175xf32, #tpu.memory_space<smem>>
    %610 = vector.extract_strided_slice %571 {offsets = [1, 0], sizes = [16, 16], strides = [1, 1]} : vector<20x16xf32> to vector<16x16xf32>
    %611 = vector.broadcast %609 : f32 to vector<16x16xf32>
    %612 = arith.mulf %611, %610 : vector<16x16xf32>
    %613 = arith.addf %608, %612 : vector<16x16xf32>
    %c8_63 = arith.constant 8 : index
    %614 = memref.load %arg2[%c8_63] : memref<175xf32, #tpu.memory_space<smem>>
    %615 = vector.extract_strided_slice %572 {offsets = [1, 0], sizes = [16, 16], strides = [1, 1]} : vector<20x16xf32> to vector<16x16xf32>
    %616 = vector.broadcast %614 : f32 to vector<16x16xf32>
    %617 = arith.mulf %616, %615 : vector<16x16xf32>
    %618 = arith.addf %613, %617 : vector<16x16xf32>
    %c9_64 = arith.constant 9 : index
    %619 = memref.load %arg2[%c9_64] : memref<175xf32, #tpu.memory_space<smem>>
    %620 = vector.extract_strided_slice %573 {offsets = [1, 0], sizes = [16, 16], strides = [1, 1]} : vector<20x16xf32> to vector<16x16xf32>
    %621 = vector.broadcast %619 : f32 to vector<16x16xf32>
    %622 = arith.mulf %621, %620 : vector<16x16xf32>
    %623 = arith.addf %618, %622 : vector<16x16xf32>
    %c10_65 = arith.constant 10 : index
    %624 = memref.load %arg2[%c10_65] : memref<175xf32, #tpu.memory_space<smem>>
    %625 = vector.extract_strided_slice %569 {offsets = [2, 0], sizes = [16, 16], strides = [1, 1]} : vector<20x16xf32> to vector<16x16xf32>
    %626 = vector.broadcast %624 : f32 to vector<16x16xf32>
    %627 = arith.mulf %626, %625 : vector<16x16xf32>
    %628 = arith.addf %623, %627 : vector<16x16xf32>
    %c11_66 = arith.constant 11 : index
    %629 = memref.load %arg2[%c11_66] : memref<175xf32, #tpu.memory_space<smem>>
    %630 = vector.extract_strided_slice %570 {offsets = [2, 0], sizes = [16, 16], strides = [1, 1]} : vector<20x16xf32> to vector<16x16xf32>
    %631 = vector.broadcast %629 : f32 to vector<16x16xf32>
    %632 = arith.mulf %631, %630 : vector<16x16xf32>
    %633 = arith.addf %628, %632 : vector<16x16xf32>
    %c12_67 = arith.constant 12 : index
    %634 = memref.load %arg2[%c12_67] : memref<175xf32, #tpu.memory_space<smem>>
    %635 = vector.extract_strided_slice %571 {offsets = [2, 0], sizes = [16, 16], strides = [1, 1]} : vector<20x16xf32> to vector<16x16xf32>
    %636 = vector.broadcast %634 : f32 to vector<16x16xf32>
    %637 = arith.mulf %636, %635 : vector<16x16xf32>
    %638 = arith.addf %633, %637 : vector<16x16xf32>
    %c13_68 = arith.constant 13 : index
    %639 = memref.load %arg2[%c13_68] : memref<175xf32, #tpu.memory_space<smem>>
    %640 = vector.extract_strided_slice %572 {offsets = [2, 0], sizes = [16, 16], strides = [1, 1]} : vector<20x16xf32> to vector<16x16xf32>
    %641 = vector.broadcast %639 : f32 to vector<16x16xf32>
    %642 = arith.mulf %641, %640 : vector<16x16xf32>
    %643 = arith.addf %638, %642 : vector<16x16xf32>
    %c14_69 = arith.constant 14 : index
    %644 = memref.load %arg2[%c14_69] : memref<175xf32, #tpu.memory_space<smem>>
    %645 = vector.extract_strided_slice %573 {offsets = [2, 0], sizes = [16, 16], strides = [1, 1]} : vector<20x16xf32> to vector<16x16xf32>
    %646 = vector.broadcast %644 : f32 to vector<16x16xf32>
    %647 = arith.mulf %646, %645 : vector<16x16xf32>
    %648 = arith.addf %643, %647 : vector<16x16xf32>
    %c15_70 = arith.constant 15 : index
    %649 = memref.load %arg2[%c15_70] : memref<175xf32, #tpu.memory_space<smem>>
    %650 = vector.extract_strided_slice %569 {offsets = [3, 0], sizes = [16, 16], strides = [1, 1]} : vector<20x16xf32> to vector<16x16xf32>
    %651 = vector.broadcast %649 : f32 to vector<16x16xf32>
    %652 = arith.mulf %651, %650 : vector<16x16xf32>
    %653 = arith.addf %648, %652 : vector<16x16xf32>
    %c16_71 = arith.constant 16 : index
    %654 = memref.load %arg2[%c16_71] : memref<175xf32, #tpu.memory_space<smem>>
    %655 = vector.extract_strided_slice %570 {offsets = [3, 0], sizes = [16, 16], strides = [1, 1]} : vector<20x16xf32> to vector<16x16xf32>
    %656 = vector.broadcast %654 : f32 to vector<16x16xf32>
    %657 = arith.mulf %656, %655 : vector<16x16xf32>
    %658 = arith.addf %653, %657 : vector<16x16xf32>
    %c17_72 = arith.constant 17 : index
    %659 = memref.load %arg2[%c17_72] : memref<175xf32, #tpu.memory_space<smem>>
    %660 = vector.extract_strided_slice %571 {offsets = [3, 0], sizes = [16, 16], strides = [1, 1]} : vector<20x16xf32> to vector<16x16xf32>
    %661 = vector.broadcast %659 : f32 to vector<16x16xf32>
    %662 = arith.mulf %661, %660 : vector<16x16xf32>
    %663 = arith.addf %658, %662 : vector<16x16xf32>
    %c18_73 = arith.constant 18 : index
    %664 = memref.load %arg2[%c18_73] : memref<175xf32, #tpu.memory_space<smem>>
    %665 = vector.extract_strided_slice %572 {offsets = [3, 0], sizes = [16, 16], strides = [1, 1]} : vector<20x16xf32> to vector<16x16xf32>
    %666 = vector.broadcast %664 : f32 to vector<16x16xf32>
    %667 = arith.mulf %666, %665 : vector<16x16xf32>
    %668 = arith.addf %663, %667 : vector<16x16xf32>
    %c19_74 = arith.constant 19 : index
    %669 = memref.load %arg2[%c19_74] : memref<175xf32, #tpu.memory_space<smem>>
    %670 = vector.extract_strided_slice %573 {offsets = [3, 0], sizes = [16, 16], strides = [1, 1]} : vector<20x16xf32> to vector<16x16xf32>
    %671 = vector.broadcast %669 : f32 to vector<16x16xf32>
    %672 = arith.mulf %671, %670 : vector<16x16xf32>
    %673 = arith.addf %668, %672 : vector<16x16xf32>
    %c20_75 = arith.constant 20 : index
    %674 = memref.load %arg2[%c20_75] : memref<175xf32, #tpu.memory_space<smem>>
    %675 = vector.extract_strided_slice %569 {offsets = [4, 0], sizes = [16, 16], strides = [1, 1]} : vector<20x16xf32> to vector<16x16xf32>
    %676 = vector.broadcast %674 : f32 to vector<16x16xf32>
    %677 = arith.mulf %676, %675 : vector<16x16xf32>
    %678 = arith.addf %673, %677 : vector<16x16xf32>
    %c21_76 = arith.constant 21 : index
    %679 = memref.load %arg2[%c21_76] : memref<175xf32, #tpu.memory_space<smem>>
    %680 = vector.extract_strided_slice %570 {offsets = [4, 0], sizes = [16, 16], strides = [1, 1]} : vector<20x16xf32> to vector<16x16xf32>
    %681 = vector.broadcast %679 : f32 to vector<16x16xf32>
    %682 = arith.mulf %681, %680 : vector<16x16xf32>
    %683 = arith.addf %678, %682 : vector<16x16xf32>
    %c22_77 = arith.constant 22 : index
    %684 = memref.load %arg2[%c22_77] : memref<175xf32, #tpu.memory_space<smem>>
    %685 = vector.extract_strided_slice %571 {offsets = [4, 0], sizes = [16, 16], strides = [1, 1]} : vector<20x16xf32> to vector<16x16xf32>
    %686 = vector.broadcast %684 : f32 to vector<16x16xf32>
    %687 = arith.mulf %686, %685 : vector<16x16xf32>
    %688 = arith.addf %683, %687 : vector<16x16xf32>
    %c23_78 = arith.constant 23 : index
    %689 = memref.load %arg2[%c23_78] : memref<175xf32, #tpu.memory_space<smem>>
    %690 = vector.extract_strided_slice %572 {offsets = [4, 0], sizes = [16, 16], strides = [1, 1]} : vector<20x16xf32> to vector<16x16xf32>
    %691 = vector.broadcast %689 : f32 to vector<16x16xf32>
    %692 = arith.mulf %691, %690 : vector<16x16xf32>
    %693 = arith.addf %688, %692 : vector<16x16xf32>
    %c24_79 = arith.constant 24 : index
    %694 = memref.load %arg2[%c24_79] : memref<175xf32, #tpu.memory_space<smem>>
    %695 = vector.extract_strided_slice %573 {offsets = [4, 0], sizes = [16, 16], strides = [1, 1]} : vector<20x16xf32> to vector<16x16xf32>
    %696 = vector.broadcast %694 : f32 to vector<16x16xf32>
    %697 = arith.mulf %696, %695 : vector<16x16xf32>
    %698 = arith.addf %693, %697 : vector<16x16xf32>
    %699 = math.tanh %698 : vector<16x16xf32>
    %cst_80 = arith.constant 6.350000e+01 : f32
    %700 = vector.broadcast %cst_80 : f32 to vector<16x16xf32>
    %701 = arith.mulf %700, %699 : vector<16x16xf32>
    %cst_81 = arith.constant 6.350000e+01 : f32
    %702 = vector.broadcast %cst_81 : f32 to vector<16x16xf32>
    %703 = arith.addf %702, %701 : vector<16x16xf32>
    %704 = math.roundeven %703 : vector<16x16xf32>
    %cst_82 = arith.constant 6.350000e+01 : f32
    %705 = vector.broadcast %cst_82 : f32 to vector<16x16xf32>
    %706 = arith.divf %704, %705 : vector<16x16xf32>
    %cst_83 = arith.constant 1.000000e+00 : f32
    %707 = vector.broadcast %cst_83 : f32 to vector<16x16xf32>
    %708 = arith.subf %706, %707 : vector<16x16xf32>
    %c0_84 = arith.constant 0 : index
    %c2_85 = arith.constant 2 : index
    %c2_86 = arith.constant 2 : index
    %709 = vector.load %arg6[%c0_84, %c2_85, %c2_86] : memref<4x20x20xf32, #tpu.memory_space<vmem>>, vector<1x16x16xf32>
    %710 = vector.shape_cast %709 : vector<1x16x16xf32> to vector<16x16xf32>
    %711 = vector.shape_cast %708 : vector<16x16xf32> to vector<1x16x16xf32>
    tpu.vector_store %arg6[%c0_84, %c2_85, %c2_86], %711 {strides = array<i32>} : memref<4x20x20xf32, #tpu.memory_space<vmem>>, vector<1x16x16xf32>,
    %c2_87 = arith.constant 2 : index
    %712 = memref.load %arg3[%c2_87] : memref<8xf32, #tpu.memory_space<smem>>
    %713 = vector.broadcast %712 : f32 to vector<16x16xf32>
    %c0_88 = arith.constant 0 : index
    %c0_89 = arith.constant 0 : index
    %c0_90 = arith.constant 0 : index
    %714 = vector.load %arg6[%c0_88, %c0_89, %c0_90] : memref<4x20x20xf32, #tpu.memory_space<vmem>>, vector<1x20x20xf32>
    %715 = vector.shape_cast %714 : vector<1x20x20xf32> to vector<20x20xf32>
    %716 = vector.extract_strided_slice %715 {offsets = [0, 0], sizes = [20, 16], strides = [1, 1]} : vector<20x20xf32> to vector<20x16xf32>
    %717 = vector.extract_strided_slice %715 {offsets = [0, 1], sizes = [20, 16], strides = [1, 1]} : vector<20x20xf32> to vector<20x16xf32>
    %718 = vector.extract_strided_slice %715 {offsets = [0, 2], sizes = [20, 16], strides = [1, 1]} : vector<20x20xf32> to vector<20x16xf32>
    %719 = vector.extract_strided_slice %715 {offsets = [0, 3], sizes = [20, 16], strides = [1, 1]} : vector<20x20xf32> to vector<20x16xf32>
    %720 = vector.extract_strided_slice %715 {offsets = [0, 4], sizes = [20, 16], strides = [1, 1]} : vector<20x20xf32> to vector<20x16xf32>
    %c25_91 = arith.constant 25 : index
    %721 = memref.load %arg2[%c25_91] : memref<175xf32, #tpu.memory_space<smem>>
    %722 = vector.extract_strided_slice %716 {offsets = [0, 0], sizes = [16, 16], strides = [1, 1]} : vector<20x16xf32> to vector<16x16xf32>
    %723 = vector.broadcast %721 : f32 to vector<16x16xf32>
    %724 = arith.mulf %723, %722 : vector<16x16xf32>
    %725 = arith.addf %713, %724 : vector<16x16xf32>
    %c26_92 = arith.constant 26 : index
    %726 = memref.load %arg2[%c26_92] : memref<175xf32, #tpu.memory_space<smem>>
    %727 = vector.extract_strided_slice %717 {offsets = [0, 0], sizes = [16, 16], strides = [1, 1]} : vector<20x16xf32> to vector<16x16xf32>
    %728 = vector.broadcast %726 : f32 to vector<16x16xf32>
    %729 = arith.mulf %728, %727 : vector<16x16xf32>
    %730 = arith.addf %725, %729 : vector<16x16xf32>
    %c27_93 = arith.constant 27 : index
    %731 = memref.load %arg2[%c27_93] : memref<175xf32, #tpu.memory_space<smem>>
    %732 = vector.extract_strided_slice %718 {offsets = [0, 0], sizes = [16, 16], strides = [1, 1]} : vector<20x16xf32> to vector<16x16xf32>
    %733 = vector.broadcast %731 : f32 to vector<16x16xf32>
    %734 = arith.mulf %733, %732 : vector<16x16xf32>
    %735 = arith.addf %730, %734 : vector<16x16xf32>
    %c28_94 = arith.constant 28 : index
    %736 = memref.load %arg2[%c28_94] : memref<175xf32, #tpu.memory_space<smem>>
    %737 = vector.extract_strided_slice %719 {offsets = [0, 0], sizes = [16, 16], strides = [1, 1]} : vector<20x16xf32> to vector<16x16xf32>
    %738 = vector.broadcast %736 : f32 to vector<16x16xf32>
    %739 = arith.mulf %738, %737 : vector<16x16xf32>
    %740 = arith.addf %735, %739 : vector<16x16xf32>
    %c29_95 = arith.constant 29 : index
    %741 = memref.load %arg2[%c29_95] : memref<175xf32, #tpu.memory_space<smem>>
    %742 = vector.extract_strided_slice %720 {offsets = [0, 0], sizes = [16, 16], strides = [1, 1]} : vector<20x16xf32> to vector<16x16xf32>
    %743 = vector.broadcast %741 : f32 to vector<16x16xf32>
    %744 = arith.mulf %743, %742 : vector<16x16xf32>
    %745 = arith.addf %740, %744 : vector<16x16xf32>
    %c30_96 = arith.constant 30 : index
    %746 = memref.load %arg2[%c30_96] : memref<175xf32, #tpu.memory_space<smem>>
    %747 = vector.extract_strided_slice %716 {offsets = [1, 0], sizes = [16, 16], strides = [1, 1]} : vector<20x16xf32> to vector<16x16xf32>
    %748 = vector.broadcast %746 : f32 to vector<16x16xf32>
    %749 = arith.mulf %748, %747 : vector<16x16xf32>
    %750 = arith.addf %745, %749 : vector<16x16xf32>
    %c31_97 = arith.constant 31 : index
    %751 = memref.load %arg2[%c31_97] : memref<175xf32, #tpu.memory_space<smem>>
    %752 = vector.extract_strided_slice %717 {offsets = [1, 0], sizes = [16, 16], strides = [1, 1]} : vector<20x16xf32> to vector<16x16xf32>
    %753 = vector.broadcast %751 : f32 to vector<16x16xf32>
    %754 = arith.mulf %753, %752 : vector<16x16xf32>
    %755 = arith.addf %750, %754 : vector<16x16xf32>
    %c32_98 = arith.constant 32 : index
    %756 = memref.load %arg2[%c32_98] : memref<175xf32, #tpu.memory_space<smem>>
    %757 = vector.extract_strided_slice %718 {offsets = [1, 0], sizes = [16, 16], strides = [1, 1]} : vector<20x16xf32> to vector<16x16xf32>
    %758 = vector.broadcast %756 : f32 to vector<16x16xf32>
    %759 = arith.mulf %758, %757 : vector<16x16xf32>
    %760 = arith.addf %755, %759 : vector<16x16xf32>
    %c33_99 = arith.constant 33 : index
    %761 = memref.load %arg2[%c33_99] : memref<175xf32, #tpu.memory_space<smem>>
    %762 = vector.extract_strided_slice %719 {offsets = [1, 0], sizes = [16, 16], strides = [1, 1]} : vector<20x16xf32> to vector<16x16xf32>
    %763 = vector.broadcast %761 : f32 to vector<16x16xf32>
    %764 = arith.mulf %763, %762 : vector<16x16xf32>
    %765 = arith.addf %760, %764 : vector<16x16xf32>
    %c34_100 = arith.constant 34 : index
    %766 = memref.load %arg2[%c34_100] : memref<175xf32, #tpu.memory_space<smem>>
    %767 = vector.extract_strided_slice %720 {offsets = [1, 0], sizes = [16, 16], strides = [1, 1]} : vector<20x16xf32> to vector<16x16xf32>
    %768 = vector.broadcast %766 : f32 to vector<16x16xf32>
    %769 = arith.mulf %768, %767 : vector<16x16xf32>
    %770 = arith.addf %765, %769 : vector<16x16xf32>
    %c35_101 = arith.constant 35 : index
    %771 = memref.load %arg2[%c35_101] : memref<175xf32, #tpu.memory_space<smem>>
    %772 = vector.extract_strided_slice %716 {offsets = [2, 0], sizes = [16, 16], strides = [1, 1]} : vector<20x16xf32> to vector<16x16xf32>
    %773 = vector.broadcast %771 : f32 to vector<16x16xf32>
    %774 = arith.mulf %773, %772 : vector<16x16xf32>
    %775 = arith.addf %770, %774 : vector<16x16xf32>
    %c36_102 = arith.constant 36 : index
    %776 = memref.load %arg2[%c36_102] : memref<175xf32, #tpu.memory_space<smem>>
    %777 = vector.extract_strided_slice %717 {offsets = [2, 0], sizes = [16, 16], strides = [1, 1]} : vector<20x16xf32> to vector<16x16xf32>
    %778 = vector.broadcast %776 : f32 to vector<16x16xf32>
    %779 = arith.mulf %778, %777 : vector<16x16xf32>
    %780 = arith.addf %775, %779 : vector<16x16xf32>
    %c37_103 = arith.constant 37 : index
    %781 = memref.load %arg2[%c37_103] : memref<175xf32, #tpu.memory_space<smem>>
    %782 = vector.extract_strided_slice %718 {offsets = [2, 0], sizes = [16, 16], strides = [1, 1]} : vector<20x16xf32> to vector<16x16xf32>
    %783 = vector.broadcast %781 : f32 to vector<16x16xf32>
    %784 = arith.mulf %783, %782 : vector<16x16xf32>
    %785 = arith.addf %780, %784 : vector<16x16xf32>
    %c38_104 = arith.constant 38 : index
    %786 = memref.load %arg2[%c38_104] : memref<175xf32, #tpu.memory_space<smem>>
    %787 = vector.extract_strided_slice %719 {offsets = [2, 0], sizes = [16, 16], strides = [1, 1]} : vector<20x16xf32> to vector<16x16xf32>
    %788 = vector.broadcast %786 : f32 to vector<16x16xf32>
    %789 = arith.mulf %788, %787 : vector<16x16xf32>
    %790 = arith.addf %785, %789 : vector<16x16xf32>
    %c39_105 = arith.constant 39 : index
    %791 = memref.load %arg2[%c39_105] : memref<175xf32, #tpu.memory_space<smem>>
    %792 = vector.extract_strided_slice %720 {offsets = [2, 0], sizes = [16, 16], strides = [1, 1]} : vector<20x16xf32> to vector<16x16xf32>
    %793 = vector.broadcast %791 : f32 to vector<16x16xf32>
    %794 = arith.mulf %793, %792 : vector<16x16xf32>
    %795 = arith.addf %790, %794 : vector<16x16xf32>
    %c40_106 = arith.constant 40 : index
    %796 = memref.load %arg2[%c40_106] : memref<175xf32, #tpu.memory_space<smem>>
    %797 = vector.extract_strided_slice %716 {offsets = [3, 0], sizes = [16, 16], strides = [1, 1]} : vector<20x16xf32> to vector<16x16xf32>
    %798 = vector.broadcast %796 : f32 to vector<16x16xf32>
    %799 = arith.mulf %798, %797 : vector<16x16xf32>
    %800 = arith.addf %795, %799 : vector<16x16xf32>
    %c41_107 = arith.constant 41 : index
    %801 = memref.load %arg2[%c41_107] : memref<175xf32, #tpu.memory_space<smem>>
    %802 = vector.extract_strided_slice %717 {offsets = [3, 0], sizes = [16, 16], strides = [1, 1]} : vector<20x16xf32> to vector<16x16xf32>
    %803 = vector.broadcast %801 : f32 to vector<16x16xf32>
    %804 = arith.mulf %803, %802 : vector<16x16xf32>
    %805 = arith.addf %800, %804 : vector<16x16xf32>
    %c42_108 = arith.constant 42 : index
    %806 = memref.load %arg2[%c42_108] : memref<175xf32, #tpu.memory_space<smem>>
    %807 = vector.extract_strided_slice %718 {offsets = [3, 0], sizes = [16, 16], strides = [1, 1]} : vector<20x16xf32> to vector<16x16xf32>
    %808 = vector.broadcast %806 : f32 to vector<16x16xf32>
    %809 = arith.mulf %808, %807 : vector<16x16xf32>
    %810 = arith.addf %805, %809 : vector<16x16xf32>
    %c43_109 = arith.constant 43 : index
    %811 = memref.load %arg2[%c43_109] : memref<175xf32, #tpu.memory_space<smem>>
    %812 = vector.extract_strided_slice %719 {offsets = [3, 0], sizes = [16, 16], strides = [1, 1]} : vector<20x16xf32> to vector<16x16xf32>
    %813 = vector.broadcast %811 : f32 to vector<16x16xf32>
    %814 = arith.mulf %813, %812 : vector<16x16xf32>
    %815 = arith.addf %810, %814 : vector<16x16xf32>
    %c44_110 = arith.constant 44 : index
    %816 = memref.load %arg2[%c44_110] : memref<175xf32, #tpu.memory_space<smem>>
    %817 = vector.extract_strided_slice %720 {offsets = [3, 0], sizes = [16, 16], strides = [1, 1]} : vector<20x16xf32> to vector<16x16xf32>
    %818 = vector.broadcast %816 : f32 to vector<16x16xf32>
    %819 = arith.mulf %818, %817 : vector<16x16xf32>
    %820 = arith.addf %815, %819 : vector<16x16xf32>
    %c45_111 = arith.constant 45 : index
    %821 = memref.load %arg2[%c45_111] : memref<175xf32, #tpu.memory_space<smem>>
    %822 = vector.extract_strided_slice %716 {offsets = [4, 0], sizes = [16, 16], strides = [1, 1]} : vector<20x16xf32> to vector<16x16xf32>
    %823 = vector.broadcast %821 : f32 to vector<16x16xf32>
    %824 = arith.mulf %823, %822 : vector<16x16xf32>
    %825 = arith.addf %820, %824 : vector<16x16xf32>
    %c46_112 = arith.constant 46 : index
    %826 = memref.load %arg2[%c46_112] : memref<175xf32, #tpu.memory_space<smem>>
    %827 = vector.extract_strided_slice %717 {offsets = [4, 0], sizes = [16, 16], strides = [1, 1]} : vector<20x16xf32> to vector<16x16xf32>
    %828 = vector.broadcast %826 : f32 to vector<16x16xf32>
    %829 = arith.mulf %828, %827 : vector<16x16xf32>
    %830 = arith.addf %825, %829 : vector<16x16xf32>
    %c47_113 = arith.constant 47 : index
    %831 = memref.load %arg2[%c47_113] : memref<175xf32, #tpu.memory_space<smem>>
    %832 = vector.extract_strided_slice %718 {offsets = [4, 0], sizes = [16, 16], strides = [1, 1]} : vector<20x16xf32> to vector<16x16xf32>
    %833 = vector.broadcast %831 : f32 to vector<16x16xf32>
    %834 = arith.mulf %833, %832 : vector<16x16xf32>
    %835 = arith.addf %830, %834 : vector<16x16xf32>
    %c48_114 = arith.constant 48 : index
    %836 = memref.load %arg2[%c48_114] : memref<175xf32, #tpu.memory_space<smem>>
    %837 = vector.extract_strided_slice %719 {offsets = [4, 0], sizes = [16, 16], strides = [1, 1]} : vector<20x16xf32> to vector<16x16xf32>
    %838 = vector.broadcast %836 : f32 to vector<16x16xf32>
    %839 = arith.mulf %838, %837 : vector<16x16xf32>
    %840 = arith.addf %835, %839 : vector<16x16xf32>
    %c49_115 = arith.constant 49 : index
    %841 = memref.load %arg2[%c49_115] : memref<175xf32, #tpu.memory_space<smem>>
    %842 = vector.extract_strided_slice %720 {offsets = [4, 0], sizes = [16, 16], strides = [1, 1]} : vector<20x16xf32> to vector<16x16xf32>
    %843 = vector.broadcast %841 : f32 to vector<16x16xf32>
    %844 = arith.mulf %843, %842 : vector<16x16xf32>
    %845 = arith.addf %840, %844 : vector<16x16xf32>
    %846 = math.tanh %845 : vector<16x16xf32>
    %cst_116 = arith.constant 3.150000e+01 : f32
    %847 = vector.broadcast %cst_116 : f32 to vector<16x16xf32>
    %848 = arith.mulf %847, %846 : vector<16x16xf32>
    %cst_117 = arith.constant 3.150000e+01 : f32
    %849 = vector.broadcast %cst_117 : f32 to vector<16x16xf32>
    %850 = arith.addf %849, %848 : vector<16x16xf32>
    %851 = math.roundeven %850 : vector<16x16xf32>
    %cst_118 = arith.constant 3.150000e+01 : f32
    %852 = vector.broadcast %cst_118 : f32 to vector<16x16xf32>
    %853 = arith.divf %851, %852 : vector<16x16xf32>
    %cst_119 = arith.constant 1.000000e+00 : f32
    %854 = vector.broadcast %cst_119 : f32 to vector<16x16xf32>
    %855 = arith.subf %853, %854 : vector<16x16xf32>
    %c0_120 = arith.constant 0 : index
    %c2_121 = arith.constant 2 : index
    %c2_122 = arith.constant 2 : index
    %856 = vector.load %arg6[%c0_120, %c2_121, %c2_122] : memref<4x20x20xf32, #tpu.memory_space<vmem>>, vector<1x16x16xf32>
    %857 = vector.shape_cast %856 : vector<1x16x16xf32> to vector<16x16xf32>
    %858 = vector.shape_cast %855 : vector<16x16xf32> to vector<1x16x16xf32>
    tpu.vector_store %arg6[%c0_120, %c2_121, %c2_122], %858 {strides = array<i32>} : memref<4x20x20xf32, #tpu.memory_space<vmem>>, vector<1x16x16xf32>,
    %c3_123 = arith.constant 3 : index
    %859 = memref.load %arg3[%c3_123] : memref<8xf32, #tpu.memory_space<smem>>
    %860 = vector.broadcast %859 : f32 to vector<16x16xf32>
    %c0_124 = arith.constant 0 : index
    %c0_125 = arith.constant 0 : index
    %c0_126 = arith.constant 0 : index
    %861 = vector.load %arg6[%c0_124, %c0_125, %c0_126] : memref<4x20x20xf32, #tpu.memory_space<vmem>>, vector<1x20x20xf32>
    %862 = vector.shape_cast %861 : vector<1x20x20xf32> to vector<20x20xf32>
    %863 = vector.extract_strided_slice %862 {offsets = [0, 0], sizes = [20, 16], strides = [1, 1]} : vector<20x20xf32> to vector<20x16xf32>
    %864 = vector.extract_strided_slice %862 {offsets = [0, 1], sizes = [20, 16], strides = [1, 1]} : vector<20x20xf32> to vector<20x16xf32>
    %865 = vector.extract_strided_slice %862 {offsets = [0, 2], sizes = [20, 16], strides = [1, 1]} : vector<20x20xf32> to vector<20x16xf32>
    %866 = vector.extract_strided_slice %862 {offsets = [0, 3], sizes = [20, 16], strides = [1, 1]} : vector<20x20xf32> to vector<20x16xf32>
    %867 = vector.extract_strided_slice %862 {offsets = [0, 4], sizes = [20, 16], strides = [1, 1]} : vector<20x20xf32> to vector<20x16xf32>
    %c50_127 = arith.constant 50 : index
    %868 = memref.load %arg2[%c50_127] : memref<175xf32, #tpu.memory_space<smem>>
    %869 = vector.extract_strided_slice %863 {offsets = [0, 0], sizes = [16, 16], strides = [1, 1]} : vector<20x16xf32> to vector<16x16xf32>
    %870 = vector.broadcast %868 : f32 to vector<16x16xf32>
    %871 = arith.mulf %870, %869 : vector<16x16xf32>
    %872 = arith.addf %860, %871 : vector<16x16xf32>
    %c51_128 = arith.constant 51 : index
    %873 = memref.load %arg2[%c51_128] : memref<175xf32, #tpu.memory_space<smem>>
    %874 = vector.extract_strided_slice %864 {offsets = [0, 0], sizes = [16, 16], strides = [1, 1]} : vector<20x16xf32> to vector<16x16xf32>
    %875 = vector.broadcast %873 : f32 to vector<16x16xf32>
    %876 = arith.mulf %875, %874 : vector<16x16xf32>
    %877 = arith.addf %872, %876 : vector<16x16xf32>
    %c52_129 = arith.constant 52 : index
    %878 = memref.load %arg2[%c52_129] : memref<175xf32, #tpu.memory_space<smem>>
    %879 = vector.extract_strided_slice %865 {offsets = [0, 0], sizes = [16, 16], strides = [1, 1]} : vector<20x16xf32> to vector<16x16xf32>
    %880 = vector.broadcast %878 : f32 to vector<16x16xf32>
    %881 = arith.mulf %880, %879 : vector<16x16xf32>
    %882 = arith.addf %877, %881 : vector<16x16xf32>
    %c53_130 = arith.constant 53 : index
    %883 = memref.load %arg2[%c53_130] : memref<175xf32, #tpu.memory_space<smem>>
    %884 = vector.extract_strided_slice %866 {offsets = [0, 0], sizes = [16, 16], strides = [1, 1]} : vector<20x16xf32> to vector<16x16xf32>
    %885 = vector.broadcast %883 : f32 to vector<16x16xf32>
    %886 = arith.mulf %885, %884 : vector<16x16xf32>
    %887 = arith.addf %882, %886 : vector<16x16xf32>
    %c54_131 = arith.constant 54 : index
    %888 = memref.load %arg2[%c54_131] : memref<175xf32, #tpu.memory_space<smem>>
    %889 = vector.extract_strided_slice %867 {offsets = [0, 0], sizes = [16, 16], strides = [1, 1]} : vector<20x16xf32> to vector<16x16xf32>
    %890 = vector.broadcast %888 : f32 to vector<16x16xf32>
    %891 = arith.mulf %890, %889 : vector<16x16xf32>
    %892 = arith.addf %887, %891 : vector<16x16xf32>
    %c55_132 = arith.constant 55 : index
    %893 = memref.load %arg2[%c55_132] : memref<175xf32, #tpu.memory_space<smem>>
    %894 = vector.extract_strided_slice %863 {offsets = [1, 0], sizes = [16, 16], strides = [1, 1]} : vector<20x16xf32> to vector<16x16xf32>
    %895 = vector.broadcast %893 : f32 to vector<16x16xf32>
    %896 = arith.mulf %895, %894 : vector<16x16xf32>
    %897 = arith.addf %892, %896 : vector<16x16xf32>
    %c56_133 = arith.constant 56 : index
    %898 = memref.load %arg2[%c56_133] : memref<175xf32, #tpu.memory_space<smem>>
    %899 = vector.extract_strided_slice %864 {offsets = [1, 0], sizes = [16, 16], strides = [1, 1]} : vector<20x16xf32> to vector<16x16xf32>
    %900 = vector.broadcast %898 : f32 to vector<16x16xf32>
    %901 = arith.mulf %900, %899 : vector<16x16xf32>
    %902 = arith.addf %897, %901 : vector<16x16xf32>
    %c57_134 = arith.constant 57 : index
    %903 = memref.load %arg2[%c57_134] : memref<175xf32, #tpu.memory_space<smem>>
    %904 = vector.extract_strided_slice %865 {offsets = [1, 0], sizes = [16, 16], strides = [1, 1]} : vector<20x16xf32> to vector<16x16xf32>
    %905 = vector.broadcast %903 : f32 to vector<16x16xf32>
    %906 = arith.mulf %905, %904 : vector<16x16xf32>
    %907 = arith.addf %902, %906 : vector<16x16xf32>
    %c58_135 = arith.constant 58 : index
    %908 = memref.load %arg2[%c58_135] : memref<175xf32, #tpu.memory_space<smem>>
    %909 = vector.extract_strided_slice %866 {offsets = [1, 0], sizes = [16, 16], strides = [1, 1]} : vector<20x16xf32> to vector<16x16xf32>
    %910 = vector.broadcast %908 : f32 to vector<16x16xf32>
    %911 = arith.mulf %910, %909 : vector<16x16xf32>
    %912 = arith.addf %907, %911 : vector<16x16xf32>
    %c59_136 = arith.constant 59 : index
    %913 = memref.load %arg2[%c59_136] : memref<175xf32, #tpu.memory_space<smem>>
    %914 = vector.extract_strided_slice %867 {offsets = [1, 0], sizes = [16, 16], strides = [1, 1]} : vector<20x16xf32> to vector<16x16xf32>
    %915 = vector.broadcast %913 : f32 to vector<16x16xf32>
    %916 = arith.mulf %915, %914 : vector<16x16xf32>
    %917 = arith.addf %912, %916 : vector<16x16xf32>
    %c60_137 = arith.constant 60 : index
    %918 = memref.load %arg2[%c60_137] : memref<175xf32, #tpu.memory_space<smem>>
    %919 = vector.extract_strided_slice %863 {offsets = [2, 0], sizes = [16, 16], strides = [1, 1]} : vector<20x16xf32> to vector<16x16xf32>
    %920 = vector.broadcast %918 : f32 to vector<16x16xf32>
    %921 = arith.mulf %920, %919 : vector<16x16xf32>
    %922 = arith.addf %917, %921 : vector<16x16xf32>
    %c61_138 = arith.constant 61 : index
    %923 = memref.load %arg2[%c61_138] : memref<175xf32, #tpu.memory_space<smem>>
    %924 = vector.extract_strided_slice %864 {offsets = [2, 0], sizes = [16, 16], strides = [1, 1]} : vector<20x16xf32> to vector<16x16xf32>
    %925 = vector.broadcast %923 : f32 to vector<16x16xf32>
    %926 = arith.mulf %925, %924 : vector<16x16xf32>
    %927 = arith.addf %922, %926 : vector<16x16xf32>
    %c62_139 = arith.constant 62 : index
    %928 = memref.load %arg2[%c62_139] : memref<175xf32, #tpu.memory_space<smem>>
    %929 = vector.extract_strided_slice %865 {offsets = [2, 0], sizes = [16, 16], strides = [1, 1]} : vector<20x16xf32> to vector<16x16xf32>
    %930 = vector.broadcast %928 : f32 to vector<16x16xf32>
    %931 = arith.mulf %930, %929 : vector<16x16xf32>
    %932 = arith.addf %927, %931 : vector<16x16xf32>
    %c63_140 = arith.constant 63 : index
    %933 = memref.load %arg2[%c63_140] : memref<175xf32, #tpu.memory_space<smem>>
    %934 = vector.extract_strided_slice %866 {offsets = [2, 0], sizes = [16, 16], strides = [1, 1]} : vector<20x16xf32> to vector<16x16xf32>
    %935 = vector.broadcast %933 : f32 to vector<16x16xf32>
    %936 = arith.mulf %935, %934 : vector<16x16xf32>
    %937 = arith.addf %932, %936 : vector<16x16xf32>
    %c64_141 = arith.constant 64 : index
    %938 = memref.load %arg2[%c64_141] : memref<175xf32, #tpu.memory_space<smem>>
    %939 = vector.extract_strided_slice %867 {offsets = [2, 0], sizes = [16, 16], strides = [1, 1]} : vector<20x16xf32> to vector<16x16xf32>
    %940 = vector.broadcast %938 : f32 to vector<16x16xf32>
    %941 = arith.mulf %940, %939 : vector<16x16xf32>
    %942 = arith.addf %937, %941 : vector<16x16xf32>
    %c65_142 = arith.constant 65 : index
    %943 = memref.load %arg2[%c65_142] : memref<175xf32, #tpu.memory_space<smem>>
    %944 = vector.extract_strided_slice %863 {offsets = [3, 0], sizes = [16, 16], strides = [1, 1]} : vector<20x16xf32> to vector<16x16xf32>
    %945 = vector.broadcast %943 : f32 to vector<16x16xf32>
    %946 = arith.mulf %945, %944 : vector<16x16xf32>
    %947 = arith.addf %942, %946 : vector<16x16xf32>
    %c66_143 = arith.constant 66 : index
    %948 = memref.load %arg2[%c66_143] : memref<175xf32, #tpu.memory_space<smem>>
    %949 = vector.extract_strided_slice %864 {offsets = [3, 0], sizes = [16, 16], strides = [1, 1]} : vector<20x16xf32> to vector<16x16xf32>
    %950 = vector.broadcast %948 : f32 to vector<16x16xf32>
    %951 = arith.mulf %950, %949 : vector<16x16xf32>
    %952 = arith.addf %947, %951 : vector<16x16xf32>
    %c67_144 = arith.constant 67 : index
    %953 = memref.load %arg2[%c67_144] : memref<175xf32, #tpu.memory_space<smem>>
    %954 = vector.extract_strided_slice %865 {offsets = [3, 0], sizes = [16, 16], strides = [1, 1]} : vector<20x16xf32> to vector<16x16xf32>
    %955 = vector.broadcast %953 : f32 to vector<16x16xf32>
    %956 = arith.mulf %955, %954 : vector<16x16xf32>
    %957 = arith.addf %952, %956 : vector<16x16xf32>
    %c68_145 = arith.constant 68 : index
    %958 = memref.load %arg2[%c68_145] : memref<175xf32, #tpu.memory_space<smem>>
    %959 = vector.extract_strided_slice %866 {offsets = [3, 0], sizes = [16, 16], strides = [1, 1]} : vector<20x16xf32> to vector<16x16xf32>
    %960 = vector.broadcast %958 : f32 to vector<16x16xf32>
    %961 = arith.mulf %960, %959 : vector<16x16xf32>
    %962 = arith.addf %957, %961 : vector<16x16xf32>
    %c69_146 = arith.constant 69 : index
    %963 = memref.load %arg2[%c69_146] : memref<175xf32, #tpu.memory_space<smem>>
    %964 = vector.extract_strided_slice %867 {offsets = [3, 0], sizes = [16, 16], strides = [1, 1]} : vector<20x16xf32> to vector<16x16xf32>
    %965 = vector.broadcast %963 : f32 to vector<16x16xf32>
    %966 = arith.mulf %965, %964 : vector<16x16xf32>
    %967 = arith.addf %962, %966 : vector<16x16xf32>
    %c70_147 = arith.constant 70 : index
    %968 = memref.load %arg2[%c70_147] : memref<175xf32, #tpu.memory_space<smem>>
    %969 = vector.extract_strided_slice %863 {offsets = [4, 0], sizes = [16, 16], strides = [1, 1]} : vector<20x16xf32> to vector<16x16xf32>
    %970 = vector.broadcast %968 : f32 to vector<16x16xf32>
    %971 = arith.mulf %970, %969 : vector<16x16xf32>
    %972 = arith.addf %967, %971 : vector<16x16xf32>
    %c71_148 = arith.constant 71 : index
    %973 = memref.load %arg2[%c71_148] : memref<175xf32, #tpu.memory_space<smem>>
    %974 = vector.extract_strided_slice %864 {offsets = [4, 0], sizes = [16, 16], strides = [1, 1]} : vector<20x16xf32> to vector<16x16xf32>
    %975 = vector.broadcast %973 : f32 to vector<16x16xf32>
    %976 = arith.mulf %975, %974 : vector<16x16xf32>
    %977 = arith.addf %972, %976 : vector<16x16xf32>
    %c72_149 = arith.constant 72 : index
    %978 = memref.load %arg2[%c72_149] : memref<175xf32, #tpu.memory_space<smem>>
    %979 = vector.extract_strided_slice %865 {offsets = [4, 0], sizes = [16, 16], strides = [1, 1]} : vector<20x16xf32> to vector<16x16xf32>
    %980 = vector.broadcast %978 : f32 to vector<16x16xf32>
    %981 = arith.mulf %980, %979 : vector<16x16xf32>
    %982 = arith.addf %977, %981 : vector<16x16xf32>
    %c73_150 = arith.constant 73 : index
    %983 = memref.load %arg2[%c73_150] : memref<175xf32, #tpu.memory_space<smem>>
    %984 = vector.extract_strided_slice %866 {offsets = [4, 0], sizes = [16, 16], strides = [1, 1]} : vector<20x16xf32> to vector<16x16xf32>
    %985 = vector.broadcast %983 : f32 to vector<16x16xf32>
    %986 = arith.mulf %985, %984 : vector<16x16xf32>
    %987 = arith.addf %982, %986 : vector<16x16xf32>
    %c74_151 = arith.constant 74 : index
    %988 = memref.load %arg2[%c74_151] : memref<175xf32, #tpu.memory_space<smem>>
    %989 = vector.extract_strided_slice %867 {offsets = [4, 0], sizes = [16, 16], strides = [1, 1]} : vector<20x16xf32> to vector<16x16xf32>
    %990 = vector.broadcast %988 : f32 to vector<16x16xf32>
    %991 = arith.mulf %990, %989 : vector<16x16xf32>
    %992 = arith.addf %987, %991 : vector<16x16xf32>
    %993 = math.tanh %992 : vector<16x16xf32>
    %cst_152 = arith.constant 1.550000e+01 : f32
    %994 = vector.broadcast %cst_152 : f32 to vector<16x16xf32>
    %995 = arith.mulf %994, %993 : vector<16x16xf32>
    %cst_153 = arith.constant 1.550000e+01 : f32
    %996 = vector.broadcast %cst_153 : f32 to vector<16x16xf32>
    %997 = arith.addf %996, %995 : vector<16x16xf32>
    %998 = math.roundeven %997 : vector<16x16xf32>
    %cst_154 = arith.constant 1.550000e+01 : f32
    %999 = vector.broadcast %cst_154 : f32 to vector<16x16xf32>
    %1000 = arith.divf %998, %999 : vector<16x16xf32>
    %cst_155 = arith.constant 1.000000e+00 : f32
    %1001 = vector.broadcast %cst_155 : f32 to vector<16x16xf32>
    %1002 = arith.subf %1000, %1001 : vector<16x16xf32>
    %c0_156 = arith.constant 0 : index
    %c2_157 = arith.constant 2 : index
    %c2_158 = arith.constant 2 : index
    %1003 = vector.load %arg6[%c0_156, %c2_157, %c2_158] : memref<4x20x20xf32, #tpu.memory_space<vmem>>, vector<1x16x16xf32>
    %1004 = vector.shape_cast %1003 : vector<1x16x16xf32> to vector<16x16xf32>
    %1005 = vector.shape_cast %1002 : vector<16x16xf32> to vector<1x16x16xf32>
    tpu.vector_store %arg6[%c0_156, %c2_157, %c2_158], %1005 {strides = array<i32>} : memref<4x20x20xf32, #tpu.memory_space<vmem>>, vector<1x16x16xf32>,
    %c4_159 = arith.constant 4 : index
    %1006 = memref.load %arg3[%c4_159] : memref<8xf32, #tpu.memory_space<smem>>
    %1007 = vector.broadcast %1006 : f32 to vector<16x16xf32>
    %c0_160 = arith.constant 0 : index
    %c0_161 = arith.constant 0 : index
    %c0_162 = arith.constant 0 : index
    %1008 = vector.load %arg6[%c0_160, %c0_161, %c0_162] : memref<4x20x20xf32, #tpu.memory_space<vmem>>, vector<1x20x20xf32>
    %1009 = vector.shape_cast %1008 : vector<1x20x20xf32> to vector<20x20xf32>
    %1010 = vector.extract_strided_slice %1009 {offsets = [0, 0], sizes = [20, 16], strides = [1, 1]} : vector<20x20xf32> to vector<20x16xf32>
    %1011 = vector.extract_strided_slice %1009 {offsets = [0, 1], sizes = [20, 16], strides = [1, 1]} : vector<20x20xf32> to vector<20x16xf32>
    %1012 = vector.extract_strided_slice %1009 {offsets = [0, 2], sizes = [20, 16], strides = [1, 1]} : vector<20x20xf32> to vector<20x16xf32>
    %1013 = vector.extract_strided_slice %1009 {offsets = [0, 3], sizes = [20, 16], strides = [1, 1]} : vector<20x20xf32> to vector<20x16xf32>
    %1014 = vector.extract_strided_slice %1009 {offsets = [0, 4], sizes = [20, 16], strides = [1, 1]} : vector<20x20xf32> to vector<20x16xf32>
    %c75_163 = arith.constant 75 : index
    %1015 = memref.load %arg2[%c75_163] : memref<175xf32, #tpu.memory_space<smem>>
    %1016 = vector.extract_strided_slice %1010 {offsets = [0, 0], sizes = [16, 16], strides = [1, 1]} : vector<20x16xf32> to vector<16x16xf32>
    %1017 = vector.broadcast %1015 : f32 to vector<16x16xf32>
    %1018 = arith.mulf %1017, %1016 : vector<16x16xf32>
    %1019 = arith.addf %1007, %1018 : vector<16x16xf32>
    %c76_164 = arith.constant 76 : index
    %1020 = memref.load %arg2[%c76_164] : memref<175xf32, #tpu.memory_space<smem>>
    %1021 = vector.extract_strided_slice %1011 {offsets = [0, 0], sizes = [16, 16], strides = [1, 1]} : vector<20x16xf32> to vector<16x16xf32>
    %1022 = vector.broadcast %1020 : f32 to vector<16x16xf32>
    %1023 = arith.mulf %1022, %1021 : vector<16x16xf32>
    %1024 = arith.addf %1019, %1023 : vector<16x16xf32>
    %c77_165 = arith.constant 77 : index
    %1025 = memref.load %arg2[%c77_165] : memref<175xf32, #tpu.memory_space<smem>>
    %1026 = vector.extract_strided_slice %1012 {offsets = [0, 0], sizes = [16, 16], strides = [1, 1]} : vector<20x16xf32> to vector<16x16xf32>
    %1027 = vector.broadcast %1025 : f32 to vector<16x16xf32>
    %1028 = arith.mulf %1027, %1026 : vector<16x16xf32>
    %1029 = arith.addf %1024, %1028 : vector<16x16xf32>
    %c78_166 = arith.constant 78 : index
    %1030 = memref.load %arg2[%c78_166] : memref<175xf32, #tpu.memory_space<smem>>
    %1031 = vector.extract_strided_slice %1013 {offsets = [0, 0], sizes = [16, 16], strides = [1, 1]} : vector<20x16xf32> to vector<16x16xf32>
    %1032 = vector.broadcast %1030 : f32 to vector<16x16xf32>
    %1033 = arith.mulf %1032, %1031 : vector<16x16xf32>
    %1034 = arith.addf %1029, %1033 : vector<16x16xf32>
    %c79_167 = arith.constant 79 : index
    %1035 = memref.load %arg2[%c79_167] : memref<175xf32, #tpu.memory_space<smem>>
    %1036 = vector.extract_strided_slice %1014 {offsets = [0, 0], sizes = [16, 16], strides = [1, 1]} : vector<20x16xf32> to vector<16x16xf32>
    %1037 = vector.broadcast %1035 : f32 to vector<16x16xf32>
    %1038 = arith.mulf %1037, %1036 : vector<16x16xf32>
    %1039 = arith.addf %1034, %1038 : vector<16x16xf32>
    %c80_168 = arith.constant 80 : index
    %1040 = memref.load %arg2[%c80_168] : memref<175xf32, #tpu.memory_space<smem>>
    %1041 = vector.extract_strided_slice %1010 {offsets = [1, 0], sizes = [16, 16], strides = [1, 1]} : vector<20x16xf32> to vector<16x16xf32>
    %1042 = vector.broadcast %1040 : f32 to vector<16x16xf32>
    %1043 = arith.mulf %1042, %1041 : vector<16x16xf32>
    %1044 = arith.addf %1039, %1043 : vector<16x16xf32>
    %c81_169 = arith.constant 81 : index
    %1045 = memref.load %arg2[%c81_169] : memref<175xf32, #tpu.memory_space<smem>>
    %1046 = vector.extract_strided_slice %1011 {offsets = [1, 0], sizes = [16, 16], strides = [1, 1]} : vector<20x16xf32> to vector<16x16xf32>
    %1047 = vector.broadcast %1045 : f32 to vector<16x16xf32>
    %1048 = arith.mulf %1047, %1046 : vector<16x16xf32>
    %1049 = arith.addf %1044, %1048 : vector<16x16xf32>
    %c82_170 = arith.constant 82 : index
    %1050 = memref.load %arg2[%c82_170] : memref<175xf32, #tpu.memory_space<smem>>
    %1051 = vector.extract_strided_slice %1012 {offsets = [1, 0], sizes = [16, 16], strides = [1, 1]} : vector<20x16xf32> to vector<16x16xf32>
    %1052 = vector.broadcast %1050 : f32 to vector<16x16xf32>
    %1053 = arith.mulf %1052, %1051 : vector<16x16xf32>
    %1054 = arith.addf %1049, %1053 : vector<16x16xf32>
    %c83_171 = arith.constant 83 : index
    %1055 = memref.load %arg2[%c83_171] : memref<175xf32, #tpu.memory_space<smem>>
    %1056 = vector.extract_strided_slice %1013 {offsets = [1, 0], sizes = [16, 16], strides = [1, 1]} : vector<20x16xf32> to vector<16x16xf32>
    %1057 = vector.broadcast %1055 : f32 to vector<16x16xf32>
    %1058 = arith.mulf %1057, %1056 : vector<16x16xf32>
    %1059 = arith.addf %1054, %1058 : vector<16x16xf32>
    %c84_172 = arith.constant 84 : index
    %1060 = memref.load %arg2[%c84_172] : memref<175xf32, #tpu.memory_space<smem>>
    %1061 = vector.extract_strided_slice %1014 {offsets = [1, 0], sizes = [16, 16], strides = [1, 1]} : vector<20x16xf32> to vector<16x16xf32>
    %1062 = vector.broadcast %1060 : f32 to vector<16x16xf32>
    %1063 = arith.mulf %1062, %1061 : vector<16x16xf32>
    %1064 = arith.addf %1059, %1063 : vector<16x16xf32>
    %c85_173 = arith.constant 85 : index
    %1065 = memref.load %arg2[%c85_173] : memref<175xf32, #tpu.memory_space<smem>>
    %1066 = vector.extract_strided_slice %1010 {offsets = [2, 0], sizes = [16, 16], strides = [1, 1]} : vector<20x16xf32> to vector<16x16xf32>
    %1067 = vector.broadcast %1065 : f32 to vector<16x16xf32>
    %1068 = arith.mulf %1067, %1066 : vector<16x16xf32>
    %1069 = arith.addf %1064, %1068 : vector<16x16xf32>
    %c86_174 = arith.constant 86 : index
    %1070 = memref.load %arg2[%c86_174] : memref<175xf32, #tpu.memory_space<smem>>
    %1071 = vector.extract_strided_slice %1011 {offsets = [2, 0], sizes = [16, 16], strides = [1, 1]} : vector<20x16xf32> to vector<16x16xf32>
    %1072 = vector.broadcast %1070 : f32 to vector<16x16xf32>
    %1073 = arith.mulf %1072, %1071 : vector<16x16xf32>
    %1074 = arith.addf %1069, %1073 : vector<16x16xf32>
    %c87_175 = arith.constant 87 : index
    %1075 = memref.load %arg2[%c87_175] : memref<175xf32, #tpu.memory_space<smem>>
    %1076 = vector.extract_strided_slice %1012 {offsets = [2, 0], sizes = [16, 16], strides = [1, 1]} : vector<20x16xf32> to vector<16x16xf32>
    %1077 = vector.broadcast %1075 : f32 to vector<16x16xf32>
    %1078 = arith.mulf %1077, %1076 : vector<16x16xf32>
    %1079 = arith.addf %1074, %1078 : vector<16x16xf32>
    %c88_176 = arith.constant 88 : index
    %1080 = memref.load %arg2[%c88_176] : memref<175xf32, #tpu.memory_space<smem>>
    %1081 = vector.extract_strided_slice %1013 {offsets = [2, 0], sizes = [16, 16], strides = [1, 1]} : vector<20x16xf32> to vector<16x16xf32>
    %1082 = vector.broadcast %1080 : f32 to vector<16x16xf32>
    %1083 = arith.mulf %1082, %1081 : vector<16x16xf32>
    %1084 = arith.addf %1079, %1083 : vector<16x16xf32>
    %c89_177 = arith.constant 89 : index
    %1085 = memref.load %arg2[%c89_177] : memref<175xf32, #tpu.memory_space<smem>>
    %1086 = vector.extract_strided_slice %1014 {offsets = [2, 0], sizes = [16, 16], strides = [1, 1]} : vector<20x16xf32> to vector<16x16xf32>
    %1087 = vector.broadcast %1085 : f32 to vector<16x16xf32>
    %1088 = arith.mulf %1087, %1086 : vector<16x16xf32>
    %1089 = arith.addf %1084, %1088 : vector<16x16xf32>
    %c90_178 = arith.constant 90 : index
    %1090 = memref.load %arg2[%c90_178] : memref<175xf32, #tpu.memory_space<smem>>
    %1091 = vector.extract_strided_slice %1010 {offsets = [3, 0], sizes = [16, 16], strides = [1, 1]} : vector<20x16xf32> to vector<16x16xf32>
    %1092 = vector.broadcast %1090 : f32 to vector<16x16xf32>
    %1093 = arith.mulf %1092, %1091 : vector<16x16xf32>
    %1094 = arith.addf %1089, %1093 : vector<16x16xf32>
    %c91_179 = arith.constant 91 : index
    %1095 = memref.load %arg2[%c91_179] : memref<175xf32, #tpu.memory_space<smem>>
    %1096 = vector.extract_strided_slice %1011 {offsets = [3, 0], sizes = [16, 16], strides = [1, 1]} : vector<20x16xf32> to vector<16x16xf32>
    %1097 = vector.broadcast %1095 : f32 to vector<16x16xf32>
    %1098 = arith.mulf %1097, %1096 : vector<16x16xf32>
    %1099 = arith.addf %1094, %1098 : vector<16x16xf32>
    %c92_180 = arith.constant 92 : index
    %1100 = memref.load %arg2[%c92_180] : memref<175xf32, #tpu.memory_space<smem>>
    %1101 = vector.extract_strided_slice %1012 {offsets = [3, 0], sizes = [16, 16], strides = [1, 1]} : vector<20x16xf32> to vector<16x16xf32>
    %1102 = vector.broadcast %1100 : f32 to vector<16x16xf32>
    %1103 = arith.mulf %1102, %1101 : vector<16x16xf32>
    %1104 = arith.addf %1099, %1103 : vector<16x16xf32>
    %c93_181 = arith.constant 93 : index
    %1105 = memref.load %arg2[%c93_181] : memref<175xf32, #tpu.memory_space<smem>>
    %1106 = vector.extract_strided_slice %1013 {offsets = [3, 0], sizes = [16, 16], strides = [1, 1]} : vector<20x16xf32> to vector<16x16xf32>
    %1107 = vector.broadcast %1105 : f32 to vector<16x16xf32>
    %1108 = arith.mulf %1107, %1106 : vector<16x16xf32>
    %1109 = arith.addf %1104, %1108 : vector<16x16xf32>
    %c94_182 = arith.constant 94 : index
    %1110 = memref.load %arg2[%c94_182] : memref<175xf32, #tpu.memory_space<smem>>
    %1111 = vector.extract_strided_slice %1014 {offsets = [3, 0], sizes = [16, 16], strides = [1, 1]} : vector<20x16xf32> to vector<16x16xf32>
    %1112 = vector.broadcast %1110 : f32 to vector<16x16xf32>
    %1113 = arith.mulf %1112, %1111 : vector<16x16xf32>
    %1114 = arith.addf %1109, %1113 : vector<16x16xf32>
    %c95_183 = arith.constant 95 : index
    %1115 = memref.load %arg2[%c95_183] : memref<175xf32, #tpu.memory_space<smem>>
    %1116 = vector.extract_strided_slice %1010 {offsets = [4, 0], sizes = [16, 16], strides = [1, 1]} : vector<20x16xf32> to vector<16x16xf32>
    %1117 = vector.broadcast %1115 : f32 to vector<16x16xf32>
    %1118 = arith.mulf %1117, %1116 : vector<16x16xf32>
    %1119 = arith.addf %1114, %1118 : vector<16x16xf32>
    %c96_184 = arith.constant 96 : index
    %1120 = memref.load %arg2[%c96_184] : memref<175xf32, #tpu.memory_space<smem>>
    %1121 = vector.extract_strided_slice %1011 {offsets = [4, 0], sizes = [16, 16], strides = [1, 1]} : vector<20x16xf32> to vector<16x16xf32>
    %1122 = vector.broadcast %1120 : f32 to vector<16x16xf32>
    %1123 = arith.mulf %1122, %1121 : vector<16x16xf32>
    %1124 = arith.addf %1119, %1123 : vector<16x16xf32>
    %c97_185 = arith.constant 97 : index
    %1125 = memref.load %arg2[%c97_185] : memref<175xf32, #tpu.memory_space<smem>>
    %1126 = vector.extract_strided_slice %1012 {offsets = [4, 0], sizes = [16, 16], strides = [1, 1]} : vector<20x16xf32> to vector<16x16xf32>
    %1127 = vector.broadcast %1125 : f32 to vector<16x16xf32>
    %1128 = arith.mulf %1127, %1126 : vector<16x16xf32>
    %1129 = arith.addf %1124, %1128 : vector<16x16xf32>
    %c98_186 = arith.constant 98 : index
    %1130 = memref.load %arg2[%c98_186] : memref<175xf32, #tpu.memory_space<smem>>
    %1131 = vector.extract_strided_slice %1013 {offsets = [4, 0], sizes = [16, 16], strides = [1, 1]} : vector<20x16xf32> to vector<16x16xf32>
    %1132 = vector.broadcast %1130 : f32 to vector<16x16xf32>
    %1133 = arith.mulf %1132, %1131 : vector<16x16xf32>
    %1134 = arith.addf %1129, %1133 : vector<16x16xf32>
    %c99_187 = arith.constant 99 : index
    %1135 = memref.load %arg2[%c99_187] : memref<175xf32, #tpu.memory_space<smem>>
    %1136 = vector.extract_strided_slice %1014 {offsets = [4, 0], sizes = [16, 16], strides = [1, 1]} : vector<20x16xf32> to vector<16x16xf32>
    %1137 = vector.broadcast %1135 : f32 to vector<16x16xf32>
    %1138 = arith.mulf %1137, %1136 : vector<16x16xf32>
    %1139 = arith.addf %1134, %1138 : vector<16x16xf32>
    %1140 = math.tanh %1139 : vector<16x16xf32>
    %cst_188 = arith.constant 7.500000e+00 : f32
    %1141 = vector.broadcast %cst_188 : f32 to vector<16x16xf32>
    %1142 = arith.mulf %1141, %1140 : vector<16x16xf32>
    %cst_189 = arith.constant 7.500000e+00 : f32
    %1143 = vector.broadcast %cst_189 : f32 to vector<16x16xf32>
    %1144 = arith.addf %1143, %1142 : vector<16x16xf32>
    %1145 = math.roundeven %1144 : vector<16x16xf32>
    %cst_190 = arith.constant 7.500000e+00 : f32
    %1146 = vector.broadcast %cst_190 : f32 to vector<16x16xf32>
    %1147 = arith.divf %1145, %1146 : vector<16x16xf32>
    %cst_191 = arith.constant 1.000000e+00 : f32
    %1148 = vector.broadcast %cst_191 : f32 to vector<16x16xf32>
    %1149 = arith.subf %1147, %1148 : vector<16x16xf32>
    %c0_192 = arith.constant 0 : index
    %c2_193 = arith.constant 2 : index
    %c2_194 = arith.constant 2 : index
    %1150 = vector.load %arg6[%c0_192, %c2_193, %c2_194] : memref<4x20x20xf32, #tpu.memory_space<vmem>>, vector<1x16x16xf32>
    %1151 = vector.shape_cast %1150 : vector<1x16x16xf32> to vector<16x16xf32>
    %1152 = vector.shape_cast %1149 : vector<16x16xf32> to vector<1x16x16xf32>
    tpu.vector_store %arg6[%c0_192, %c2_193, %c2_194], %1152 {strides = array<i32>} : memref<4x20x20xf32, #tpu.memory_space<vmem>>, vector<1x16x16xf32>,
    %c5_195 = arith.constant 5 : index
    %1153 = memref.load %arg3[%c5_195] : memref<8xf32, #tpu.memory_space<smem>>
    %1154 = vector.broadcast %1153 : f32 to vector<16x16xf32>
    %c0_196 = arith.constant 0 : index
    %c0_197 = arith.constant 0 : index
    %c0_198 = arith.constant 0 : index
    %1155 = vector.load %arg6[%c0_196, %c0_197, %c0_198] : memref<4x20x20xf32, #tpu.memory_space<vmem>>, vector<1x20x20xf32>
    %1156 = vector.shape_cast %1155 : vector<1x20x20xf32> to vector<20x20xf32>
    %1157 = vector.extract_strided_slice %1156 {offsets = [0, 0], sizes = [20, 16], strides = [1, 1]} : vector<20x20xf32> to vector<20x16xf32>
    %1158 = vector.extract_strided_slice %1156 {offsets = [0, 1], sizes = [20, 16], strides = [1, 1]} : vector<20x20xf32> to vector<20x16xf32>
    %1159 = vector.extract_strided_slice %1156 {offsets = [0, 2], sizes = [20, 16], strides = [1, 1]} : vector<20x20xf32> to vector<20x16xf32>
    %1160 = vector.extract_strided_slice %1156 {offsets = [0, 3], sizes = [20, 16], strides = [1, 1]} : vector<20x20xf32> to vector<20x16xf32>
    %1161 = vector.extract_strided_slice %1156 {offsets = [0, 4], sizes = [20, 16], strides = [1, 1]} : vector<20x20xf32> to vector<20x16xf32>
    %c100 = arith.constant 100 : index
    %1162 = memref.load %arg2[%c100] : memref<175xf32, #tpu.memory_space<smem>>
    %1163 = vector.extract_strided_slice %1157 {offsets = [0, 0], sizes = [16, 16], strides = [1, 1]} : vector<20x16xf32> to vector<16x16xf32>
    %1164 = vector.broadcast %1162 : f32 to vector<16x16xf32>
    %1165 = arith.mulf %1164, %1163 : vector<16x16xf32>
    %1166 = arith.addf %1154, %1165 : vector<16x16xf32>
    %c101 = arith.constant 101 : index
    %1167 = memref.load %arg2[%c101] : memref<175xf32, #tpu.memory_space<smem>>
    %1168 = vector.extract_strided_slice %1158 {offsets = [0, 0], sizes = [16, 16], strides = [1, 1]} : vector<20x16xf32> to vector<16x16xf32>
    %1169 = vector.broadcast %1167 : f32 to vector<16x16xf32>
    %1170 = arith.mulf %1169, %1168 : vector<16x16xf32>
    %1171 = arith.addf %1166, %1170 : vector<16x16xf32>
    %c102 = arith.constant 102 : index
    %1172 = memref.load %arg2[%c102] : memref<175xf32, #tpu.memory_space<smem>>
    %1173 = vector.extract_strided_slice %1159 {offsets = [0, 0], sizes = [16, 16], strides = [1, 1]} : vector<20x16xf32> to vector<16x16xf32>
    %1174 = vector.broadcast %1172 : f32 to vector<16x16xf32>
    %1175 = arith.mulf %1174, %1173 : vector<16x16xf32>
    %1176 = arith.addf %1171, %1175 : vector<16x16xf32>
    %c103 = arith.constant 103 : index
    %1177 = memref.load %arg2[%c103] : memref<175xf32, #tpu.memory_space<smem>>
    %1178 = vector.extract_strided_slice %1160 {offsets = [0, 0], sizes = [16, 16], strides = [1, 1]} : vector<20x16xf32> to vector<16x16xf32>
    %1179 = vector.broadcast %1177 : f32 to vector<16x16xf32>
    %1180 = arith.mulf %1179, %1178 : vector<16x16xf32>
    %1181 = arith.addf %1176, %1180 : vector<16x16xf32>
    %c104 = arith.constant 104 : index
    %1182 = memref.load %arg2[%c104] : memref<175xf32, #tpu.memory_space<smem>>
    %1183 = vector.extract_strided_slice %1161 {offsets = [0, 0], sizes = [16, 16], strides = [1, 1]} : vector<20x16xf32> to vector<16x16xf32>
    %1184 = vector.broadcast %1182 : f32 to vector<16x16xf32>
    %1185 = arith.mulf %1184, %1183 : vector<16x16xf32>
    %1186 = arith.addf %1181, %1185 : vector<16x16xf32>
    %c105 = arith.constant 105 : index
    %1187 = memref.load %arg2[%c105] : memref<175xf32, #tpu.memory_space<smem>>
    %1188 = vector.extract_strided_slice %1157 {offsets = [1, 0], sizes = [16, 16], strides = [1, 1]} : vector<20x16xf32> to vector<16x16xf32>
    %1189 = vector.broadcast %1187 : f32 to vector<16x16xf32>
    %1190 = arith.mulf %1189, %1188 : vector<16x16xf32>
    %1191 = arith.addf %1186, %1190 : vector<16x16xf32>
    %c106 = arith.constant 106 : index
    %1192 = memref.load %arg2[%c106] : memref<175xf32, #tpu.memory_space<smem>>
    %1193 = vector.extract_strided_slice %1158 {offsets = [1, 0], sizes = [16, 16], strides = [1, 1]} : vector<20x16xf32> to vector<16x16xf32>
    %1194 = vector.broadcast %1192 : f32 to vector<16x16xf32>
    %1195 = arith.mulf %1194, %1193 : vector<16x16xf32>
    %1196 = arith.addf %1191, %1195 : vector<16x16xf32>
    %c107 = arith.constant 107 : index
    %1197 = memref.load %arg2[%c107] : memref<175xf32, #tpu.memory_space<smem>>
    %1198 = vector.extract_strided_slice %1159 {offsets = [1, 0], sizes = [16, 16], strides = [1, 1]} : vector<20x16xf32> to vector<16x16xf32>
    %1199 = vector.broadcast %1197 : f32 to vector<16x16xf32>
    %1200 = arith.mulf %1199, %1198 : vector<16x16xf32>
    %1201 = arith.addf %1196, %1200 : vector<16x16xf32>
    %c108 = arith.constant 108 : index
    %1202 = memref.load %arg2[%c108] : memref<175xf32, #tpu.memory_space<smem>>
    %1203 = vector.extract_strided_slice %1160 {offsets = [1, 0], sizes = [16, 16], strides = [1, 1]} : vector<20x16xf32> to vector<16x16xf32>
    %1204 = vector.broadcast %1202 : f32 to vector<16x16xf32>
    %1205 = arith.mulf %1204, %1203 : vector<16x16xf32>
    %1206 = arith.addf %1201, %1205 : vector<16x16xf32>
    %c109 = arith.constant 109 : index
    %1207 = memref.load %arg2[%c109] : memref<175xf32, #tpu.memory_space<smem>>
    %1208 = vector.extract_strided_slice %1161 {offsets = [1, 0], sizes = [16, 16], strides = [1, 1]} : vector<20x16xf32> to vector<16x16xf32>
    %1209 = vector.broadcast %1207 : f32 to vector<16x16xf32>
    %1210 = arith.mulf %1209, %1208 : vector<16x16xf32>
    %1211 = arith.addf %1206, %1210 : vector<16x16xf32>
    %c110 = arith.constant 110 : index
    %1212 = memref.load %arg2[%c110] : memref<175xf32, #tpu.memory_space<smem>>
    %1213 = vector.extract_strided_slice %1157 {offsets = [2, 0], sizes = [16, 16], strides = [1, 1]} : vector<20x16xf32> to vector<16x16xf32>
    %1214 = vector.broadcast %1212 : f32 to vector<16x16xf32>
    %1215 = arith.mulf %1214, %1213 : vector<16x16xf32>
    %1216 = arith.addf %1211, %1215 : vector<16x16xf32>
    %c111 = arith.constant 111 : index
    %1217 = memref.load %arg2[%c111] : memref<175xf32, #tpu.memory_space<smem>>
    %1218 = vector.extract_strided_slice %1158 {offsets = [2, 0], sizes = [16, 16], strides = [1, 1]} : vector<20x16xf32> to vector<16x16xf32>
    %1219 = vector.broadcast %1217 : f32 to vector<16x16xf32>
    %1220 = arith.mulf %1219, %1218 : vector<16x16xf32>
    %1221 = arith.addf %1216, %1220 : vector<16x16xf32>
    %c112 = arith.constant 112 : index
    %1222 = memref.load %arg2[%c112] : memref<175xf32, #tpu.memory_space<smem>>
    %1223 = vector.extract_strided_slice %1159 {offsets = [2, 0], sizes = [16, 16], strides = [1, 1]} : vector<20x16xf32> to vector<16x16xf32>
    %1224 = vector.broadcast %1222 : f32 to vector<16x16xf32>
    %1225 = arith.mulf %1224, %1223 : vector<16x16xf32>
    %1226 = arith.addf %1221, %1225 : vector<16x16xf32>
    %c113 = arith.constant 113 : index
    %1227 = memref.load %arg2[%c113] : memref<175xf32, #tpu.memory_space<smem>>
    %1228 = vector.extract_strided_slice %1160 {offsets = [2, 0], sizes = [16, 16], strides = [1, 1]} : vector<20x16xf32> to vector<16x16xf32>
    %1229 = vector.broadcast %1227 : f32 to vector<16x16xf32>
    %1230 = arith.mulf %1229, %1228 : vector<16x16xf32>
    %1231 = arith.addf %1226, %1230 : vector<16x16xf32>
    %c114 = arith.constant 114 : index
    %1232 = memref.load %arg2[%c114] : memref<175xf32, #tpu.memory_space<smem>>
    %1233 = vector.extract_strided_slice %1161 {offsets = [2, 0], sizes = [16, 16], strides = [1, 1]} : vector<20x16xf32> to vector<16x16xf32>
    %1234 = vector.broadcast %1232 : f32 to vector<16x16xf32>
    %1235 = arith.mulf %1234, %1233 : vector<16x16xf32>
    %1236 = arith.addf %1231, %1235 : vector<16x16xf32>
    %c115 = arith.constant 115 : index
    %1237 = memref.load %arg2[%c115] : memref<175xf32, #tpu.memory_space<smem>>
    %1238 = vector.extract_strided_slice %1157 {offsets = [3, 0], sizes = [16, 16], strides = [1, 1]} : vector<20x16xf32> to vector<16x16xf32>
    %1239 = vector.broadcast %1237 : f32 to vector<16x16xf32>
    %1240 = arith.mulf %1239, %1238 : vector<16x16xf32>
    %1241 = arith.addf %1236, %1240 : vector<16x16xf32>
    %c116 = arith.constant 116 : index
    %1242 = memref.load %arg2[%c116] : memref<175xf32, #tpu.memory_space<smem>>
    %1243 = vector.extract_strided_slice %1158 {offsets = [3, 0], sizes = [16, 16], strides = [1, 1]} : vector<20x16xf32> to vector<16x16xf32>
    %1244 = vector.broadcast %1242 : f32 to vector<16x16xf32>
    %1245 = arith.mulf %1244, %1243 : vector<16x16xf32>
    %1246 = arith.addf %1241, %1245 : vector<16x16xf32>
    %c117 = arith.constant 117 : index
    %1247 = memref.load %arg2[%c117] : memref<175xf32, #tpu.memory_space<smem>>
    %1248 = vector.extract_strided_slice %1159 {offsets = [3, 0], sizes = [16, 16], strides = [1, 1]} : vector<20x16xf32> to vector<16x16xf32>
    %1249 = vector.broadcast %1247 : f32 to vector<16x16xf32>
    %1250 = arith.mulf %1249, %1248 : vector<16x16xf32>
    %1251 = arith.addf %1246, %1250 : vector<16x16xf32>
    %c118 = arith.constant 118 : index
    %1252 = memref.load %arg2[%c118] : memref<175xf32, #tpu.memory_space<smem>>
    %1253 = vector.extract_strided_slice %1160 {offsets = [3, 0], sizes = [16, 16], strides = [1, 1]} : vector<20x16xf32> to vector<16x16xf32>
    %1254 = vector.broadcast %1252 : f32 to vector<16x16xf32>
    %1255 = arith.mulf %1254, %1253 : vector<16x16xf32>
    %1256 = arith.addf %1251, %1255 : vector<16x16xf32>
    %c119 = arith.constant 119 : index
    %1257 = memref.load %arg2[%c119] : memref<175xf32, #tpu.memory_space<smem>>
    %1258 = vector.extract_strided_slice %1161 {offsets = [3, 0], sizes = [16, 16], strides = [1, 1]} : vector<20x16xf32> to vector<16x16xf32>
    %1259 = vector.broadcast %1257 : f32 to vector<16x16xf32>
    %1260 = arith.mulf %1259, %1258 : vector<16x16xf32>
    %1261 = arith.addf %1256, %1260 : vector<16x16xf32>
    %c120 = arith.constant 120 : index
    %1262 = memref.load %arg2[%c120] : memref<175xf32, #tpu.memory_space<smem>>
    %1263 = vector.extract_strided_slice %1157 {offsets = [4, 0], sizes = [16, 16], strides = [1, 1]} : vector<20x16xf32> to vector<16x16xf32>
    %1264 = vector.broadcast %1262 : f32 to vector<16x16xf32>
    %1265 = arith.mulf %1264, %1263 : vector<16x16xf32>
    %1266 = arith.addf %1261, %1265 : vector<16x16xf32>
    %c121 = arith.constant 121 : index
    %1267 = memref.load %arg2[%c121] : memref<175xf32, #tpu.memory_space<smem>>
    %1268 = vector.extract_strided_slice %1158 {offsets = [4, 0], sizes = [16, 16], strides = [1, 1]} : vector<20x16xf32> to vector<16x16xf32>
    %1269 = vector.broadcast %1267 : f32 to vector<16x16xf32>
    %1270 = arith.mulf %1269, %1268 : vector<16x16xf32>
    %1271 = arith.addf %1266, %1270 : vector<16x16xf32>
    %c122 = arith.constant 122 : index
    %1272 = memref.load %arg2[%c122] : memref<175xf32, #tpu.memory_space<smem>>
    %1273 = vector.extract_strided_slice %1159 {offsets = [4, 0], sizes = [16, 16], strides = [1, 1]} : vector<20x16xf32> to vector<16x16xf32>
    %1274 = vector.broadcast %1272 : f32 to vector<16x16xf32>
    %1275 = arith.mulf %1274, %1273 : vector<16x16xf32>
    %1276 = arith.addf %1271, %1275 : vector<16x16xf32>
    %c123 = arith.constant 123 : index
    %1277 = memref.load %arg2[%c123] : memref<175xf32, #tpu.memory_space<smem>>
    %1278 = vector.extract_strided_slice %1160 {offsets = [4, 0], sizes = [16, 16], strides = [1, 1]} : vector<20x16xf32> to vector<16x16xf32>
    %1279 = vector.broadcast %1277 : f32 to vector<16x16xf32>
    %1280 = arith.mulf %1279, %1278 : vector<16x16xf32>
    %1281 = arith.addf %1276, %1280 : vector<16x16xf32>
    %c124 = arith.constant 124 : index
    %1282 = memref.load %arg2[%c124] : memref<175xf32, #tpu.memory_space<smem>>
    %1283 = vector.extract_strided_slice %1161 {offsets = [4, 0], sizes = [16, 16], strides = [1, 1]} : vector<20x16xf32> to vector<16x16xf32>
    %1284 = vector.broadcast %1282 : f32 to vector<16x16xf32>
    %1285 = arith.mulf %1284, %1283 : vector<16x16xf32>
    %1286 = arith.addf %1281, %1285 : vector<16x16xf32>
    %1287 = math.tanh %1286 : vector<16x16xf32>
    %cst_199 = arith.constant 3.500000e+00 : f32
    %1288 = vector.broadcast %cst_199 : f32 to vector<16x16xf32>
    %1289 = arith.mulf %1288, %1287 : vector<16x16xf32>
    %cst_200 = arith.constant 3.500000e+00 : f32
    %1290 = vector.broadcast %cst_200 : f32 to vector<16x16xf32>
    %1291 = arith.addf %1290, %1289 : vector<16x16xf32>
    %1292 = math.roundeven %1291 : vector<16x16xf32>
    %cst_201 = arith.constant 3.500000e+00 : f32
    %1293 = vector.broadcast %cst_201 : f32 to vector<16x16xf32>
    %1294 = arith.divf %1292, %1293 : vector<16x16xf32>
    %cst_202 = arith.constant 1.000000e+00 : f32
    %1295 = vector.broadcast %cst_202 : f32 to vector<16x16xf32>
    %1296 = arith.subf %1294, %1295 : vector<16x16xf32>
    %c0_203 = arith.constant 0 : index
    %c2_204 = arith.constant 2 : index
    %c2_205 = arith.constant 2 : index
    %1297 = vector.load %arg6[%c0_203, %c2_204, %c2_205] : memref<4x20x20xf32, #tpu.memory_space<vmem>>, vector<1x16x16xf32>
    %1298 = vector.shape_cast %1297 : vector<1x16x16xf32> to vector<16x16xf32>
    %1299 = vector.shape_cast %1296 : vector<16x16xf32> to vector<1x16x16xf32>
    tpu.vector_store %arg6[%c0_203, %c2_204, %c2_205], %1299 {strides = array<i32>} : memref<4x20x20xf32, #tpu.memory_space<vmem>>, vector<1x16x16xf32>,
    %c6_206 = arith.constant 6 : index
    %1300 = memref.load %arg3[%c6_206] : memref<8xf32, #tpu.memory_space<smem>>
    %1301 = vector.broadcast %1300 : f32 to vector<16x16xf32>
    %c0_207 = arith.constant 0 : index
    %c0_208 = arith.constant 0 : index
    %c0_209 = arith.constant 0 : index
    %1302 = vector.load %arg6[%c0_207, %c0_208, %c0_209] : memref<4x20x20xf32, #tpu.memory_space<vmem>>, vector<1x20x20xf32>
    %1303 = vector.shape_cast %1302 : vector<1x20x20xf32> to vector<20x20xf32>
    %1304 = vector.extract_strided_slice %1303 {offsets = [0, 0], sizes = [20, 16], strides = [1, 1]} : vector<20x20xf32> to vector<20x16xf32>
    %1305 = vector.extract_strided_slice %1303 {offsets = [0, 1], sizes = [20, 16], strides = [1, 1]} : vector<20x20xf32> to vector<20x16xf32>
    %1306 = vector.extract_strided_slice %1303 {offsets = [0, 2], sizes = [20, 16], strides = [1, 1]} : vector<20x20xf32> to vector<20x16xf32>
    %1307 = vector.extract_strided_slice %1303 {offsets = [0, 3], sizes = [20, 16], strides = [1, 1]} : vector<20x20xf32> to vector<20x16xf32>
    %1308 = vector.extract_strided_slice %1303 {offsets = [0, 4], sizes = [20, 16], strides = [1, 1]} : vector<20x20xf32> to vector<20x16xf32>
    %c125 = arith.constant 125 : index
    %1309 = memref.load %arg2[%c125] : memref<175xf32, #tpu.memory_space<smem>>
    %1310 = vector.extract_strided_slice %1304 {offsets = [0, 0], sizes = [16, 16], strides = [1, 1]} : vector<20x16xf32> to vector<16x16xf32>
    %1311 = vector.broadcast %1309 : f32 to vector<16x16xf32>
    %1312 = arith.mulf %1311, %1310 : vector<16x16xf32>
    %1313 = arith.addf %1301, %1312 : vector<16x16xf32>
    %c126 = arith.constant 126 : index
    %1314 = memref.load %arg2[%c126] : memref<175xf32, #tpu.memory_space<smem>>
    %1315 = vector.extract_strided_slice %1305 {offsets = [0, 0], sizes = [16, 16], strides = [1, 1]} : vector<20x16xf32> to vector<16x16xf32>
    %1316 = vector.broadcast %1314 : f32 to vector<16x16xf32>
    %1317 = arith.mulf %1316, %1315 : vector<16x16xf32>
    %1318 = arith.addf %1313, %1317 : vector<16x16xf32>
    %c127 = arith.constant 127 : index
    %1319 = memref.load %arg2[%c127] : memref<175xf32, #tpu.memory_space<smem>>
    %1320 = vector.extract_strided_slice %1306 {offsets = [0, 0], sizes = [16, 16], strides = [1, 1]} : vector<20x16xf32> to vector<16x16xf32>
    %1321 = vector.broadcast %1319 : f32 to vector<16x16xf32>
    %1322 = arith.mulf %1321, %1320 : vector<16x16xf32>
    %1323 = arith.addf %1318, %1322 : vector<16x16xf32>
    %c128 = arith.constant 128 : index
    %1324 = memref.load %arg2[%c128] : memref<175xf32, #tpu.memory_space<smem>>
    %1325 = vector.extract_strided_slice %1307 {offsets = [0, 0], sizes = [16, 16], strides = [1, 1]} : vector<20x16xf32> to vector<16x16xf32>
    %1326 = vector.broadcast %1324 : f32 to vector<16x16xf32>
    %1327 = arith.mulf %1326, %1325 : vector<16x16xf32>
    %1328 = arith.addf %1323, %1327 : vector<16x16xf32>
    %c129 = arith.constant 129 : index
    %1329 = memref.load %arg2[%c129] : memref<175xf32, #tpu.memory_space<smem>>
    %1330 = vector.extract_strided_slice %1308 {offsets = [0, 0], sizes = [16, 16], strides = [1, 1]} : vector<20x16xf32> to vector<16x16xf32>
    %1331 = vector.broadcast %1329 : f32 to vector<16x16xf32>
    %1332 = arith.mulf %1331, %1330 : vector<16x16xf32>
    %1333 = arith.addf %1328, %1332 : vector<16x16xf32>
    %c130 = arith.constant 130 : index
    %1334 = memref.load %arg2[%c130] : memref<175xf32, #tpu.memory_space<smem>>
    %1335 = vector.extract_strided_slice %1304 {offsets = [1, 0], sizes = [16, 16], strides = [1, 1]} : vector<20x16xf32> to vector<16x16xf32>
    %1336 = vector.broadcast %1334 : f32 to vector<16x16xf32>
    %1337 = arith.mulf %1336, %1335 : vector<16x16xf32>
    %1338 = arith.addf %1333, %1337 : vector<16x16xf32>
    %c131 = arith.constant 131 : index
    %1339 = memref.load %arg2[%c131] : memref<175xf32, #tpu.memory_space<smem>>
    %1340 = vector.extract_strided_slice %1305 {offsets = [1, 0], sizes = [16, 16], strides = [1, 1]} : vector<20x16xf32> to vector<16x16xf32>
    %1341 = vector.broadcast %1339 : f32 to vector<16x16xf32>
    %1342 = arith.mulf %1341, %1340 : vector<16x16xf32>
    %1343 = arith.addf %1338, %1342 : vector<16x16xf32>
    %c132 = arith.constant 132 : index
    %1344 = memref.load %arg2[%c132] : memref<175xf32, #tpu.memory_space<smem>>
    %1345 = vector.extract_strided_slice %1306 {offsets = [1, 0], sizes = [16, 16], strides = [1, 1]} : vector<20x16xf32> to vector<16x16xf32>
    %1346 = vector.broadcast %1344 : f32 to vector<16x16xf32>
    %1347 = arith.mulf %1346, %1345 : vector<16x16xf32>
    %1348 = arith.addf %1343, %1347 : vector<16x16xf32>
    %c133 = arith.constant 133 : index
    %1349 = memref.load %arg2[%c133] : memref<175xf32, #tpu.memory_space<smem>>
    %1350 = vector.extract_strided_slice %1307 {offsets = [1, 0], sizes = [16, 16], strides = [1, 1]} : vector<20x16xf32> to vector<16x16xf32>
    %1351 = vector.broadcast %1349 : f32 to vector<16x16xf32>
    %1352 = arith.mulf %1351, %1350 : vector<16x16xf32>
    %1353 = arith.addf %1348, %1352 : vector<16x16xf32>
    %c134 = arith.constant 134 : index
    %1354 = memref.load %arg2[%c134] : memref<175xf32, #tpu.memory_space<smem>>
    %1355 = vector.extract_strided_slice %1308 {offsets = [1, 0], sizes = [16, 16], strides = [1, 1]} : vector<20x16xf32> to vector<16x16xf32>
    %1356 = vector.broadcast %1354 : f32 to vector<16x16xf32>
    %1357 = arith.mulf %1356, %1355 : vector<16x16xf32>
    %1358 = arith.addf %1353, %1357 : vector<16x16xf32>
    %c135 = arith.constant 135 : index
    %1359 = memref.load %arg2[%c135] : memref<175xf32, #tpu.memory_space<smem>>
    %1360 = vector.extract_strided_slice %1304 {offsets = [2, 0], sizes = [16, 16], strides = [1, 1]} : vector<20x16xf32> to vector<16x16xf32>
    %1361 = vector.broadcast %1359 : f32 to vector<16x16xf32>
    %1362 = arith.mulf %1361, %1360 : vector<16x16xf32>
    %1363 = arith.addf %1358, %1362 : vector<16x16xf32>
    %c136 = arith.constant 136 : index
    %1364 = memref.load %arg2[%c136] : memref<175xf32, #tpu.memory_space<smem>>
    %1365 = vector.extract_strided_slice %1305 {offsets = [2, 0], sizes = [16, 16], strides = [1, 1]} : vector<20x16xf32> to vector<16x16xf32>
    %1366 = vector.broadcast %1364 : f32 to vector<16x16xf32>
    %1367 = arith.mulf %1366, %1365 : vector<16x16xf32>
    %1368 = arith.addf %1363, %1367 : vector<16x16xf32>
    %c137 = arith.constant 137 : index
    %1369 = memref.load %arg2[%c137] : memref<175xf32, #tpu.memory_space<smem>>
    %1370 = vector.extract_strided_slice %1306 {offsets = [2, 0], sizes = [16, 16], strides = [1, 1]} : vector<20x16xf32> to vector<16x16xf32>
    %1371 = vector.broadcast %1369 : f32 to vector<16x16xf32>
    %1372 = arith.mulf %1371, %1370 : vector<16x16xf32>
    %1373 = arith.addf %1368, %1372 : vector<16x16xf32>
    %c138 = arith.constant 138 : index
    %1374 = memref.load %arg2[%c138] : memref<175xf32, #tpu.memory_space<smem>>
    %1375 = vector.extract_strided_slice %1307 {offsets = [2, 0], sizes = [16, 16], strides = [1, 1]} : vector<20x16xf32> to vector<16x16xf32>
    %1376 = vector.broadcast %1374 : f32 to vector<16x16xf32>
    %1377 = arith.mulf %1376, %1375 : vector<16x16xf32>
    %1378 = arith.addf %1373, %1377 : vector<16x16xf32>
    %c139 = arith.constant 139 : index
    %1379 = memref.load %arg2[%c139] : memref<175xf32, #tpu.memory_space<smem>>
    %1380 = vector.extract_strided_slice %1308 {offsets = [2, 0], sizes = [16, 16], strides = [1, 1]} : vector<20x16xf32> to vector<16x16xf32>
    %1381 = vector.broadcast %1379 : f32 to vector<16x16xf32>
    %1382 = arith.mulf %1381, %1380 : vector<16x16xf32>
    %1383 = arith.addf %1378, %1382 : vector<16x16xf32>
    %c140 = arith.constant 140 : index
    %1384 = memref.load %arg2[%c140] : memref<175xf32, #tpu.memory_space<smem>>
    %1385 = vector.extract_strided_slice %1304 {offsets = [3, 0], sizes = [16, 16], strides = [1, 1]} : vector<20x16xf32> to vector<16x16xf32>
    %1386 = vector.broadcast %1384 : f32 to vector<16x16xf32>
    %1387 = arith.mulf %1386, %1385 : vector<16x16xf32>
    %1388 = arith.addf %1383, %1387 : vector<16x16xf32>
    %c141 = arith.constant 141 : index
    %1389 = memref.load %arg2[%c141] : memref<175xf32, #tpu.memory_space<smem>>
    %1390 = vector.extract_strided_slice %1305 {offsets = [3, 0], sizes = [16, 16], strides = [1, 1]} : vector<20x16xf32> to vector<16x16xf32>
    %1391 = vector.broadcast %1389 : f32 to vector<16x16xf32>
    %1392 = arith.mulf %1391, %1390 : vector<16x16xf32>
    %1393 = arith.addf %1388, %1392 : vector<16x16xf32>
    %c142 = arith.constant 142 : index
    %1394 = memref.load %arg2[%c142] : memref<175xf32, #tpu.memory_space<smem>>
    %1395 = vector.extract_strided_slice %1306 {offsets = [3, 0], sizes = [16, 16], strides = [1, 1]} : vector<20x16xf32> to vector<16x16xf32>
    %1396 = vector.broadcast %1394 : f32 to vector<16x16xf32>
    %1397 = arith.mulf %1396, %1395 : vector<16x16xf32>
    %1398 = arith.addf %1393, %1397 : vector<16x16xf32>
    %c143 = arith.constant 143 : index
    %1399 = memref.load %arg2[%c143] : memref<175xf32, #tpu.memory_space<smem>>
    %1400 = vector.extract_strided_slice %1307 {offsets = [3, 0], sizes = [16, 16], strides = [1, 1]} : vector<20x16xf32> to vector<16x16xf32>
    %1401 = vector.broadcast %1399 : f32 to vector<16x16xf32>
    %1402 = arith.mulf %1401, %1400 : vector<16x16xf32>
    %1403 = arith.addf %1398, %1402 : vector<16x16xf32>
    %c144 = arith.constant 144 : index
    %1404 = memref.load %arg2[%c144] : memref<175xf32, #tpu.memory_space<smem>>
    %1405 = vector.extract_strided_slice %1308 {offsets = [3, 0], sizes = [16, 16], strides = [1, 1]} : vector<20x16xf32> to vector<16x16xf32>
    %1406 = vector.broadcast %1404 : f32 to vector<16x16xf32>
    %1407 = arith.mulf %1406, %1405 : vector<16x16xf32>
    %1408 = arith.addf %1403, %1407 : vector<16x16xf32>
    %c145 = arith.constant 145 : index
    %1409 = memref.load %arg2[%c145] : memref<175xf32, #tpu.memory_space<smem>>
    %1410 = vector.extract_strided_slice %1304 {offsets = [4, 0], sizes = [16, 16], strides = [1, 1]} : vector<20x16xf32> to vector<16x16xf32>
    %1411 = vector.broadcast %1409 : f32 to vector<16x16xf32>
    %1412 = arith.mulf %1411, %1410 : vector<16x16xf32>
    %1413 = arith.addf %1408, %1412 : vector<16x16xf32>
    %c146 = arith.constant 146 : index
    %1414 = memref.load %arg2[%c146] : memref<175xf32, #tpu.memory_space<smem>>
    %1415 = vector.extract_strided_slice %1305 {offsets = [4, 0], sizes = [16, 16], strides = [1, 1]} : vector<20x16xf32> to vector<16x16xf32>
    %1416 = vector.broadcast %1414 : f32 to vector<16x16xf32>
    %1417 = arith.mulf %1416, %1415 : vector<16x16xf32>
    %1418 = arith.addf %1413, %1417 : vector<16x16xf32>
    %c147 = arith.constant 147 : index
    %1419 = memref.load %arg2[%c147] : memref<175xf32, #tpu.memory_space<smem>>
    %1420 = vector.extract_strided_slice %1306 {offsets = [4, 0], sizes = [16, 16], strides = [1, 1]} : vector<20x16xf32> to vector<16x16xf32>
    %1421 = vector.broadcast %1419 : f32 to vector<16x16xf32>
    %1422 = arith.mulf %1421, %1420 : vector<16x16xf32>
    %1423 = arith.addf %1418, %1422 : vector<16x16xf32>
    %c148 = arith.constant 148 : index
    %1424 = memref.load %arg2[%c148] : memref<175xf32, #tpu.memory_space<smem>>
    %1425 = vector.extract_strided_slice %1307 {offsets = [4, 0], sizes = [16, 16], strides = [1, 1]} : vector<20x16xf32> to vector<16x16xf32>
    %1426 = vector.broadcast %1424 : f32 to vector<16x16xf32>
    %1427 = arith.mulf %1426, %1425 : vector<16x16xf32>
    %1428 = arith.addf %1423, %1427 : vector<16x16xf32>
    %c149 = arith.constant 149 : index
    %1429 = memref.load %arg2[%c149] : memref<175xf32, #tpu.memory_space<smem>>
    %1430 = vector.extract_strided_slice %1308 {offsets = [4, 0], sizes = [16, 16], strides = [1, 1]} : vector<20x16xf32> to vector<16x16xf32>
    %1431 = vector.broadcast %1429 : f32 to vector<16x16xf32>
    %1432 = arith.mulf %1431, %1430 : vector<16x16xf32>
    %1433 = arith.addf %1428, %1432 : vector<16x16xf32>
    %1434 = math.tanh %1433 : vector<16x16xf32>
    %cst_210 = arith.constant 1.500000e+00 : f32
    %1435 = vector.broadcast %cst_210 : f32 to vector<16x16xf32>
    %1436 = arith.mulf %1435, %1434 : vector<16x16xf32>
    %cst_211 = arith.constant 1.500000e+00 : f32
    %1437 = vector.broadcast %cst_211 : f32 to vector<16x16xf32>
    %1438 = arith.addf %1437, %1436 : vector<16x16xf32>
    %1439 = math.roundeven %1438 : vector<16x16xf32>
    %cst_212 = arith.constant 1.500000e+00 : f32
    %1440 = vector.broadcast %cst_212 : f32 to vector<16x16xf32>
    %1441 = arith.divf %1439, %1440 : vector<16x16xf32>
    %cst_213 = arith.constant 1.000000e+00 : f32
    %1442 = vector.broadcast %cst_213 : f32 to vector<16x16xf32>
    %1443 = arith.subf %1441, %1442 : vector<16x16xf32>
    %c0_214 = arith.constant 0 : index
    %c2_215 = arith.constant 2 : index
    %c2_216 = arith.constant 2 : index
    %1444 = vector.load %arg6[%c0_214, %c2_215, %c2_216] : memref<4x20x20xf32, #tpu.memory_space<vmem>>, vector<1x16x16xf32>
    %1445 = vector.shape_cast %1444 : vector<1x16x16xf32> to vector<16x16xf32>
    %1446 = vector.shape_cast %1443 : vector<16x16xf32> to vector<1x16x16xf32>
    tpu.vector_store %arg6[%c0_214, %c2_215, %c2_216], %1446 {strides = array<i32>} : memref<4x20x20xf32, #tpu.memory_space<vmem>>, vector<1x16x16xf32>,
    %c7_217 = arith.constant 7 : index
    %1447 = memref.load %arg3[%c7_217] : memref<8xf32, #tpu.memory_space<smem>>
    %1448 = vector.broadcast %1447 : f32 to vector<16x16xf32>
    %c0_218 = arith.constant 0 : index
    %c0_219 = arith.constant 0 : index
    %c0_220 = arith.constant 0 : index
    %1449 = vector.load %arg6[%c0_218, %c0_219, %c0_220] : memref<4x20x20xf32, #tpu.memory_space<vmem>>, vector<1x20x20xf32>
    %1450 = vector.shape_cast %1449 : vector<1x20x20xf32> to vector<20x20xf32>
    %1451 = vector.extract_strided_slice %1450 {offsets = [0, 0], sizes = [20, 16], strides = [1, 1]} : vector<20x20xf32> to vector<20x16xf32>
    %1452 = vector.extract_strided_slice %1450 {offsets = [0, 1], sizes = [20, 16], strides = [1, 1]} : vector<20x20xf32> to vector<20x16xf32>
    %1453 = vector.extract_strided_slice %1450 {offsets = [0, 2], sizes = [20, 16], strides = [1, 1]} : vector<20x20xf32> to vector<20x16xf32>
    %1454 = vector.extract_strided_slice %1450 {offsets = [0, 3], sizes = [20, 16], strides = [1, 1]} : vector<20x20xf32> to vector<20x16xf32>
    %1455 = vector.extract_strided_slice %1450 {offsets = [0, 4], sizes = [20, 16], strides = [1, 1]} : vector<20x20xf32> to vector<20x16xf32>
    %c150 = arith.constant 150 : index
    %1456 = memref.load %arg2[%c150] : memref<175xf32, #tpu.memory_space<smem>>
    %1457 = vector.extract_strided_slice %1451 {offsets = [0, 0], sizes = [16, 16], strides = [1, 1]} : vector<20x16xf32> to vector<16x16xf32>
    %1458 = vector.broadcast %1456 : f32 to vector<16x16xf32>
    %1459 = arith.mulf %1458, %1457 : vector<16x16xf32>
    %1460 = arith.addf %1448, %1459 : vector<16x16xf32>
    %c151 = arith.constant 151 : index
    %1461 = memref.load %arg2[%c151] : memref<175xf32, #tpu.memory_space<smem>>
    %1462 = vector.extract_strided_slice %1452 {offsets = [0, 0], sizes = [16, 16], strides = [1, 1]} : vector<20x16xf32> to vector<16x16xf32>
    %1463 = vector.broadcast %1461 : f32 to vector<16x16xf32>
    %1464 = arith.mulf %1463, %1462 : vector<16x16xf32>
    %1465 = arith.addf %1460, %1464 : vector<16x16xf32>
    %c152 = arith.constant 152 : index
    %1466 = memref.load %arg2[%c152] : memref<175xf32, #tpu.memory_space<smem>>
    %1467 = vector.extract_strided_slice %1453 {offsets = [0, 0], sizes = [16, 16], strides = [1, 1]} : vector<20x16xf32> to vector<16x16xf32>
    %1468 = vector.broadcast %1466 : f32 to vector<16x16xf32>
    %1469 = arith.mulf %1468, %1467 : vector<16x16xf32>
    %1470 = arith.addf %1465, %1469 : vector<16x16xf32>
    %c153 = arith.constant 153 : index
    %1471 = memref.load %arg2[%c153] : memref<175xf32, #tpu.memory_space<smem>>
    %1472 = vector.extract_strided_slice %1454 {offsets = [0, 0], sizes = [16, 16], strides = [1, 1]} : vector<20x16xf32> to vector<16x16xf32>
    %1473 = vector.broadcast %1471 : f32 to vector<16x16xf32>
    %1474 = arith.mulf %1473, %1472 : vector<16x16xf32>
    %1475 = arith.addf %1470, %1474 : vector<16x16xf32>
    %c154 = arith.constant 154 : index
    %1476 = memref.load %arg2[%c154] : memref<175xf32, #tpu.memory_space<smem>>
    %1477 = vector.extract_strided_slice %1455 {offsets = [0, 0], sizes = [16, 16], strides = [1, 1]} : vector<20x16xf32> to vector<16x16xf32>
    %1478 = vector.broadcast %1476 : f32 to vector<16x16xf32>
    %1479 = arith.mulf %1478, %1477 : vector<16x16xf32>
    %1480 = arith.addf %1475, %1479 : vector<16x16xf32>
    %c155 = arith.constant 155 : index
    %1481 = memref.load %arg2[%c155] : memref<175xf32, #tpu.memory_space<smem>>
    %1482 = vector.extract_strided_slice %1451 {offsets = [1, 0], sizes = [16, 16], strides = [1, 1]} : vector<20x16xf32> to vector<16x16xf32>
    %1483 = vector.broadcast %1481 : f32 to vector<16x16xf32>
    %1484 = arith.mulf %1483, %1482 : vector<16x16xf32>
    %1485 = arith.addf %1480, %1484 : vector<16x16xf32>
    %c156 = arith.constant 156 : index
    %1486 = memref.load %arg2[%c156] : memref<175xf32, #tpu.memory_space<smem>>
    %1487 = vector.extract_strided_slice %1452 {offsets = [1, 0], sizes = [16, 16], strides = [1, 1]} : vector<20x16xf32> to vector<16x16xf32>
    %1488 = vector.broadcast %1486 : f32 to vector<16x16xf32>
    %1489 = arith.mulf %1488, %1487 : vector<16x16xf32>
    %1490 = arith.addf %1485, %1489 : vector<16x16xf32>
    %c157 = arith.constant 157 : index
    %1491 = memref.load %arg2[%c157] : memref<175xf32, #tpu.memory_space<smem>>
    %1492 = vector.extract_strided_slice %1453 {offsets = [1, 0], sizes = [16, 16], strides = [1, 1]} : vector<20x16xf32> to vector<16x16xf32>
    %1493 = vector.broadcast %1491 : f32 to vector<16x16xf32>
    %1494 = arith.mulf %1493, %1492 : vector<16x16xf32>
    %1495 = arith.addf %1490, %1494 : vector<16x16xf32>
    %c158 = arith.constant 158 : index
    %1496 = memref.load %arg2[%c158] : memref<175xf32, #tpu.memory_space<smem>>
    %1497 = vector.extract_strided_slice %1454 {offsets = [1, 0], sizes = [16, 16], strides = [1, 1]} : vector<20x16xf32> to vector<16x16xf32>
    %1498 = vector.broadcast %1496 : f32 to vector<16x16xf32>
    %1499 = arith.mulf %1498, %1497 : vector<16x16xf32>
    %1500 = arith.addf %1495, %1499 : vector<16x16xf32>
    %c159 = arith.constant 159 : index
    %1501 = memref.load %arg2[%c159] : memref<175xf32, #tpu.memory_space<smem>>
    %1502 = vector.extract_strided_slice %1455 {offsets = [1, 0], sizes = [16, 16], strides = [1, 1]} : vector<20x16xf32> to vector<16x16xf32>
    %1503 = vector.broadcast %1501 : f32 to vector<16x16xf32>
    %1504 = arith.mulf %1503, %1502 : vector<16x16xf32>
    %1505 = arith.addf %1500, %1504 : vector<16x16xf32>
    %c160 = arith.constant 160 : index
    %1506 = memref.load %arg2[%c160] : memref<175xf32, #tpu.memory_space<smem>>
    %1507 = vector.extract_strided_slice %1451 {offsets = [2, 0], sizes = [16, 16], strides = [1, 1]} : vector<20x16xf32> to vector<16x16xf32>
    %1508 = vector.broadcast %1506 : f32 to vector<16x16xf32>
    %1509 = arith.mulf %1508, %1507 : vector<16x16xf32>
    %1510 = arith.addf %1505, %1509 : vector<16x16xf32>
    %c161 = arith.constant 161 : index
    %1511 = memref.load %arg2[%c161] : memref<175xf32, #tpu.memory_space<smem>>
    %1512 = vector.extract_strided_slice %1452 {offsets = [2, 0], sizes = [16, 16], strides = [1, 1]} : vector<20x16xf32> to vector<16x16xf32>
    %1513 = vector.broadcast %1511 : f32 to vector<16x16xf32>
    %1514 = arith.mulf %1513, %1512 : vector<16x16xf32>
    %1515 = arith.addf %1510, %1514 : vector<16x16xf32>
    %c162 = arith.constant 162 : index
    %1516 = memref.load %arg2[%c162] : memref<175xf32, #tpu.memory_space<smem>>
    %1517 = vector.extract_strided_slice %1453 {offsets = [2, 0], sizes = [16, 16], strides = [1, 1]} : vector<20x16xf32> to vector<16x16xf32>
    %1518 = vector.broadcast %1516 : f32 to vector<16x16xf32>
    %1519 = arith.mulf %1518, %1517 : vector<16x16xf32>
    %1520 = arith.addf %1515, %1519 : vector<16x16xf32>
    %c163 = arith.constant 163 : index
    %1521 = memref.load %arg2[%c163] : memref<175xf32, #tpu.memory_space<smem>>
    %1522 = vector.extract_strided_slice %1454 {offsets = [2, 0], sizes = [16, 16], strides = [1, 1]} : vector<20x16xf32> to vector<16x16xf32>
    %1523 = vector.broadcast %1521 : f32 to vector<16x16xf32>
    %1524 = arith.mulf %1523, %1522 : vector<16x16xf32>
    %1525 = arith.addf %1520, %1524 : vector<16x16xf32>
    %c164 = arith.constant 164 : index
    %1526 = memref.load %arg2[%c164] : memref<175xf32, #tpu.memory_space<smem>>
    %1527 = vector.extract_strided_slice %1455 {offsets = [2, 0], sizes = [16, 16], strides = [1, 1]} : vector<20x16xf32> to vector<16x16xf32>
    %1528 = vector.broadcast %1526 : f32 to vector<16x16xf32>
    %1529 = arith.mulf %1528, %1527 : vector<16x16xf32>
    %1530 = arith.addf %1525, %1529 : vector<16x16xf32>
    %c165 = arith.constant 165 : index
    %1531 = memref.load %arg2[%c165] : memref<175xf32, #tpu.memory_space<smem>>
    %1532 = vector.extract_strided_slice %1451 {offsets = [3, 0], sizes = [16, 16], strides = [1, 1]} : vector<20x16xf32> to vector<16x16xf32>
    %1533 = vector.broadcast %1531 : f32 to vector<16x16xf32>
    %1534 = arith.mulf %1533, %1532 : vector<16x16xf32>
    %1535 = arith.addf %1530, %1534 : vector<16x16xf32>
    %c166 = arith.constant 166 : index
    %1536 = memref.load %arg2[%c166] : memref<175xf32, #tpu.memory_space<smem>>
    %1537 = vector.extract_strided_slice %1452 {offsets = [3, 0], sizes = [16, 16], strides = [1, 1]} : vector<20x16xf32> to vector<16x16xf32>
    %1538 = vector.broadcast %1536 : f32 to vector<16x16xf32>
    %1539 = arith.mulf %1538, %1537 : vector<16x16xf32>
    %1540 = arith.addf %1535, %1539 : vector<16x16xf32>
    %c167 = arith.constant 167 : index
    %1541 = memref.load %arg2[%c167] : memref<175xf32, #tpu.memory_space<smem>>
    %1542 = vector.extract_strided_slice %1453 {offsets = [3, 0], sizes = [16, 16], strides = [1, 1]} : vector<20x16xf32> to vector<16x16xf32>
    %1543 = vector.broadcast %1541 : f32 to vector<16x16xf32>
    %1544 = arith.mulf %1543, %1542 : vector<16x16xf32>
    %1545 = arith.addf %1540, %1544 : vector<16x16xf32>
    %c168 = arith.constant 168 : index
    %1546 = memref.load %arg2[%c168] : memref<175xf32, #tpu.memory_space<smem>>
    %1547 = vector.extract_strided_slice %1454 {offsets = [3, 0], sizes = [16, 16], strides = [1, 1]} : vector<20x16xf32> to vector<16x16xf32>
    %1548 = vector.broadcast %1546 : f32 to vector<16x16xf32>
    %1549 = arith.mulf %1548, %1547 : vector<16x16xf32>
    %1550 = arith.addf %1545, %1549 : vector<16x16xf32>
    %c169 = arith.constant 169 : index
    %1551 = memref.load %arg2[%c169] : memref<175xf32, #tpu.memory_space<smem>>
    %1552 = vector.extract_strided_slice %1455 {offsets = [3, 0], sizes = [16, 16], strides = [1, 1]} : vector<20x16xf32> to vector<16x16xf32>
    %1553 = vector.broadcast %1551 : f32 to vector<16x16xf32>
    %1554 = arith.mulf %1553, %1552 : vector<16x16xf32>
    %1555 = arith.addf %1550, %1554 : vector<16x16xf32>
    %c170 = arith.constant 170 : index
    %1556 = memref.load %arg2[%c170] : memref<175xf32, #tpu.memory_space<smem>>
    %1557 = vector.extract_strided_slice %1451 {offsets = [4, 0], sizes = [16, 16], strides = [1, 1]} : vector<20x16xf32> to vector<16x16xf32>
    %1558 = vector.broadcast %1556 : f32 to vector<16x16xf32>
    %1559 = arith.mulf %1558, %1557 : vector<16x16xf32>
    %1560 = arith.addf %1555, %1559 : vector<16x16xf32>
    %c171 = arith.constant 171 : index
    %1561 = memref.load %arg2[%c171] : memref<175xf32, #tpu.memory_space<smem>>
    %1562 = vector.extract_strided_slice %1452 {offsets = [4, 0], sizes = [16, 16], strides = [1, 1]} : vector<20x16xf32> to vector<16x16xf32>
    %1563 = vector.broadcast %1561 : f32 to vector<16x16xf32>
    %1564 = arith.mulf %1563, %1562 : vector<16x16xf32>
    %1565 = arith.addf %1560, %1564 : vector<16x16xf32>
    %c172 = arith.constant 172 : index
    %1566 = memref.load %arg2[%c172] : memref<175xf32, #tpu.memory_space<smem>>
    %1567 = vector.extract_strided_slice %1453 {offsets = [4, 0], sizes = [16, 16], strides = [1, 1]} : vector<20x16xf32> to vector<16x16xf32>
    %1568 = vector.broadcast %1566 : f32 to vector<16x16xf32>
    %1569 = arith.mulf %1568, %1567 : vector<16x16xf32>
    %1570 = arith.addf %1565, %1569 : vector<16x16xf32>
    %c173 = arith.constant 173 : index
    %1571 = memref.load %arg2[%c173] : memref<175xf32, #tpu.memory_space<smem>>
    %1572 = vector.extract_strided_slice %1454 {offsets = [4, 0], sizes = [16, 16], strides = [1, 1]} : vector<20x16xf32> to vector<16x16xf32>
    %1573 = vector.broadcast %1571 : f32 to vector<16x16xf32>
    %1574 = arith.mulf %1573, %1572 : vector<16x16xf32>
    %1575 = arith.addf %1570, %1574 : vector<16x16xf32>
    %c174 = arith.constant 174 : index
    %1576 = memref.load %arg2[%c174] : memref<175xf32, #tpu.memory_space<smem>>
    %1577 = vector.extract_strided_slice %1455 {offsets = [4, 0], sizes = [16, 16], strides = [1, 1]} : vector<20x16xf32> to vector<16x16xf32>
    %1578 = vector.broadcast %1576 : f32 to vector<16x16xf32>
    %1579 = arith.mulf %1578, %1577 : vector<16x16xf32>
    %1580 = arith.addf %1575, %1579 : vector<16x16xf32>
    %1581 = math.tanh %1580 : vector<16x16xf32>
    %cst_221 = arith.constant 5.000000e-01 : f32
    %1582 = vector.broadcast %cst_221 : f32 to vector<16x16xf32>
    %1583 = arith.mulf %1582, %1581 : vector<16x16xf32>
    %cst_222 = arith.constant 5.000000e-01 : f32
    %1584 = vector.broadcast %cst_222 : f32 to vector<16x16xf32>
    %1585 = arith.addf %1584, %1583 : vector<16x16xf32>
    %1586 = math.roundeven %1585 : vector<16x16xf32>
    %cst_223 = arith.constant 5.000000e-01 : f32
    %1587 = vector.broadcast %cst_223 : f32 to vector<16x16xf32>
    %1588 = arith.divf %1586, %1587 : vector<16x16xf32>
    %cst_224 = arith.constant 1.000000e+00 : f32
    %1589 = vector.broadcast %cst_224 : f32 to vector<16x16xf32>
    %1590 = arith.subf %1588, %1589 : vector<16x16xf32>
    %c0_225 = arith.constant 0 : index
    %c0_226 = arith.constant 0 : index
    %c0_227 = arith.constant 0 : index
    %c0_228 = arith.constant 0 : index
    %1591 = vector.load %arg5[%c0_225, %c0_226, %c0_227, %c0_228] : memref<1x1x16x16xf32, #tpu.memory_space<vmem>>, vector<1x1x16x16xf32>
    %1592 = vector.shape_cast %1591 : vector<1x1x16x16xf32> to vector<16x16xf32>
    %1593 = vector.shape_cast %1590 : vector<16x16xf32> to vector<1x1x16x16xf32>
    tpu.vector_store %arg5[%c0_225, %c0_226, %c0_227, %c0_228], %1593 {strides = array<i32>} : memref<1x1x16x16xf32, #tpu.memory_space<vmem>>, vector<1x1x16x16xf32>,
    return
  }
  func.func @transform_0(%arg0: i32) -> i32 {
    %c0_i32 = arith.constant 0 : i32
    %c0_i32_0 = arith.constant 0 : i32
    return %c0_i32 : i32
  }
  func.func @transform_1(%arg0: i32) -> i32 {
    %c0_i32 = arith.constant 0 : i32
    %c0_i32_0 = arith.constant 0 : i32
    return %c0_i32 : i32
  }
  func.func @transform_2(%arg0: i32) -> i32 {
    %c0_i32 = arith.constant 0 : i32
    %c0_i32_0 = arith.constant 0 : i32
    return %c0_i32 : i32
  }
  func.func @transform_3(%arg0: i32) -> (i32, i32, i32, i32) {
    %c0_i32 = arith.constant 0 : i32
    %c0_i32_0 = arith.constant 0 : i32
    %c0_i32_1 = arith.constant 0 : i32
    %c0_i32_2 = arith.constant 0 : i32
    return %arg0, %c0_i32, %c0_i32_0, %c0_i32_1 : i32, i32, i32, i32
  }
  func.func @transform_4(%arg0: i32) -> (i32, i32, i32, i32) {
    %c0_i32 = arith.constant 0 : i32
    %c0_i32_0 = arith.constant 0 : i32
    %c0_i32_1 = arith.constant 0 : i32
    %c0_i32_2 = arith.constant 0 : i32
    return %arg0, %c0_i32, %c0_i32_0, %c0_i32_1 : i32, i32, i32, i32
  }
}

</mosaic_0001>

<llo_original>
// kernel: tpu_custom_call.1
$region0: #{tpu_custom_call.1}
  #allocation0 [shape = 'u32[]', space=smem, size = 0x4, offset = 0x4, fixed_abs, tag = 'smem constant byte address 0x4 - core index']
  #allocation1 [shape = 'u32[72,128]{1,0:T(1,128)}', space=vmem, size = 0x9000, scoped, tag = 'internal scratch']
  #allocation2 [shape = 'f32[4,20,20]{2,1,0:T(8,128)}', space=vmem, size = 0xc000, scoped, tag = 'scratch operand']
  %s0 = inlined_call_operand.hbm [shape: f32[100], index: 0, kind: input, shape index: {}]
  %s1 = inlined_call_operand.hbm [shape: f32[175], index: 1, kind: input, shape index: {}]
  %s2 = inlined_call_operand.vmem [shape: f32[8], index: 2, kind: input, shape index: {}]
  %s3 = inlined_call_operand.hbm [shape: f32[2,4,16,16], index: 3, kind: input, shape index: {}]
  %s4 = inlined_call_operand.hbm [shape: f32[2,1,16,16], index: 4, kind: output, shape index: {}]
  %s5 = sld [smem:[#allocation0]]
  $region65: #{tpu_custom_call.1} parent=0
    _
  %s7 = ssub.s32 1, %s5
  %s8 = scalar_select 0, %s7, %s5
  $region1: #{tpu_custom_call.1} parent=0
    #allocation3 [shape = 'u8[512]{0}', space=smem, size = 0x200, scoped, tag = 'input window, operand 0, single buffered']
    #allocation4 [shape = 's32[2]{0}', space=sflag, size = 0x8, scoped, tag = 'scoped memory for tpu_custom_call.1']
    #allocation5 [shape = 's32[2]{0}', space=sflag, size = 0x8, scoped, tag = 'scoped memory for tpu_custom_call.1']
    #allocation6 [shape = 's32[2]{0}', space=sflag, size = 0x8, scoped, tag = 'scoped memory for tpu_custom_call.1']
    #allocation7 [shape = 's32[2]{0}', space=sflag, size = 0x8, scoped, tag = 'scoped memory for tpu_custom_call.1']
    #allocation8 [shape = 'u8[1024]{0}', space=smem, size = 0x400, scoped, tag = 'input window, operand 1, single buffered']
    #allocation9 [shape = 's32[1]{0}', space=sflag, size = 0x4, scoped, tag = 'scoped memory for tpu_custom_call.1']
    #allocation10 [shape = 'u8[512]{0}', space=smem, size = 0x200, scoped, tag = 'input window, operand 2, single buffered']
    #allocation11 [shape = 'u8[65536]{0}', space=vmem, size = 0x10000, scoped, tag = 'input window, operand 3']
    #allocation12 [shape = 'u8[16384]{0}', space=vmem, size = 0x4000, scoped, tag = 'output window, operand 0']
    %9 = vsyncpa [#allocation6], 0
    %10 = vsyncpa [#allocation9], 0
    %11 = vsyncpa [#allocation7], 0
    %12 = vsyncpa [#allocation4], 0
    %s13 = scalar_lea.sflag [#allocation4], 1
    %14 = vsyncpa %s13, 0
    %15 = vsyncpa [#allocation5], 0
    %s16 = scalar_lea.sflag [#allocation5], 1
    %17 = vsyncpa %s16, 0
    loop: start=0, step=1, limit=4
    $region2: #{tpu_custom_call.1} parent=1 // loop_pre_header
      _
    $region3: #{tpu_custom_call.1} parent=1 // loop_header
      %s19 = sphi 0, %s23
      %p20 = scmp.ge.s32.totalorder %s19, 4
      %s27 = sphi 0, %s27
      %s29 = sphi 0, %s27
      %s30 = sphi 0, %s29
      %s44 = sphi 0, %s30
      %s48 = sphi 0, %s48
      %s50 = sphi 0, %s48
      %s51 = sphi 0, %s50
      %s65 = sphi 0, %s51
      %s69 = sphi 0, %s69
      %s71 = sphi 0, %s69
      %s72 = sphi 0, %s71
      %s86 = sphi 0, %s72
      %s92 = sphi 0, %s94
      %s95 = sphi 0, %s92
      %s96 = sphi 0, %s95
      %s112 = sphi 0, %s96
      %s118 = sphi 0, %s120
      %s121 = sphi 0, %s118
      %s122 = sphi 0, %s121
      %s138 = sphi 0, %s122
    $region4: #{tpu_custom_call.1} parent=1 // loop_header_branch
      %22 = sbr.rel (%p20) target = $region8
    $region5: #{tpu_custom_call.1} parent=1 // loop_body
      %s24 = ssub.s32 %s19, 1
      %s25 = ssub.s32 %s19, 2
      %s26 = sadd.s32 %s19, 1
      %s28 = sadd.s32 %s27, 1
      %p31 = scmp.eq.s32.totalorder %s19, 1
      %p32 = scmp.ne.s32.totalorder %s27, %s29
      %p33 = scmp.eq.s32.totalorder %s19, 0
      %p34 = por %p32, %p33
      %p35 = scmp.ne.s32.totalorder %s27, %s29
      %p36 = scmp.eq.s32.totalorder %s24, 1
      %p37 = por %p35, %p36
      %p38 = scmp.ne.s32.totalorder %s29, %s30
      %p39 = scmp.eq.s32.totalorder %s24, 0
      %p40 = por %p38, %p39
      %p41 = scmp.ne.s32.totalorder %s29, %s30
      %p42 = scmp.eq.s32.totalorder %s25, 1
      %p43 = por %p41, %p42
      %p45 = scmp.ne.s32.totalorder %s30, %s44
      %p46 = scmp.eq.s32.totalorder %s25, 0
      %p47 = por %p45, %p46
      %s49 = sadd.s32 %s48, 1
      %p52 = scmp.eq.s32.totalorder %s19, 1
      %p53 = scmp.ne.s32.totalorder %s48, %s50
      %p54 = scmp.eq.s32.totalorder %s19, 0
      %p55 = por %p53, %p54
      %p56 = scmp.ne.s32.totalorder %s48, %s50
      %p57 = scmp.eq.s32.totalorder %s24, 1
      %p58 = por %p56, %p57
      %p59 = scmp.ne.s32.totalorder %s50, %s51
      %p60 = scmp.eq.s32.totalorder %s24, 0
      %p61 = por %p59, %p60
      %p62 = scmp.ne.s32.totalorder %s50, %s51
      %p63 = scmp.eq.s32.totalorder %s25, 1
      %p64 = por %p62, %p63
      %p66 = scmp.ne.s32.totalorder %s51, %s65
      %p67 = scmp.eq.s32.totalorder %s25, 0
      %p68 = por %p66, %p67
      %s70 = sadd.s32 %s69, 1
      %p73 = scmp.eq.s32.totalorder %s19, 1
      %p74 = scmp.ne.s32.totalorder %s69, %s71
      %p75 = scmp.eq.s32.totalorder %s19, 0
      %p76 = por %p74, %p75
      %p77 = scmp.ne.s32.totalorder %s69, %s71
      %p78 = scmp.eq.s32.totalorder %s24, 1
      %p79 = por %p77, %p78
      %p80 = scmp.ne.s32.totalorder %s71, %s72
      %p81 = scmp.eq.s32.totalorder %s24, 0
      %p82 = por %p80, %p81
      %p83 = scmp.ne.s32.totalorder %s71, %s72
      %p84 = scmp.eq.s32.totalorder %s25, 1
      %p85 = por %p83, %p84
      %p87 = scmp.ne.s32.totalorder %s72, %s86
      %p88 = scmp.eq.s32.totalorder %s25, 0
      %p89 = por %p87, %p88
      %s90 = ssub.s32 %s19, %s26
      %p91 = scmp.eq.s32.totalorder %s90, 0
      %s93 = sadd.s32 %s92, 1
      %s94 = scalar_select %p91, %s92, %s93
      %p97 = pneg %p91
      %p98 = scmp.eq.s32.totalorder %s19, 1
      %p99 = por %p97, %p98
      %p100 = scmp.ne.s32.totalorder %s92, %s95
      %p101 = scmp.eq.s32.totalorder %s19, 0
      %p102 = por %p100, %p101
      %p103 = scmp.ne.s32.totalorder %s92, %s95
      %p104 = scmp.eq.s32.totalorder %s24, 1
      %p105 = por %p103, %p104
      %p106 = scmp.ne.s32.totalorder %s95, %s96
      %p107 = scmp.eq.s32.totalorder %s24, 0
      %p108 = por %p106, %p107
      %p109 = scmp.ne.s32.totalorder %s95, %s96
      %p110 = scmp.eq.s32.totalorder %s25, 1
      %p111 = por %p109, %p110
      %p113 = scmp.ne.s32.totalorder %s96, %s112
      %p114 = scmp.eq.s32.totalorder %s25, 0
      %p115 = por %p113, %p114
      %s116 = ssub.s32 %s19, %s26
      %p117 = scmp.eq.s32.totalorder %s116, 0
      %s119 = sadd.s32 %s118, 1
      %s120 = scalar_select %p117, %s118, %s119
      %p123 = pneg %p117
      %p124 = scmp.eq.s32.totalorder %s19, 1
      %p125 = por %p123, %p124
      %p126 = scmp.ne.s32.totalorder %s118, %s121
      %p127 = scmp.eq.s32.totalorder %s19, 0
      %p128 = por %p126, %p127
      %p129 = scmp.ne.s32.totalorder %s118, %s121
      %p130 = scmp.eq.s32.totalorder %s24, 1
      %p131 = por %p129, %p130
      %p132 = scmp.ne.s32.totalorder %s121, %s122
      %p133 = scmp.eq.s32.totalorder %s24, 0
      %p134 = por %p132, %p133
      %p135 = scmp.ne.s32.totalorder %s121, %s122
      %p136 = scmp.eq.s32.totalorder %s25, 1
      %p137 = por %p135, %p136
      %p139 = scmp.ne.s32.totalorder %s122, %s138
      %p140 = scmp.eq.s32.totalorder %s25, 0
      %p141 = por %p139, %p140
      %p142 = scmp.le.s32.totalorder 1, %s19
      %p143 = scmp.lt.s32.totalorder %s19, 3
      %p144 = pnand %p142, %p143
      %p145 = pneg %p144
      // Predicated region
      $region9: #{tpu_custom_call.1} parent=5 // pred_check
        _
      $region10: #{tpu_custom_call.1} parent=5 // pred_check_branch
        %147 = sbr.rel (%p144) target = $region12
      $region11: #{tpu_custom_call.1} parent=5 // pred_region
        %s148 = ssub.s32 %s19, 1
        // Predicated region
        $region13: #{tpu_custom_call.1} parent=11 // pred_check
          %p149 = pneg %p40
        $region14: #{tpu_custom_call.1} parent=11 // pred_check_branch
          %151 = sbr.rel (%p149) target = $region16
        $region15: #{tpu_custom_call.1} parent=11 // pred_region
          %153 = vsyncadd [#allocation6], 0
          %s155 = sshll.u32 %s0, 4
          %s156 = int_to_ptr.hbm [resolvable:$true] %s155
          %158 = dma.hbm_to_smem %s156, 16, [#allocation3], [#allocation6]
        $region16: #{tpu_custom_call.1} parent=11 // pred_fallthru
          _
        // Predicated region
        $region17: #{tpu_custom_call.1} parent=11 // pred_check
          %p159 = pneg %p61
        $region18: #{tpu_custom_call.1} parent=11 // pred_check_branch
          %161 = sbr.rel (%p159) target = $region20
        $region19: #{tpu_custom_call.1} parent=11 // pred_region
          %163 = vsyncadd [#allocation9], 0
          %s165 = sshll.u32 %s1, 4
          %s166 = int_to_ptr.hbm [resolvable:$true] %s165
          %168 = dma.hbm_to_smem %s166, 32, [#allocation8], [#allocation9]
        $region20: #{tpu_custom_call.1} parent=11 // pred_fallthru
          _
        // Predicated region
        $region21: #{tpu_custom_call.1} parent=11 // pred_check
          %p169 = pneg %p82
        $region22: #{tpu_custom_call.1} parent=11 // pred_check_branch
          %171 = sbr.rel (%p169) target = $region24
        $region23: #{tpu_custom_call.1} parent=11 // pred_region
          %173 = vsyncadd [#allocation7], 0
          %s175 = sshll.u32 %s2, 4
          %s176 = int_to_ptr.vmem [resolvable:$true] %s175
          %178 = dma.vmem_to_smem %s176, 16, [#allocation10], [#allocation7]
        $region24: #{tpu_custom_call.1} parent=11 // pred_fallthru
          _
      $region12: #{tpu_custom_call.1} parent=5 // pred_fallthru
        _
      %p179 = scmp.lt.s32.totalorder %s19, 2
      // Predicated region
      $region25: #{tpu_custom_call.1} parent=5 // pred_check
        %p180 = pneg %p179
      $region26: #{tpu_custom_call.1} parent=5 // pred_check_branch
        %182 = sbr.rel (%p180) target = $region28
      $region27: #{tpu_custom_call.1} parent=5 // pred_region
        // Predicated region
        $region29: #{tpu_custom_call.1} parent=27 // pred_check
          %p183 = pneg %p102
        $region30: #{tpu_custom_call.1} parent=27 // pred_check_branch
          %185 = sbr.rel (%p183) target = $region32
        $region31: #{tpu_custom_call.1} parent=27 // pred_region
          %s186 = sand.u32 %s92, 1
          %s187 = scalar_lea.sflag [#allocation4], %s186
          %s188 = sand.u32 %s92, 1
          %s189 = smul.addr %s188, 64
          %s190 = scalar_lea.vmem [#allocation11], %s189
          %192 = vsyncadd %s187, 0
          %s193 = smul.addr %s19, 8
          %s194 = smul.addr %s193, 8
          %s195 = scalar_lea.hbm %s3, %s194
          %s196 = sshll.u32 %s195, 4
          %s197 = int_to_ptr.hbm [resolvable:$true] %s196
          %s198 = sshll.u32 %s190, 4
          %s199 = int_to_ptr.vmem [resolvable:$true] %s198
          %204 = dma.hbm_to_vmem [thread:$0]  %s197, 1024, %s199, %s187, 128, 128, 8
        $region32: #{tpu_custom_call.1} parent=27 // pred_fallthru
          _
      $region28: #{tpu_custom_call.1} parent=5 // pred_fallthru
        _
      %p205 = scmp.le.s32.totalorder 1, %s19
      %p206 = scmp.lt.s32.totalorder %s19, 3
      %p207 = pnand %p205, %p206
      %p208 = pneg %p207
      // Predicated region
      $region33: #{tpu_custom_call.1} parent=5 // pred_check
        _
      $region34: #{tpu_custom_call.1} parent=5 // pred_check_branch
        %210 = sbr.rel (%p207) target = $region36
      $region35: #{tpu_custom_call.1} parent=5 // pred_region
        %s211 = ssub.s32 %s19, 1
        // Predicated region
        $region37: #{tpu_custom_call.1} parent=35 // pred_check
          %p212 = pneg %p40
        $region38: #{tpu_custom_call.1} parent=35 // pred_check_branch
          %214 = sbr.rel (%p212) target = $region40
        $region39: #{tpu_custom_call.1} parent=35 // pred_region
          %216 = dma.done [#allocation6], 16
        $region40: #{tpu_custom_call.1} parent=35 // pred_fallthru
          _
        // Predicated region
        $region41: #{tpu_custom_call.1} parent=35 // pred_check
          %p217 = pneg %p61
        $region42: #{tpu_custom_call.1} parent=35 // pred_check_branch
          %219 = sbr.rel (%p217) target = $region44
        $region43: #{tpu_custom_call.1} parent=35 // pred_region
          %221 = dma.done [#allocation9], 32
        $region44: #{tpu_custom_call.1} parent=35 // pred_fallthru
          _
        // Predicated region
        $region45: #{tpu_custom_call.1} parent=35 // pred_check
          %p222 = pneg %p82
        $region46: #{tpu_custom_call.1} parent=35 // pred_check_branch
          %224 = sbr.rel (%p222) target = $region48
        $region47: #{tpu_custom_call.1} parent=35 // pred_region
          %226 = dma.done [#allocation7], 16
        $region48: #{tpu_custom_call.1} parent=35 // pred_fallthru
          _
        %s227 = sand.u32 %s95, 1
        %s228 = scalar_lea.sflag [#allocation4], %s227
        %s229 = sand.u32 %s95, 1
        %s230 = smul.addr %s229, 64
        %s231 = scalar_lea.vmem [#allocation11], %s230
        // Predicated region
        $region49: #{tpu_custom_call.1} parent=35 // pred_check
          %p232 = pneg %p108
        $region50: #{tpu_custom_call.1} parent=35 // pred_check_branch
          %234 = sbr.rel (%p232) target = $region52
        $region51: #{tpu_custom_call.1} parent=35 // pred_region
          %236 = dma.done %s228, 1024
        $region52: #{tpu_custom_call.1} parent=35 // pred_fallthru
          _
        %237 = sfence
        %p238 = pneg %p40
        %p239 = pneg %p37
        %p240 = pneg %p61
        %p241 = pneg %p58
        %p242 = pneg %p82
        %p243 = pneg %p79
        %s244 = sand.u32 %s95, 1
        %s245 = scalar_lea.sflag [#allocation4], %s244
        %s246 = sand.u32 %s95, 1
        %s247 = smul.addr %s246, 64
        %s248 = scalar_lea.vmem [#allocation11], %s247
        %p249 = pneg %p108
        %p250 = pneg %p105
        %p251 = pneg %p134
        %p252 = pneg %p131
        %s253 = sand.u32 %s121, 1
        %s254 = scalar_lea.sflag [#allocation5], %s253
        %s255 = sand.u32 %s121, 1
        %s256 = smul.addr %s255, 16
        %s257 = scalar_lea.vmem [#allocation12], %s256
        %vm258 = vcmask 162816
        %259 = vst.msk [vmem:[#allocation2] sm:$0xff] %vm258, 0.0
        %260 = vst.msk [vmem:[#allocation2 + $0x8] sm:$0xff] %vm258, 0.0
        %vm261 = vcmask 158720
        %262 = vst.msk [vmem:[#allocation2 + $0x10] sm:$0xf] %vm261, 0.0
        %263 = vst.msk [vmem:[#allocation2 + $0x18] sm:$0xff] %vm258, 0.0
        %264 = vst.msk [vmem:[#allocation2 + $0x20] sm:$0xff] %vm258, 0.0
        %265 = vst.msk [vmem:[#allocation2 + $0x28] sm:$0xf] %vm261, 0.0
        %266 = vst.msk [vmem:[#allocation2 + $0x30] sm:$0xff] %vm258, 0.0
        %267 = vst.msk [vmem:[#allocation2 + $0x38] sm:$0xff] %vm258, 0.0
        %268 = vst.msk [vmem:[#allocation2 + $0x40] sm:$0xf] %vm261, 0.0
        %269 = vst.msk [vmem:[#allocation2 + $0x48] sm:$0xff] %vm258, 0.0
        %270 = vst.msk [vmem:[#allocation2 + $0x50] sm:$0xff] %vm258, 0.0
        %271 = vst.msk [vmem:[#allocation2 + $0x58] sm:$0xf] %vm261, 0.0
        %v272 = vld [vmem:[%s231] sm:$0xff]
        %v273 = vld [vmem:[%s231 + $0x8] sm:$0xff]
        %276 = vrot.lane.b32.xlu0 %v272, 2
        %v277 = vpop.permute.xlu0 %276
        %278 = vrot.lane.b32.xlu0 %v273, 2
        %v279 = vpop.permute.xlu0 %278
        %vm282 = vcmask 146448
        %283 = vst.msk [vmem:[#allocation2 + $0x2] sm:$0xff] %vm282, %v277
        %284 = vst.msk [vmem:[#allocation2 + $0xa] sm:$0xff] %vm282, %v279
        %s285 = scalar_lea.vmem %s231, 16 [#allocation11]
        %v286 = vld [vmem:[%s285] sm:$0xff]
        %v287 = vld [vmem:[%s285 + $0x8] sm:$0xff]
        %290 = vrot.lane.b32.xlu0 %v286, 2
        %v291 = vpop.permute.xlu0 %290
        %292 = vrot.lane.b32.xlu0 %v287, 2
        %v293 = vpop.permute.xlu0 %292
        %s296 = scalar_lea.vmem [#allocation2], 24
        %297 = vst.msk [vmem:[%s296 + $0x2] sm:$0xff] %vm282, %v291
        %298 = vst.msk [vmem:[%s296 + $0xa] sm:$0xff] %vm282, %v293
        %s299 = scalar_lea.vmem %s231, 32 [#allocation11]
        %v300 = vld [vmem:[%s299] sm:$0xff]
        %v301 = vld [vmem:[%s299 + $0x8] sm:$0xff]
        %304 = vrot.lane.b32.xlu0 %v300, 2
        %v305 = vpop.permute.xlu0 %304
        %306 = vrot.lane.b32.xlu0 %v301, 2
        %v307 = vpop.permute.xlu0 %306
        %s310 = scalar_lea.vmem [#allocation2], 48
        %311 = vst.msk [vmem:[%s310 + $0x2] sm:$0xff] %vm282, %v305
        %312 = vst.msk [vmem:[%s310 + $0xa] sm:$0xff] %vm282, %v307
        %s313 = scalar_lea.vmem %s231, 48 [#allocation11]
        %v314 = vld [vmem:[%s313] sm:$0xff]
        %v315 = vld [vmem:[%s313 + $0x8] sm:$0xff]
        %318 = vrot.lane.b32.xlu0 %v314, 2
        %v319 = vpop.permute.xlu0 %318
        %320 = vrot.lane.b32.xlu0 %v315, 2
        %v321 = vpop.permute.xlu0 %320
        %s324 = scalar_lea.vmem [#allocation2], 72
        %325 = vst.msk [vmem:[%s324 + $0x2] sm:$0xff] %vm282, %v319
        %326 = vst.msk [vmem:[%s324 + $0xa] sm:$0xff] %vm282, %v321
        %s327 = sld [smem:[#allocation10]]
        %v328 = vstv %s327
        %v329 = vld [vmem:[#allocation2] sm:$0xff]
        %v330 = vld [vmem:[#allocation2 + $0x8] sm:$0xff]
        %v331 = vld [vmem:[#allocation2 + $0x10] sm:$0xf]
        %s332 = sld [smem:[#allocation3]]
        %v333 = vstv %s332
        %v334 = vmul.f32 %v333, %v329
        %v335 = vmul.f32 %v333, %v330
        %v336 = vadd.f32 %v328, %v334
        %v337 = vadd.f32 %v328, %v335
        %s338 = sld [smem:[#allocation3 + $0x1]]
        %v339 = vstv %s338
        %v340 = vmul.f32 %v339, %v329
        %v341 = vmul.f32 %v339, %v330
        %344 = vrot.lane.b32.xlu0 %v340, 127
        %v345 = vpop.permute.xlu0 %344
        %346 = vrot.lane.b32.xlu0 %v341, 127
        %v347 = vpop.permute.xlu0 %346
        %v350 = vadd.f32 %v336, %v345
        %v351 = vadd.f32 %v337, %v347
        %s352 = sld [smem:[#allocation3 + $0x2]]
        %v353 = vstv %s352
        %v354 = vmul.f32 %v353, %v329
        %v355 = vmul.f32 %v353, %v330
        %358 = vrot.lane.b32.xlu0 %v354, 126
        %v359 = vpop.permute.xlu0 %358
        %360 = vrot.lane.b32.xlu0 %v355, 126
        %v361 = vpop.permute.xlu0 %360
        %v364 = vadd.f32 %v350, %v359
        %v365 = vadd.f32 %v351, %v361
        %s366 = sld [smem:[#allocation3 + $0x3]]
        %v367 = vstv %s366
        %v368 = vmul.f32 %v367, %v329
        %v369 = vmul.f32 %v367, %v330
        %372 = vrot.lane.b32.xlu0 %v368, 125
        %v373 = vpop.permute.xlu0 %372
        %374 = vrot.lane.b32.xlu0 %v369, 125
        %v375 = vpop.permute.xlu0 %374
        %v378 = vadd.f32 %v364, %v373
        %v379 = vadd.f32 %v365, %v375
        %s380 = sld [smem:[#allocation3 + $0x4]]
        %v381 = vstv %s380
        %v382 = vmul.f32 %v381, %v329
        %v383 = vmul.f32 %v381, %v330
        %386 = vrot.lane.b32.xlu0 %v382, 124
        %v387 = vpop.permute.xlu0 %386
        %388 = vrot.lane.b32.xlu0 %v383, 124
        %v389 = vpop.permute.xlu0 %388
        %v392 = vadd.f32 %v378, %v387
        %v393 = vadd.f32 %v379, %v389
        %s394 = sld [smem:[#allocation3 + $0x5]]
        %v395 = vstv %s394
        %v396 = vmul.f32 %v395, %v329
        %v397 = vmul.f32 %v395, %v330
        %v398 = vmul.f32 %v395, %v331
        %vm402 = vcmask 1046528
        %v403 = vrot.slane %v396, 1
        %v404 = vrot.slane %v397, 1
        %v405 = vsel %vm402, %v403, %v404
        %v406 = vrot.slane %v398, 1
        %v407 = vsel %vm402, %v404, %v406
        %v410 = vadd.f32 %v392, %v405
        %v411 = vadd.f32 %v393, %v407
        %s412 = sld [smem:[#allocation3 + $0x6]]
        %v413 = vstv %s412
        %v414 = vmul.f32 %v413, %v329
        %v415 = vmul.f32 %v413, %v330
        %v416 = vmul.f32 %v413, %v331
        %v420 = vrot.slane %v414, 1
        %v421 = vrot.slane %v415, 1
        %v422 = vsel %vm402, %v420, %v421
        %v423 = vrot.slane %v416, 1
        %v424 = vsel %vm402, %v421, %v423
        %425 = vrot.lane.b32.xlu0 %v422, 127
        %v426 = vpop.permute.xlu0 %425
        %427 = vrot.lane.b32.xlu0 %v424, 127
        %v428 = vpop.permute.xlu0 %427
        %v431 = vadd.f32 %v410, %v426
        %v432 = vadd.f32 %v411, %v428
        %s433 = sld [smem:[#allocation3 + $0x7]]
        %v434 = vstv %s433
        %v435 = vmul.f32 %v434, %v329
        %v436 = vmul.f32 %v434, %v330
        %v437 = vmul.f32 %v434, %v331
        %v441 = vrot.slane %v435, 1
        %v442 = vrot.slane %v436, 1
        %v443 = vsel %vm402, %v441, %v442
        %v444 = vrot.slane %v437, 1
        %v445 = vsel %vm402, %v442, %v444
        %446 = vrot.lane.b32.xlu0 %v443, 126
        %v447 = vpop.permute.xlu0 %446
        %448 = vrot.lane.b32.xlu0 %v445, 126
        %v449 = vpop.permute.xlu0 %448
        %v452 = vadd.f32 %v431, %v447
        %v453 = vadd.f32 %v432, %v449
        %s454 = sld [smem:[#allocation3 + $0x8]]
        %v455 = vstv %s454
        %v456 = vmul.f32 %v455, %v329
        %v457 = vmul.f32 %v455, %v330
        %v458 = vmul.f32 %v455, %v331
        %v462 = vrot.slane %v456, 1
        %v463 = vrot.slane %v457, 1
        %v464 = vsel %vm402, %v462, %v463
        %v465 = vrot.slane %v458, 1
        %v466 = vsel %vm402, %v463, %v465
        %467 = vrot.lane.b32.xlu0 %v464, 125
        %v468 = vpop.permute.xlu0 %467
        %469 = vrot.lane.b32.xlu0 %v466, 125
        %v470 = vpop.permute.xlu0 %469
        %v473 = vadd.f32 %v452, %v468
        %v474 = vadd.f32 %v453, %v470
        %s475 = sld [smem:[#allocation3 + $0x9]]
        %v476 = vstv %s475
        %v477 = vmul.f32 %v476, %v329
        %v478 = vmul.f32 %v476, %v330
        %v479 = vmul.f32 %v476, %v331
        %v483 = vrot.slane %v477, 1
        %v484 = vrot.slane %v478, 1
        %v485 = vsel %vm402, %v483, %v484
        %v486 = vrot.slane %v479, 1
        %v487 = vsel %vm402, %v484, %v486
        %488 = vrot.lane.b32.xlu0 %v485, 124
        %v489 = vpop.permute.xlu0 %488
        %490 = vrot.lane.b32.xlu0 %v487, 124
        %v491 = vpop.permute.xlu0 %490
        %v494 = vadd.f32 %v473, %v489
        %v495 = vadd.f32 %v474, %v491
        %s496 = sld [smem:[#allocation3 + $0xa]]
        %v497 = vstv %s496
        %v498 = vmul.f32 %v497, %v329
        %v499 = vmul.f32 %v497, %v330
        %v500 = vmul.f32 %v497, %v331
        %vm504 = vcmask 1045504
        %v505 = vrot.slane %v498, 2
        %v506 = vrot.slane %v499, 2
        %v507 = vsel %vm504, %v505, %v506
        %v508 = vrot.slane %v500, 2
        %v509 = vsel %vm504, %v506, %v508
        %v512 = vadd.f32 %v494, %v507
        %v513 = vadd.f32 %v495, %v509
        %s514 = sld [smem:[#allocation3 + $0xb]]
        %v515 = vstv %s514
        %v516 = vmul.f32 %v515, %v329
        %v517 = vmul.f32 %v515, %v330
        %v518 = vmul.f32 %v515, %v331
        %v522 = vrot.slane %v516, 2
        %v523 = vrot.slane %v517, 2
        %v524 = vsel %vm504, %v522, %v523
        %v525 = vrot.slane %v518, 2
        %v526 = vsel %vm504, %v523, %v525
        %527 = vrot.lane.b32.xlu0 %v524, 127
        %v528 = vpop.permute.xlu0 %527
        %529 = vrot.lane.b32.xlu0 %v526, 127
        %v530 = vpop.permute.xlu0 %529
        %v533 = vadd.f32 %v512, %v528
        %v534 = vadd.f32 %v513, %v530
        %s535 = sld [smem:[#allocation3 + $0xc]]
        %v536 = vstv %s535
        %v537 = vmul.f32 %v536, %v329
        %v538 = vmul.f32 %v536, %v330
        %v539 = vmul.f32 %v536, %v331
        %v543 = vrot.slane %v537, 2
        %v544 = vrot.slane %v538, 2
        %v545 = vsel %vm504, %v543, %v544
        %v546 = vrot.slane %v539, 2
        %v547 = vsel %vm504, %v544, %v546
        %548 = vrot.lane.b32.xlu0 %v545, 126
        %v549 = vpop.permute.xlu0 %548
        %550 = vrot.lane.b32.xlu0 %v547, 126
        %v551 = vpop.permute.xlu0 %550
        %v554 = vadd.f32 %v533, %v549
        %v555 = vadd.f32 %v534, %v551
        %s556 = sld [smem:[#allocation3 + $0xd]]
        %v557 = vstv %s556
        %v558 = vmul.f32 %v557, %v329
        %v559 = vmul.f32 %v557, %v330
        %v560 = vmul.f32 %v557, %v331
        %v564 = vrot.slane %v558, 2
        %v565 = vrot.slane %v559, 2
        %v566 = vsel %vm504, %v564, %v565
        %v567 = vrot.slane %v560, 2
        %v568 = vsel %vm504, %v565, %v567
        %569 = vrot.lane.b32.xlu0 %v566, 125
        %v570 = vpop.permute.xlu0 %569
        %571 = vrot.lane.b32.xlu0 %v568, 125
        %v572 = vpop.permute.xlu0 %571
        %v575 = vadd.f32 %v554, %v570
        %v576 = vadd.f32 %v555, %v572
        %s577 = sld [smem:[#allocation3 + $0xe]]
        %v578 = vstv %s577
        %v579 = vmul.f32 %v578, %v329
        %v580 = vmul.f32 %v578, %v330
        %v581 = vmul.f32 %v578, %v331
        %v585 = vrot.slane %v579, 2
        %v586 = vrot.slane %v580, 2
        %v587 = vsel %vm504, %v585, %v586
        %v588 = vrot.slane %v581, 2
        %v589 = vsel %vm504, %v586, %v588
        %590 = vrot.lane.b32.xlu0 %v587, 124
        %v591 = vpop.permute.xlu0 %590
        %592 = vrot.lane.b32.xlu0 %v589, 124
        %v593 = vpop.permute.xlu0 %592
        %v596 = vadd.f32 %v575, %v591
        %v597 = vadd.f32 %v576, %v593
        %s598 = sld [smem:[#allocation3 + $0xf]]
        %v599 = vstv %s598
        %v600 = vmul.f32 %v599, %v329
        %v601 = vmul.f32 %v599, %v330
        %v602 = vmul.f32 %v599, %v331
        %vm606 = vcmask 1044480
        %v607 = vrot.slane %v600, 3
        %v608 = vrot.slane %v601, 3
        %v609 = vsel %vm606, %v607, %v608
        %v610 = vrot.slane %v602, 3
        %v611 = vsel %vm606, %v608, %v610
        %v614 = vadd.f32 %v596, %v609
        %v615 = vadd.f32 %v597, %v611
        %s616 = sld [smem:[#allocation3 + $0x10]]
        %v617 = vstv %s616
        %v618 = vmul.f32 %v617, %v329
        %v619 = vmul.f32 %v617, %v330
        %v620 = vmul.f32 %v617, %v331
        %v624 = vrot.slane %v618, 3
        %v625 = vrot.slane %v619, 3
        %v626 = vsel %vm606, %v624, %v625
        %v627 = vrot.slane %v620, 3
        %v628 = vsel %vm606, %v625, %v627
        %629 = vrot.lane.b32.xlu0 %v626, 127
        %v630 = vpop.permute.xlu0 %629
        %631 = vrot.lane.b32.xlu0 %v628, 127
        %v632 = vpop.permute.xlu0 %631
        %v635 = vadd.f32 %v614, %v630
        %v636 = vadd.f32 %v615, %v632
        %s637 = sld [smem:[#allocation3 + $0x11]]
        %v638 = vstv %s637
        %v639 = vmul.f32 %v638, %v329
        %v640 = vmul.f32 %v638, %v330
        %v641 = vmul.f32 %v638, %v331
        %v645 = vrot.slane %v639, 3
        %v646 = vrot.slane %v640, 3
        %v647 = vsel %vm606, %v645, %v646
        %v648 = vrot.slane %v641, 3
        %v649 = vsel %vm606, %v646, %v648
        %650 = vrot.lane.b32.xlu0 %v647, 126
        %v651 = vpop.permute.xlu0 %650
        %652 = vrot.lane.b32.xlu0 %v649, 126
        %v653 = vpop.permute.xlu0 %652
        %v656 = vadd.f32 %v635, %v651
        %v657 = vadd.f32 %v636, %v653
        %s658 = sld [smem:[#allocation3 + $0x12]]
        %v659 = vstv %s658
        %v660 = vmul.f32 %v659, %v329
        %v661 = vmul.f32 %v659, %v330
        %v662 = vmul.f32 %v659, %v331
        %v666 = vrot.slane %v660, 3
        %v667 = vrot.slane %v661, 3
        %v668 = vsel %vm606, %v666, %v667
        %v669 = vrot.slane %v662, 3
        %v670 = vsel %vm606, %v667, %v669
        %671 = vrot.lane.b32.xlu0 %v668, 125
        %v672 = vpop.permute.xlu0 %671
        %673 = vrot.lane.b32.xlu0 %v670, 125
        %v674 = vpop.permute.xlu0 %673
        %v677 = vadd.f32 %v656, %v672
        %v678 = vadd.f32 %v657, %v674
        %s679 = sld [smem:[#allocation3 + $0x13]]
        %v680 = vstv %s679
        %v681 = vmul.f32 %v680, %v329
        %v682 = vmul.f32 %v680, %v330
        %v683 = vmul.f32 %v680, %v331
        %v687 = vrot.slane %v681, 3
        %v688 = vrot.slane %v682, 3
        %v689 = vsel %vm606, %v687, %v688
        %v690 = vrot.slane %v683, 3
        %v691 = vsel %vm606, %v688, %v690
        %692 = vrot.lane.b32.xlu0 %v689, 124
        %v693 = vpop.permute.xlu0 %692
        %694 = vrot.lane.b32.xlu0 %v691, 124
        %v695 = vpop.permute.xlu0 %694
        %v698 = vadd.f32 %v677, %v693
        %v699 = vadd.f32 %v678, %v695
        %s700 = sld [smem:[#allocation3 + $0x14]]
        %v701 = vstv %s700
        %v702 = vmul.f32 %v701, %v329
        %v703 = vmul.f32 %v701, %v330
        %v704 = vmul.f32 %v701, %v331
        %vm708 = vcmask 1043456
        %v709 = vrot.slane %v702, 4
        %v710 = vrot.slane %v703, 4
        %v711 = vsel %vm708, %v709, %v710
        %v712 = vrot.slane %v704, 4
        %v713 = vsel %vm708, %v710, %v712
        %v716 = vadd.f32 %v698, %v711
        %v717 = vadd.f32 %v699, %v713
        %s718 = sld [smem:[#allocation3 + $0x15]]
        %v719 = vstv %s718
        %v720 = vmul.f32 %v719, %v329
        %v721 = vmul.f32 %v719, %v330
        %v722 = vmul.f32 %v719, %v331
        %v726 = vrot.slane %v720, 4
        %v727 = vrot.slane %v721, 4
        %v728 = vsel %vm708, %v726, %v727
        %v729 = vrot.slane %v722, 4
        %v730 = vsel %vm708, %v727, %v729
        %731 = vrot.lane.b32.xlu0 %v728, 127
        %v732 = vpop.permute.xlu0 %731
        %733 = vrot.lane.b32.xlu0 %v730, 127
        %v734 = vpop.permute.xlu0 %733
        %v737 = vadd.f32 %v716, %v732
        %v738 = vadd.f32 %v717, %v734
        %s739 = sld [smem:[#allocation3 + $0x16]]
        %v740 = vstv %s739
        %v741 = vmul.f32 %v740, %v329
        %v742 = vmul.f32 %v740, %v330
        %v743 = vmul.f32 %v740, %v331
        %v747 = vrot.slane %v741, 4
        %v748 = vrot.slane %v742, 4
        %v749 = vsel %vm708, %v747, %v748
        %v750 = vrot.slane %v743, 4
        %v751 = vsel %vm708, %v748, %v750
        %752 = vrot.lane.b32.xlu0 %v749, 126
        %v753 = vpop.permute.xlu0 %752
        %754 = vrot.lane.b32.xlu0 %v751, 126
        %v755 = vpop.permute.xlu0 %754
        %v758 = vadd.f32 %v737, %v753
        %v759 = vadd.f32 %v738, %v755
        %s760 = sld [smem:[#allocation3 + $0x17]]
        %v761 = vstv %s760
        %v762 = vmul.f32 %v761, %v329
        %v763 = vmul.f32 %v761, %v330
        %v764 = vmul.f32 %v761, %v331
        %v768 = vrot.slane %v762, 4
        %v769 = vrot.slane %v763, 4
        %v770 = vsel %vm708, %v768, %v769
        %v771 = vrot.slane %v764, 4
        %v772 = vsel %vm708, %v769, %v771
        %773 = vrot.lane.b32.xlu0 %v770, 125
        %v774 = vpop.permute.xlu0 %773
        %775 = vrot.lane.b32.xlu0 %v772, 125
        %v776 = vpop.permute.xlu0 %775
        %v779 = vadd.f32 %v758, %v774
        %v780 = vadd.f32 %v759, %v776
        %s781 = sld [smem:[#allocation3 + $0x18]]
        %v782 = vstv %s781
        %v783 = vmul.f32 %v782, %v329
        %v784 = vmul.f32 %v782, %v330
        %v785 = vmul.f32 %v782, %v331
        %v789 = vrot.slane %v783, 4
        %v790 = vrot.slane %v784, 4
        %v791 = vsel %vm708, %v789, %v790
        %v792 = vrot.slane %v785, 4
        %v793 = vsel %vm708, %v790, %v792
        %794 = vrot.lane.b32.xlu0 %v791, 124
        %v795 = vpop.permute.xlu0 %794
        %796 = vrot.lane.b32.xlu0 %v793, 124
        %v797 = vpop.permute.xlu0 %796
        %v800 = vadd.f32 %v779, %v795
        %v801 = vadd.f32 %v780, %v797
        %v802 = vld [vmem:[%s296] sm:$0xff]
        %v803 = vld [vmem:[%s296 + $0x8] sm:$0xff]
        %v804 = vld [vmem:[%s296 + $0x10] sm:$0xf]
        %s805 = sld [smem:[#allocation3 + $0x19]]
        %v806 = vstv %s805
        %v807 = vmul.f32 %v806, %v802
        %v808 = vmul.f32 %v806, %v803
        %v809 = vadd.f32 %v800, %v807
        %v810 = vadd.f32 %v801, %v808
        %s811 = sld [smem:[#allocation3 + $0x1a]]
        %v812 = vstv %s811
        %v813 = vmul.f32 %v812, %v802
        %v814 = vmul.f32 %v812, %v803
        %817 = vrot.lane.b32.xlu0 %v813, 127
        %v818 = vpop.permute.xlu0 %817
        %819 = vrot.lane.b32.xlu0 %v814, 127
        %v820 = vpop.permute.xlu0 %819
        %v823 = vadd.f32 %v809, %v818
        %v824 = vadd.f32 %v810, %v820
        %s825 = sld [smem:[#allocation3 + $0x1b]]
        %v826 = vstv %s825
        %v827 = vmul.f32 %v826, %v802
        %v828 = vmul.f32 %v826, %v803
        %831 = vrot.lane.b32.xlu0 %v827, 126
        %v832 = vpop.permute.xlu0 %831
        %833 = vrot.lane.b32.xlu0 %v828, 126
        %v834 = vpop.permute.xlu0 %833
        %v837 = vadd.f32 %v823, %v832
        %v838 = vadd.f32 %v824, %v834
        %s839 = sld [smem:[#allocation3 + $0x1c]]
        %v840 = vstv %s839
        %v841 = vmul.f32 %v840, %v802
        %v842 = vmul.f32 %v840, %v803
        %845 = vrot.lane.b32.xlu0 %v841, 125
        %v846 = vpop.permute.xlu0 %845
        %847 = vrot.lane.b32.xlu0 %v842, 125
        %v848 = vpop.permute.xlu0 %847
        %v851 = vadd.f32 %v837, %v846
        %v852 = vadd.f32 %v838, %v848
        %s853 = sld [smem:[#allocation3 + $0x1d]]
        %v854 = vstv %s853
        %v855 = vmul.f32 %v854, %v802
        %v856 = vmul.f32 %v854, %v803
        %859 = vrot.lane.b32.xlu0 %v855, 124
        %v860 = vpop.permute.xlu0 %859
        %861 = vrot.lane.b32.xlu0 %v856, 124
        %v862 = vpop.permute.xlu0 %861
        %v865 = vadd.f32 %v851, %v860
        %v866 = vadd.f32 %v852, %v862
        %s867 = sld [smem:[#allocation3 + $0x1e]]
        %v868 = vstv %s867
        %v869 = vmul.f32 %v868, %v802
        %v870 = vmul.f32 %v868, %v803
        %v871 = vmul.f32 %v868, %v804
        %v875 = vrot.slane %v869, 1
        %v876 = vrot.slane %v870, 1
        %v877 = vsel %vm402, %v875, %v876
        %v878 = vrot.slane %v871, 1
        %v879 = vsel %vm402, %v876, %v878
        %v882 = vadd.f32 %v865, %v877
        %v883 = vadd.f32 %v866, %v879
        %s884 = sld [smem:[#allocation3 + $0x1f]]
        %v885 = vstv %s884
        %v886 = vmul.f32 %v885, %v802
        %v887 = vmul.f32 %v885, %v803
        %v888 = vmul.f32 %v885, %v804
        %v892 = vrot.slane %v886, 1
        %v893 = vrot.slane %v887, 1
        %v894 = vsel %vm402, %v892, %v893
        %v895 = vrot.slane %v888, 1
        %v896 = vsel %vm402, %v893, %v895
        %897 = vrot.lane.b32.xlu0 %v894, 127
        %v898 = vpop.permute.xlu0 %897
        %899 = vrot.lane.b32.xlu0 %v896, 127
        %v900 = vpop.permute.xlu0 %899
        %v903 = vadd.f32 %v882, %v898
        %v904 = vadd.f32 %v883, %v900
        %s905 = sld [smem:[#allocation3 + $0x20]]
        %v906 = vstv %s905
        %v907 = vmul.f32 %v906, %v802
        %v908 = vmul.f32 %v906, %v803
        %v909 = vmul.f32 %v906, %v804
        %v913 = vrot.slane %v907, 1
        %v914 = vrot.slane %v908, 1
        %v915 = vsel %vm402, %v913, %v914
        %v916 = vrot.slane %v909, 1
        %v917 = vsel %vm402, %v914, %v916
        %918 = vrot.lane.b32.xlu0 %v915, 126
        %v919 = vpop.permute.xlu0 %918
        %920 = vrot.lane.b32.xlu0 %v917, 126
        %v921 = vpop.permute.xlu0 %920
        %v924 = vadd.f32 %v903, %v919
        %v925 = vadd.f32 %v904, %v921
        %s926 = sld [smem:[#allocation3 + $0x21]]
        %v927 = vstv %s926
        %v928 = vmul.f32 %v927, %v802
        %v929 = vmul.f32 %v927, %v803
        %v930 = vmul.f32 %v927, %v804
        %v934 = vrot.slane %v928, 1
        %v935 = vrot.slane %v929, 1
        %v936 = vsel %vm402, %v934, %v935
        %v937 = vrot.slane %v930, 1
        %v938 = vsel %vm402, %v935, %v937
        %939 = vrot.lane.b32.xlu0 %v936, 125
        %v940 = vpop.permute.xlu0 %939
        %941 = vrot.lane.b32.xlu0 %v938, 125
        %v942 = vpop.permute.xlu0 %941
        %v945 = vadd.f32 %v924, %v940
        %v946 = vadd.f32 %v925, %v942
        %s947 = sld [smem:[#allocation3 + $0x22]]
        %v948 = vstv %s947
        %v949 = vmul.f32 %v948, %v802
        %v950 = vmul.f32 %v948, %v803
        %v951 = vmul.f32 %v948, %v804
        %v955 = vrot.slane %v949, 1
        %v956 = vrot.slane %v950, 1
        %v957 = vsel %vm402, %v955, %v956
        %v958 = vrot.slane %v951, 1
        %v959 = vsel %vm402, %v956, %v958
        %960 = vrot.lane.b32.xlu0 %v957, 124
        %v961 = vpop.permute.xlu0 %960
        %962 = vrot.lane.b32.xlu0 %v959, 124
        %v963 = vpop.permute.xlu0 %962
        %v966 = vadd.f32 %v945, %v961
        %v967 = vadd.f32 %v946, %v963
        %s968 = sld [smem:[#allocation3 + $0x23]]
        %v969 = vstv %s968
        %v970 = vmul.f32 %v969, %v802
        %v971 = vmul.f32 %v969, %v803
        %v972 = vmul.f32 %v969, %v804
        %v976 = vrot.slane %v970, 2
        %v977 = vrot.slane %v971, 2
        %v978 = vsel %vm504, %v976, %v977
        %v979 = vrot.slane %v972, 2
        %v980 = vsel %vm504, %v977, %v979
        %v983 = vadd.f32 %v966, %v978
        %v984 = vadd.f32 %v967, %v980
        %s985 = sld [smem:[#allocation3 + $0x24]]
        %v986 = vstv %s985
        %v987 = vmul.f32 %v986, %v802
        %v988 = vmul.f32 %v986, %v803
        %v989 = vmul.f32 %v986, %v804
        %v993 = vrot.slane %v987, 2
        %v994 = vrot.slane %v988, 2
        %v995 = vsel %vm504, %v993, %v994
        %v996 = vrot.slane %v989, 2
        %v997 = vsel %vm504, %v994, %v996
        %998 = vrot.lane.b32.xlu0 %v995, 127
        %v999 = vpop.permute.xlu0 %998
        %1000 = vrot.lane.b32.xlu0 %v997, 127
        %v1001 = vpop.permute.xlu0 %1000
        %v1004 = vadd.f32 %v983, %v999
        %v1005 = vadd.f32 %v984, %v1001
        %s1006 = sld [smem:[#allocation3 + $0x25]]
        %v1007 = vstv %s1006
        %v1008 = vmul.f32 %v1007, %v802
        %v1009 = vmul.f32 %v1007, %v803
        %v1010 = vmul.f32 %v1007, %v804
        %v1014 = vrot.slane %v1008, 2
        %v1015 = vrot.slane %v1009, 2
        %v1016 = vsel %vm504, %v1014, %v1015
        %v1017 = vrot.slane %v1010, 2
        %v1018 = vsel %vm504, %v1015, %v1017
        %1019 = vrot.lane.b32.xlu0 %v1016, 126
        %v1020 = vpop.permute.xlu0 %1019
        %1021 = vrot.lane.b32.xlu0 %v1018, 126
        %v1022 = vpop.permute.xlu0 %1021
        %v1025 = vadd.f32 %v1004, %v1020
        %v1026 = vadd.f32 %v1005, %v1022
        %s1027 = sld [smem:[#allocation3 + $0x26]]
        %v1028 = vstv %s1027
        %v1029 = vmul.f32 %v1028, %v802
        %v1030 = vmul.f32 %v1028, %v803
        %v1031 = vmul.f32 %v1028, %v804
        %v1035 = vrot.slane %v1029, 2
        %v1036 = vrot.slane %v1030, 2
        %v1037 = vsel %vm504, %v1035, %v1036
        %v1038 = vrot.slane %v1031, 2
        %v1039 = vsel %vm504, %v1036, %v1038
        %1040 = vrot.lane.b32.xlu0 %v1037, 125
        %v1041 = vpop.permute.xlu0 %1040
        %1042 = vrot.lane.b32.xlu0 %v1039, 125
        %v1043 = vpop.permute.xlu0 %1042
        %v1046 = vadd.f32 %v1025, %v1041
        %v1047 = vadd.f32 %v1026, %v1043
        %s1048 = sld [smem:[#allocation3 + $0x27]]
        %v1049 = vstv %s1048
        %v1050 = vmul.f32 %v1049, %v802
        %v1051 = vmul.f32 %v1049, %v803
        %v1052 = vmul.f32 %v1049, %v804
        %v1056 = vrot.slane %v1050, 2
        %v1057 = vrot.slane %v1051, 2
        %v1058 = vsel %vm504, %v1056, %v1057
        %v1059 = vrot.slane %v1052, 2
        %v1060 = vsel %vm504, %v1057, %v1059
        %1061 = vrot.lane.b32.xlu0 %v1058, 124
        %v1062 = vpop.permute.xlu0 %1061
        %1063 = vrot.lane.b32.xlu0 %v1060, 124
        %v1064 = vpop.permute.xlu0 %1063
        %v1067 = vadd.f32 %v1046, %v1062
        %v1068 = vadd.f32 %v1047, %v1064
        %s1069 = sld [smem:[#allocation3 + $0x28]]
        %v1070 = vstv %s1069
        %v1071 = vmul.f32 %v1070, %v802
        %v1072 = vmul.f32 %v1070, %v803
        %v1073 = vmul.f32 %v1070, %v804
        %v1077 = vrot.slane %v1071, 3
        %v1078 = vrot.slane %v1072, 3
        %v1079 = vsel %vm606, %v1077, %v1078
        %v1080 = vrot.slane %v1073, 3
        %v1081 = vsel %vm606, %v1078, %v1080
        %v1084 = vadd.f32 %v1067, %v1079
        %v1085 = vadd.f32 %v1068, %v1081
        %s1086 = sld [smem:[#allocation3 + $0x29]]
        %v1087 = vstv %s1086
        %v1088 = vmul.f32 %v1087, %v802
        %v1089 = vmul.f32 %v1087, %v803
        %v1090 = vmul.f32 %v1087, %v804
        %v1094 = vrot.slane %v1088, 3
        %v1095 = vrot.slane %v1089, 3
        %v1096 = vsel %vm606, %v1094, %v1095
        %v1097 = vrot.slane %v1090, 3
        %v1098 = vsel %vm606, %v1095, %v1097
        %1099 = vrot.lane.b32.xlu0 %v1096, 127
        %v1100 = vpop.permute.xlu0 %1099
        %1101 = vrot.lane.b32.xlu0 %v1098, 127
        %v1102 = vpop.permute.xlu0 %1101
        %v1105 = vadd.f32 %v1084, %v1100
        %v1106 = vadd.f32 %v1085, %v1102
        %s1107 = sld [smem:[#allocation3 + $0x2a]]
        %v1108 = vstv %s1107
        %v1109 = vmul.f32 %v1108, %v802
        %v1110 = vmul.f32 %v1108, %v803
        %v1111 = vmul.f32 %v1108, %v804
        %v1115 = vrot.slane %v1109, 3
        %v1116 = vrot.slane %v1110, 3
        %v1117 = vsel %vm606, %v1115, %v1116
        %v1118 = vrot.slane %v1111, 3
        %v1119 = vsel %vm606, %v1116, %v1118
        %1120 = vrot.lane.b32.xlu0 %v1117, 126
        %v1121 = vpop.permute.xlu0 %1120
        %1122 = vrot.lane.b32.xlu0 %v1119, 126
        %v1123 = vpop.permute.xlu0 %1122
        %v1126 = vadd.f32 %v1105, %v1121
        %v1127 = vadd.f32 %v1106, %v1123
        %s1128 = sld [smem:[#allocation3 + $0x2b]]
        %v1129 = vstv %s1128
        %v1130 = vmul.f32 %v1129, %v802
        %v1131 = vmul.f32 %v1129, %v803
        %v1132 = vmul.f32 %v1129, %v804
        %v1136 = vrot.slane %v1130, 3
        %v1137 = vrot.slane %v1131, 3
        %v1138 = vsel %vm606, %v1136, %v1137
        %v1139 = vrot.slane %v1132, 3
        %v1140 = vsel %vm606, %v1137, %v1139
        %1141 = vrot.lane.b32.xlu0 %v1138, 125
        %v1142 = vpop.permute.xlu0 %1141
        %1143 = vrot.lane.b32.xlu0 %v1140, 125
        %v1144 = vpop.permute.xlu0 %1143
        %v1147 = vadd.f32 %v1126, %v1142
        %v1148 = vadd.f32 %v1127, %v1144
        %s1149 = sld [smem:[#allocation3 + $0x2c]]
        %v1150 = vstv %s1149
        %v1151 = vmul.f32 %v1150, %v802
        %v1152 = vmul.f32 %v1150, %v803
        %v1153 = vmul.f32 %v1150, %v804
        %v1157 = vrot.slane %v1151, 3
        %v1158 = vrot.slane %v1152, 3
        %v1159 = vsel %vm606, %v1157, %v1158
        %v1160 = vrot.slane %v1153, 3
        %v1161 = vsel %vm606, %v1158, %v1160
        %1162 = vrot.lane.b32.xlu0 %v1159, 124
        %v1163 = vpop.permute.xlu0 %1162
        %1164 = vrot.lane.b32.xlu0 %v1161, 124
        %v1165 = vpop.permute.xlu0 %1164
        %v1168 = vadd.f32 %v1147, %v1163
        %v1169 = vadd.f32 %v1148, %v1165
        %s1170 = sld [smem:[#allocation3 + $0x2d]]
        %v1171 = vstv %s1170
        %v1172 = vmul.f32 %v1171, %v802
        %v1173 = vmul.f32 %v1171, %v803
        %v1174 = vmul.f32 %v1171, %v804
        %v1178 = vrot.slane %v1172, 4
        %v1179 = vrot.slane %v1173, 4
        %v1180 = vsel %vm708, %v1178, %v1179
        %v1181 = vrot.slane %v1174, 4
        %v1182 = vsel %vm708, %v1179, %v1181
        %v1185 = vadd.f32 %v1168, %v1180
        %v1186 = vadd.f32 %v1169, %v1182
        %s1187 = sld [smem:[#allocation3 + $0x2e]]
        %v1188 = vstv %s1187
        %v1189 = vmul.f32 %v1188, %v802
        %v1190 = vmul.f32 %v1188, %v803
        %v1191 = vmul.f32 %v1188, %v804
        %v1195 = vrot.slane %v1189, 4
        %v1196 = vrot.slane %v1190, 4
        %v1197 = vsel %vm708, %v1195, %v1196
        %v1198 = vrot.slane %v1191, 4
        %v1199 = vsel %vm708, %v1196, %v1198
        %1200 = vrot.lane.b32.xlu0 %v1197, 127
        %v1201 = vpop.permute.xlu0 %1200
        %1202 = vrot.lane.b32.xlu0 %v1199, 127
        %v1203 = vpop.permute.xlu0 %1202
        %v1206 = vadd.f32 %v1185, %v1201
        %v1207 = vadd.f32 %v1186, %v1203
        %s1208 = sld [smem:[#allocation3 + $0x2f]]
        %v1209 = vstv %s1208
        %v1210 = vmul.f32 %v1209, %v802
        %v1211 = vmul.f32 %v1209, %v803
        %v1212 = vmul.f32 %v1209, %v804
        %v1216 = vrot.slane %v1210, 4
        %v1217 = vrot.slane %v1211, 4
        %v1218 = vsel %vm708, %v1216, %v1217
        %v1219 = vrot.slane %v1212, 4
        %v1220 = vsel %vm708, %v1217, %v1219
        %1221 = vrot.lane.b32.xlu0 %v1218, 126
        %v1222 = vpop.permute.xlu0 %1221
        %1223 = vrot.lane.b32.xlu0 %v1220, 126
        %v1224 = vpop.permute.xlu0 %1223
        %v1227 = vadd.f32 %v1206, %v1222
        %v1228 = vadd.f32 %v1207, %v1224
        %s1229 = sld [smem:[#allocation3 + $0x30]]
        %v1230 = vstv %s1229
        %v1231 = vmul.f32 %v1230, %v802
        %v1232 = vmul.f32 %v1230, %v803
        %v1233 = vmul.f32 %v1230, %v804
        %v1237 = vrot.slane %v1231, 4
        %v1238 = vrot.slane %v1232, 4
        %v1239 = vsel %vm708, %v1237, %v1238
        %v1240 = vrot.slane %v1233, 4
        %v1241 = vsel %vm708, %v1238, %v1240
        %1242 = vrot.lane.b32.xlu0 %v1239, 125
        %v1243 = vpop.permute.xlu0 %1242
        %1244 = vrot.lane.b32.xlu0 %v1241, 125
        %v1245 = vpop.permute.xlu0 %1244
        %v1248 = vadd.f32 %v1227, %v1243
        %v1249 = vadd.f32 %v1228, %v1245
        %s1250 = sld [smem:[#allocation3 + $0x31]]
        %v1251 = vstv %s1250
        %v1252 = vmul.f32 %v1251, %v802
        %v1253 = vmul.f32 %v1251, %v803
        %v1254 = vmul.f32 %v1251, %v804
        %v1258 = vrot.slane %v1252, 4
        %v1259 = vrot.slane %v1253, 4
        %v1260 = vsel %vm708, %v1258, %v1259
        %v1261 = vrot.slane %v1254, 4
        %v1262 = vsel %vm708, %v1259, %v1261
        %1263 = vrot.lane.b32.xlu0 %v1260, 124
        %v1264 = vpop.permute.xlu0 %1263
        %1265 = vrot.lane.b32.xlu0 %v1262, 124
        %v1266 = vpop.permute.xlu0 %1265
        %v1269 = vadd.f32 %v1248, %v1264
        %v1270 = vadd.f32 %v1249, %v1266
        %v1271 = vld [vmem:[%s310] sm:$0xff]
        %v1272 = vld [vmem:[%s310 + $0x8] sm:$0xff]
        %v1273 = vld [vmem:[%s310 + $0x10] sm:$0xf]
        %s1274 = sld [smem:[#allocation3 + $0x32]]
        %v1275 = vstv %s1274
        %v1276 = vmul.f32 %v1275, %v1271
        %v1277 = vmul.f32 %v1275, %v1272
        %v1278 = vadd.f32 %v1269, %v1276
        %v1279 = vadd.f32 %v1270, %v1277
        %s1280 = sld [smem:[#allocation3 + $0x33]]
        %v1281 = vstv %s1280
        %v1282 = vmul.f32 %v1281, %v1271
        %v1283 = vmul.f32 %v1281, %v1272
        %1286 = vrot.lane.b32.xlu0 %v1282, 127
        %v1287 = vpop.permute.xlu0 %1286
        %1288 = vrot.lane.b32.xlu0 %v1283, 127
        %v1289 = vpop.permute.xlu0 %1288
        %v1292 = vadd.f32 %v1278, %v1287
        %v1293 = vadd.f32 %v1279, %v1289
        %s1294 = sld [smem:[#allocation3 + $0x34]]
        %v1295 = vstv %s1294
        %v1296 = vmul.f32 %v1295, %v1271
        %v1297 = vmul.f32 %v1295, %v1272
        %1300 = vrot.lane.b32.xlu0 %v1296, 126
        %v1301 = vpop.permute.xlu0 %1300
        %1302 = vrot.lane.b32.xlu0 %v1297, 126
        %v1303 = vpop.permute.xlu0 %1302
        %v1306 = vadd.f32 %v1292, %v1301
        %v1307 = vadd.f32 %v1293, %v1303
        %s1308 = sld [smem:[#allocation3 + $0x35]]
        %v1309 = vstv %s1308
        %v1310 = vmul.f32 %v1309, %v1271
        %v1311 = vmul.f32 %v1309, %v1272
        %1314 = vrot.lane.b32.xlu0 %v1310, 125
        %v1315 = vpop.permute.xlu0 %1314
        %1316 = vrot.lane.b32.xlu0 %v1311, 125
        %v1317 = vpop.permute.xlu0 %1316
        %v1320 = vadd.f32 %v1306, %v1315
        %v1321 = vadd.f32 %v1307, %v1317
        %s1322 = sld [smem:[#allocation3 + $0x36]]
        %v1323 = vstv %s1322
        %v1324 = vmul.f32 %v1323, %v1271
        %v1325 = vmul.f32 %v1323, %v1272
        %1328 = vrot.lane.b32.xlu0 %v1324, 124
        %v1329 = vpop.permute.xlu0 %1328
        %1330 = vrot.lane.b32.xlu0 %v1325, 124
        %v1331 = vpop.permute.xlu0 %1330
        %v1334 = vadd.f32 %v1320, %v1329
        %v1335 = vadd.f32 %v1321, %v1331
        %s1336 = sld [smem:[#allocation3 + $0x37]]
        %v1337 = vstv %s1336
        %v1338 = vmul.f32 %v1337, %v1271
        %v1339 = vmul.f32 %v1337, %v1272
        %v1340 = vmul.f32 %v1337, %v1273
        %v1344 = vrot.slane %v1338, 1
        %v1345 = vrot.slane %v1339, 1
        %v1346 = vsel %vm402, %v1344, %v1345
        %v1347 = vrot.slane %v1340, 1
        %v1348 = vsel %vm402, %v1345, %v1347
        %v1351 = vadd.f32 %v1334, %v1346
        %v1352 = vadd.f32 %v1335, %v1348
        %s1353 = sld [smem:[#allocation3 + $0x38]]
        %v1354 = vstv %s1353
        %v1355 = vmul.f32 %v1354, %v1271
        %v1356 = vmul.f32 %v1354, %v1272
        %v1357 = vmul.f32 %v1354, %v1273
        %v1361 = vrot.slane %v1355, 1
        %v1362 = vrot.slane %v1356, 1
        %v1363 = vsel %vm402, %v1361, %v1362
        %v1364 = vrot.slane %v1357, 1
        %v1365 = vsel %vm402, %v1362, %v1364
        %1366 = vrot.lane.b32.xlu0 %v1363, 127
        %v1367 = vpop.permute.xlu0 %1366
        %1368 = vrot.lane.b32.xlu0 %v1365, 127
        %v1369 = vpop.permute.xlu0 %1368
        %v1372 = vadd.f32 %v1351, %v1367
        %v1373 = vadd.f32 %v1352, %v1369
        %s1374 = sld [smem:[#allocation3 + $0x39]]
        %v1375 = vstv %s1374
        %v1376 = vmul.f32 %v1375, %v1271
        %v1377 = vmul.f32 %v1375, %v1272
        %v1378 = vmul.f32 %v1375, %v1273
        %v1382 = vrot.slane %v1376, 1
        %v1383 = vrot.slane %v1377, 1
        %v1384 = vsel %vm402, %v1382, %v1383
        %v1385 = vrot.slane %v1378, 1
        %v1386 = vsel %vm402, %v1383, %v1385
        %1387 = vrot.lane.b32.xlu0 %v1384, 126
        %v1388 = vpop.permute.xlu0 %1387
        %1389 = vrot.lane.b32.xlu0 %v1386, 126
        %v1390 = vpop.permute.xlu0 %1389
        %v1393 = vadd.f32 %v1372, %v1388
        %v1394 = vadd.f32 %v1373, %v1390
        %s1395 = sld [smem:[#allocation3 + $0x3a]]
        %v1396 = vstv %s1395
        %v1397 = vmul.f32 %v1396, %v1271
        %v1398 = vmul.f32 %v1396, %v1272
        %v1399 = vmul.f32 %v1396, %v1273
        %v1403 = vrot.slane %v1397, 1
        %v1404 = vrot.slane %v1398, 1
        %v1405 = vsel %vm402, %v1403, %v1404
        %v1406 = vrot.slane %v1399, 1
        %v1407 = vsel %vm402, %v1404, %v1406
        %1408 = vrot.lane.b32.xlu0 %v1405, 125
        %v1409 = vpop.permute.xlu0 %1408
        %1410 = vrot.lane.b32.xlu0 %v1407, 125
        %v1411 = vpop.permute.xlu0 %1410
        %v1414 = vadd.f32 %v1393, %v1409
        %v1415 = vadd.f32 %v1394, %v1411
        %s1416 = sld [smem:[#allocation3 + $0x3b]]
        %v1417 = vstv %s1416
        %v1418 = vmul.f32 %v1417, %v1271
        %v1419 = vmul.f32 %v1417, %v1272
        %v1420 = vmul.f32 %v1417, %v1273
        %v1424 = vrot.slane %v1418, 1
        %v1425 = vrot.slane %v1419, 1
        %v1426 = vsel %vm402, %v1424, %v1425
        %v1427 = vrot.slane %v1420, 1
        %v1428 = vsel %vm402, %v1425, %v1427
        %1429 = vrot.lane.b32.xlu0 %v1426, 124
        %v1430 = vpop.permute.xlu0 %1429
        %1431 = vrot.lane.b32.xlu0 %v1428, 124
        %v1432 = vpop.permute.xlu0 %1431
        %v1435 = vadd.f32 %v1414, %v1430
        %v1436 = vadd.f32 %v1415, %v1432
        %s1437 = sld [smem:[#allocation3 + $0x3c]]
        %v1438 = vstv %s1437
        %v1439 = vmul.f32 %v1438, %v1271
        %v1440 = vmul.f32 %v1438, %v1272
        %v1441 = vmul.f32 %v1438, %v1273
        %v1445 = vrot.slane %v1439, 2
        %v1446 = vrot.slane %v1440, 2
        %v1447 = vsel %vm504, %v1445, %v1446
        %v1448 = vrot.slane %v1441, 2
        %v1449 = vsel %vm504, %v1446, %v1448
        %v1452 = vadd.f32 %v1435, %v1447
        %v1453 = vadd.f32 %v1436, %v1449
        %s1454 = sld [smem:[#allocation3 + $0x3d]]
        %v1455 = vstv %s1454
        %v1456 = vmul.f32 %v1455, %v1271
        %v1457 = vmul.f32 %v1455, %v1272
        %v1458 = vmul.f32 %v1455, %v1273
        %v1462 = vrot.slane %v1456, 2
        %v1463 = vrot.slane %v1457, 2
        %v1464 = vsel %vm504, %v1462, %v1463
        %v1465 = vrot.slane %v1458, 2
        %v1466 = vsel %vm504, %v1463, %v1465
        %1467 = vrot.lane.b32.xlu0 %v1464, 127
        %v1468 = vpop.permute.xlu0 %1467
        %1469 = vrot.lane.b32.xlu0 %v1466, 127
        %v1470 = vpop.permute.xlu0 %1469
        %v1473 = vadd.f32 %v1452, %v1468
        %v1474 = vadd.f32 %v1453, %v1470
        %s1475 = sld [smem:[#allocation3 + $0x3e]]
        %v1476 = vstv %s1475
        %v1477 = vmul.f32 %v1476, %v1271
        %v1478 = vmul.f32 %v1476, %v1272
        %v1479 = vmul.f32 %v1476, %v1273
        %v1483 = vrot.slane %v1477, 2
        %v1484 = vrot.slane %v1478, 2
        %v1485 = vsel %vm504, %v1483, %v1484
        %v1486 = vrot.slane %v1479, 2
        %v1487 = vsel %vm504, %v1484, %v1486
        %1488 = vrot.lane.b32.xlu0 %v1485, 126
        %v1489 = vpop.permute.xlu0 %1488
        %1490 = vrot.lane.b32.xlu0 %v1487, 126
        %v1491 = vpop.permute.xlu0 %1490
        %v1494 = vadd.f32 %v1473, %v1489
        %v1495 = vadd.f32 %v1474, %v1491
        %s1496 = sld [smem:[#allocation3 + $0x3f]]
        %v1497 = vstv %s1496
        %v1498 = vmul.f32 %v1497, %v1271
        %v1499 = vmul.f32 %v1497, %v1272
        %v1500 = vmul.f32 %v1497, %v1273
        %v1504 = vrot.slane %v1498, 2
        %v1505 = vrot.slane %v1499, 2
        %v1506 = vsel %vm504, %v1504, %v1505
        %v1507 = vrot.slane %v1500, 2
        %v1508 = vsel %vm504, %v1505, %v1507
        %1509 = vrot.lane.b32.xlu0 %v1506, 125
        %v1510 = vpop.permute.xlu0 %1509
        %1511 = vrot.lane.b32.xlu0 %v1508, 125
        %v1512 = vpop.permute.xlu0 %1511
        %v1515 = vadd.f32 %v1494, %v1510
        %v1516 = vadd.f32 %v1495, %v1512
        %s1517 = sld [smem:[#allocation3 + $0x40]]
        %v1518 = vstv %s1517
        %v1519 = vmul.f32 %v1518, %v1271
        %v1520 = vmul.f32 %v1518, %v1272
        %v1521 = vmul.f32 %v1518, %v1273
        %v1525 = vrot.slane %v1519, 2
        %v1526 = vrot.slane %v1520, 2
        %v1527 = vsel %vm504, %v1525, %v1526
        %v1528 = vrot.slane %v1521, 2
        %v1529 = vsel %vm504, %v1526, %v1528
        %1530 = vrot.lane.b32.xlu0 %v1527, 124
        %v1531 = vpop.permute.xlu0 %1530
        %1532 = vrot.lane.b32.xlu0 %v1529, 124
        %v1533 = vpop.permute.xlu0 %1532
        %v1536 = vadd.f32 %v1515, %v1531
        %v1537 = vadd.f32 %v1516, %v1533
        %s1538 = sld [smem:[#allocation3 + $0x41]]
        %v1539 = vstv %s1538
        %v1540 = vmul.f32 %v1539, %v1271
        %v1541 = vmul.f32 %v1539, %v1272
        %v1542 = vmul.f32 %v1539, %v1273
        %v1546 = vrot.slane %v1540, 3
        %v1547 = vrot.slane %v1541, 3
        %v1548 = vsel %vm606, %v1546, %v1547
        %v1549 = vrot.slane %v1542, 3
        %v1550 = vsel %vm606, %v1547, %v1549
        %v1553 = vadd.f32 %v1536, %v1548
        %v1554 = vadd.f32 %v1537, %v1550
        %s1555 = sld [smem:[#allocation3 + $0x42]]
        %v1556 = vstv %s1555
        %v1557 = vmul.f32 %v1556, %v1271
        %v1558 = vmul.f32 %v1556, %v1272
        %v1559 = vmul.f32 %v1556, %v1273
        %v1563 = vrot.slane %v1557, 3
        %v1564 = vrot.slane %v1558, 3
        %v1565 = vsel %vm606, %v1563, %v1564
        %v1566 = vrot.slane %v1559, 3
        %v1567 = vsel %vm606, %v1564, %v1566
        %1568 = vrot.lane.b32.xlu0 %v1565, 127
        %v1569 = vpop.permute.xlu0 %1568
        %1570 = vrot.lane.b32.xlu0 %v1567, 127
        %v1571 = vpop.permute.xlu0 %1570
        %v1574 = vadd.f32 %v1553, %v1569
        %v1575 = vadd.f32 %v1554, %v1571
        %s1576 = sld [smem:[#allocation3 + $0x43]]
        %v1577 = vstv %s1576
        %v1578 = vmul.f32 %v1577, %v1271
        %v1579 = vmul.f32 %v1577, %v1272
        %v1580 = vmul.f32 %v1577, %v1273
        %v1584 = vrot.slane %v1578, 3
        %v1585 = vrot.slane %v1579, 3
        %v1586 = vsel %vm606, %v1584, %v1585
        %v1587 = vrot.slane %v1580, 3
        %v1588 = vsel %vm606, %v1585, %v1587
        %1589 = vrot.lane.b32.xlu0 %v1586, 126
        %v1590 = vpop.permute.xlu0 %1589
        %1591 = vrot.lane.b32.xlu0 %v1588, 126
        %v1592 = vpop.permute.xlu0 %1591
        %v1595 = vadd.f32 %v1574, %v1590
        %v1596 = vadd.f32 %v1575, %v1592
        %s1597 = sld [smem:[#allocation3 + $0x44]]
        %v1598 = vstv %s1597
        %v1599 = vmul.f32 %v1598, %v1271
        %v1600 = vmul.f32 %v1598, %v1272
        %v1601 = vmul.f32 %v1598, %v1273
        %v1605 = vrot.slane %v1599, 3
        %v1606 = vrot.slane %v1600, 3
        %v1607 = vsel %vm606, %v1605, %v1606
        %v1608 = vrot.slane %v1601, 3
        %v1609 = vsel %vm606, %v1606, %v1608
        %1610 = vrot.lane.b32.xlu0 %v1607, 125
        %v1611 = vpop.permute.xlu0 %1610
        %1612 = vrot.lane.b32.xlu0 %v1609, 125
        %v1613 = vpop.permute.xlu0 %1612
        %v1616 = vadd.f32 %v1595, %v1611
        %v1617 = vadd.f32 %v1596, %v1613
        %s1618 = sld [smem:[#allocation3 + $0x45]]
        %v1619 = vstv %s1618
        %v1620 = vmul.f32 %v1619, %v1271
        %v1621 = vmul.f32 %v1619, %v1272
        %v1622 = vmul.f32 %v1619, %v1273
        %v1626 = vrot.slane %v1620, 3
        %v1627 = vrot.slane %v1621, 3
        %v1628 = vsel %vm606, %v1626, %v1627
        %v1629 = vrot.slane %v1622, 3
        %v1630 = vsel %vm606, %v1627, %v1629
        %1631 = vrot.lane.b32.xlu0 %v1628, 124
        %v1632 = vpop.permute.xlu0 %1631
        %1633 = vrot.lane.b32.xlu0 %v1630, 124
        %v1634 = vpop.permute.xlu0 %1633
        %v1637 = vadd.f32 %v1616, %v1632
        %v1638 = vadd.f32 %v1617, %v1634
        %s1639 = sld [smem:[#allocation3 + $0x46]]
        %v1640 = vstv %s1639
        %v1641 = vmul.f32 %v1640, %v1271
        %v1642 = vmul.f32 %v1640, %v1272
        %v1643 = vmul.f32 %v1640, %v1273
        %v1647 = vrot.slane %v1641, 4
        %v1648 = vrot.slane %v1642, 4
        %v1649 = vsel %vm708, %v1647, %v1648
        %v1650 = vrot.slane %v1643, 4
        %v1651 = vsel %vm708, %v1648, %v1650
        %v1654 = vadd.f32 %v1637, %v1649
        %v1655 = vadd.f32 %v1638, %v1651
        %s1656 = sld [smem:[#allocation3 + $0x47]]
        %v1657 = vstv %s1656
        %v1658 = vmul.f32 %v1657, %v1271
        %v1659 = vmul.f32 %v1657, %v1272
        %v1660 = vmul.f32 %v1657, %v1273
        %v1664 = vrot.slane %v1658, 4
        %v1665 = vrot.slane %v1659, 4
        %v1666 = vsel %vm708, %v1664, %v1665
        %v1667 = vrot.slane %v1660, 4
        %v1668 = vsel %vm708, %v1665, %v1667
        %1669 = vrot.lane.b32.xlu0 %v1666, 127
        %v1670 = vpop.permute.xlu0 %1669
        %1671 = vrot.lane.b32.xlu0 %v1668, 127
        %v1672 = vpop.permute.xlu0 %1671
        %v1675 = vadd.f32 %v1654, %v1670
        %v1676 = vadd.f32 %v1655, %v1672
        %s1677 = sld [smem:[#allocation3 + $0x48]]
        %v1678 = vstv %s1677
        %v1679 = vmul.f32 %v1678, %v1271
        %v1680 = vmul.f32 %v1678, %v1272
        %v1681 = vmul.f32 %v1678, %v1273
        %v1685 = vrot.slane %v1679, 4
        %v1686 = vrot.slane %v1680, 4
        %v1687 = vsel %vm708, %v1685, %v1686
        %v1688 = vrot.slane %v1681, 4
        %v1689 = vsel %vm708, %v1686, %v1688
        %1690 = vrot.lane.b32.xlu0 %v1687, 126
        %v1691 = vpop.permute.xlu0 %1690
        %1692 = vrot.lane.b32.xlu0 %v1689, 126
        %v1693 = vpop.permute.xlu0 %1692
        %v1696 = vadd.f32 %v1675, %v1691
        %v1697 = vadd.f32 %v1676, %v1693
        %s1698 = sld [smem:[#allocation3 + $0x49]]
        %v1699 = vstv %s1698
        %v1700 = vmul.f32 %v1699, %v1271
        %v1701 = vmul.f32 %v1699, %v1272
        %v1702 = vmul.f32 %v1699, %v1273
        %v1706 = vrot.slane %v1700, 4
        %v1707 = vrot.slane %v1701, 4
        %v1708 = vsel %vm708, %v1706, %v1707
        %v1709 = vrot.slane %v1702, 4
        %v1710 = vsel %vm708, %v1707, %v1709
        %1711 = vrot.lane.b32.xlu0 %v1708, 125
        %v1712 = vpop.permute.xlu0 %1711
        %1713 = vrot.lane.b32.xlu0 %v1710, 125
        %v1714 = vpop.permute.xlu0 %1713
        %v1717 = vadd.f32 %v1696, %v1712
        %v1718 = vadd.f32 %v1697, %v1714
        %s1719 = sld [smem:[#allocation3 + $0x4a]]
        %v1720 = vstv %s1719
        %v1721 = vmul.f32 %v1720, %v1271
        %v1722 = vmul.f32 %v1720, %v1272
        %v1723 = vmul.f32 %v1720, %v1273
        %v1727 = vrot.slane %v1721, 4
        %v1728 = vrot.slane %v1722, 4
        %v1729 = vsel %vm708, %v1727, %v1728
        %v1730 = vrot.slane %v1723, 4
        %v1731 = vsel %vm708, %v1728, %v1730
        %1732 = vrot.lane.b32.xlu0 %v1729, 124
        %v1733 = vpop.permute.xlu0 %1732
        %1734 = vrot.lane.b32.xlu0 %v1731, 124
        %v1735 = vpop.permute.xlu0 %1734
        %v1738 = vadd.f32 %v1717, %v1733
        %v1739 = vadd.f32 %v1718, %v1735
        %v1740 = vld [vmem:[%s324] sm:$0xff]
        %v1741 = vld [vmem:[%s324 + $0x8] sm:$0xff]
        %v1742 = vld [vmem:[%s324 + $0x10] sm:$0xf]
        %s1743 = sld [smem:[#allocation3 + $0x4b]]
        %v1744 = vstv %s1743
        %v1745 = vmul.f32 %v1744, %v1740
        %v1746 = vmul.f32 %v1744, %v1741
        %v1747 = vadd.f32 %v1738, %v1745
        %v1748 = vadd.f32 %v1739, %v1746
        %s1749 = sld [smem:[#allocation3 + $0x4c]]
        %v1750 = vstv %s1749
        %v1751 = vmul.f32 %v1750, %v1740
        %v1752 = vmul.f32 %v1750, %v1741
        %1755 = vrot.lane.b32.xlu0 %v1751, 127
        %v1756 = vpop.permute.xlu0 %1755
        %1757 = vrot.lane.b32.xlu0 %v1752, 127
        %v1758 = vpop.permute.xlu0 %1757
        %v1761 = vadd.f32 %v1747, %v1756
        %v1762 = vadd.f32 %v1748, %v1758
        %s1763 = sld [smem:[#allocation3 + $0x4d]]
        %v1764 = vstv %s1763
        %v1765 = vmul.f32 %v1764, %v1740
        %v1766 = vmul.f32 %v1764, %v1741
        %1769 = vrot.lane.b32.xlu0 %v1765, 126
        %v1770 = vpop.permute.xlu0 %1769
        %1771 = vrot.lane.b32.xlu0 %v1766, 126
        %v1772 = vpop.permute.xlu0 %1771
        %v1775 = vadd.f32 %v1761, %v1770
        %v1776 = vadd.f32 %v1762, %v1772
        %s1777 = sld [smem:[#allocation3 + $0x4e]]
        %v1778 = vstv %s1777
        %v1779 = vmul.f32 %v1778, %v1740
        %v1780 = vmul.f32 %v1778, %v1741
        %1783 = vrot.lane.b32.xlu0 %v1779, 125
        %v1784 = vpop.permute.xlu0 %1783
        %1785 = vrot.lane.b32.xlu0 %v1780, 125
        %v1786 = vpop.permute.xlu0 %1785
        %v1789 = vadd.f32 %v1775, %v1784
        %v1790 = vadd.f32 %v1776, %v1786
        %s1791 = sld [smem:[#allocation3 + $0x4f]]
        %v1792 = vstv %s1791
        %v1793 = vmul.f32 %v1792, %v1740
        %v1794 = vmul.f32 %v1792, %v1741
        %1797 = vrot.lane.b32.xlu0 %v1793, 124
        %v1798 = vpop.permute.xlu0 %1797
        %1799 = vrot.lane.b32.xlu0 %v1794, 124
        %v1800 = vpop.permute.xlu0 %1799
        %v1803 = vadd.f32 %v1789, %v1798
        %v1804 = vadd.f32 %v1790, %v1800
        %s1805 = sld [smem:[#allocation3 + $0x50]]
        %v1806 = vstv %s1805
        %v1807 = vmul.f32 %v1806, %v1740
        %v1808 = vmul.f32 %v1806, %v1741
        %v1809 = vmul.f32 %v1806, %v1742
        %v1813 = vrot.slane %v1807, 1
        %v1814 = vrot.slane %v1808, 1
        %v1815 = vsel %vm402, %v1813, %v1814
        %v1816 = vrot.slane %v1809, 1
        %v1817 = vsel %vm402, %v1814, %v1816
        %v1820 = vadd.f32 %v1803, %v1815
        %v1821 = vadd.f32 %v1804, %v1817
        %s1822 = sld [smem:[#allocation3 + $0x51]]
        %v1823 = vstv %s1822
        %v1824 = vmul.f32 %v1823, %v1740
        %v1825 = vmul.f32 %v1823, %v1741
        %v1826 = vmul.f32 %v1823, %v1742
        %v1830 = vrot.slane %v1824, 1
        %v1831 = vrot.slane %v1825, 1
        %v1832 = vsel %vm402, %v1830, %v1831
        %v1833 = vrot.slane %v1826, 1
        %v1834 = vsel %vm402, %v1831, %v1833
        %1835 = vrot.lane.b32.xlu0 %v1832, 127
        %v1836 = vpop.permute.xlu0 %1835
        %1837 = vrot.lane.b32.xlu0 %v1834, 127
        %v1838 = vpop.permute.xlu0 %1837
        %v1841 = vadd.f32 %v1820, %v1836
        %v1842 = vadd.f32 %v1821, %v1838
        %s1843 = sld [smem:[#allocation3 + $0x52]]
        %v1844 = vstv %s1843
        %v1845 = vmul.f32 %v1844, %v1740
        %v1846 = vmul.f32 %v1844, %v1741
        %v1847 = vmul.f32 %v1844, %v1742
        %v1851 = vrot.slane %v1845, 1
        %v1852 = vrot.slane %v1846, 1
        %v1853 = vsel %vm402, %v1851, %v1852
        %v1854 = vrot.slane %v1847, 1
        %v1855 = vsel %vm402, %v1852, %v1854
        %1856 = vrot.lane.b32.xlu0 %v1853, 126
        %v1857 = vpop.permute.xlu0 %1856
        %1858 = vrot.lane.b32.xlu0 %v1855, 126
        %v1859 = vpop.permute.xlu0 %1858
        %v1862 = vadd.f32 %v1841, %v1857
        %v1863 = vadd.f32 %v1842, %v1859
        %s1864 = sld [smem:[#allocation3 + $0x53]]
        %v1865 = vstv %s1864
        %v1866 = vmul.f32 %v1865, %v1740
        %v1867 = vmul.f32 %v1865, %v1741
        %v1868 = vmul.f32 %v1865, %v1742
        %v1872 = vrot.slane %v1866, 1
        %v1873 = vrot.slane %v1867, 1
        %v1874 = vsel %vm402, %v1872, %v1873
        %v1875 = vrot.slane %v1868, 1
        %v1876 = vsel %vm402, %v1873, %v1875
        %1877 = vrot.lane.b32.xlu0 %v1874, 125
        %v1878 = vpop.permute.xlu0 %1877
        %1879 = vrot.lane.b32.xlu0 %v1876, 125
        %v1880 = vpop.permute.xlu0 %1879
        %v1883 = vadd.f32 %v1862, %v1878
        %v1884 = vadd.f32 %v1863, %v1880
        %s1885 = sld [smem:[#allocation3 + $0x54]]
        %v1886 = vstv %s1885
        %v1887 = vmul.f32 %v1886, %v1740
        %v1888 = vmul.f32 %v1886, %v1741
        %v1889 = vmul.f32 %v1886, %v1742
        %v1893 = vrot.slane %v1887, 1
        %v1894 = vrot.slane %v1888, 1
        %v1895 = vsel %vm402, %v1893, %v1894
        %v1896 = vrot.slane %v1889, 1
        %v1897 = vsel %vm402, %v1894, %v1896
        %1898 = vrot.lane.b32.xlu0 %v1895, 124
        %v1899 = vpop.permute.xlu0 %1898
        %1900 = vrot.lane.b32.xlu0 %v1897, 124
        %v1901 = vpop.permute.xlu0 %1900
        %v1904 = vadd.f32 %v1883, %v1899
        %v1905 = vadd.f32 %v1884, %v1901
        %s1906 = sld [smem:[#allocation3 + $0x55]]
        %v1907 = vstv %s1906
        %v1908 = vmul.f32 %v1907, %v1740
        %v1909 = vmul.f32 %v1907, %v1741
        %v1910 = vmul.f32 %v1907, %v1742
        %v1914 = vrot.slane %v1908, 2
        %v1915 = vrot.slane %v1909, 2
        %v1916 = vsel %vm504, %v1914, %v1915
        %v1917 = vrot.slane %v1910, 2
        %v1918 = vsel %vm504, %v1915, %v1917
        %v1921 = vadd.f32 %v1904, %v1916
        %v1922 = vadd.f32 %v1905, %v1918
        %s1923 = sld [smem:[#allocation3 + $0x56]]
        %v1924 = vstv %s1923
        %v1925 = vmul.f32 %v1924, %v1740
        %v1926 = vmul.f32 %v1924, %v1741
        %v1927 = vmul.f32 %v1924, %v1742
        %v1931 = vrot.slane %v1925, 2
        %v1932 = vrot.slane %v1926, 2
        %v1933 = vsel %vm504, %v1931, %v1932
        %v1934 = vrot.slane %v1927, 2
        %v1935 = vsel %vm504, %v1932, %v1934
        %1936 = vrot.lane.b32.xlu0 %v1933, 127
        %v1937 = vpop.permute.xlu0 %1936
        %1938 = vrot.lane.b32.xlu0 %v1935, 127
        %v1939 = vpop.permute.xlu0 %1938
        %v1942 = vadd.f32 %v1921, %v1937
        %v1943 = vadd.f32 %v1922, %v1939
        %s1944 = sld [smem:[#allocation3 + $0x57]]
        %v1945 = vstv %s1944
        %v1946 = vmul.f32 %v1945, %v1740
        %v1947 = vmul.f32 %v1945, %v1741
        %v1948 = vmul.f32 %v1945, %v1742
        %v1952 = vrot.slane %v1946, 2
        %v1953 = vrot.slane %v1947, 2
        %v1954 = vsel %vm504, %v1952, %v1953
        %v1955 = vrot.slane %v1948, 2
        %v1956 = vsel %vm504, %v1953, %v1955
        %1957 = vrot.lane.b32.xlu0 %v1954, 126
        %v1958 = vpop.permute.xlu0 %1957
        %1959 = vrot.lane.b32.xlu0 %v1956, 126
        %v1960 = vpop.permute.xlu0 %1959
        %v1963 = vadd.f32 %v1942, %v1958
        %v1964 = vadd.f32 %v1943, %v1960
        %s1965 = sld [smem:[#allocation3 + $0x58]]
        %v1966 = vstv %s1965
        %v1967 = vmul.f32 %v1966, %v1740
        %v1968 = vmul.f32 %v1966, %v1741
        %v1969 = vmul.f32 %v1966, %v1742
        %v1973 = vrot.slane %v1967, 2
        %v1974 = vrot.slane %v1968, 2
        %v1975 = vsel %vm504, %v1973, %v1974
        %v1976 = vrot.slane %v1969, 2
        %v1977 = vsel %vm504, %v1974, %v1976
        %1978 = vrot.lane.b32.xlu0 %v1975, 125
        %v1979 = vpop.permute.xlu0 %1978
        %1980 = vrot.lane.b32.xlu0 %v1977, 125
        %v1981 = vpop.permute.xlu0 %1980
        %v1984 = vadd.f32 %v1963, %v1979
        %v1985 = vadd.f32 %v1964, %v1981
        %s1986 = sld [smem:[#allocation3 + $0x59]]
        %v1987 = vstv %s1986
        %v1988 = vmul.f32 %v1987, %v1740
        %v1989 = vmul.f32 %v1987, %v1741
        %v1990 = vmul.f32 %v1987, %v1742
        %v1994 = vrot.slane %v1988, 2
        %v1995 = vrot.slane %v1989, 2
        %v1996 = vsel %vm504, %v1994, %v1995
        %v1997 = vrot.slane %v1990, 2
        %v1998 = vsel %vm504, %v1995, %v1997
        %1999 = vrot.lane.b32.xlu0 %v1996, 124
        %v2000 = vpop.permute.xlu0 %1999
        %2001 = vrot.lane.b32.xlu0 %v1998, 124
        %v2002 = vpop.permute.xlu0 %2001
        %v2005 = vadd.f32 %v1984, %v2000
        %v2006 = vadd.f32 %v1985, %v2002
        %s2007 = sld [smem:[#allocation3 + $0x5a]]
        %v2008 = vstv %s2007
        %v2009 = vmul.f32 %v2008, %v1740
        %v2010 = vmul.f32 %v2008, %v1741
        %v2011 = vmul.f32 %v2008, %v1742
        %v2015 = vrot.slane %v2009, 3
        %v2016 = vrot.slane %v2010, 3
        %v2017 = vsel %vm606, %v2015, %v2016
        %v2018 = vrot.slane %v2011, 3
        %v2019 = vsel %vm606, %v2016, %v2018
        %v2022 = vadd.f32 %v2005, %v2017
        %v2023 = vadd.f32 %v2006, %v2019
        %s2024 = sld [smem:[#allocation3 + $0x5b]]
        %v2025 = vstv %s2024
        %v2026 = vmul.f32 %v2025, %v1740
        %v2027 = vmul.f32 %v2025, %v1741
        %v2028 = vmul.f32 %v2025, %v1742
        %v2032 = vrot.slane %v2026, 3
        %v2033 = vrot.slane %v2027, 3
        %v2034 = vsel %vm606, %v2032, %v2033
        %v2035 = vrot.slane %v2028, 3
        %v2036 = vsel %vm606, %v2033, %v2035
        %2037 = vrot.lane.b32.xlu0 %v2034, 127
        %v2038 = vpop.permute.xlu0 %2037
        %2039 = vrot.lane.b32.xlu0 %v2036, 127
        %v2040 = vpop.permute.xlu0 %2039
        %v2043 = vadd.f32 %v2022, %v2038
        %v2044 = vadd.f32 %v2023, %v2040
        %s2045 = sld [smem:[#allocation3 + $0x5c]]
        %v2046 = vstv %s2045
        %v2047 = vmul.f32 %v2046, %v1740
        %v2048 = vmul.f32 %v2046, %v1741
        %v2049 = vmul.f32 %v2046, %v1742
        %v2053 = vrot.slane %v2047, 3
        %v2054 = vrot.slane %v2048, 3
        %v2055 = vsel %vm606, %v2053, %v2054
        %v2056 = vrot.slane %v2049, 3
        %v2057 = vsel %vm606, %v2054, %v2056
        %2058 = vrot.lane.b32.xlu0 %v2055, 126
        %v2059 = vpop.permute.xlu0 %2058
        %2060 = vrot.lane.b32.xlu0 %v2057, 126
        %v2061 = vpop.permute.xlu0 %2060
        %v2064 = vadd.f32 %v2043, %v2059
        %v2065 = vadd.f32 %v2044, %v2061
        %s2066 = sld [smem:[#allocation3 + $0x5d]]
        %v2067 = vstv %s2066
        %v2068 = vmul.f32 %v2067, %v1740
        %v2069 = vmul.f32 %v2067, %v1741
        %v2070 = vmul.f32 %v2067, %v1742
        %v2074 = vrot.slane %v2068, 3
        %v2075 = vrot.slane %v2069, 3
        %v2076 = vsel %vm606, %v2074, %v2075
        %v2077 = vrot.slane %v2070, 3
        %v2078 = vsel %vm606, %v2075, %v2077
        %2079 = vrot.lane.b32.xlu0 %v2076, 125
        %v2080 = vpop.permute.xlu0 %2079
        %2081 = vrot.lane.b32.xlu0 %v2078, 125
        %v2082 = vpop.permute.xlu0 %2081
        %v2085 = vadd.f32 %v2064, %v2080
        %v2086 = vadd.f32 %v2065, %v2082
        %s2087 = sld [smem:[#allocation3 + $0x5e]]
        %v2088 = vstv %s2087
        %v2089 = vmul.f32 %v2088, %v1740
        %v2090 = vmul.f32 %v2088, %v1741
        %v2091 = vmul.f32 %v2088, %v1742
        %v2095 = vrot.slane %v2089, 3
        %v2096 = vrot.slane %v2090, 3
        %v2097 = vsel %vm606, %v2095, %v2096
        %v2098 = vrot.slane %v2091, 3
        %v2099 = vsel %vm606, %v2096, %v2098
        %2100 = vrot.lane.b32.xlu0 %v2097, 124
        %v2101 = vpop.permute.xlu0 %2100
        %2102 = vrot.lane.b32.xlu0 %v2099, 124
        %v2103 = vpop.permute.xlu0 %2102
        %v2106 = vadd.f32 %v2085, %v2101
        %v2107 = vadd.f32 %v2086, %v2103
        %s2108 = sld [smem:[#allocation3 + $0x5f]]
        %v2109 = vstv %s2108
        %v2110 = vmul.f32 %v2109, %v1740
        %v2111 = vmul.f32 %v2109, %v1741
        %v2112 = vmul.f32 %v2109, %v1742
        %v2116 = vrot.slane %v2110, 4
        %v2117 = vrot.slane %v2111, 4
        %v2118 = vsel %vm708, %v2116, %v2117
        %v2119 = vrot.slane %v2112, 4
        %v2120 = vsel %vm708, %v2117, %v2119
        %v2123 = vadd.f32 %v2106, %v2118
        %v2124 = vadd.f32 %v2107, %v2120
        %s2125 = sld [smem:[#allocation3 + $0x60]]
        %v2126 = vstv %s2125
        %v2127 = vmul.f32 %v2126, %v1740
        %v2128 = vmul.f32 %v2126, %v1741
        %v2129 = vmul.f32 %v2126, %v1742
        %v2133 = vrot.slane %v2127, 4
        %v2134 = vrot.slane %v2128, 4
        %v2135 = vsel %vm708, %v2133, %v2134
        %v2136 = vrot.slane %v2129, 4
        %v2137 = vsel %vm708, %v2134, %v2136
        %2138 = vrot.lane.b32.xlu0 %v2135, 127
        %v2139 = vpop.permute.xlu0 %2138
        %2140 = vrot.lane.b32.xlu0 %v2137, 127
        %v2141 = vpop.permute.xlu0 %2140
        %v2144 = vadd.f32 %v2123, %v2139
        %v2145 = vadd.f32 %v2124, %v2141
        %s2146 = sld [smem:[#allocation3 + $0x61]]
        %v2147 = vstv %s2146
        %v2148 = vmul.f32 %v2147, %v1740
        %v2149 = vmul.f32 %v2147, %v1741
        %v2150 = vmul.f32 %v2147, %v1742
        %v2154 = vrot.slane %v2148, 4
        %v2155 = vrot.slane %v2149, 4
        %v2156 = vsel %vm708, %v2154, %v2155
        %v2157 = vrot.slane %v2150, 4
        %v2158 = vsel %vm708, %v2155, %v2157
        %2159 = vrot.lane.b32.xlu0 %v2156, 126
        %v2160 = vpop.permute.xlu0 %2159
        %2161 = vrot.lane.b32.xlu0 %v2158, 126
        %v2162 = vpop.permute.xlu0 %2161
        %v2165 = vadd.f32 %v2144, %v2160
        %v2166 = vadd.f32 %v2145, %v2162
        %s2167 = sld [smem:[#allocation3 + $0x62]]
        %v2168 = vstv %s2167
        %v2169 = vmul.f32 %v2168, %v1740
        %v2170 = vmul.f32 %v2168, %v1741
        %v2171 = vmul.f32 %v2168, %v1742
        %v2175 = vrot.slane %v2169, 4
        %v2176 = vrot.slane %v2170, 4
        %v2177 = vsel %vm708, %v2175, %v2176
        %v2178 = vrot.slane %v2171, 4
        %v2179 = vsel %vm708, %v2176, %v2178
        %2180 = vrot.lane.b32.xlu0 %v2177, 125
        %v2181 = vpop.permute.xlu0 %2180
        %2182 = vrot.lane.b32.xlu0 %v2179, 125
        %v2183 = vpop.permute.xlu0 %2182
        %v2186 = vadd.f32 %v2165, %v2181
        %v2187 = vadd.f32 %v2166, %v2183
        %s2188 = sld [smem:[#allocation3 + $0x63]]
        %v2189 = vstv %s2188
        %v2190 = vmul.f32 %v2189, %v1740
        %v2191 = vmul.f32 %v2189, %v1741
        %v2192 = vmul.f32 %v2189, %v1742
        %v2196 = vrot.slane %v2190, 4
        %v2197 = vrot.slane %v2191, 4
        %v2198 = vsel %vm708, %v2196, %v2197
        %v2199 = vrot.slane %v2192, 4
        %v2200 = vsel %vm708, %v2197, %v2199
        %2201 = vrot.lane.b32.xlu0 %v2198, 124
        %v2202 = vpop.permute.xlu0 %2201
        %2203 = vrot.lane.b32.xlu0 %v2200, 124
        %v2204 = vpop.permute.xlu0 %2203
        %v2207 = vadd.f32 %v2186, %v2202
        %v2208 = vadd.f32 %v2187, %v2204
        %v2209 = vtanh.pop %v2207
        %v2210 = vtanh.pop %v2208
        %v2211 = vmul.f32 %v2209, 127.5
        %v2212 = vmul.f32 %v2210, 127.5
        %v2213 = vadd.f32 %v2211, 127.5
        %v2214 = vadd.f32 %v2212, 127.5
        %v2215 = vround.ne.pseudo %v2213
        %v2216 = vround.ne.pseudo %v2214
        %v2217 = vrcp.pop 127.5
        %v2218 = vmul.f32 127.5, %v2217
        %v2219 = vsub.f32 1.0, %v2218
        %v2220 = vmul.f32 %v2217, %v2219
        %v2221 = vadd.f32 %v2217, %v2220
        %vm2222 = vweird.f32 %v2217
        %v2223 = vsel %vm2222, %v2217, %v2221
        %v2224 = vmul.f32 %v2215, %v2223
        %v2225 = vmul.f32 %v2216, %v2223
        %v2226 = vsub.f32 %v2224, 1.0
        %v2227 = vsub.f32 %v2225, 1.0
        %2230 = vrot.lane.b32.xlu0 %v2226, 2
        %v2231 = vpop.permute.xlu0 %2230
        %2232 = vrot.lane.b32.xlu0 %v2227, 2
        %v2233 = vpop.permute.xlu0 %2232
        %2236 = vst.msk [vmem:[#allocation2 + $0x2] sm:$0xff] %vm282, %v2231
        %2237 = vst.msk [vmem:[#allocation2 + $0xa] sm:$0xff] %vm282, %v2233
        %s2238 = sld [smem:[#allocation10 + $0x1]]
        %v2239 = vstv %s2238
        %v2240 = vld [vmem:[#allocation2] sm:$0xff]
        %v2241 = vld [vmem:[#allocation2 + $0x8] sm:$0xff]
        %v2242 = vld [vmem:[#allocation2 + $0x10] sm:$0xf]
        %s2243 = sld [smem:[#allocation8]]
        %v2244 = vstv %s2243
        %v2245 = vmul.f32 %v2244, %v2240
        %v2246 = vmul.f32 %v2244, %v2241
        %v2247 = vadd.f32 %v2239, %v2245
        %v2248 = vadd.f32 %v2239, %v2246
        %s2249 = sld [smem:[#allocation8 + $0x1]]
        %v2250 = vstv %s2249
        %v2251 = vmul.f32 %v2250, %v2240
        %v2252 = vmul.f32 %v2250, %v2241
        %2255 = vrot.lane.b32.xlu0 %v2251, 127
        %v2256 = vpop.permute.xlu0 %2255
        %2257 = vrot.lane.b32.xlu0 %v2252, 127
        %v2258 = vpop.permute.xlu0 %2257
        %v2261 = vadd.f32 %v2247, %v2256
        %v2262 = vadd.f32 %v2248, %v2258
        %s2263 = sld [smem:[#allocation8 + $0x2]]
        %v2264 = vstv %s2263
        %v2265 = vmul.f32 %v2264, %v2240
        %v2266 = vmul.f32 %v2264, %v2241
        %2269 = vrot.lane.b32.xlu0 %v2265, 126
        %v2270 = vpop.permute.xlu0 %2269
        %2271 = vrot.lane.b32.xlu0 %v2266, 126
        %v2272 = vpop.permute.xlu0 %2271
        %v2275 = vadd.f32 %v2261, %v2270
        %v2276 = vadd.f32 %v2262, %v2272
        %s2277 = sld [smem:[#allocation8 + $0x3]]
        %v2278 = vstv %s2277
        %v2279 = vmul.f32 %v2278, %v2240
        %v2280 = vmul.f32 %v2278, %v2241
        %2283 = vrot.lane.b32.xlu0 %v2279, 125
        %v2284 = vpop.permute.xlu0 %2283
        %2285 = vrot.lane.b32.xlu0 %v2280, 125
        %v2286 = vpop.permute.xlu0 %2285
        %v2289 = vadd.f32 %v2275, %v2284
        %v2290 = vadd.f32 %v2276, %v2286
        %s2291 = sld [smem:[#allocation8 + $0x4]]
        %v2292 = vstv %s2291
        %v2293 = vmul.f32 %v2292, %v2240
        %v2294 = vmul.f32 %v2292, %v2241
        %2297 = vrot.lane.b32.xlu0 %v2293, 124
        %v2298 = vpop.permute.xlu0 %2297
        %2299 = vrot.lane.b32.xlu0 %v2294, 124
        %v2300 = vpop.permute.xlu0 %2299
        %v2303 = vadd.f32 %v2289, %v2298
        %v2304 = vadd.f32 %v2290, %v2300
        %s2305 = sld [smem:[#allocation8 + $0x5]]
        %v2306 = vstv %s2305
        %v2307 = vmul.f32 %v2306, %v2240
        %v2308 = vmul.f32 %v2306, %v2241
        %v2309 = vmul.f32 %v2306, %v2242
        %v2313 = vrot.slane %v2307, 1
        %v2314 = vrot.slane %v2308, 1
        %v2315 = vsel %vm402, %v2313, %v2314
        %v2316 = vrot.slane %v2309, 1
        %v2317 = vsel %vm402, %v2314, %v2316
        %v2320 = vadd.f32 %v2303, %v2315
        %v2321 = vadd.f32 %v2304, %v2317
        %s2322 = sld [smem:[#allocation8 + $0x6]]
        %v2323 = vstv %s2322
        %v2324 = vmul.f32 %v2323, %v2240
        %v2325 = vmul.f32 %v2323, %v2241
        %v2326 = vmul.f32 %v2323, %v2242
        %v2330 = vrot.slane %v2324, 1
        %v2331 = vrot.slane %v2325, 1
        %v2332 = vsel %vm402, %v2330, %v2331
        %v2333 = vrot.slane %v2326, 1
        %v2334 = vsel %vm402, %v2331, %v2333
        %2335 = vrot.lane.b32.xlu0 %v2332, 127
        %v2336 = vpop.permute.xlu0 %2335
        %2337 = vrot.lane.b32.xlu0 %v2334, 127
        %v2338 = vpop.permute.xlu0 %2337
        %v2341 = vadd.f32 %v2320, %v2336
        %v2342 = vadd.f32 %v2321, %v2338
        %s2343 = sld [smem:[#allocation8 + $0x7]]
        %v2344 = vstv %s2343
        %v2345 = vmul.f32 %v2344, %v2240
        %v2346 = vmul.f32 %v2344, %v2241
        %v2347 = vmul.f32 %v2344, %v2242
        %v2351 = vrot.slane %v2345, 1
        %v2352 = vrot.slane %v2346, 1
        %v2353 = vsel %vm402, %v2351, %v2352
        %v2354 = vrot.slane %v2347, 1
        %v2355 = vsel %vm402, %v2352, %v2354
        %2356 = vrot.lane.b32.xlu0 %v2353, 126
        %v2357 = vpop.permute.xlu0 %2356
        %2358 = vrot.lane.b32.xlu0 %v2355, 126
        %v2359 = vpop.permute.xlu0 %2358
        %v2362 = vadd.f32 %v2341, %v2357
        %v2363 = vadd.f32 %v2342, %v2359
        %s2364 = sld [smem:[#allocation8 + $0x8]]
        %v2365 = vstv %s2364
        %v2366 = vmul.f32 %v2365, %v2240
        %v2367 = vmul.f32 %v2365, %v2241
        %v2368 = vmul.f32 %v2365, %v2242
        %v2372 = vrot.slane %v2366, 1
        %v2373 = vrot.slane %v2367, 1
        %v2374 = vsel %vm402, %v2372, %v2373
        %v2375 = vrot.slane %v2368, 1
        %v2376 = vsel %vm402, %v2373, %v2375
        %2377 = vrot.lane.b32.xlu0 %v2374, 125
        %v2378 = vpop.permute.xlu0 %2377
        %2379 = vrot.lane.b32.xlu0 %v2376, 125
        %v2380 = vpop.permute.xlu0 %2379
        %v2383 = vadd.f32 %v2362, %v2378
        %v2384 = vadd.f32 %v2363, %v2380
        %s2385 = sld [smem:[#allocation8 + $0x9]]
        %v2386 = vstv %s2385
        %v2387 = vmul.f32 %v2386, %v2240
        %v2388 = vmul.f32 %v2386, %v2241
        %v2389 = vmul.f32 %v2386, %v2242
        %v2393 = vrot.slane %v2387, 1
        %v2394 = vrot.slane %v2388, 1
        %v2395 = vsel %vm402, %v2393, %v2394
        %v2396 = vrot.slane %v2389, 1
        %v2397 = vsel %vm402, %v2394, %v2396
        %2398 = vrot.lane.b32.xlu0 %v2395, 124
        %v2399 = vpop.permute.xlu0 %2398
        %2400 = vrot.lane.b32.xlu0 %v2397, 124
        %v2401 = vpop.permute.xlu0 %2400
        %v2404 = vadd.f32 %v2383, %v2399
        %v2405 = vadd.f32 %v2384, %v2401
        %s2406 = sld [smem:[#allocation8 + $0xa]]
        %v2407 = vstv %s2406
        %v2408 = vmul.f32 %v2407, %v2240
        %v2409 = vmul.f32 %v2407, %v2241
        %v2410 = vmul.f32 %v2407, %v2242
        %v2414 = vrot.slane %v2408, 2
        %v2415 = vrot.slane %v2409, 2
        %v2416 = vsel %vm504, %v2414, %v2415
        %v2417 = vrot.slane %v2410, 2
        %v2418 = vsel %vm504, %v2415, %v2417
        %v2421 = vadd.f32 %v2404, %v2416
        %v2422 = vadd.f32 %v2405, %v2418
        %s2423 = sld [smem:[#allocation8 + $0xb]]
        %v2424 = vstv %s2423
        %v2425 = vmul.f32 %v2424, %v2240
        %v2426 = vmul.f32 %v2424, %v2241
        %v2427 = vmul.f32 %v2424, %v2242
        %v2431 = vrot.slane %v2425, 2
        %v2432 = vrot.slane %v2426, 2
        %v2433 = vsel %vm504, %v2431, %v2432
        %v2434 = vrot.slane %v2427, 2
        %v2435 = vsel %vm504, %v2432, %v2434
        %2436 = vrot.lane.b32.xlu0 %v2433, 127
        %v2437 = vpop.permute.xlu0 %2436
        %2438 = vrot.lane.b32.xlu0 %v2435, 127
        %v2439 = vpop.permute.xlu0 %2438
        %v2442 = vadd.f32 %v2421, %v2437
        %v2443 = vadd.f32 %v2422, %v2439
        %s2444 = sld [smem:[#allocation8 + $0xc]]
        %v2445 = vstv %s2444
        %v2446 = vmul.f32 %v2445, %v2240
        %v2447 = vmul.f32 %v2445, %v2241
        %v2448 = vmul.f32 %v2445, %v2242
        %v2452 = vrot.slane %v2446, 2
        %v2453 = vrot.slane %v2447, 2
        %v2454 = vsel %vm504, %v2452, %v2453
        %v2455 = vrot.slane %v2448, 2
        %v2456 = vsel %vm504, %v2453, %v2455
        %2457 = vrot.lane.b32.xlu0 %v2454, 126
        %v2458 = vpop.permute.xlu0 %2457
        %2459 = vrot.lane.b32.xlu0 %v2456, 126
        %v2460 = vpop.permute.xlu0 %2459
        %v2463 = vadd.f32 %v2442, %v2458
        %v2464 = vadd.f32 %v2443, %v2460
        %s2465 = sld [smem:[#allocation8 + $0xd]]
        %v2466 = vstv %s2465
        %v2467 = vmul.f32 %v2466, %v2240
        %v2468 = vmul.f32 %v2466, %v2241
        %v2469 = vmul.f32 %v2466, %v2242
        %v2473 = vrot.slane %v2467, 2
        %v2474 = vrot.slane %v2468, 2
        %v2475 = vsel %vm504, %v2473, %v2474
        %v2476 = vrot.slane %v2469, 2
        %v2477 = vsel %vm504, %v2474, %v2476
        %2478 = vrot.lane.b32.xlu0 %v2475, 125
        %v2479 = vpop.permute.xlu0 %2478
        %2480 = vrot.lane.b32.xlu0 %v2477, 125
        %v2481 = vpop.permute.xlu0 %2480
        %v2484 = vadd.f32 %v2463, %v2479
        %v2485 = vadd.f32 %v2464, %v2481
        %s2486 = sld [smem:[#allocation8 + $0xe]]
        %v2487 = vstv %s2486
        %v2488 = vmul.f32 %v2487, %v2240
        %v2489 = vmul.f32 %v2487, %v2241
        %v2490 = vmul.f32 %v2487, %v2242
        %v2494 = vrot.slane %v2488, 2
        %v2495 = vrot.slane %v2489, 2
        %v2496 = vsel %vm504, %v2494, %v2495
        %v2497 = vrot.slane %v2490, 2
        %v2498 = vsel %vm504, %v2495, %v2497
        %2499 = vrot.lane.b32.xlu0 %v2496, 124
        %v2500 = vpop.permute.xlu0 %2499
        %2501 = vrot.lane.b32.xlu0 %v2498, 124
        %v2502 = vpop.permute.xlu0 %2501
        %v2505 = vadd.f32 %v2484, %v2500
        %v2506 = vadd.f32 %v2485, %v2502
        %s2507 = sld [smem:[#allocation8 + $0xf]]
        %v2508 = vstv %s2507
        %v2509 = vmul.f32 %v2508, %v2240
        %v2510 = vmul.f32 %v2508, %v2241
        %v2511 = vmul.f32 %v2508, %v2242
        %v2515 = vrot.slane %v2509, 3
        %v2516 = vrot.slane %v2510, 3
        %v2517 = vsel %vm606, %v2515, %v2516
        %v2518 = vrot.slane %v2511, 3
        %v2519 = vsel %vm606, %v2516, %v2518
        %v2522 = vadd.f32 %v2505, %v2517
        %v2523 = vadd.f32 %v2506, %v2519
        %s2524 = sld [smem:[#allocation8 + $0x10]]
        %v2525 = vstv %s2524
        %v2526 = vmul.f32 %v2525, %v2240
        %v2527 = vmul.f32 %v2525, %v2241
        %v2528 = vmul.f32 %v2525, %v2242
        %v2532 = vrot.slane %v2526, 3
        %v2533 = vrot.slane %v2527, 3
        %v2534 = vsel %vm606, %v2532, %v2533
        %v2535 = vrot.slane %v2528, 3
        %v2536 = vsel %vm606, %v2533, %v2535
        %2537 = vrot.lane.b32.xlu0 %v2534, 127
        %v2538 = vpop.permute.xlu0 %2537
        %2539 = vrot.lane.b32.xlu0 %v2536, 127
        %v2540 = vpop.permute.xlu0 %2539
        %v2543 = vadd.f32 %v2522, %v2538
        %v2544 = vadd.f32 %v2523, %v2540
        %s2545 = sld [smem:[#allocation8 + $0x11]]
        %v2546 = vstv %s2545
        %v2547 = vmul.f32 %v2546, %v2240
        %v2548 = vmul.f32 %v2546, %v2241
        %v2549 = vmul.f32 %v2546, %v2242
        %v2553 = vrot.slane %v2547, 3
        %v2554 = vrot.slane %v2548, 3
        %v2555 = vsel %vm606, %v2553, %v2554
        %v2556 = vrot.slane %v2549, 3
        %v2557 = vsel %vm606, %v2554, %v2556
        %2558 = vrot.lane.b32.xlu0 %v2555, 126
        %v2559 = vpop.permute.xlu0 %2558
        %2560 = vrot.lane.b32.xlu0 %v2557, 126
        %v2561 = vpop.permute.xlu0 %2560
        %v2564 = vadd.f32 %v2543, %v2559
        %v2565 = vadd.f32 %v2544, %v2561
        %s2566 = sld [smem:[#allocation8 + $0x12]]
        %v2567 = vstv %s2566
        %v2568 = vmul.f32 %v2567, %v2240
        %v2569 = vmul.f32 %v2567, %v2241
        %v2570 = vmul.f32 %v2567, %v2242
        %v2574 = vrot.slane %v2568, 3
        %v2575 = vrot.slane %v2569, 3
        %v2576 = vsel %vm606, %v2574, %v2575
        %v2577 = vrot.slane %v2570, 3
        %v2578 = vsel %vm606, %v2575, %v2577
        %2579 = vrot.lane.b32.xlu0 %v2576, 125
        %v2580 = vpop.permute.xlu0 %2579
        %2581 = vrot.lane.b32.xlu0 %v2578, 125
        %v2582 = vpop.permute.xlu0 %2581
        %v2585 = vadd.f32 %v2564, %v2580
        %v2586 = vadd.f32 %v2565, %v2582
        %s2587 = sld [smem:[#allocation8 + $0x13]]
        %v2588 = vstv %s2587
        %v2589 = vmul.f32 %v2588, %v2240
        %v2590 = vmul.f32 %v2588, %v2241
        %v2591 = vmul.f32 %v2588, %v2242
        %v2595 = vrot.slane %v2589, 3
        %v2596 = vrot.slane %v2590, 3
        %v2597 = vsel %vm606, %v2595, %v2596
        %v2598 = vrot.slane %v2591, 3
        %v2599 = vsel %vm606, %v2596, %v2598
        %2600 = vrot.lane.b32.xlu0 %v2597, 124
        %v2601 = vpop.permute.xlu0 %2600
        %2602 = vrot.lane.b32.xlu0 %v2599, 124
        %v2603 = vpop.permute.xlu0 %2602
        %v2606 = vadd.f32 %v2585, %v2601
        %v2607 = vadd.f32 %v2586, %v2603
        %s2608 = sld [smem:[#allocation8 + $0x14]]
        %v2609 = vstv %s2608
        %v2610 = vmul.f32 %v2609, %v2240
        %v2611 = vmul.f32 %v2609, %v2241
        %v2612 = vmul.f32 %v2609, %v2242
        %v2616 = vrot.slane %v2610, 4
        %v2617 = vrot.slane %v2611, 4
        %v2618 = vsel %vm708, %v2616, %v2617
        %v2619 = vrot.slane %v2612, 4
        %v2620 = vsel %vm708, %v2617, %v2619
        %v2623 = vadd.f32 %v2606, %v2618
        %v2624 = vadd.f32 %v2607, %v2620
        %s2625 = sld [smem:[#allocation8 + $0x15]]
        %v2626 = vstv %s2625
        %v2627 = vmul.f32 %v2626, %v2240
        %v2628 = vmul.f32 %v2626, %v2241
        %v2629 = vmul.f32 %v2626, %v2242
        %v2633 = vrot.slane %v2627, 4
        %v2634 = vrot.slane %v2628, 4
        %v2635 = vsel %vm708, %v2633, %v2634
        %v2636 = vrot.slane %v2629, 4
        %v2637 = vsel %vm708, %v2634, %v2636
        %2638 = vrot.lane.b32.xlu0 %v2635, 127
        %v2639 = vpop.permute.xlu0 %2638
        %2640 = vrot.lane.b32.xlu0 %v2637, 127
        %v2641 = vpop.permute.xlu0 %2640
        %v2644 = vadd.f32 %v2623, %v2639
        %v2645 = vadd.f32 %v2624, %v2641
        %s2646 = sld [smem:[#allocation8 + $0x16]]
        %v2647 = vstv %s2646
        %v2648 = vmul.f32 %v2647, %v2240
        %v2649 = vmul.f32 %v2647, %v2241
        %v2650 = vmul.f32 %v2647, %v2242
        %v2654 = vrot.slane %v2648, 4
        %v2655 = vrot.slane %v2649, 4
        %v2656 = vsel %vm708, %v2654, %v2655
        %v2657 = vrot.slane %v2650, 4
        %v2658 = vsel %vm708, %v2655, %v2657
        %2659 = vrot.lane.b32.xlu0 %v2656, 126
        %v2660 = vpop.permute.xlu0 %2659
        %2661 = vrot.lane.b32.xlu0 %v2658, 126
        %v2662 = vpop.permute.xlu0 %2661
        %v2665 = vadd.f32 %v2644, %v2660
        %v2666 = vadd.f32 %v2645, %v2662
        %s2667 = sld [smem:[#allocation8 + $0x17]]
        %v2668 = vstv %s2667
        %v2669 = vmul.f32 %v2668, %v2240
        %v2670 = vmul.f32 %v2668, %v2241
        %v2671 = vmul.f32 %v2668, %v2242
        %v2675 = vrot.slane %v2669, 4
        %v2676 = vrot.slane %v2670, 4
        %v2677 = vsel %vm708, %v2675, %v2676
        %v2678 = vrot.slane %v2671, 4
        %v2679 = vsel %vm708, %v2676, %v2678
        %2680 = vrot.lane.b32.xlu0 %v2677, 125
        %v2681 = vpop.permute.xlu0 %2680
        %2682 = vrot.lane.b32.xlu0 %v2679, 125
        %v2683 = vpop.permute.xlu0 %2682
        %v2686 = vadd.f32 %v2665, %v2681
        %v2687 = vadd.f32 %v2666, %v2683
        %s2688 = sld [smem:[#allocation8 + $0x18]]
        %v2689 = vstv %s2688
        %v2690 = vmul.f32 %v2689, %v2240
        %v2691 = vmul.f32 %v2689, %v2241
        %v2692 = vmul.f32 %v2689, %v2242
        %v2696 = vrot.slane %v2690, 4
        %v2697 = vrot.slane %v2691, 4
        %v2698 = vsel %vm708, %v2696, %v2697
        %v2699 = vrot.slane %v2692, 4
        %v2700 = vsel %vm708, %v2697, %v2699
        %2701 = vrot.lane.b32.xlu0 %v2698, 124
        %v2702 = vpop.permute.xlu0 %2701
        %2703 = vrot.lane.b32.xlu0 %v2700, 124
        %v2704 = vpop.permute.xlu0 %2703
        %v2707 = vadd.f32 %v2686, %v2702
        %v2708 = vadd.f32 %v2687, %v2704
        %v2709 = vtanh.pop %v2707
        %v2710 = vtanh.pop %v2708
        %v2711 = vmul.f32 %v2709, 63.5
        %v2712 = vmul.f32 %v2710, 63.5
        %v2713 = vadd.f32 %v2711, 63.5
        %v2714 = vadd.f32 %v2712, 63.5
        %v2715 = vround.ne.pseudo %v2713
        %v2716 = vround.ne.pseudo %v2714
        %v2717 = vrcp.pop 63.5
        %v2718 = vmul.f32 63.5, %v2717
        %v2719 = vsub.f32 1.0, %v2718
        %v2720 = vmul.f32 %v2717, %v2719
        %v2721 = vadd.f32 %v2717, %v2720
        %vm2722 = vweird.f32 %v2717
        %v2723 = vsel %vm2722, %v2717, %v2721
        %v2724 = vmul.f32 %v2715, %v2723
        %v2725 = vmul.f32 %v2716, %v2723
        %v2726 = vsub.f32 %v2724, 1.0
        %v2727 = vsub.f32 %v2725, 1.0
        %2730 = vrot.lane.b32.xlu0 %v2726, 2
        %v2731 = vpop.permute.xlu0 %2730
        %2732 = vrot.lane.b32.xlu0 %v2727, 2
        %v2733 = vpop.permute.xlu0 %2732
        %2736 = vst.msk [vmem:[#allocation2 + $0x2] sm:$0xff] %vm282, %v2731
        %2737 = vst.msk [vmem:[#allocation2 + $0xa] sm:$0xff] %vm282, %v2733
        %s2738 = sld [smem:[#allocation10 + $0x2]]
        %v2739 = vstv %s2738
        %v2740 = vld [vmem:[#allocation2] sm:$0xff]
        %v2741 = vld [vmem:[#allocation2 + $0x8] sm:$0xff]
        %v2742 = vld [vmem:[#allocation2 + $0x10] sm:$0xf]
        %s2743 = sld [smem:[#allocation8 + $0x19]]
        %v2744 = vstv %s2743
        %v2745 = vmul.f32 %v2744, %v2740
        %v2746 = vmul.f32 %v2744, %v2741
        %v2747 = vadd.f32 %v2739, %v2745
        %v2748 = vadd.f32 %v2739, %v2746
        %s2749 = sld [smem:[#allocation8 + $0x1a]]
        %v2750 = vstv %s2749
        %v2751 = vmul.f32 %v2750, %v2740
        %v2752 = vmul.f32 %v2750, %v2741
        %2755 = vrot.lane.b32.xlu0 %v2751, 127
        %v2756 = vpop.permute.xlu0 %2755
        %2757 = vrot.lane.b32.xlu0 %v2752, 127
        %v2758 = vpop.permute.xlu0 %2757
        %v2761 = vadd.f32 %v2747, %v2756
        %v2762 = vadd.f32 %v2748, %v2758
        %s2763 = sld [smem:[#allocation8 + $0x1b]]
        %v2764 = vstv %s2763
        %v2765 = vmul.f32 %v2764, %v2740
        %v2766 = vmul.f32 %v2764, %v2741
        %2769 = vrot.lane.b32.xlu0 %v2765, 126
        %v2770 = vpop.permute.xlu0 %2769
        %2771 = vrot.lane.b32.xlu0 %v2766, 126
        %v2772 = vpop.permute.xlu0 %2771
        %v2775 = vadd.f32 %v2761, %v2770
        %v2776 = vadd.f32 %v2762, %v2772
        %s2777 = sld [smem:[#allocation8 + $0x1c]]
        %v2778 = vstv %s2777
        %v2779 = vmul.f32 %v2778, %v2740
        %v2780 = vmul.f32 %v2778, %v2741
        %2783 = vrot.lane.b32.xlu0 %v2779, 125
        %v2784 = vpop.permute.xlu0 %2783
        %2785 = vrot.lane.b32.xlu0 %v2780, 125
        %v2786 = vpop.permute.xlu0 %2785
        %v2789 = vadd.f32 %v2775, %v2784
        %v2790 = vadd.f32 %v2776, %v2786
        %s2791 = sld [smem:[#allocation8 + $0x1d]]
        %v2792 = vstv %s2791
        %v2793 = vmul.f32 %v2792, %v2740
        %v2794 = vmul.f32 %v2792, %v2741
        %2797 = vrot.lane.b32.xlu0 %v2793, 124
        %v2798 = vpop.permute.xlu0 %2797
        %2799 = vrot.lane.b32.xlu0 %v2794, 124
        %v2800 = vpop.permute.xlu0 %2799
        %v2803 = vadd.f32 %v2789, %v2798
        %v2804 = vadd.f32 %v2790, %v2800
        %s2805 = sld [smem:[#allocation8 + $0x1e]]
        %v2806 = vstv %s2805
        %v2807 = vmul.f32 %v2806, %v2740
        %v2808 = vmul.f32 %v2806, %v2741
        %v2809 = vmul.f32 %v2806, %v2742
        %v2813 = vrot.slane %v2807, 1
        %v2814 = vrot.slane %v2808, 1
        %v2815 = vsel %vm402, %v2813, %v2814
        %v2816 = vrot.slane %v2809, 1
        %v2817 = vsel %vm402, %v2814, %v2816
        %v2820 = vadd.f32 %v2803, %v2815
        %v2821 = vadd.f32 %v2804, %v2817
        %s2822 = sld [smem:[#allocation8 + $0x1f]]
        %v2823 = vstv %s2822
        %v2824 = vmul.f32 %v2823, %v2740
        %v2825 = vmul.f32 %v2823, %v2741
        %v2826 = vmul.f32 %v2823, %v2742
        %v2830 = vrot.slane %v2824, 1
        %v2831 = vrot.slane %v2825, 1
        %v2832 = vsel %vm402, %v2830, %v2831
        %v2833 = vrot.slane %v2826, 1
        %v2834 = vsel %vm402, %v2831, %v2833
        %2835 = vrot.lane.b32.xlu0 %v2832, 127
        %v2836 = vpop.permute.xlu0 %2835
        %2837 = vrot.lane.b32.xlu0 %v2834, 127
        %v2838 = vpop.permute.xlu0 %2837
        %v2841 = vadd.f32 %v2820, %v2836
        %v2842 = vadd.f32 %v2821, %v2838
        %s2843 = sld [smem:[#allocation8 + $0x20]]
        %v2844 = vstv %s2843
        %v2845 = vmul.f32 %v2844, %v2740
        %v2846 = vmul.f32 %v2844, %v2741
        %v2847 = vmul.f32 %v2844, %v2742
        %v2851 = vrot.slane %v2845, 1
        %v2852 = vrot.slane %v2846, 1
        %v2853 = vsel %vm402, %v2851, %v2852
        %v2854 = vrot.slane %v2847, 1
        %v2855 = vsel %vm402, %v2852, %v2854
        %2856 = vrot.lane.b32.xlu0 %v2853, 126
        %v2857 = vpop.permute.xlu0 %2856
        %2858 = vrot.lane.b32.xlu0 %v2855, 126
        %v2859 = vpop.permute.xlu0 %2858
        %v2862 = vadd.f32 %v2841, %v2857
        %v2863 = vadd.f32 %v2842, %v2859
        %s2864 = sld [smem:[#allocation8 + $0x21]]
        %v2865 = vstv %s2864
        %v2866 = vmul.f32 %v2865, %v2740
        %v2867 = vmul.f32 %v2865, %v2741
        %v2868 = vmul.f32 %v2865, %v2742
        %v2872 = vrot.slane %v2866, 1
        %v2873 = vrot.slane %v2867, 1
        %v2874 = vsel %vm402, %v2872, %v2873
        %v2875 = vrot.slane %v2868, 1
        %v2876 = vsel %vm402, %v2873, %v2875
        %2877 = vrot.lane.b32.xlu0 %v2874, 125
        %v2878 = vpop.permute.xlu0 %2877
        %2879 = vrot.lane.b32.xlu0 %v2876, 125
        %v2880 = vpop.permute.xlu0 %2879
        %v2883 = vadd.f32 %v2862, %v2878
        %v2884 = vadd.f32 %v2863, %v2880
        %s2885 = sld [smem:[#allocation8 + $0x22]]
        %v2886 = vstv %s2885
        %v2887 = vmul.f32 %v2886, %v2740
        %v2888 = vmul.f32 %v2886, %v2741
        %v2889 = vmul.f32 %v2886, %v2742
        %v2893 = vrot.slane %v2887, 1
        %v2894 = vrot.slane %v2888, 1
        %v2895 = vsel %vm402, %v2893, %v2894
        %v2896 = vrot.slane %v2889, 1
        %v2897 = vsel %vm402, %v2894, %v2896
        %2898 = vrot.lane.b32.xlu0 %v2895, 124
        %v2899 = vpop.permute.xlu0 %2898
        %2900 = vrot.lane.b32.xlu0 %v2897, 124
        %v2901 = vpop.permute.xlu0 %2900
        %v2904 = vadd.f32 %v2883, %v2899
        %v2905 = vadd.f32 %v2884, %v2901
        %s2906 = sld [smem:[#allocation8 + $0x23]]
        %v2907 = vstv %s2906
        %v2908 = vmul.f32 %v2907, %v2740
        %v2909 = vmul.f32 %v2907, %v2741
        %v2910 = vmul.f32 %v2907, %v2742
        %v2914 = vrot.slane %v2908, 2
        %v2915 = vrot.slane %v2909, 2
        %v2916 = vsel %vm504, %v2914, %v2915
        %v2917 = vrot.slane %v2910, 2
        %v2918 = vsel %vm504, %v2915, %v2917
        %v2921 = vadd.f32 %v2904, %v2916
        %v2922 = vadd.f32 %v2905, %v2918
        %s2923 = sld [smem:[#allocation8 + $0x24]]
        %v2924 = vstv %s2923
        %v2925 = vmul.f32 %v2924, %v2740
        %v2926 = vmul.f32 %v2924, %v2741
        %v2927 = vmul.f32 %v2924, %v2742
        %v2931 = vrot.slane %v2925, 2
        %v2932 = vrot.slane %v2926, 2
        %v2933 = vsel %vm504, %v2931, %v2932
        %v2934 = vrot.slane %v2927, 2
        %v2935 = vsel %vm504, %v2932, %v2934
        %2936 = vrot.lane.b32.xlu0 %v2933, 127
        %v2937 = vpop.permute.xlu0 %2936
        %2938 = vrot.lane.b32.xlu0 %v2935, 127
        %v2939 = vpop.permute.xlu0 %2938
        %v2942 = vadd.f32 %v2921, %v2937
        %v2943 = vadd.f32 %v2922, %v2939
        %s2944 = sld [smem:[#allocation8 + $0x25]]
        %v2945 = vstv %s2944
        %v2946 = vmul.f32 %v2945, %v2740
        %v2947 = vmul.f32 %v2945, %v2741
        %v2948 = vmul.f32 %v2945, %v2742
        %v2952 = vrot.slane %v2946, 2
        %v2953 = vrot.slane %v2947, 2
        %v2954 = vsel %vm504, %v2952, %v2953
        %v2955 = vrot.slane %v2948, 2
        %v2956 = vsel %vm504, %v2953, %v2955
        %2957 = vrot.lane.b32.xlu0 %v2954, 126
        %v2958 = vpop.permute.xlu0 %2957
        %2959 = vrot.lane.b32.xlu0 %v2956, 126
        %v2960 = vpop.permute.xlu0 %2959
        %v2963 = vadd.f32 %v2942, %v2958
        %v2964 = vadd.f32 %v2943, %v2960
        %s2965 = sld [smem:[#allocation8 + $0x26]]
        %v2966 = vstv %s2965
        %v2967 = vmul.f32 %v2966, %v2740
        %v2968 = vmul.f32 %v2966, %v2741
        %v2969 = vmul.f32 %v2966, %v2742
        %v2973 = vrot.slane %v2967, 2
        %v2974 = vrot.slane %v2968, 2
        %v2975 = vsel %vm504, %v2973, %v2974
        %v2976 = vrot.slane %v2969, 2
        %v2977 = vsel %vm504, %v2974, %v2976
        %2978 = vrot.lane.b32.xlu0 %v2975, 125
        %v2979 = vpop.permute.xlu0 %2978
        %2980 = vrot.lane.b32.xlu0 %v2977, 125
        %v2981 = vpop.permute.xlu0 %2980
        %v2984 = vadd.f32 %v2963, %v2979
        %v2985 = vadd.f32 %v2964, %v2981
        %s2986 = sld [smem:[#allocation8 + $0x27]]
        %v2987 = vstv %s2986
        %v2988 = vmul.f32 %v2987, %v2740
        %v2989 = vmul.f32 %v2987, %v2741
        %v2990 = vmul.f32 %v2987, %v2742
        %v2994 = vrot.slane %v2988, 2
        %v2995 = vrot.slane %v2989, 2
        %v2996 = vsel %vm504, %v2994, %v2995
        %v2997 = vrot.slane %v2990, 2
        %v2998 = vsel %vm504, %v2995, %v2997
        %2999 = vrot.lane.b32.xlu0 %v2996, 124
        %v3000 = vpop.permute.xlu0 %2999
        %3001 = vrot.lane.b32.xlu0 %v2998, 124
        %v3002 = vpop.permute.xlu0 %3001
        %v3005 = vadd.f32 %v2984, %v3000
        %v3006 = vadd.f32 %v2985, %v3002
        %s3007 = sld [smem:[#allocation8 + $0x28]]
        %v3008 = vstv %s3007
        %v3009 = vmul.f32 %v3008, %v2740
        %v3010 = vmul.f32 %v3008, %v2741
        %v3011 = vmul.f32 %v3008, %v2742
        %v3015 = vrot.slane %v3009, 3
        %v3016 = vrot.slane %v3010, 3
        %v3017 = vsel %vm606, %v3015, %v3016
        %v3018 = vrot.slane %v3011, 3
        %v3019 = vsel %vm606, %v3016, %v3018
        %v3022 = vadd.f32 %v3005, %v3017
        %v3023 = vadd.f32 %v3006, %v3019
        %s3024 = sld [smem:[#allocation8 + $0x29]]
        %v3025 = vstv %s3024
        %v3026 = vmul.f32 %v3025, %v2740
        %v3027 = vmul.f32 %v3025, %v2741
        %v3028 = vmul.f32 %v3025, %v2742
        %v3032 = vrot.slane %v3026, 3
        %v3033 = vrot.slane %v3027, 3
        %v3034 = vsel %vm606, %v3032, %v3033
        %v3035 = vrot.slane %v3028, 3
        %v3036 = vsel %vm606, %v3033, %v3035
        %3037 = vrot.lane.b32.xlu0 %v3034, 127
        %v3038 = vpop.permute.xlu0 %3037
        %3039 = vrot.lane.b32.xlu0 %v3036, 127
        %v3040 = vpop.permute.xlu0 %3039
        %v3043 = vadd.f32 %v3022, %v3038
        %v3044 = vadd.f32 %v3023, %v3040
        %s3045 = sld [smem:[#allocation8 + $0x2a]]
        %v3046 = vstv %s3045
        %v3047 = vmul.f32 %v3046, %v2740
        %v3048 = vmul.f32 %v3046, %v2741
        %v3049 = vmul.f32 %v3046, %v2742
        %v3053 = vrot.slane %v3047, 3
        %v3054 = vrot.slane %v3048, 3
        %v3055 = vsel %vm606, %v3053, %v3054
        %v3056 = vrot.slane %v3049, 3
        %v3057 = vsel %vm606, %v3054, %v3056
        %3058 = vrot.lane.b32.xlu0 %v3055, 126
        %v3059 = vpop.permute.xlu0 %3058
        %3060 = vrot.lane.b32.xlu0 %v3057, 126
        %v3061 = vpop.permute.xlu0 %3060
        %v3064 = vadd.f32 %v3043, %v3059
        %v3065 = vadd.f32 %v3044, %v3061
        %s3066 = sld [smem:[#allocation8 + $0x2b]]
        %v3067 = vstv %s3066
        %v3068 = vmul.f32 %v3067, %v2740
        %v3069 = vmul.f32 %v3067, %v2741
        %v3070 = vmul.f32 %v3067, %v2742
        %v3074 = vrot.slane %v3068, 3
        %v3075 = vrot.slane %v3069, 3
        %v3076 = vsel %vm606, %v3074, %v3075
        %v3077 = vrot.slane %v3070, 3
        %v3078 = vsel %vm606, %v3075, %v3077
        %3079 = vrot.lane.b32.xlu0 %v3076, 125
        %v3080 = vpop.permute.xlu0 %3079
        %3081 = vrot.lane.b32.xlu0 %v3078, 125
        %v3082 = vpop.permute.xlu0 %3081
        %v3085 = vadd.f32 %v3064, %v3080
        %v3086 = vadd.f32 %v3065, %v3082
        %s3087 = sld [smem:[#allocation8 + $0x2c]]
        %v3088 = vstv %s3087
        %v3089 = vmul.f32 %v3088, %v2740
        %v3090 = vmul.f32 %v3088, %v2741
        %v3091 = vmul.f32 %v3088, %v2742
        %v3095 = vrot.slane %v3089, 3
        %v3096 = vrot.slane %v3090, 3
        %v3097 = vsel %vm606, %v3095, %v3096
        %v3098 = vrot.slane %v3091, 3
        %v3099 = vsel %vm606, %v3096, %v3098
        %3100 = vrot.lane.b32.xlu0 %v3097, 124
        %v3101 = vpop.permute.xlu0 %3100
        %3102 = vrot.lane.b32.xlu0 %v3099, 124
        %v3103 = vpop.permute.xlu0 %3102
        %v3106 = vadd.f32 %v3085, %v3101
        %v3107 = vadd.f32 %v3086, %v3103
        %s3108 = sld [smem:[#allocation8 + $0x2d]]
        %v3109 = vstv %s3108
        %v3110 = vmul.f32 %v3109, %v2740
        %v3111 = vmul.f32 %v3109, %v2741
        %v3112 = vmul.f32 %v3109, %v2742
        %v3116 = vrot.slane %v3110, 4
        %v3117 = vrot.slane %v3111, 4
        %v3118 = vsel %vm708, %v3116, %v3117
        %v3119 = vrot.slane %v3112, 4
        %v3120 = vsel %vm708, %v3117, %v3119
        %v3123 = vadd.f32 %v3106, %v3118
        %v3124 = vadd.f32 %v3107, %v3120
        %s3125 = sld [smem:[#allocation8 + $0x2e]]
        %v3126 = vstv %s3125
        %v3127 = vmul.f32 %v3126, %v2740
        %v3128 = vmul.f32 %v3126, %v2741
        %v3129 = vmul.f32 %v3126, %v2742
        %v3133 = vrot.slane %v3127, 4
        %v3134 = vrot.slane %v3128, 4
        %v3135 = vsel %vm708, %v3133, %v3134
        %v3136 = vrot.slane %v3129, 4
        %v3137 = vsel %vm708, %v3134, %v3136
        %3138 = vrot.lane.b32.xlu0 %v3135, 127
        %v3139 = vpop.permute.xlu0 %3138
        %3140 = vrot.lane.b32.xlu0 %v3137, 127
        %v3141 = vpop.permute.xlu0 %3140
        %v3144 = vadd.f32 %v3123, %v3139
        %v3145 = vadd.f32 %v3124, %v3141
        %s3146 = sld [smem:[#allocation8 + $0x2f]]
        %v3147 = vstv %s3146
        %v3148 = vmul.f32 %v3147, %v2740
        %v3149 = vmul.f32 %v3147, %v2741
        %v3150 = vmul.f32 %v3147, %v2742
        %v3154 = vrot.slane %v3148, 4
        %v3155 = vrot.slane %v3149, 4
        %v3156 = vsel %vm708, %v3154, %v3155
        %v3157 = vrot.slane %v3150, 4
        %v3158 = vsel %vm708, %v3155, %v3157
        %3159 = vrot.lane.b32.xlu0 %v3156, 126
        %v3160 = vpop.permute.xlu0 %3159
        %3161 = vrot.lane.b32.xlu0 %v3158, 126
        %v3162 = vpop.permute.xlu0 %3161
        %v3165 = vadd.f32 %v3144, %v3160
        %v3166 = vadd.f32 %v3145, %v3162
        %s3167 = sld [smem:[#allocation8 + $0x30]]
        %v3168 = vstv %s3167
        %v3169 = vmul.f32 %v3168, %v2740
        %v3170 = vmul.f32 %v3168, %v2741
        %v3171 = vmul.f32 %v3168, %v2742
        %v3175 = vrot.slane %v3169, 4
        %v3176 = vrot.slane %v3170, 4
        %v3177 = vsel %vm708, %v3175, %v3176
        %v3178 = vrot.slane %v3171, 4
        %v3179 = vsel %vm708, %v3176, %v3178
        %3180 = vrot.lane.b32.xlu0 %v3177, 125
        %v3181 = vpop.permute.xlu0 %3180
        %3182 = vrot.lane.b32.xlu0 %v3179, 125
        %v3183 = vpop.permute.xlu0 %3182
        %v3186 = vadd.f32 %v3165, %v3181
        %v3187 = vadd.f32 %v3166, %v3183
        %s3188 = sld [smem:[#allocation8 + $0x31]]
        %v3189 = vstv %s3188
        %v3190 = vmul.f32 %v3189, %v2740
        %v3191 = vmul.f32 %v3189, %v2741
        %v3192 = vmul.f32 %v3189, %v2742
        %v3196 = vrot.slane %v3190, 4
        %v3197 = vrot.slane %v3191, 4
        %v3198 = vsel %vm708, %v3196, %v3197
        %v3199 = vrot.slane %v3192, 4
        %v3200 = vsel %vm708, %v3197, %v3199
        %3201 = vrot.lane.b32.xlu0 %v3198, 124
        %v3202 = vpop.permute.xlu0 %3201
        %3203 = vrot.lane.b32.xlu0 %v3200, 124
        %v3204 = vpop.permute.xlu0 %3203
        %v3207 = vadd.f32 %v3186, %v3202
        %v3208 = vadd.f32 %v3187, %v3204
        %v3209 = vtanh.pop %v3207
        %v3210 = vtanh.pop %v3208
        %v3211 = vmul.f32 %v3209, 31.5
        %v3212 = vmul.f32 %v3210, 31.5
        %v3213 = vadd.f32 %v3211, 31.5
        %v3214 = vadd.f32 %v3212, 31.5
        %v3215 = vround.ne.pseudo %v3213
        %v3216 = vround.ne.pseudo %v3214
        %v3217 = vrcp.pop 31.5
        %v3218 = vmul.f32 31.5, %v3217
        %v3219 = vsub.f32 1.0, %v3218
        %v3220 = vmul.f32 %v3217, %v3219
        %v3221 = vadd.f32 %v3217, %v3220
        %vm3222 = vweird.f32 %v3217
        %v3223 = vsel %vm3222, %v3217, %v3221
        %v3224 = vmul.f32 %v3215, %v3223
        %v3225 = vmul.f32 %v3216, %v3223
        %v3226 = vsub.f32 %v3224, 1.0
        %v3227 = vsub.f32 %v3225, 1.0
        %3230 = vrot.lane.b32.xlu0 %v3226, 2
        %v3231 = vpop.permute.xlu0 %3230
        %3232 = vrot.lane.b32.xlu0 %v3227, 2
        %v3233 = vpop.permute.xlu0 %3232
        %3236 = vst.msk [vmem:[#allocation2 + $0x2] sm:$0xff] %vm282, %v3231
        %3237 = vst.msk [vmem:[#allocation2 + $0xa] sm:$0xff] %vm282, %v3233
        %s3238 = sld [smem:[#allocation10 + $0x3]]
        %v3239 = vstv %s3238
        %v3240 = vld [vmem:[#allocation2] sm:$0xff]
        %v3241 = vld [vmem:[#allocation2 + $0x8] sm:$0xff]
        %v3242 = vld [vmem:[#allocation2 + $0x10] sm:$0xf]
        %s3243 = sld [smem:[#allocation8 + $0x32]]
        %v3244 = vstv %s3243
        %v3245 = vmul.f32 %v3244, %v3240
        %v3246 = vmul.f32 %v3244, %v3241
        %v3247 = vadd.f32 %v3239, %v3245
        %v3248 = vadd.f32 %v3239, %v3246
        %s3249 = sld [smem:[#allocation8 + $0x33]]
        %v3250 = vstv %s3249
        %v3251 = vmul.f32 %v3250, %v3240
        %v3252 = vmul.f32 %v3250, %v3241
        %3255 = vrot.lane.b32.xlu0 %v3251, 127
        %v3256 = vpop.permute.xlu0 %3255
        %3257 = vrot.lane.b32.xlu0 %v3252, 127
        %v3258 = vpop.permute.xlu0 %3257
        %v3261 = vadd.f32 %v3247, %v3256
        %v3262 = vadd.f32 %v3248, %v3258
        %s3263 = sld [smem:[#allocation8 + $0x34]]
        %v3264 = vstv %s3263
        %v3265 = vmul.f32 %v3264, %v3240
        %v3266 = vmul.f32 %v3264, %v3241
        %3269 = vrot.lane.b32.xlu0 %v3265, 126
        %v3270 = vpop.permute.xlu0 %3269
        %3271 = vrot.lane.b32.xlu0 %v3266, 126
        %v3272 = vpop.permute.xlu0 %3271
        %v3275 = vadd.f32 %v3261, %v3270
        %v3276 = vadd.f32 %v3262, %v3272
        %s3277 = sld [smem:[#allocation8 + $0x35]]
        %v3278 = vstv %s3277
        %v3279 = vmul.f32 %v3278, %v3240
        %v3280 = vmul.f32 %v3278, %v3241
        %3283 = vrot.lane.b32.xlu0 %v3279, 125
        %v3284 = vpop.permute.xlu0 %3283
        %3285 = vrot.lane.b32.xlu0 %v3280, 125
        %v3286 = vpop.permute.xlu0 %3285
        %v3289 = vadd.f32 %v3275, %v3284
        %v3290 = vadd.f32 %v3276, %v3286
        %s3291 = sld [smem:[#allocation8 + $0x36]]
        %v3292 = vstv %s3291
        %v3293 = vmul.f32 %v3292, %v3240
        %v3294 = vmul.f32 %v3292, %v3241
        %3297 = vrot.lane.b32.xlu0 %v3293, 124
        %v3298 = vpop.permute.xlu0 %3297
        %3299 = vrot.lane.b32.xlu0 %v3294, 124
        %v3300 = vpop.permute.xlu0 %3299
        %v3303 = vadd.f32 %v3289, %v3298
        %v3304 = vadd.f32 %v3290, %v3300
        %s3305 = sld [smem:[#allocation8 + $0x37]]
        %v3306 = vstv %s3305
        %v3307 = vmul.f32 %v3306, %v3240
        %v3308 = vmul.f32 %v3306, %v3241
        %v3309 = vmul.f32 %v3306, %v3242
        %v3313 = vrot.slane %v3307, 1
        %v3314 = vrot.slane %v3308, 1
        %v3315 = vsel %vm402, %v3313, %v3314
        %v3316 = vrot.slane %v3309, 1
        %v3317 = vsel %vm402, %v3314, %v3316
        %v3320 = vadd.f32 %v3303, %v3315
        %v3321 = vadd.f32 %v3304, %v3317
        %s3322 = sld [smem:[#allocation8 + $0x38]]
        %v3323 = vstv %s3322
        %v3324 = vmul.f32 %v3323, %v3240
        %v3325 = vmul.f32 %v3323, %v3241
        %v3326 = vmul.f32 %v3323, %v3242
        %v3330 = vrot.slane %v3324, 1
        %v3331 = vrot.slane %v3325, 1
        %v3332 = vsel %vm402, %v3330, %v3331
        %v3333 = vrot.slane %v3326, 1
        %v3334 = vsel %vm402, %v3331, %v3333
        %3335 = vrot.lane.b32.xlu0 %v3332, 127
        %v3336 = vpop.permute.xlu0 %3335
        %3337 = vrot.lane.b32.xlu0 %v3334, 127
        %v3338 = vpop.permute.xlu0 %3337
        %v3341 = vadd.f32 %v3320, %v3336
        %v3342 = vadd.f32 %v3321, %v3338
        %s3343 = sld [smem:[#allocation8 + $0x39]]
        %v3344 = vstv %s3343
        %v3345 = vmul.f32 %v3344, %v3240
        %v3346 = vmul.f32 %v3344, %v3241
        %v3347 = vmul.f32 %v3344, %v3242
        %v3351 = vrot.slane %v3345, 1
        %v3352 = vrot.slane %v3346, 1
        %v3353 = vsel %vm402, %v3351, %v3352
        %v3354 = vrot.slane %v3347, 1
        %v3355 = vsel %vm402, %v3352, %v3354
        %3356 = vrot.lane.b32.xlu0 %v3353, 126
        %v3357 = vpop.permute.xlu0 %3356
        %3358 = vrot.lane.b32.xlu0 %v3355, 126
        %v3359 = vpop.permute.xlu0 %3358
        %v3362 = vadd.f32 %v3341, %v3357
        %v3363 = vadd.f32 %v3342, %v3359
        %s3364 = sld [smem:[#allocation8 + $0x3a]]
        %v3365 = vstv %s3364
        %v3366 = vmul.f32 %v3365, %v3240
        %v3367 = vmul.f32 %v3365, %v3241
        %v3368 = vmul.f32 %v3365, %v3242
        %v3372 = vrot.slane %v3366, 1
        %v3373 = vrot.slane %v3367, 1
        %v3374 = vsel %vm402, %v3372, %v3373
        %v3375 = vrot.slane %v3368, 1
        %v3376 = vsel %vm402, %v3373, %v3375
        %3377 = vrot.lane.b32.xlu0 %v3374, 125
        %v3378 = vpop.permute.xlu0 %3377
        %3379 = vrot.lane.b32.xlu0 %v3376, 125
        %v3380 = vpop.permute.xlu0 %3379
        %v3383 = vadd.f32 %v3362, %v3378
        %v3384 = vadd.f32 %v3363, %v3380
        %s3385 = sld [smem:[#allocation8 + $0x3b]]
        %v3386 = vstv %s3385
        %v3387 = vmul.f32 %v3386, %v3240
        %v3388 = vmul.f32 %v3386, %v3241
        %v3389 = vmul.f32 %v3386, %v3242
        %v3393 = vrot.slane %v3387, 1
        %v3394 = vrot.slane %v3388, 1
        %v3395 = vsel %vm402, %v3393, %v3394
        %v3396 = vrot.slane %v3389, 1
        %v3397 = vsel %vm402, %v3394, %v3396
        %3398 = vrot.lane.b32.xlu0 %v3395, 124
        %v3399 = vpop.permute.xlu0 %3398
        %3400 = vrot.lane.b32.xlu0 %v3397, 124
        %v3401 = vpop.permute.xlu0 %3400
        %v3404 = vadd.f32 %v3383, %v3399
        %v3405 = vadd.f32 %v3384, %v3401
        %s3406 = sld [smem:[#allocation8 + $0x3c]]
        %v3407 = vstv %s3406
        %v3408 = vmul.f32 %v3407, %v3240
        %v3409 = vmul.f32 %v3407, %v3241
        %v3410 = vmul.f32 %v3407, %v3242
        %v3414 = vrot.slane %v3408, 2
        %v3415 = vrot.slane %v3409, 2
        %v3416 = vsel %vm504, %v3414, %v3415
        %v3417 = vrot.slane %v3410, 2
        %v3418 = vsel %vm504, %v3415, %v3417
        %v3421 = vadd.f32 %v3404, %v3416
        %v3422 = vadd.f32 %v3405, %v3418
        %s3423 = sld [smem:[#allocation8 + $0x3d]]
        %v3424 = vstv %s3423
        %v3425 = vmul.f32 %v3424, %v3240
        %v3426 = vmul.f32 %v3424, %v3241
        %v3427 = vmul.f32 %v3424, %v3242
        %v3431 = vrot.slane %v3425, 2
        %v3432 = vrot.slane %v3426, 2
        %v3433 = vsel %vm504, %v3431, %v3432
        %v3434 = vrot.slane %v3427, 2
        %v3435 = vsel %vm504, %v3432, %v3434
        %3436 = vrot.lane.b32.xlu0 %v3433, 127
        %v3437 = vpop.permute.xlu0 %3436
        %3438 = vrot.lane.b32.xlu0 %v3435, 127
        %v3439 = vpop.permute.xlu0 %3438
        %v3442 = vadd.f32 %v3421, %v3437
        %v3443 = vadd.f32 %v3422, %v3439
        %s3444 = sld [smem:[#allocation8 + $0x3e]]
        %v3445 = vstv %s3444
        %v3446 = vmul.f32 %v3445, %v3240
        %v3447 = vmul.f32 %v3445, %v3241
        %v3448 = vmul.f32 %v3445, %v3242
        %v3452 = vrot.slane %v3446, 2
        %v3453 = vrot.slane %v3447, 2
        %v3454 = vsel %vm504, %v3452, %v3453
        %v3455 = vrot.slane %v3448, 2
        %v3456 = vsel %vm504, %v3453, %v3455
        %3457 = vrot.lane.b32.xlu0 %v3454, 126
        %v3458 = vpop.permute.xlu0 %3457
        %3459 = vrot.lane.b32.xlu0 %v3456, 126
        %v3460 = vpop.permute.xlu0 %3459
        %v3463 = vadd.f32 %v3442, %v3458
        %v3464 = vadd.f32 %v3443, %v3460
        %s3465 = sld [smem:[#allocation8 + $0x3f]]
        %v3466 = vstv %s3465
        %v3467 = vmul.f32 %v3466, %v3240
        %v3468 = vmul.f32 %v3466, %v3241
        %v3469 = vmul.f32 %v3466, %v3242
        %v3473 = vrot.slane %v3467, 2
        %v3474 = vrot.slane %v3468, 2
        %v3475 = vsel %vm504, %v3473, %v3474
        %v3476 = vrot.slane %v3469, 2
        %v3477 = vsel %vm504, %v3474, %v3476
        %3478 = vrot.lane.b32.xlu0 %v3475, 125
        %v3479 = vpop.permute.xlu0 %3478
        %3480 = vrot.lane.b32.xlu0 %v3477, 125
        %v3481 = vpop.permute.xlu0 %3480
        %v3484 = vadd.f32 %v3463, %v3479
        %v3485 = vadd.f32 %v3464, %v3481
        %s3486 = sld [smem:[#allocation8 + $0x40]]
        %v3487 = vstv %s3486
        %v3488 = vmul.f32 %v3487, %v3240
        %v3489 = vmul.f32 %v3487, %v3241
        %v3490 = vmul.f32 %v3487, %v3242
        %v3494 = vrot.slane %v3488, 2
        %v3495 = vrot.slane %v3489, 2
        %v3496 = vsel %vm504, %v3494, %v3495
        %v3497 = vrot.slane %v3490, 2
        %v3498 = vsel %vm504, %v3495, %v3497
        %3499 = vrot.lane.b32.xlu0 %v3496, 124
        %v3500 = vpop.permute.xlu0 %3499
        %3501 = vrot.lane.b32.xlu0 %v3498, 124
        %v3502 = vpop.permute.xlu0 %3501
        %v3505 = vadd.f32 %v3484, %v3500
        %v3506 = vadd.f32 %v3485, %v3502
        %s3507 = sld [smem:[#allocation8 + $0x41]]
        %v3508 = vstv %s3507
        %v3509 = vmul.f32 %v3508, %v3240
        %v3510 = vmul.f32 %v3508, %v3241
        %v3511 = vmul.f32 %v3508, %v3242
        %v3515 = vrot.slane %v3509, 3
        %v3516 = vrot.slane %v3510, 3
        %v3517 = vsel %vm606, %v3515, %v3516
        %v3518 = vrot.slane %v3511, 3
        %v3519 = vsel %vm606, %v3516, %v3518
        %v3522 = vadd.f32 %v3505, %v3517
        %v3523 = vadd.f32 %v3506, %v3519
        %s3524 = sld [smem:[#allocation8 + $0x42]]
        %v3525 = vstv %s3524
        %v3526 = vmul.f32 %v3525, %v3240
        %v3527 = vmul.f32 %v3525, %v3241
        %v3528 = vmul.f32 %v3525, %v3242
        %v3532 = vrot.slane %v3526, 3
        %v3533 = vrot.slane %v3527, 3
        %v3534 = vsel %vm606, %v3532, %v3533
        %v3535 = vrot.slane %v3528, 3
        %v3536 = vsel %vm606, %v3533, %v3535
        %3537 = vrot.lane.b32.xlu0 %v3534, 127
        %v3538 = vpop.permute.xlu0 %3537
        %3539 = vrot.lane.b32.xlu0 %v3536, 127
        %v3540 = vpop.permute.xlu0 %3539
        %v3543 = vadd.f32 %v3522, %v3538
        %v3544 = vadd.f32 %v3523, %v3540
        %s3545 = sld [smem:[#allocation8 + $0x43]]
        %v3546 = vstv %s3545
        %v3547 = vmul.f32 %v3546, %v3240
        %v3548 = vmul.f32 %v3546, %v3241
        %v3549 = vmul.f32 %v3546, %v3242
        %v3553 = vrot.slane %v3547, 3
        %v3554 = vrot.slane %v3548, 3
        %v3555 = vsel %vm606, %v3553, %v3554
        %v3556 = vrot.slane %v3549, 3
        %v3557 = vsel %vm606, %v3554, %v3556
        %3558 = vrot.lane.b32.xlu0 %v3555, 126
        %v3559 = vpop.permute.xlu0 %3558
        %3560 = vrot.lane.b32.xlu0 %v3557, 126
        %v3561 = vpop.permute.xlu0 %3560
        %v3564 = vadd.f32 %v3543, %v3559
        %v3565 = vadd.f32 %v3544, %v3561
        %s3566 = sld [smem:[#allocation8 + $0x44]]
        %v3567 = vstv %s3566
        %v3568 = vmul.f32 %v3567, %v3240
        %v3569 = vmul.f32 %v3567, %v3241
        %v3570 = vmul.f32 %v3567, %v3242
        %v3574 = vrot.slane %v3568, 3
        %v3575 = vrot.slane %v3569, 3
        %v3576 = vsel %vm606, %v3574, %v3575
        %v3577 = vrot.slane %v3570, 3
        %v3578 = vsel %vm606, %v3575, %v3577
        %3579 = vrot.lane.b32.xlu0 %v3576, 125
        %v3580 = vpop.permute.xlu0 %3579
        %3581 = vrot.lane.b32.xlu0 %v3578, 125
        %v3582 = vpop.permute.xlu0 %3581
        %v3585 = vadd.f32 %v3564, %v3580
        %v3586 = vadd.f32 %v3565, %v3582
        %s3587 = sld [smem:[#allocation8 + $0x45]]
        %v3588 = vstv %s3587
        %v3589 = vmul.f32 %v3588, %v3240
        %v3590 = vmul.f32 %v3588, %v3241
        %v3591 = vmul.f32 %v3588, %v3242
        %v3595 = vrot.slane %v3589, 3
        %v3596 = vrot.slane %v3590, 3
        %v3597 = vsel %vm606, %v3595, %v3596
        %v3598 = vrot.slane %v3591, 3
        %v3599 = vsel %vm606, %v3596, %v3598
        %3600 = vrot.lane.b32.xlu0 %v3597, 124
        %v3601 = vpop.permute.xlu0 %3600
        %3602 = vrot.lane.b32.xlu0 %v3599, 124
        %v3603 = vpop.permute.xlu0 %3602
        %v3606 = vadd.f32 %v3585, %v3601
        %v3607 = vadd.f32 %v3586, %v3603
        %s3608 = sld [smem:[#allocation8 + $0x46]]
        %v3609 = vstv %s3608
        %v3610 = vmul.f32 %v3609, %v3240
        %v3611 = vmul.f32 %v3609, %v3241
        %v3612 = vmul.f32 %v3609, %v3242
        %v3616 = vrot.slane %v3610, 4
        %v3617 = vrot.slane %v3611, 4
        %v3618 = vsel %vm708, %v3616, %v3617
        %v3619 = vrot.slane %v3612, 4
        %v3620 = vsel %vm708, %v3617, %v3619
        %v3623 = vadd.f32 %v3606, %v3618
        %v3624 = vadd.f32 %v3607, %v3620
        %s3625 = sld [smem:[#allocation8 + $0x47]]
        %v3626 = vstv %s3625
        %v3627 = vmul.f32 %v3626, %v3240
        %v3628 = vmul.f32 %v3626, %v3241
        %v3629 = vmul.f32 %v3626, %v3242
        %v3633 = vrot.slane %v3627, 4
        %v3634 = vrot.slane %v3628, 4
        %v3635 = vsel %vm708, %v3633, %v3634
        %v3636 = vrot.slane %v3629, 4
        %v3637 = vsel %vm708, %v3634, %v3636
        %3638 = vrot.lane.b32.xlu0 %v3635, 127
        %v3639 = vpop.permute.xlu0 %3638
        %3640 = vrot.lane.b32.xlu0 %v3637, 127
        %v3641 = vpop.permute.xlu0 %3640
        %v3644 = vadd.f32 %v3623, %v3639
        %v3645 = vadd.f32 %v3624, %v3641
        %s3646 = sld [smem:[#allocation8 + $0x48]]
        %v3647 = vstv %s3646
        %v3648 = vmul.f32 %v3647, %v3240
        %v3649 = vmul.f32 %v3647, %v3241
        %v3650 = vmul.f32 %v3647, %v3242
        %v3654 = vrot.slane %v3648, 4
        %v3655 = vrot.slane %v3649, 4
        %v3656 = vsel %vm708, %v3654, %v3655
        %v3657 = vrot.slane %v3650, 4
        %v3658 = vsel %vm708, %v3655, %v3657
        %3659 = vrot.lane.b32.xlu0 %v3656, 126
        %v3660 = vpop.permute.xlu0 %3659
        %3661 = vrot.lane.b32.xlu0 %v3658, 126
        %v3662 = vpop.permute.xlu0 %3661
        %v3665 = vadd.f32 %v3644, %v3660
        %v3666 = vadd.f32 %v3645, %v3662
        %s3667 = sld [smem:[#allocation8 + $0x49]]
        %v3668 = vstv %s3667
        %v3669 = vmul.f32 %v3668, %v3240
        %v3670 = vmul.f32 %v3668, %v3241
        %v3671 = vmul.f32 %v3668, %v3242
        %v3675 = vrot.slane %v3669, 4
        %v3676 = vrot.slane %v3670, 4
        %v3677 = vsel %vm708, %v3675, %v3676
        %v3678 = vrot.slane %v3671, 4
        %v3679 = vsel %vm708, %v3676, %v3678
        %3680 = vrot.lane.b32.xlu0 %v3677, 125
        %v3681 = vpop.permute.xlu0 %3680
        %3682 = vrot.lane.b32.xlu0 %v3679, 125
        %v3683 = vpop.permute.xlu0 %3682
        %v3686 = vadd.f32 %v3665, %v3681
        %v3687 = vadd.f32 %v3666, %v3683
        %s3688 = sld [smem:[#allocation8 + $0x4a]]
        %v3689 = vstv %s3688
        %v3690 = vmul.f32 %v3689, %v3240
        %v3691 = vmul.f32 %v3689, %v3241
        %v3692 = vmul.f32 %v3689, %v3242
        %v3696 = vrot.slane %v3690, 4
        %v3697 = vrot.slane %v3691, 4
        %v3698 = vsel %vm708, %v3696, %v3697
        %v3699 = vrot.slane %v3692, 4
        %v3700 = vsel %vm708, %v3697, %v3699
        %3701 = vrot.lane.b32.xlu0 %v3698, 124
        %v3702 = vpop.permute.xlu0 %3701
        %3703 = vrot.lane.b32.xlu0 %v3700, 124
        %v3704 = vpop.permute.xlu0 %3703
        %v3707 = vadd.f32 %v3686, %v3702
        %v3708 = vadd.f32 %v3687, %v3704
        %v3709 = vtanh.pop %v3707
        %v3710 = vtanh.pop %v3708
        %v3711 = vmul.f32 %v3709, 15.5
        %v3712 = vmul.f32 %v3710, 15.5
        %v3713 = vadd.f32 %v3711, 15.5
        %v3714 = vadd.f32 %v3712, 15.5
        %v3715 = vround.ne.pseudo %v3713
        %v3716 = vround.ne.pseudo %v3714
        %v3717 = vrcp.pop 15.5
        %v3718 = vmul.f32 15.5, %v3717
        %v3719 = vsub.f32 1.0, %v3718
        %v3720 = vmul.f32 %v3717, %v3719
        %v3721 = vadd.f32 %v3717, %v3720
        %vm3722 = vweird.f32 %v3717
        %v3723 = vsel %vm3722, %v3717, %v3721
        %v3724 = vmul.f32 %v3715, %v3723
        %v3725 = vmul.f32 %v3716, %v3723
        %v3726 = vsub.f32 %v3724, 1.0
        %v3727 = vsub.f32 %v3725, 1.0
        %3730 = vrot.lane.b32.xlu0 %v3726, 2
        %v3731 = vpop.permute.xlu0 %3730
        %3732 = vrot.lane.b32.xlu0 %v3727, 2
        %v3733 = vpop.permute.xlu0 %3732
        %3736 = vst.msk [vmem:[#allocation2 + $0x2] sm:$0xff] %vm282, %v3731
        %3737 = vst.msk [vmem:[#allocation2 + $0xa] sm:$0xff] %vm282, %v3733
        %s3738 = sld [smem:[#allocation10 + $0x4]]
        %v3739 = vstv %s3738
        %v3740 = vld [vmem:[#allocation2] sm:$0xff]
        %v3741 = vld [vmem:[#allocation2 + $0x8] sm:$0xff]
        %v3742 = vld [vmem:[#allocation2 + $0x10] sm:$0xf]
        %s3743 = sld [smem:[#allocation8 + $0x4b]]
        %v3744 = vstv %s3743
        %v3745 = vmul.f32 %v3744, %v3740
        %v3746 = vmul.f32 %v3744, %v3741
        %v3747 = vadd.f32 %v3739, %v3745
        %v3748 = vadd.f32 %v3739, %v3746
        %s3749 = sld [smem:[#allocation8 + $0x4c]]
        %v3750 = vstv %s3749
        %v3751 = vmul.f32 %v3750, %v3740
        %v3752 = vmul.f32 %v3750, %v3741
        %3755 = vrot.lane.b32.xlu0 %v3751, 127
        %v3756 = vpop.permute.xlu0 %3755
        %3757 = vrot.lane.b32.xlu0 %v3752, 127
        %v3758 = vpop.permute.xlu0 %3757
        %v3761 = vadd.f32 %v3747, %v3756
        %v3762 = vadd.f32 %v3748, %v3758
        %s3763 = sld [smem:[#allocation8 + $0x4d]]
        %v3764 = vstv %s3763
        %v3765 = vmul.f32 %v3764, %v3740
        %v3766 = vmul.f32 %v3764, %v3741
        %3769 = vrot.lane.b32.xlu0 %v3765, 126
        %v3770 = vpop.permute.xlu0 %3769
        %3771 = vrot.lane.b32.xlu0 %v3766, 126
        %v3772 = vpop.permute.xlu0 %3771
        %v3775 = vadd.f32 %v3761, %v3770
        %v3776 = vadd.f32 %v3762, %v3772
        %s3777 = sld [smem:[#allocation8 + $0x4e]]
        %v3778 = vstv %s3777
        %v3779 = vmul.f32 %v3778, %v3740
        %v3780 = vmul.f32 %v3778, %v3741
        %3783 = vrot.lane.b32.xlu0 %v3779, 125
        %v3784 = vpop.permute.xlu0 %3783
        %3785 = vrot.lane.b32.xlu0 %v3780, 125
        %v3786 = vpop.permute.xlu0 %3785
        %v3789 = vadd.f32 %v3775, %v3784
        %v3790 = vadd.f32 %v3776, %v3786
        %s3791 = sld [smem:[#allocation8 + $0x4f]]
        %v3792 = vstv %s3791
        %v3793 = vmul.f32 %v3792, %v3740
        %v3794 = vmul.f32 %v3792, %v3741
        %3797 = vrot.lane.b32.xlu0 %v3793, 124
        %v3798 = vpop.permute.xlu0 %3797
        %3799 = vrot.lane.b32.xlu0 %v3794, 124
        %v3800 = vpop.permute.xlu0 %3799
        %v3803 = vadd.f32 %v3789, %v3798
        %v3804 = vadd.f32 %v3790, %v3800
        %s3805 = sld [smem:[#allocation8 + $0x50]]
        %v3806 = vstv %s3805
        %v3807 = vmul.f32 %v3806, %v3740
        %v3808 = vmul.f32 %v3806, %v3741
        %v3809 = vmul.f32 %v3806, %v3742
        %v3813 = vrot.slane %v3807, 1
        %v3814 = vrot.slane %v3808, 1
        %v3815 = vsel %vm402, %v3813, %v3814
        %v3816 = vrot.slane %v3809, 1
        %v3817 = vsel %vm402, %v3814, %v3816
        %v3820 = vadd.f32 %v3803, %v3815
        %v3821 = vadd.f32 %v3804, %v3817
        %s3822 = sld [smem:[#allocation8 + $0x51]]
        %v3823 = vstv %s3822
        %v3824 = vmul.f32 %v3823, %v3740
        %v3825 = vmul.f32 %v3823, %v3741
        %v3826 = vmul.f32 %v3823, %v3742
        %v3830 = vrot.slane %v3824, 1
        %v3831 = vrot.slane %v3825, 1
        %v3832 = vsel %vm402, %v3830, %v3831
        %v3833 = vrot.slane %v3826, 1
        %v3834 = vsel %vm402, %v3831, %v3833
        %3835 = vrot.lane.b32.xlu0 %v3832, 127
        %v3836 = vpop.permute.xlu0 %3835
        %3837 = vrot.lane.b32.xlu0 %v3834, 127
        %v3838 = vpop.permute.xlu0 %3837
        %v3841 = vadd.f32 %v3820, %v3836
        %v3842 = vadd.f32 %v3821, %v3838
        %s3843 = sld [smem:[#allocation8 + $0x52]]
        %v3844 = vstv %s3843
        %v3845 = vmul.f32 %v3844, %v3740
        %v3846 = vmul.f32 %v3844, %v3741
        %v3847 = vmul.f32 %v3844, %v3742
        %v3851 = vrot.slane %v3845, 1
        %v3852 = vrot.slane %v3846, 1
        %v3853 = vsel %vm402, %v3851, %v3852
        %v3854 = vrot.slane %v3847, 1
        %v3855 = vsel %vm402, %v3852, %v3854
        %3856 = vrot.lane.b32.xlu0 %v3853, 126
        %v3857 = vpop.permute.xlu0 %3856
        %3858 = vrot.lane.b32.xlu0 %v3855, 126
        %v3859 = vpop.permute.xlu0 %3858
        %v3862 = vadd.f32 %v3841, %v3857
        %v3863 = vadd.f32 %v3842, %v3859
        %s3864 = sld [smem:[#allocation8 + $0x53]]
        %v3865 = vstv %s3864
        %v3866 = vmul.f32 %v3865, %v3740
        %v3867 = vmul.f32 %v3865, %v3741
        %v3868 = vmul.f32 %v3865, %v3742
        %v3872 = vrot.slane %v3866, 1
        %v3873 = vrot.slane %v3867, 1
        %v3874 = vsel %vm402, %v3872, %v3873
        %v3875 = vrot.slane %v3868, 1
        %v3876 = vsel %vm402, %v3873, %v3875
        %3877 = vrot.lane.b32.xlu0 %v3874, 125
        %v3878 = vpop.permute.xlu0 %3877
        %3879 = vrot.lane.b32.xlu0 %v3876, 125
        %v3880 = vpop.permute.xlu0 %3879
        %v3883 = vadd.f32 %v3862, %v3878
        %v3884 = vadd.f32 %v3863, %v3880
        %s3885 = sld [smem:[#allocation8 + $0x54]]
        %v3886 = vstv %s3885
        %v3887 = vmul.f32 %v3886, %v3740
        %v3888 = vmul.f32 %v3886, %v3741
        %v3889 = vmul.f32 %v3886, %v3742
        %v3893 = vrot.slane %v3887, 1
        %v3894 = vrot.slane %v3888, 1
        %v3895 = vsel %vm402, %v3893, %v3894
        %v3896 = vrot.slane %v3889, 1
        %v3897 = vsel %vm402, %v3894, %v3896
        %3898 = vrot.lane.b32.xlu0 %v3895, 124
        %v3899 = vpop.permute.xlu0 %3898
        %3900 = vrot.lane.b32.xlu0 %v3897, 124
        %v3901 = vpop.permute.xlu0 %3900
        %v3904 = vadd.f32 %v3883, %v3899
        %v3905 = vadd.f32 %v3884, %v3901
        %s3906 = sld [smem:[#allocation8 + $0x55]]
        %v3907 = vstv %s3906
        %v3908 = vmul.f32 %v3907, %v3740
        %v3909 = vmul.f32 %v3907, %v3741
        %v3910 = vmul.f32 %v3907, %v3742
        %v3914 = vrot.slane %v3908, 2
        %v3915 = vrot.slane %v3909, 2
        %v3916 = vsel %vm504, %v3914, %v3915
        %v3917 = vrot.slane %v3910, 2
        %v3918 = vsel %vm504, %v3915, %v3917
        %v3921 = vadd.f32 %v3904, %v3916
        %v3922 = vadd.f32 %v3905, %v3918
        %s3923 = sld [smem:[#allocation8 + $0x56]]
        %v3924 = vstv %s3923
        %v3925 = vmul.f32 %v3924, %v3740
        %v3926 = vmul.f32 %v3924, %v3741
        %v3927 = vmul.f32 %v3924, %v3742
        %v3931 = vrot.slane %v3925, 2
        %v3932 = vrot.slane %v3926, 2
        %v3933 = vsel %vm504, %v3931, %v3932
        %v3934 = vrot.slane %v3927, 2
        %v3935 = vsel %vm504, %v3932, %v3934
        %3936 = vrot.lane.b32.xlu0 %v3933, 127
        %v3937 = vpop.permute.xlu0 %3936
        %3938 = vrot.lane.b32.xlu0 %v3935, 127
        %v3939 = vpop.permute.xlu0 %3938
        %v3942 = vadd.f32 %v3921, %v3937
        %v3943 = vadd.f32 %v3922, %v3939
        %s3944 = sld [smem:[#allocation8 + $0x57]]
        %v3945 = vstv %s3944
        %v3946 = vmul.f32 %v3945, %v3740
        %v3947 = vmul.f32 %v3945, %v3741
        %v3948 = vmul.f32 %v3945, %v3742
        %v3952 = vrot.slane %v3946, 2
        %v3953 = vrot.slane %v3947, 2
        %v3954 = vsel %vm504, %v3952, %v3953
        %v3955 = vrot.slane %v3948, 2
        %v3956 = vsel %vm504, %v3953, %v3955
        %3957 = vrot.lane.b32.xlu0 %v3954, 126
        %v3958 = vpop.permute.xlu0 %3957
        %3959 = vrot.lane.b32.xlu0 %v3956, 126
        %v3960 = vpop.permute.xlu0 %3959
        %v3963 = vadd.f32 %v3942, %v3958
        %v3964 = vadd.f32 %v3943, %v3960
        %s3965 = sld [smem:[#allocation8 + $0x58]]
        %v3966 = vstv %s3965
        %v3967 = vmul.f32 %v3966, %v3740
        %v3968 = vmul.f32 %v3966, %v3741
        %v3969 = vmul.f32 %v3966, %v3742
        %v3973 = vrot.slane %v3967, 2
        %v3974 = vrot.slane %v3968, 2
        %v3975 = vsel %vm504, %v3973, %v3974
        %v3976 = vrot.slane %v3969, 2
        %v3977 = vsel %vm504, %v3974, %v3976
        %3978 = vrot.lane.b32.xlu0 %v3975, 125
        %v3979 = vpop.permute.xlu0 %3978
        %3980 = vrot.lane.b32.xlu0 %v3977, 125
        %v3981 = vpop.permute.xlu0 %3980
        %v3984 = vadd.f32 %v3963, %v3979
        %v3985 = vadd.f32 %v3964, %v3981
        %s3986 = sld [smem:[#allocation8 + $0x59]]
        %v3987 = vstv %s3986
        %v3988 = vmul.f32 %v3987, %v3740
        %v3989 = vmul.f32 %v3987, %v3741
        %v3990 = vmul.f32 %v3987, %v3742
        %v3994 = vrot.slane %v3988, 2
        %v3995 = vrot.slane %v3989, 2
        %v3996 = vsel %vm504, %v3994, %v3995
        %v3997 = vrot.slane %v3990, 2
        %v3998 = vsel %vm504, %v3995, %v3997
        %3999 = vrot.lane.b32.xlu0 %v3996, 124
        %v4000 = vpop.permute.xlu0 %3999
        %4001 = vrot.lane.b32.xlu0 %v3998, 124
        %v4002 = vpop.permute.xlu0 %4001
        %v4005 = vadd.f32 %v3984, %v4000
        %v4006 = vadd.f32 %v3985, %v4002
        %s4007 = sld [smem:[#allocation8 + $0x5a]]
        %v4008 = vstv %s4007
        %v4009 = vmul.f32 %v4008, %v3740
        %v4010 = vmul.f32 %v4008, %v3741
        %v4011 = vmul.f32 %v4008, %v3742
        %v4015 = vrot.slane %v4009, 3
        %v4016 = vrot.slane %v4010, 3
        %v4017 = vsel %vm606, %v4015, %v4016
        %v4018 = vrot.slane %v4011, 3
        %v4019 = vsel %vm606, %v4016, %v4018
        %v4022 = vadd.f32 %v4005, %v4017
        %v4023 = vadd.f32 %v4006, %v4019
        %s4024 = sld [smem:[#allocation8 + $0x5b]]
        %v4025 = vstv %s4024
        %v4026 = vmul.f32 %v4025, %v3740
        %v4027 = vmul.f32 %v4025, %v3741
        %v4028 = vmul.f32 %v4025, %v3742
        %v4032 = vrot.slane %v4026, 3
        %v4033 = vrot.slane %v4027, 3
        %v4034 = vsel %vm606, %v4032, %v4033
        %v4035 = vrot.slane %v4028, 3
        %v4036 = vsel %vm606, %v4033, %v4035
        %4037 = vrot.lane.b32.xlu0 %v4034, 127
        %v4038 = vpop.permute.xlu0 %4037
        %4039 = vrot.lane.b32.xlu0 %v4036, 127
        %v4040 = vpop.permute.xlu0 %4039
        %v4043 = vadd.f32 %v4022, %v4038
        %v4044 = vadd.f32 %v4023, %v4040
        %s4045 = sld [smem:[#allocation8 + $0x5c]]
        %v4046 = vstv %s4045
        %v4047 = vmul.f32 %v4046, %v3740
        %v4048 = vmul.f32 %v4046, %v3741
        %v4049 = vmul.f32 %v4046, %v3742
        %v4053 = vrot.slane %v4047, 3
        %v4054 = vrot.slane %v4048, 3
        %v4055 = vsel %vm606, %v4053, %v4054
        %v4056 = vrot.slane %v4049, 3
        %v4057 = vsel %vm606, %v4054, %v4056
        %4058 = vrot.lane.b32.xlu0 %v4055, 126
        %v4059 = vpop.permute.xlu0 %4058
        %4060 = vrot.lane.b32.xlu0 %v4057, 126
        %v4061 = vpop.permute.xlu0 %4060
        %v4064 = vadd.f32 %v4043, %v4059
        %v4065 = vadd.f32 %v4044, %v4061
        %s4066 = sld [smem:[#allocation8 + $0x5d]]
        %v4067 = vstv %s4066
        %v4068 = vmul.f32 %v4067, %v3740
        %v4069 = vmul.f32 %v4067, %v3741
        %v4070 = vmul.f32 %v4067, %v3742
        %v4074 = vrot.slane %v4068, 3
        %v4075 = vrot.slane %v4069, 3
        %v4076 = vsel %vm606, %v4074, %v4075
        %v4077 = vrot.slane %v4070, 3
        %v4078 = vsel %vm606, %v4075, %v4077
        %4079 = vrot.lane.b32.xlu0 %v4076, 125
        %v4080 = vpop.permute.xlu0 %4079
        %4081 = vrot.lane.b32.xlu0 %v4078, 125
        %v4082 = vpop.permute.xlu0 %4081
        %v4085 = vadd.f32 %v4064, %v4080
        %v4086 = vadd.f32 %v4065, %v4082
        %s4087 = sld [smem:[#allocation8 + $0x5e]]
        %v4088 = vstv %s4087
        %v4089 = vmul.f32 %v4088, %v3740
        %v4090 = vmul.f32 %v4088, %v3741
        %v4091 = vmul.f32 %v4088, %v3742
        %v4095 = vrot.slane %v4089, 3
        %v4096 = vrot.slane %v4090, 3
        %v4097 = vsel %vm606, %v4095, %v4096
        %v4098 = vrot.slane %v4091, 3
        %v4099 = vsel %vm606, %v4096, %v4098
        %4100 = vrot.lane.b32.xlu0 %v4097, 124
        %v4101 = vpop.permute.xlu0 %4100
        %4102 = vrot.lane.b32.xlu0 %v4099, 124
        %v4103 = vpop.permute.xlu0 %4102
        %v4106 = vadd.f32 %v4085, %v4101
        %v4107 = vadd.f32 %v4086, %v4103
        %s4108 = sld [smem:[#allocation8 + $0x5f]]
        %v4109 = vstv %s4108
        %v4110 = vmul.f32 %v4109, %v3740
        %v4111 = vmul.f32 %v4109, %v3741
        %v4112 = vmul.f32 %v4109, %v3742
        %v4116 = vrot.slane %v4110, 4
        %v4117 = vrot.slane %v4111, 4
        %v4118 = vsel %vm708, %v4116, %v4117
        %v4119 = vrot.slane %v4112, 4
        %v4120 = vsel %vm708, %v4117, %v4119
        %v4123 = vadd.f32 %v4106, %v4118
        %v4124 = vadd.f32 %v4107, %v4120
        %s4125 = sld [smem:[#allocation8 + $0x60]]
        %v4126 = vstv %s4125
        %v4127 = vmul.f32 %v4126, %v3740
        %v4128 = vmul.f32 %v4126, %v3741
        %v4129 = vmul.f32 %v4126, %v3742
        %v4133 = vrot.slane %v4127, 4
        %v4134 = vrot.slane %v4128, 4
        %v4135 = vsel %vm708, %v4133, %v4134
        %v4136 = vrot.slane %v4129, 4
        %v4137 = vsel %vm708, %v4134, %v4136
        %4138 = vrot.lane.b32.xlu0 %v4135, 127
        %v4139 = vpop.permute.xlu0 %4138
        %4140 = vrot.lane.b32.xlu0 %v4137, 127
        %v4141 = vpop.permute.xlu0 %4140
        %v4144 = vadd.f32 %v4123, %v4139
        %v4145 = vadd.f32 %v4124, %v4141
        %s4146 = sld [smem:[#allocation8 + $0x61]]
        %v4147 = vstv %s4146
        %v4148 = vmul.f32 %v4147, %v3740
        %v4149 = vmul.f32 %v4147, %v3741
        %v4150 = vmul.f32 %v4147, %v3742
        %v4154 = vrot.slane %v4148, 4
        %v4155 = vrot.slane %v4149, 4
        %v4156 = vsel %vm708, %v4154, %v4155
        %v4157 = vrot.slane %v4150, 4
        %v4158 = vsel %vm708, %v4155, %v4157
        %4159 = vrot.lane.b32.xlu0 %v4156, 126
        %v4160 = vpop.permute.xlu0 %4159
        %4161 = vrot.lane.b32.xlu0 %v4158, 126
        %v4162 = vpop.permute.xlu0 %4161
        %v4165 = vadd.f32 %v4144, %v4160
        %v4166 = vadd.f32 %v4145, %v4162
        %s4167 = sld [smem:[#allocation8 + $0x62]]
        %v4168 = vstv %s4167
        %v4169 = vmul.f32 %v4168, %v3740
        %v4170 = vmul.f32 %v4168, %v3741
        %v4171 = vmul.f32 %v4168, %v3742
        %v4175 = vrot.slane %v4169, 4
        %v4176 = vrot.slane %v4170, 4
        %v4177 = vsel %vm708, %v4175, %v4176
        %v4178 = vrot.slane %v4171, 4
        %v4179 = vsel %vm708, %v4176, %v4178
        %4180 = vrot.lane.b32.xlu0 %v4177, 125
        %v4181 = vpop.permute.xlu0 %4180
        %4182 = vrot.lane.b32.xlu0 %v4179, 125
        %v4183 = vpop.permute.xlu0 %4182
        %v4186 = vadd.f32 %v4165, %v4181
        %v4187 = vadd.f32 %v4166, %v4183
        %s4188 = sld [smem:[#allocation8 + $0x63]]
        %v4189 = vstv %s4188
        %v4190 = vmul.f32 %v4189, %v3740
        %v4191 = vmul.f32 %v4189, %v3741
        %v4192 = vmul.f32 %v4189, %v3742
        %v4196 = vrot.slane %v4190, 4
        %v4197 = vrot.slane %v4191, 4
        %v4198 = vsel %vm708, %v4196, %v4197
        %v4199 = vrot.slane %v4192, 4
        %v4200 = vsel %vm708, %v4197, %v4199
        %4201 = vrot.lane.b32.xlu0 %v4198, 124
        %v4202 = vpop.permute.xlu0 %4201
        %4203 = vrot.lane.b32.xlu0 %v4200, 124
        %v4204 = vpop.permute.xlu0 %4203
        %v4207 = vadd.f32 %v4186, %v4202
        %v4208 = vadd.f32 %v4187, %v4204
        %v4209 = vtanh.pop %v4207
        %v4210 = vtanh.pop %v4208
        %v4211 = vmul.f32 %v4209, 7.5
        %v4212 = vmul.f32 %v4210, 7.5
        %v4213 = vadd.f32 %v4211, 7.5
        %v4214 = vadd.f32 %v4212, 7.5
        %v4215 = vround.ne.pseudo %v4213
        %v4216 = vround.ne.pseudo %v4214
        %v4217 = vrcp.pop 7.5
        %v4218 = vmul.f32 7.5, %v4217
        %v4219 = vsub.f32 1.0, %v4218
        %v4220 = vmul.f32 %v4217, %v4219
        %v4221 = vadd.f32 %v4217, %v4220
        %vm4222 = vweird.f32 %v4217
        %v4223 = vsel %vm4222, %v4217, %v4221
        %v4224 = vmul.f32 %v4215, %v4223
        %v4225 = vmul.f32 %v4216, %v4223
        %v4226 = vsub.f32 %v4224, 1.0
        %v4227 = vsub.f32 %v4225, 1.0
        %4230 = vrot.lane.b32.xlu0 %v4226, 2
        %v4231 = vpop.permute.xlu0 %4230
        %4232 = vrot.lane.b32.xlu0 %v4227, 2
        %v4233 = vpop.permute.xlu0 %4232
        %4236 = vst.msk [vmem:[#allocation2 + $0x2] sm:$0xff] %vm282, %v4231
        %4237 = vst.msk [vmem:[#allocation2 + $0xa] sm:$0xff] %vm282, %v4233
        %s4238 = sld [smem:[#allocation10 + $0x5]]
        %v4239 = vstv %s4238
        %v4240 = vld [vmem:[#allocation2] sm:$0xff]
        %v4241 = vld [vmem:[#allocation2 + $0x8] sm:$0xff]
        %v4242 = vld [vmem:[#allocation2 + $0x10] sm:$0xf]
        %s4243 = sld [smem:[#allocation8 + $0x64]]
        %v4244 = vstv %s4243
        %v4245 = vmul.f32 %v4244, %v4240
        %v4246 = vmul.f32 %v4244, %v4241
        %v4247 = vadd.f32 %v4239, %v4245
        %v4248 = vadd.f32 %v4239, %v4246
        %s4249 = sld [smem:[#allocation8 + $0x65]]
        %v4250 = vstv %s4249
        %v4251 = vmul.f32 %v4250, %v4240
        %v4252 = vmul.f32 %v4250, %v4241
        %4255 = vrot.lane.b32.xlu0 %v4251, 127
        %v4256 = vpop.permute.xlu0 %4255
        %4257 = vrot.lane.b32.xlu0 %v4252, 127
        %v4258 = vpop.permute.xlu0 %4257
        %v4261 = vadd.f32 %v4247, %v4256
        %v4262 = vadd.f32 %v4248, %v4258
        %s4263 = sld [smem:[#allocation8 + $0x66]]
        %v4264 = vstv %s4263
        %v4265 = vmul.f32 %v4264, %v4240
        %v4266 = vmul.f32 %v4264, %v4241
        %4269 = vrot.lane.b32.xlu0 %v4265, 126
        %v4270 = vpop.permute.xlu0 %4269
        %4271 = vrot.lane.b32.xlu0 %v4266, 126
        %v4272 = vpop.permute.xlu0 %4271
        %v4275 = vadd.f32 %v4261, %v4270
        %v4276 = vadd.f32 %v4262, %v4272
        %s4277 = sld [smem:[#allocation8 + $0x67]]
        %v4278 = vstv %s4277
        %v4279 = vmul.f32 %v4278, %v4240
        %v4280 = vmul.f32 %v4278, %v4241
        %4283 = vrot.lane.b32.xlu0 %v4279, 125
        %v4284 = vpop.permute.xlu0 %4283
        %4285 = vrot.lane.b32.xlu0 %v4280, 125
        %v4286 = vpop.permute.xlu0 %4285
        %v4289 = vadd.f32 %v4275, %v4284
        %v4290 = vadd.f32 %v4276, %v4286
        %s4291 = sld [smem:[#allocation8 + $0x68]]
        %v4292 = vstv %s4291
        %v4293 = vmul.f32 %v4292, %v4240
        %v4294 = vmul.f32 %v4292, %v4241
        %4297 = vrot.lane.b32.xlu0 %v4293, 124
        %v4298 = vpop.permute.xlu0 %4297
        %4299 = vrot.lane.b32.xlu0 %v4294, 124
        %v4300 = vpop.permute.xlu0 %4299
        %v4303 = vadd.f32 %v4289, %v4298
        %v4304 = vadd.f32 %v4290, %v4300
        %s4305 = sld [smem:[#allocation8 + $0x69]]
        %v4306 = vstv %s4305
        %v4307 = vmul.f32 %v4306, %v4240
        %v4308 = vmul.f32 %v4306, %v4241
        %v4309 = vmul.f32 %v4306, %v4242
        %v4313 = vrot.slane %v4307, 1
        %v4314 = vrot.slane %v4308, 1
        %v4315 = vsel %vm402, %v4313, %v4314
        %v4316 = vrot.slane %v4309, 1
        %v4317 = vsel %vm402, %v4314, %v4316
        %v4320 = vadd.f32 %v4303, %v4315
        %v4321 = vadd.f32 %v4304, %v4317
        %s4322 = sld [smem:[#allocation8 + $0x6a]]
        %v4323 = vstv %s4322
        %v4324 = vmul.f32 %v4323, %v4240
        %v4325 = vmul.f32 %v4323, %v4241
        %v4326 = vmul.f32 %v4323, %v4242
        %v4330 = vrot.slane %v4324, 1
        %v4331 = vrot.slane %v4325, 1
        %v4332 = vsel %vm402, %v4330, %v4331
        %v4333 = vrot.slane %v4326, 1
        %v4334 = vsel %vm402, %v4331, %v4333
        %4335 = vrot.lane.b32.xlu0 %v4332, 127
        %v4336 = vpop.permute.xlu0 %4335
        %4337 = vrot.lane.b32.xlu0 %v4334, 127
        %v4338 = vpop.permute.xlu0 %4337
        %v4341 = vadd.f32 %v4320, %v4336
        %v4342 = vadd.f32 %v4321, %v4338
        %s4343 = sld [smem:[#allocation8 + $0x6b]]
        %v4344 = vstv %s4343
        %v4345 = vmul.f32 %v4344, %v4240
        %v4346 = vmul.f32 %v4344, %v4241
        %v4347 = vmul.f32 %v4344, %v4242
        %v4351 = vrot.slane %v4345, 1
        %v4352 = vrot.slane %v4346, 1
        %v4353 = vsel %vm402, %v4351, %v4352
        %v4354 = vrot.slane %v4347, 1
        %v4355 = vsel %vm402, %v4352, %v4354
        %4356 = vrot.lane.b32.xlu0 %v4353, 126
        %v4357 = vpop.permute.xlu0 %4356
        %4358 = vrot.lane.b32.xlu0 %v4355, 126
        %v4359 = vpop.permute.xlu0 %4358
        %v4362 = vadd.f32 %v4341, %v4357
        %v4363 = vadd.f32 %v4342, %v4359
        %s4364 = sld [smem:[#allocation8 + $0x6c]]
        %v4365 = vstv %s4364
        %v4366 = vmul.f32 %v4365, %v4240
        %v4367 = vmul.f32 %v4365, %v4241
        %v4368 = vmul.f32 %v4365, %v4242
        %v4372 = vrot.slane %v4366, 1
        %v4373 = vrot.slane %v4367, 1
        %v4374 = vsel %vm402, %v4372, %v4373
        %v4375 = vrot.slane %v4368, 1
        %v4376 = vsel %vm402, %v4373, %v4375
        %4377 = vrot.lane.b32.xlu0 %v4374, 125
        %v4378 = vpop.permute.xlu0 %4377
        %4379 = vrot.lane.b32.xlu0 %v4376, 125
        %v4380 = vpop.permute.xlu0 %4379
        %v4383 = vadd.f32 %v4362, %v4378
        %v4384 = vadd.f32 %v4363, %v4380
        %s4385 = sld [smem:[#allocation8 + $0x6d]]
        %v4386 = vstv %s4385
        %v4387 = vmul.f32 %v4386, %v4240
        %v4388 = vmul.f32 %v4386, %v4241
        %v4389 = vmul.f32 %v4386, %v4242
        %v4393 = vrot.slane %v4387, 1
        %v4394 = vrot.slane %v4388, 1
        %v4395 = vsel %vm402, %v4393, %v4394
        %v4396 = vrot.slane %v4389, 1
        %v4397 = vsel %vm402, %v4394, %v4396
        %4398 = vrot.lane.b32.xlu0 %v4395, 124
        %v4399 = vpop.permute.xlu0 %4398
        %4400 = vrot.lane.b32.xlu0 %v4397, 124
        %v4401 = vpop.permute.xlu0 %4400
        %v4404 = vadd.f32 %v4383, %v4399
        %v4405 = vadd.f32 %v4384, %v4401
        %s4406 = sld [smem:[#allocation8 + $0x6e]]
        %v4407 = vstv %s4406
        %v4408 = vmul.f32 %v4407, %v4240
        %v4409 = vmul.f32 %v4407, %v4241
        %v4410 = vmul.f32 %v4407, %v4242
        %v4414 = vrot.slane %v4408, 2
        %v4415 = vrot.slane %v4409, 2
        %v4416 = vsel %vm504, %v4414, %v4415
        %v4417 = vrot.slane %v4410, 2
        %v4418 = vsel %vm504, %v4415, %v4417
        %v4421 = vadd.f32 %v4404, %v4416
        %v4422 = vadd.f32 %v4405, %v4418
        %s4423 = sld [smem:[#allocation8 + $0x6f]]
        %v4424 = vstv %s4423
        %v4425 = vmul.f32 %v4424, %v4240
        %v4426 = vmul.f32 %v4424, %v4241
        %v4427 = vmul.f32 %v4424, %v4242
        %v4431 = vrot.slane %v4425, 2
        %v4432 = vrot.slane %v4426, 2
        %v4433 = vsel %vm504, %v4431, %v4432
        %v4434 = vrot.slane %v4427, 2
        %v4435 = vsel %vm504, %v4432, %v4434
        %4436 = vrot.lane.b32.xlu0 %v4433, 127
        %v4437 = vpop.permute.xlu0 %4436
        %4438 = vrot.lane.b32.xlu0 %v4435, 127
        %v4439 = vpop.permute.xlu0 %4438
        %v4442 = vadd.f32 %v4421, %v4437
        %v4443 = vadd.f32 %v4422, %v4439
        %s4444 = sld [smem:[#allocation8 + $0x70]]
        %v4445 = vstv %s4444
        %v4446 = vmul.f32 %v4445, %v4240
        %v4447 = vmul.f32 %v4445, %v4241
        %v4448 = vmul.f32 %v4445, %v4242
        %v4452 = vrot.slane %v4446, 2
        %v4453 = vrot.slane %v4447, 2
        %v4454 = vsel %vm504, %v4452, %v4453
        %v4455 = vrot.slane %v4448, 2
        %v4456 = vsel %vm504, %v4453, %v4455
        %4457 = vrot.lane.b32.xlu0 %v4454, 126
        %v4458 = vpop.permute.xlu0 %4457
        %4459 = vrot.lane.b32.xlu0 %v4456, 126
        %v4460 = vpop.permute.xlu0 %4459
        %v4463 = vadd.f32 %v4442, %v4458
        %v4464 = vadd.f32 %v4443, %v4460
        %s4465 = sld [smem:[#allocation8 + $0x71]]
        %v4466 = vstv %s4465
        %v4467 = vmul.f32 %v4466, %v4240
        %v4468 = vmul.f32 %v4466, %v4241
        %v4469 = vmul.f32 %v4466, %v4242
        %v4473 = vrot.slane %v4467, 2
        %v4474 = vrot.slane %v4468, 2
        %v4475 = vsel %vm504, %v4473, %v4474
        %v4476 = vrot.slane %v4469, 2
        %v4477 = vsel %vm504, %v4474, %v4476
        %4478 = vrot.lane.b32.xlu0 %v4475, 125
        %v4479 = vpop.permute.xlu0 %4478
        %4480 = vrot.lane.b32.xlu0 %v4477, 125
        %v4481 = vpop.permute.xlu0 %4480
        %v4484 = vadd.f32 %v4463, %v4479
        %v4485 = vadd.f32 %v4464, %v4481
        %s4486 = sld [smem:[#allocation8 + $0x72]]
        %v4487 = vstv %s4486
        %v4488 = vmul.f32 %v4487, %v4240
        %v4489 = vmul.f32 %v4487, %v4241
        %v4490 = vmul.f32 %v4487, %v4242
        %v4494 = vrot.slane %v4488, 2
        %v4495 = vrot.slane %v4489, 2
        %v4496 = vsel %vm504, %v4494, %v4495
        %v4497 = vrot.slane %v4490, 2
        %v4498 = vsel %vm504, %v4495, %v4497
        %4499 = vrot.lane.b32.xlu0 %v4496, 124
        %v4500 = vpop.permute.xlu0 %4499
        %4501 = vrot.lane.b32.xlu0 %v4498, 124
        %v4502 = vpop.permute.xlu0 %4501
        %v4505 = vadd.f32 %v4484, %v4500
        %v4506 = vadd.f32 %v4485, %v4502
        %s4507 = sld [smem:[#allocation8 + $0x73]]
        %v4508 = vstv %s4507
        %v4509 = vmul.f32 %v4508, %v4240
        %v4510 = vmul.f32 %v4508, %v4241
        %v4511 = vmul.f32 %v4508, %v4242
        %v4515 = vrot.slane %v4509, 3
        %v4516 = vrot.slane %v4510, 3
        %v4517 = vsel %vm606, %v4515, %v4516
        %v4518 = vrot.slane %v4511, 3
        %v4519 = vsel %vm606, %v4516, %v4518
        %v4522 = vadd.f32 %v4505, %v4517
        %v4523 = vadd.f32 %v4506, %v4519
        %s4524 = sld [smem:[#allocation8 + $0x74]]
        %v4525 = vstv %s4524
        %v4526 = vmul.f32 %v4525, %v4240
        %v4527 = vmul.f32 %v4525, %v4241
        %v4528 = vmul.f32 %v4525, %v4242
        %v4532 = vrot.slane %v4526, 3
        %v4533 = vrot.slane %v4527, 3
        %v4534 = vsel %vm606, %v4532, %v4533
        %v4535 = vrot.slane %v4528, 3
        %v4536 = vsel %vm606, %v4533, %v4535
        %4537 = vrot.lane.b32.xlu0 %v4534, 127
        %v4538 = vpop.permute.xlu0 %4537
        %4539 = vrot.lane.b32.xlu0 %v4536, 127
        %v4540 = vpop.permute.xlu0 %4539
        %v4543 = vadd.f32 %v4522, %v4538
        %v4544 = vadd.f32 %v4523, %v4540
        %s4545 = sld [smem:[#allocation8 + $0x75]]
        %v4546 = vstv %s4545
        %v4547 = vmul.f32 %v4546, %v4240
        %v4548 = vmul.f32 %v4546, %v4241
        %v4549 = vmul.f32 %v4546, %v4242
        %v4553 = vrot.slane %v4547, 3
        %v4554 = vrot.slane %v4548, 3
        %v4555 = vsel %vm606, %v4553, %v4554
        %v4556 = vrot.slane %v4549, 3
        %v4557 = vsel %vm606, %v4554, %v4556
        %4558 = vrot.lane.b32.xlu0 %v4555, 126
        %v4559 = vpop.permute.xlu0 %4558
        %4560 = vrot.lane.b32.xlu0 %v4557, 126
        %v4561 = vpop.permute.xlu0 %4560
        %v4564 = vadd.f32 %v4543, %v4559
        %v4565 = vadd.f32 %v4544, %v4561
        %s4566 = sld [smem:[#allocation8 + $0x76]]
        %v4567 = vstv %s4566
        %v4568 = vmul.f32 %v4567, %v4240
        %v4569 = vmul.f32 %v4567, %v4241
        %v4570 = vmul.f32 %v4567, %v4242
        %v4574 = vrot.slane %v4568, 3
        %v4575 = vrot.slane %v4569, 3
        %v4576 = vsel %vm606, %v4574, %v4575
        %v4577 = vrot.slane %v4570, 3
        %v4578 = vsel %vm606, %v4575, %v4577
        %4579 = vrot.lane.b32.xlu0 %v4576, 125
        %v4580 = vpop.permute.xlu0 %4579
        %4581 = vrot.lane.b32.xlu0 %v4578, 125
        %v4582 = vpop.permute.xlu0 %4581
        %v4585 = vadd.f32 %v4564, %v4580
        %v4586 = vadd.f32 %v4565, %v4582
        %s4587 = sld [smem:[#allocation8 + $0x77]]
        %v4588 = vstv %s4587
        %v4589 = vmul.f32 %v4588, %v4240
        %v4590 = vmul.f32 %v4588, %v4241
        %v4591 = vmul.f32 %v4588, %v4242
        %v4595 = vrot.slane %v4589, 3
        %v4596 = vrot.slane %v4590, 3
        %v4597 = vsel %vm606, %v4595, %v4596
        %v4598 = vrot.slane %v4591, 3
        %v4599 = vsel %vm606, %v4596, %v4598
        %4600 = vrot.lane.b32.xlu0 %v4597, 124
        %v4601 = vpop.permute.xlu0 %4600
        %4602 = vrot.lane.b32.xlu0 %v4599, 124
        %v4603 = vpop.permute.xlu0 %4602
        %v4606 = vadd.f32 %v4585, %v4601
        %v4607 = vadd.f32 %v4586, %v4603
        %s4608 = sld [smem:[#allocation8 + $0x78]]
        %v4609 = vstv %s4608
        %v4610 = vmul.f32 %v4609, %v4240
        %v4611 = vmul.f32 %v4609, %v4241
        %v4612 = vmul.f32 %v4609, %v4242
        %v4616 = vrot.slane %v4610, 4
        %v4617 = vrot.slane %v4611, 4
        %v4618 = vsel %vm708, %v4616, %v4617
        %v4619 = vrot.slane %v4612, 4
        %v4620 = vsel %vm708, %v4617, %v4619
        %v4623 = vadd.f32 %v4606, %v4618
        %v4624 = vadd.f32 %v4607, %v4620
        %s4625 = sld [smem:[#allocation8 + $0x79]]
        %v4626 = vstv %s4625
        %v4627 = vmul.f32 %v4626, %v4240
        %v4628 = vmul.f32 %v4626, %v4241
        %v4629 = vmul.f32 %v4626, %v4242
        %v4633 = vrot.slane %v4627, 4
        %v4634 = vrot.slane %v4628, 4
        %v4635 = vsel %vm708, %v4633, %v4634
        %v4636 = vrot.slane %v4629, 4
        %v4637 = vsel %vm708, %v4634, %v4636
        %4638 = vrot.lane.b32.xlu0 %v4635, 127
        %v4639 = vpop.permute.xlu0 %4638
        %4640 = vrot.lane.b32.xlu0 %v4637, 127
        %v4641 = vpop.permute.xlu0 %4640
        %v4644 = vadd.f32 %v4623, %v4639
        %v4645 = vadd.f32 %v4624, %v4641
        %s4646 = sld [smem:[#allocation8 + $0x7a]]
        %v4647 = vstv %s4646
        %v4648 = vmul.f32 %v4647, %v4240
        %v4649 = vmul.f32 %v4647, %v4241
        %v4650 = vmul.f32 %v4647, %v4242
        %v4654 = vrot.slane %v4648, 4
        %v4655 = vrot.slane %v4649, 4
        %v4656 = vsel %vm708, %v4654, %v4655
        %v4657 = vrot.slane %v4650, 4
        %v4658 = vsel %vm708, %v4655, %v4657
        %4659 = vrot.lane.b32.xlu0 %v4656, 126
        %v4660 = vpop.permute.xlu0 %4659
        %4661 = vrot.lane.b32.xlu0 %v4658, 126
        %v4662 = vpop.permute.xlu0 %4661
        %v4665 = vadd.f32 %v4644, %v4660
        %v4666 = vadd.f32 %v4645, %v4662
        %s4667 = sld [smem:[#allocation8 + $0x7b]]
        %v4668 = vstv %s4667
        %v4669 = vmul.f32 %v4668, %v4240
        %v4670 = vmul.f32 %v4668, %v4241
        %v4671 = vmul.f32 %v4668, %v4242
        %v4675 = vrot.slane %v4669, 4
        %v4676 = vrot.slane %v4670, 4
        %v4677 = vsel %vm708, %v4675, %v4676
        %v4678 = vrot.slane %v4671, 4
        %v4679 = vsel %vm708, %v4676, %v4678
        %4680 = vrot.lane.b32.xlu0 %v4677, 125
        %v4681 = vpop.permute.xlu0 %4680
        %4682 = vrot.lane.b32.xlu0 %v4679, 125
        %v4683 = vpop.permute.xlu0 %4682
        %v4686 = vadd.f32 %v4665, %v4681
        %v4687 = vadd.f32 %v4666, %v4683
        %s4688 = sld [smem:[#allocation8 + $0x7c]]
        %v4689 = vstv %s4688
        %v4690 = vmul.f32 %v4689, %v4240
        %v4691 = vmul.f32 %v4689, %v4241
        %v4692 = vmul.f32 %v4689, %v4242
        %v4696 = vrot.slane %v4690, 4
        %v4697 = vrot.slane %v4691, 4
        %v4698 = vsel %vm708, %v4696, %v4697
        %v4699 = vrot.slane %v4692, 4
        %v4700 = vsel %vm708, %v4697, %v4699
        %4701 = vrot.lane.b32.xlu0 %v4698, 124
        %v4702 = vpop.permute.xlu0 %4701
        %4703 = vrot.lane.b32.xlu0 %v4700, 124
        %v4704 = vpop.permute.xlu0 %4703
        %v4707 = vadd.f32 %v4686, %v4702
        %v4708 = vadd.f32 %v4687, %v4704
        %v4709 = vtanh.pop %v4707
        %v4710 = vtanh.pop %v4708
        %v4711 = vmul.f32 %v4709, 3.5
        %v4712 = vmul.f32 %v4710, 3.5
        %v4713 = vadd.f32 %v4711, 3.5
        %v4714 = vadd.f32 %v4712, 3.5
        %v4715 = vround.ne.pseudo %v4713
        %v4716 = vround.ne.pseudo %v4714
        %v4717 = vrcp.pop 3.5
        %v4718 = vmul.f32 3.5, %v4717
        %v4719 = vsub.f32 1.0, %v4718
        %v4720 = vmul.f32 %v4717, %v4719
        %v4721 = vadd.f32 %v4717, %v4720
        %vm4722 = vweird.f32 %v4717
        %v4723 = vsel %vm4722, %v4717, %v4721
        %v4724 = vmul.f32 %v4715, %v4723
        %v4725 = vmul.f32 %v4716, %v4723
        %v4726 = vsub.f32 %v4724, 1.0
        %v4727 = vsub.f32 %v4725, 1.0
        %4730 = vrot.lane.b32.xlu0 %v4726, 2
        %v4731 = vpop.permute.xlu0 %4730
        %4732 = vrot.lane.b32.xlu0 %v4727, 2
        %v4733 = vpop.permute.xlu0 %4732
        %4736 = vst.msk [vmem:[#allocation2 + $0x2] sm:$0xff] %vm282, %v4731
        %4737 = vst.msk [vmem:[#allocation2 + $0xa] sm:$0xff] %vm282, %v4733
        %s4738 = sld [smem:[#allocation10 + $0x6]]
        %v4739 = vstv %s4738
        %v4740 = vld [vmem:[#allocation2] sm:$0xff]
        %v4741 = vld [vmem:[#allocation2 + $0x8] sm:$0xff]
        %v4742 = vld [vmem:[#allocation2 + $0x10] sm:$0xf]
        %s4743 = sld [smem:[#allocation8 + $0x7d]]
        %v4744 = vstv %s4743
        %v4745 = vmul.f32 %v4744, %v4740
        %v4746 = vmul.f32 %v4744, %v4741
        %v4747 = vadd.f32 %v4739, %v4745
        %v4748 = vadd.f32 %v4739, %v4746
        %s4749 = sld [smem:[#allocation8 + $0x7e]]
        %v4750 = vstv %s4749
        %v4751 = vmul.f32 %v4750, %v4740
        %v4752 = vmul.f32 %v4750, %v4741
        %4755 = vrot.lane.b32.xlu0 %v4751, 127
        %v4756 = vpop.permute.xlu0 %4755
        %4757 = vrot.lane.b32.xlu0 %v4752, 127
        %v4758 = vpop.permute.xlu0 %4757
        %v4761 = vadd.f32 %v4747, %v4756
        %v4762 = vadd.f32 %v4748, %v4758
        %s4763 = sld [smem:[#allocation8 + $0x7f]]
        %v4764 = vstv %s4763
        %v4765 = vmul.f32 %v4764, %v4740
        %v4766 = vmul.f32 %v4764, %v4741
        %4769 = vrot.lane.b32.xlu0 %v4765, 126
        %v4770 = vpop.permute.xlu0 %4769
        %4771 = vrot.lane.b32.xlu0 %v4766, 126
        %v4772 = vpop.permute.xlu0 %4771
        %v4775 = vadd.f32 %v4761, %v4770
        %v4776 = vadd.f32 %v4762, %v4772
        %s4777 = sld [smem:[#allocation8 + $0x80]]
        %v4778 = vstv %s4777
        %v4779 = vmul.f32 %v4778, %v4740
        %v4780 = vmul.f32 %v4778, %v4741
        %4783 = vrot.lane.b32.xlu0 %v4779, 125
        %v4784 = vpop.permute.xlu0 %4783
        %4785 = vrot.lane.b32.xlu0 %v4780, 125
        %v4786 = vpop.permute.xlu0 %4785
        %v4789 = vadd.f32 %v4775, %v4784
        %v4790 = vadd.f32 %v4776, %v4786
        %s4791 = sld [smem:[#allocation8 + $0x81]]
        %v4792 = vstv %s4791
        %v4793 = vmul.f32 %v4792, %v4740
        %v4794 = vmul.f32 %v4792, %v4741
        %4797 = vrot.lane.b32.xlu0 %v4793, 124
        %v4798 = vpop.permute.xlu0 %4797
        %4799 = vrot.lane.b32.xlu0 %v4794, 124
        %v4800 = vpop.permute.xlu0 %4799
        %v4803 = vadd.f32 %v4789, %v4798
        %v4804 = vadd.f32 %v4790, %v4800
        %s4805 = sld [smem:[#allocation8 + $0x82]]
        %v4806 = vstv %s4805
        %v4807 = vmul.f32 %v4806, %v4740
        %v4808 = vmul.f32 %v4806, %v4741
        %v4809 = vmul.f32 %v4806, %v4742
        %v4813 = vrot.slane %v4807, 1
        %v4814 = vrot.slane %v4808, 1
        %v4815 = vsel %vm402, %v4813, %v4814
        %v4816 = vrot.slane %v4809, 1
        %v4817 = vsel %vm402, %v4814, %v4816
        %v4820 = vadd.f32 %v4803, %v4815
        %v4821 = vadd.f32 %v4804, %v4817
        %s4822 = sld [smem:[#allocation8 + $0x83]]
        %v4823 = vstv %s4822
        %v4824 = vmul.f32 %v4823, %v4740
        %v4825 = vmul.f32 %v4823, %v4741
        %v4826 = vmul.f32 %v4823, %v4742
        %v4830 = vrot.slane %v4824, 1
        %v4831 = vrot.slane %v4825, 1
        %v4832 = vsel %vm402, %v4830, %v4831
        %v4833 = vrot.slane %v4826, 1
        %v4834 = vsel %vm402, %v4831, %v4833
        %4835 = vrot.lane.b32.xlu0 %v4832, 127
        %v4836 = vpop.permute.xlu0 %4835
        %4837 = vrot.lane.b32.xlu0 %v4834, 127
        %v4838 = vpop.permute.xlu0 %4837
        %v4841 = vadd.f32 %v4820, %v4836
        %v4842 = vadd.f32 %v4821, %v4838
        %s4843 = sld [smem:[#allocation8 + $0x84]]
        %v4844 = vstv %s4843
        %v4845 = vmul.f32 %v4844, %v4740
        %v4846 = vmul.f32 %v4844, %v4741
        %v4847 = vmul.f32 %v4844, %v4742
        %v4851 = vrot.slane %v4845, 1
        %v4852 = vrot.slane %v4846, 1
        %v4853 = vsel %vm402, %v4851, %v4852
        %v4854 = vrot.slane %v4847, 1
        %v4855 = vsel %vm402, %v4852, %v4854
        %4856 = vrot.lane.b32.xlu0 %v4853, 126
        %v4857 = vpop.permute.xlu0 %4856
        %4858 = vrot.lane.b32.xlu0 %v4855, 126
        %v4859 = vpop.permute.xlu0 %4858
        %v4862 = vadd.f32 %v4841, %v4857
        %v4863 = vadd.f32 %v4842, %v4859
        %s4864 = sld [smem:[#allocation8 + $0x85]]
        %v4865 = vstv %s4864
        %v4866 = vmul.f32 %v4865, %v4740
        %v4867 = vmul.f32 %v4865, %v4741
        %v4868 = vmul.f32 %v4865, %v4742
        %v4872 = vrot.slane %v4866, 1
        %v4873 = vrot.slane %v4867, 1
        %v4874 = vsel %vm402, %v4872, %v4873
        %v4875 = vrot.slane %v4868, 1
        %v4876 = vsel %vm402, %v4873, %v4875
        %4877 = vrot.lane.b32.xlu0 %v4874, 125
        %v4878 = vpop.permute.xlu0 %4877
        %4879 = vrot.lane.b32.xlu0 %v4876, 125
        %v4880 = vpop.permute.xlu0 %4879
        %v4883 = vadd.f32 %v4862, %v4878
        %v4884 = vadd.f32 %v4863, %v4880
        %s4885 = sld [smem:[#allocation8 + $0x86]]
        %v4886 = vstv %s4885
        %v4887 = vmul.f32 %v4886, %v4740
        %v4888 = vmul.f32 %v4886, %v4741
        %v4889 = vmul.f32 %v4886, %v4742
        %v4893 = vrot.slane %v4887, 1
        %v4894 = vrot.slane %v4888, 1
        %v4895 = vsel %vm402, %v4893, %v4894
        %v4896 = vrot.slane %v4889, 1
        %v4897 = vsel %vm402, %v4894, %v4896
        %4898 = vrot.lane.b32.xlu0 %v4895, 124
        %v4899 = vpop.permute.xlu0 %4898
        %4900 = vrot.lane.b32.xlu0 %v4897, 124
        %v4901 = vpop.permute.xlu0 %4900
        %v4904 = vadd.f32 %v4883, %v4899
        %v4905 = vadd.f32 %v4884, %v4901
        %s4906 = sld [smem:[#allocation8 + $0x87]]
        %v4907 = vstv %s4906
        %v4908 = vmul.f32 %v4907, %v4740
        %v4909 = vmul.f32 %v4907, %v4741
        %v4910 = vmul.f32 %v4907, %v4742
        %v4914 = vrot.slane %v4908, 2
        %v4915 = vrot.slane %v4909, 2
        %v4916 = vsel %vm504, %v4914, %v4915
        %v4917 = vrot.slane %v4910, 2
        %v4918 = vsel %vm504, %v4915, %v4917
        %v4921 = vadd.f32 %v4904, %v4916
        %v4922 = vadd.f32 %v4905, %v4918
        %s4923 = sld [smem:[#allocation8 + $0x88]]
        %v4924 = vstv %s4923
        %v4925 = vmul.f32 %v4924, %v4740
        %v4926 = vmul.f32 %v4924, %v4741
        %v4927 = vmul.f32 %v4924, %v4742
        %v4931 = vrot.slane %v4925, 2
        %v4932 = vrot.slane %v4926, 2
        %v4933 = vsel %vm504, %v4931, %v4932
        %v4934 = vrot.slane %v4927, 2
        %v4935 = vsel %vm504, %v4932, %v4934
        %4936 = vrot.lane.b32.xlu0 %v4933, 127
        %v4937 = vpop.permute.xlu0 %4936
        %4938 = vrot.lane.b32.xlu0 %v4935, 127
        %v4939 = vpop.permute.xlu0 %4938
        %v4942 = vadd.f32 %v4921, %v4937
        %v4943 = vadd.f32 %v4922, %v4939
        %s4944 = sld [smem:[#allocation8 + $0x89]]
        %v4945 = vstv %s4944
        %v4946 = vmul.f32 %v4945, %v4740
        %v4947 = vmul.f32 %v4945, %v4741
        %v4948 = vmul.f32 %v4945, %v4742
        %v4952 = vrot.slane %v4946, 2
        %v4953 = vrot.slane %v4947, 2
        %v4954 = vsel %vm504, %v4952, %v4953
        %v4955 = vrot.slane %v4948, 2
        %v4956 = vsel %vm504, %v4953, %v4955
        %4957 = vrot.lane.b32.xlu0 %v4954, 126
        %v4958 = vpop.permute.xlu0 %4957
        %4959 = vrot.lane.b32.xlu0 %v4956, 126
        %v4960 = vpop.permute.xlu0 %4959
        %v4963 = vadd.f32 %v4942, %v4958
        %v4964 = vadd.f32 %v4943, %v4960
        %s4965 = sld [smem:[#allocation8 + $0x8a]]
        %v4966 = vstv %s4965
        %v4967 = vmul.f32 %v4966, %v4740
        %v4968 = vmul.f32 %v4966, %v4741
        %v4969 = vmul.f32 %v4966, %v4742
        %v4973 = vrot.slane %v4967, 2
        %v4974 = vrot.slane %v4968, 2
        %v4975 = vsel %vm504, %v4973, %v4974
        %v4976 = vrot.slane %v4969, 2
        %v4977 = vsel %vm504, %v4974, %v4976
        %4978 = vrot.lane.b32.xlu0 %v4975, 125
        %v4979 = vpop.permute.xlu0 %4978
        %4980 = vrot.lane.b32.xlu0 %v4977, 125
        %v4981 = vpop.permute.xlu0 %4980
        %v4984 = vadd.f32 %v4963, %v4979
        %v4985 = vadd.f32 %v4964, %v4981
        %s4986 = sld [smem:[#allocation8 + $0x8b]]
        %v4987 = vstv %s4986
        %v4988 = vmul.f32 %v4987, %v4740
        %v4989 = vmul.f32 %v4987, %v4741
        %v4990 = vmul.f32 %v4987, %v4742
        %v4994 = vrot.slane %v4988, 2
        %v4995 = vrot.slane %v4989, 2
        %v4996 = vsel %vm504, %v4994, %v4995
        %v4997 = vrot.slane %v4990, 2
        %v4998 = vsel %vm504, %v4995, %v4997
        %4999 = vrot.lane.b32.xlu0 %v4996, 124
        %v5000 = vpop.permute.xlu0 %4999
        %5001 = vrot.lane.b32.xlu0 %v4998, 124
        %v5002 = vpop.permute.xlu0 %5001
        %v5005 = vadd.f32 %v4984, %v5000
        %v5006 = vadd.f32 %v4985, %v5002
        %s5007 = sld [smem:[#allocation8 + $0x8c]]
        %v5008 = vstv %s5007
        %v5009 = vmul.f32 %v5008, %v4740
        %v5010 = vmul.f32 %v5008, %v4741
        %v5011 = vmul.f32 %v5008, %v4742
        %v5015 = vrot.slane %v5009, 3
        %v5016 = vrot.slane %v5010, 3
        %v5017 = vsel %vm606, %v5015, %v5016
        %v5018 = vrot.slane %v5011, 3
        %v5019 = vsel %vm606, %v5016, %v5018
        %v5022 = vadd.f32 %v5005, %v5017
        %v5023 = vadd.f32 %v5006, %v5019
        %s5024 = sld [smem:[#allocation8 + $0x8d]]
        %v5025 = vstv %s5024
        %v5026 = vmul.f32 %v5025, %v4740
        %v5027 = vmul.f32 %v5025, %v4741
        %v5028 = vmul.f32 %v5025, %v4742
        %v5032 = vrot.slane %v5026, 3
        %v5033 = vrot.slane %v5027, 3
        %v5034 = vsel %vm606, %v5032, %v5033
        %v5035 = vrot.slane %v5028, 3
        %v5036 = vsel %vm606, %v5033, %v5035
        %5037 = vrot.lane.b32.xlu0 %v5034, 127
        %v5038 = vpop.permute.xlu0 %5037
        %5039 = vrot.lane.b32.xlu0 %v5036, 127
        %v5040 = vpop.permute.xlu0 %5039
        %v5043 = vadd.f32 %v5022, %v5038
        %v5044 = vadd.f32 %v5023, %v5040
        %s5045 = sld [smem:[#allocation8 + $0x8e]]
        %v5046 = vstv %s5045
        %v5047 = vmul.f32 %v5046, %v4740
        %v5048 = vmul.f32 %v5046, %v4741
        %v5049 = vmul.f32 %v5046, %v4742
        %v5053 = vrot.slane %v5047, 3
        %v5054 = vrot.slane %v5048, 3
        %v5055 = vsel %vm606, %v5053, %v5054
        %v5056 = vrot.slane %v5049, 3
        %v5057 = vsel %vm606, %v5054, %v5056
        %5058 = vrot.lane.b32.xlu0 %v5055, 126
        %v5059 = vpop.permute.xlu0 %5058
        %5060 = vrot.lane.b32.xlu0 %v5057, 126
        %v5061 = vpop.permute.xlu0 %5060
        %v5064 = vadd.f32 %v5043, %v5059
        %v5065 = vadd.f32 %v5044, %v5061
        %s5066 = sld [smem:[#allocation8 + $0x8f]]
        %v5067 = vstv %s5066
        %v5068 = vmul.f32 %v5067, %v4740
        %v5069 = vmul.f32 %v5067, %v4741
        %v5070 = vmul.f32 %v5067, %v4742
        %v5074 = vrot.slane %v5068, 3
        %v5075 = vrot.slane %v5069, 3
        %v5076 = vsel %vm606, %v5074, %v5075
        %v5077 = vrot.slane %v5070, 3
        %v5078 = vsel %vm606, %v5075, %v5077
        %5079 = vrot.lane.b32.xlu0 %v5076, 125
        %v5080 = vpop.permute.xlu0 %5079
        %5081 = vrot.lane.b32.xlu0 %v5078, 125
        %v5082 = vpop.permute.xlu0 %5081
        %v5085 = vadd.f32 %v5064, %v5080
        %v5086 = vadd.f32 %v5065, %v5082
        %s5087 = sld [smem:[#allocation8 + $0x90]]
        %v5088 = vstv %s5087
        %v5089 = vmul.f32 %v5088, %v4740
        %v5090 = vmul.f32 %v5088, %v4741
        %v5091 = vmul.f32 %v5088, %v4742
        %v5095 = vrot.slane %v5089, 3
        %v5096 = vrot.slane %v5090, 3
        %v5097 = vsel %vm606, %v5095, %v5096
        %v5098 = vrot.slane %v5091, 3
        %v5099 = vsel %vm606, %v5096, %v5098
        %5100 = vrot.lane.b32.xlu0 %v5097, 124
        %v5101 = vpop.permute.xlu0 %5100
        %5102 = vrot.lane.b32.xlu0 %v5099, 124
        %v5103 = vpop.permute.xlu0 %5102
        %v5106 = vadd.f32 %v5085, %v5101
        %v5107 = vadd.f32 %v5086, %v5103
        %s5108 = sld [smem:[#allocation8 + $0x91]]
        %v5109 = vstv %s5108
        %v5110 = vmul.f32 %v5109, %v4740
        %v5111 = vmul.f32 %v5109, %v4741
        %v5112 = vmul.f32 %v5109, %v4742
        %v5116 = vrot.slane %v5110, 4
        %v5117 = vrot.slane %v5111, 4
        %v5118 = vsel %vm708, %v5116, %v5117
        %v5119 = vrot.slane %v5112, 4
        %v5120 = vsel %vm708, %v5117, %v5119
        %v5123 = vadd.f32 %v5106, %v5118
        %v5124 = vadd.f32 %v5107, %v5120
        %s5125 = sld [smem:[#allocation8 + $0x92]]
        %v5126 = vstv %s5125
        %v5127 = vmul.f32 %v5126, %v4740
        %v5128 = vmul.f32 %v5126, %v4741
        %v5129 = vmul.f32 %v5126, %v4742
        %v5133 = vrot.slane %v5127, 4
        %v5134 = vrot.slane %v5128, 4
        %v5135 = vsel %vm708, %v5133, %v5134
        %v5136 = vrot.slane %v5129, 4
        %v5137 = vsel %vm708, %v5134, %v5136
        %5138 = vrot.lane.b32.xlu0 %v5135, 127
        %v5139 = vpop.permute.xlu0 %5138
        %5140 = vrot.lane.b32.xlu0 %v5137, 127
        %v5141 = vpop.permute.xlu0 %5140
        %v5144 = vadd.f32 %v5123, %v5139
        %v5145 = vadd.f32 %v5124, %v5141
        %s5146 = sld [smem:[#allocation8 + $0x93]]
        %v5147 = vstv %s5146
        %v5148 = vmul.f32 %v5147, %v4740
        %v5149 = vmul.f32 %v5147, %v4741
        %v5150 = vmul.f32 %v5147, %v4742
        %v5154 = vrot.slane %v5148, 4
        %v5155 = vrot.slane %v5149, 4
        %v5156 = vsel %vm708, %v5154, %v5155
        %v5157 = vrot.slane %v5150, 4
        %v5158 = vsel %vm708, %v5155, %v5157
        %5159 = vrot.lane.b32.xlu0 %v5156, 126
        %v5160 = vpop.permute.xlu0 %5159
        %5161 = vrot.lane.b32.xlu0 %v5158, 126
        %v5162 = vpop.permute.xlu0 %5161
        %v5165 = vadd.f32 %v5144, %v5160
        %v5166 = vadd.f32 %v5145, %v5162
        %s5167 = sld [smem:[#allocation8 + $0x94]]
        %v5168 = vstv %s5167
        %v5169 = vmul.f32 %v5168, %v4740
        %v5170 = vmul.f32 %v5168, %v4741
        %v5171 = vmul.f32 %v5168, %v4742
        %v5175 = vrot.slane %v5169, 4
        %v5176 = vrot.slane %v5170, 4
        %v5177 = vsel %vm708, %v5175, %v5176
        %v5178 = vrot.slane %v5171, 4
        %v5179 = vsel %vm708, %v5176, %v5178
        %5180 = vrot.lane.b32.xlu0 %v5177, 125
        %v5181 = vpop.permute.xlu0 %5180
        %5182 = vrot.lane.b32.xlu0 %v5179, 125
        %v5183 = vpop.permute.xlu0 %5182
        %v5186 = vadd.f32 %v5165, %v5181
        %v5187 = vadd.f32 %v5166, %v5183
        %s5188 = sld [smem:[#allocation8 + $0x95]]
        %v5189 = vstv %s5188
        %v5190 = vmul.f32 %v5189, %v4740
        %v5191 = vmul.f32 %v5189, %v4741
        %v5192 = vmul.f32 %v5189, %v4742
        %v5196 = vrot.slane %v5190, 4
        %v5197 = vrot.slane %v5191, 4
        %v5198 = vsel %vm708, %v5196, %v5197
        %v5199 = vrot.slane %v5192, 4
        %v5200 = vsel %vm708, %v5197, %v5199
        %5201 = vrot.lane.b32.xlu0 %v5198, 124
        %v5202 = vpop.permute.xlu0 %5201
        %5203 = vrot.lane.b32.xlu0 %v5200, 124
        %v5204 = vpop.permute.xlu0 %5203
        %v5207 = vadd.f32 %v5186, %v5202
        %v5208 = vadd.f32 %v5187, %v5204
        %v5209 = vtanh.pop %v5207
        %v5210 = vtanh.pop %v5208
        %v5211 = vmul.f32 %v5209, 1.5
        %v5212 = vmul.f32 %v5210, 1.5
        %v5213 = vadd.f32 %v5211, 1.5
        %v5214 = vadd.f32 %v5212, 1.5
        %v5215 = vround.ne.pseudo %v5213
        %v5216 = vround.ne.pseudo %v5214
        %v5217 = vrcp.pop 1.5
        %v5218 = vmul.f32 1.5, %v5217
        %v5219 = vsub.f32 1.0, %v5218
        %v5220 = vmul.f32 %v5217, %v5219
        %v5221 = vadd.f32 %v5217, %v5220
        %vm5222 = vweird.f32 %v5217
        %v5223 = vsel %vm5222, %v5217, %v5221
        %v5224 = vmul.f32 %v5215, %v5223
        %v5225 = vmul.f32 %v5216, %v5223
        %v5226 = vsub.f32 %v5224, 1.0
        %v5227 = vsub.f32 %v5225, 1.0
        %5230 = vrot.lane.b32.xlu0 %v5226, 2
        %v5231 = vpop.permute.xlu0 %5230
        %5232 = vrot.lane.b32.xlu0 %v5227, 2
        %v5233 = vpop.permute.xlu0 %5232
        %5236 = vst.msk [vmem:[#allocation2 + $0x2] sm:$0xff] %vm282, %v5231
        %5237 = vst.msk [vmem:[#allocation2 + $0xa] sm:$0xff] %vm282, %v5233
        %s5238 = sld [smem:[#allocation10 + $0x7]]
        %v5239 = vstv %s5238
        %v5240 = vld [vmem:[#allocation2] sm:$0xff]
        %v5241 = vld [vmem:[#allocation2 + $0x8] sm:$0xff]
        %v5242 = vld [vmem:[#allocation2 + $0x10] sm:$0xf]
        %s5243 = sld [smem:[#allocation8 + $0x96]]
        %v5244 = vstv %s5243
        %v5245 = vmul.f32 %v5244, %v5240
        %v5246 = vmul.f32 %v5244, %v5241
        %v5247 = vadd.f32 %v5239, %v5245
        %v5248 = vadd.f32 %v5239, %v5246
        %s5249 = sld [smem:[#allocation8 + $0x97]]
        %v5250 = vstv %s5249
        %v5251 = vmul.f32 %v5250, %v5240
        %v5252 = vmul.f32 %v5250, %v5241
        %5255 = vrot.lane.b32.xlu0 %v5251, 127
        %v5256 = vpop.permute.xlu0 %5255
        %5257 = vrot.lane.b32.xlu0 %v5252, 127
        %v5258 = vpop.permute.xlu0 %5257
        %v5261 = vadd.f32 %v5247, %v5256
        %v5262 = vadd.f32 %v5248, %v5258
        %s5263 = sld [smem:[#allocation8 + $0x98]]
        %v5264 = vstv %s5263
        %v5265 = vmul.f32 %v5264, %v5240
        %v5266 = vmul.f32 %v5264, %v5241
        %5269 = vrot.lane.b32.xlu0 %v5265, 126
        %v5270 = vpop.permute.xlu0 %5269
        %5271 = vrot.lane.b32.xlu0 %v5266, 126
        %v5272 = vpop.permute.xlu0 %5271
        %v5275 = vadd.f32 %v5261, %v5270
        %v5276 = vadd.f32 %v5262, %v5272
        %s5277 = sld [smem:[#allocation8 + $0x99]]
        %v5278 = vstv %s5277
        %v5279 = vmul.f32 %v5278, %v5240
        %v5280 = vmul.f32 %v5278, %v5241
        %5283 = vrot.lane.b32.xlu0 %v5279, 125
        %v5284 = vpop.permute.xlu0 %5283
        %5285 = vrot.lane.b32.xlu0 %v5280, 125
        %v5286 = vpop.permute.xlu0 %5285
        %v5289 = vadd.f32 %v5275, %v5284
        %v5290 = vadd.f32 %v5276, %v5286
        %s5291 = sld [smem:[#allocation8 + $0x9a]]
        %v5292 = vstv %s5291
        %v5293 = vmul.f32 %v5292, %v5240
        %v5294 = vmul.f32 %v5292, %v5241
        %5297 = vrot.lane.b32.xlu0 %v5293, 124
        %v5298 = vpop.permute.xlu0 %5297
        %5299 = vrot.lane.b32.xlu0 %v5294, 124
        %v5300 = vpop.permute.xlu0 %5299
        %v5303 = vadd.f32 %v5289, %v5298
        %v5304 = vadd.f32 %v5290, %v5300
        %s5305 = sld [smem:[#allocation8 + $0x9b]]
        %v5306 = vstv %s5305
        %v5307 = vmul.f32 %v5306, %v5240
        %v5308 = vmul.f32 %v5306, %v5241
        %v5309 = vmul.f32 %v5306, %v5242
        %v5313 = vrot.slane %v5307, 1
        %v5314 = vrot.slane %v5308, 1
        %v5315 = vsel %vm402, %v5313, %v5314
        %v5316 = vrot.slane %v5309, 1
        %v5317 = vsel %vm402, %v5314, %v5316
        %v5320 = vadd.f32 %v5303, %v5315
        %v5321 = vadd.f32 %v5304, %v5317
        %s5322 = sld [smem:[#allocation8 + $0x9c]]
        %v5323 = vstv %s5322
        %v5324 = vmul.f32 %v5323, %v5240
        %v5325 = vmul.f32 %v5323, %v5241
        %v5326 = vmul.f32 %v5323, %v5242
        %v5330 = vrot.slane %v5324, 1
        %v5331 = vrot.slane %v5325, 1
        %v5332 = vsel %vm402, %v5330, %v5331
        %v5333 = vrot.slane %v5326, 1
        %v5334 = vsel %vm402, %v5331, %v5333
        %5335 = vrot.lane.b32.xlu0 %v5332, 127
        %v5336 = vpop.permute.xlu0 %5335
        %5337 = vrot.lane.b32.xlu0 %v5334, 127
        %v5338 = vpop.permute.xlu0 %5337
        %v5341 = vadd.f32 %v5320, %v5336
        %v5342 = vadd.f32 %v5321, %v5338
        %s5343 = sld [smem:[#allocation8 + $0x9d]]
        %v5344 = vstv %s5343
        %v5345 = vmul.f32 %v5344, %v5240
        %v5346 = vmul.f32 %v5344, %v5241
        %v5347 = vmul.f32 %v5344, %v5242
        %v5351 = vrot.slane %v5345, 1
        %v5352 = vrot.slane %v5346, 1
        %v5353 = vsel %vm402, %v5351, %v5352
        %v5354 = vrot.slane %v5347, 1
        %v5355 = vsel %vm402, %v5352, %v5354
        %5356 = vrot.lane.b32.xlu0 %v5353, 126
        %v5357 = vpop.permute.xlu0 %5356
        %5358 = vrot.lane.b32.xlu0 %v5355, 126
        %v5359 = vpop.permute.xlu0 %5358
        %v5362 = vadd.f32 %v5341, %v5357
        %v5363 = vadd.f32 %v5342, %v5359
        %s5364 = sld [smem:[#allocation8 + $0x9e]]
        %v5365 = vstv %s5364
        %v5366 = vmul.f32 %v5365, %v5240
        %v5367 = vmul.f32 %v5365, %v5241
        %v5368 = vmul.f32 %v5365, %v5242
        %v5372 = vrot.slane %v5366, 1
        %v5373 = vrot.slane %v5367, 1
        %v5374 = vsel %vm402, %v5372, %v5373
        %v5375 = vrot.slane %v5368, 1
        %v5376 = vsel %vm402, %v5373, %v5375
        %5377 = vrot.lane.b32.xlu0 %v5374, 125
        %v5378 = vpop.permute.xlu0 %5377
        %5379 = vrot.lane.b32.xlu0 %v5376, 125
        %v5380 = vpop.permute.xlu0 %5379
        %v5383 = vadd.f32 %v5362, %v5378
        %v5384 = vadd.f32 %v5363, %v5380
        %s5385 = sld [smem:[#allocation8 + $0x9f]]
        %v5386 = vstv %s5385
        %v5387 = vmul.f32 %v5386, %v5240
        %v5388 = vmul.f32 %v5386, %v5241
        %v5389 = vmul.f32 %v5386, %v5242
        %v5393 = vrot.slane %v5387, 1
        %v5394 = vrot.slane %v5388, 1
        %v5395 = vsel %vm402, %v5393, %v5394
        %v5396 = vrot.slane %v5389, 1
        %v5397 = vsel %vm402, %v5394, %v5396
        %5398 = vrot.lane.b32.xlu0 %v5395, 124
        %v5399 = vpop.permute.xlu0 %5398
        %5400 = vrot.lane.b32.xlu0 %v5397, 124
        %v5401 = vpop.permute.xlu0 %5400
        %v5404 = vadd.f32 %v5383, %v5399
        %v5405 = vadd.f32 %v5384, %v5401
        %s5406 = sld [smem:[#allocation8 + $0xa0]]
        %v5407 = vstv %s5406
        %v5408 = vmul.f32 %v5407, %v5240
        %v5409 = vmul.f32 %v5407, %v5241
        %v5410 = vmul.f32 %v5407, %v5242
        %v5414 = vrot.slane %v5408, 2
        %v5415 = vrot.slane %v5409, 2
        %v5416 = vsel %vm504, %v5414, %v5415
        %v5417 = vrot.slane %v5410, 2
        %v5418 = vsel %vm504, %v5415, %v5417
        %v5421 = vadd.f32 %v5404, %v5416
        %v5422 = vadd.f32 %v5405, %v5418
        %s5423 = sld [smem:[#allocation8 + $0xa1]]
        %v5424 = vstv %s5423
        %v5425 = vmul.f32 %v5424, %v5240
        %v5426 = vmul.f32 %v5424, %v5241
        %v5427 = vmul.f32 %v5424, %v5242
        %v5431 = vrot.slane %v5425, 2
        %v5432 = vrot.slane %v5426, 2
        %v5433 = vsel %vm504, %v5431, %v5432
        %v5434 = vrot.slane %v5427, 2
        %v5435 = vsel %vm504, %v5432, %v5434
        %5436 = vrot.lane.b32.xlu0 %v5433, 127
        %v5437 = vpop.permute.xlu0 %5436
        %5438 = vrot.lane.b32.xlu0 %v5435, 127
        %v5439 = vpop.permute.xlu0 %5438
        %v5442 = vadd.f32 %v5421, %v5437
        %v5443 = vadd.f32 %v5422, %v5439
        %s5444 = sld [smem:[#allocation8 + $0xa2]]
        %v5445 = vstv %s5444
        %v5446 = vmul.f32 %v5445, %v5240
        %v5447 = vmul.f32 %v5445, %v5241
        %v5448 = vmul.f32 %v5445, %v5242
        %v5452 = vrot.slane %v5446, 2
        %v5453 = vrot.slane %v5447, 2
        %v5454 = vsel %vm504, %v5452, %v5453
        %v5455 = vrot.slane %v5448, 2
        %v5456 = vsel %vm504, %v5453, %v5455
        %5457 = vrot.lane.b32.xlu0 %v5454, 126
        %v5458 = vpop.permute.xlu0 %5457
        %5459 = vrot.lane.b32.xlu0 %v5456, 126
        %v5460 = vpop.permute.xlu0 %5459
        %v5463 = vadd.f32 %v5442, %v5458
        %v5464 = vadd.f32 %v5443, %v5460
        %s5465 = sld [smem:[#allocation8 + $0xa3]]
        %v5466 = vstv %s5465
        %v5467 = vmul.f32 %v5466, %v5240
        %v5468 = vmul.f32 %v5466, %v5241
        %v5469 = vmul.f32 %v5466, %v5242
        %v5473 = vrot.slane %v5467, 2
        %v5474 = vrot.slane %v5468, 2
        %v5475 = vsel %vm504, %v5473, %v5474
        %v5476 = vrot.slane %v5469, 2
        %v5477 = vsel %vm504, %v5474, %v5476
        %5478 = vrot.lane.b32.xlu0 %v5475, 125
        %v5479 = vpop.permute.xlu0 %5478
        %5480 = vrot.lane.b32.xlu0 %v5477, 125
        %v5481 = vpop.permute.xlu0 %5480
        %v5484 = vadd.f32 %v5463, %v5479
        %v5485 = vadd.f32 %v5464, %v5481
        %s5486 = sld [smem:[#allocation8 + $0xa4]]
        %v5487 = vstv %s5486
        %v5488 = vmul.f32 %v5487, %v5240
        %v5489 = vmul.f32 %v5487, %v5241
        %v5490 = vmul.f32 %v5487, %v5242
        %v5494 = vrot.slane %v5488, 2
        %v5495 = vrot.slane %v5489, 2
        %v5496 = vsel %vm504, %v5494, %v5495
        %v5497 = vrot.slane %v5490, 2
        %v5498 = vsel %vm504, %v5495, %v5497
        %5499 = vrot.lane.b32.xlu0 %v5496, 124
        %v5500 = vpop.permute.xlu0 %5499
        %5501 = vrot.lane.b32.xlu0 %v5498, 124
        %v5502 = vpop.permute.xlu0 %5501
        %v5505 = vadd.f32 %v5484, %v5500
        %v5506 = vadd.f32 %v5485, %v5502
        %s5507 = sld [smem:[#allocation8 + $0xa5]]
        %v5508 = vstv %s5507
        %v5509 = vmul.f32 %v5508, %v5240
        %v5510 = vmul.f32 %v5508, %v5241
        %v5511 = vmul.f32 %v5508, %v5242
        %v5515 = vrot.slane %v5509, 3
        %v5516 = vrot.slane %v5510, 3
        %v5517 = vsel %vm606, %v5515, %v5516
        %v5518 = vrot.slane %v5511, 3
        %v5519 = vsel %vm606, %v5516, %v5518
        %v5522 = vadd.f32 %v5505, %v5517
        %v5523 = vadd.f32 %v5506, %v5519
        %s5524 = sld [smem:[#allocation8 + $0xa6]]
        %v5525 = vstv %s5524
        %v5526 = vmul.f32 %v5525, %v5240
        %v5527 = vmul.f32 %v5525, %v5241
        %v5528 = vmul.f32 %v5525, %v5242
        %v5532 = vrot.slane %v5526, 3
        %v5533 = vrot.slane %v5527, 3
        %v5534 = vsel %vm606, %v5532, %v5533
        %v5535 = vrot.slane %v5528, 3
        %v5536 = vsel %vm606, %v5533, %v5535
        %5537 = vrot.lane.b32.xlu0 %v5534, 127
        %v5538 = vpop.permute.xlu0 %5537
        %5539 = vrot.lane.b32.xlu0 %v5536, 127
        %v5540 = vpop.permute.xlu0 %5539
        %v5543 = vadd.f32 %v5522, %v5538
        %v5544 = vadd.f32 %v5523, %v5540
        %s5545 = sld [smem:[#allocation8 + $0xa7]]
        %v5546 = vstv %s5545
        %v5547 = vmul.f32 %v5546, %v5240
        %v5548 = vmul.f32 %v5546, %v5241
        %v5549 = vmul.f32 %v5546, %v5242
        %v5553 = vrot.slane %v5547, 3
        %v5554 = vrot.slane %v5548, 3
        %v5555 = vsel %vm606, %v5553, %v5554
        %v5556 = vrot.slane %v5549, 3
        %v5557 = vsel %vm606, %v5554, %v5556
        %5558 = vrot.lane.b32.xlu0 %v5555, 126
        %v5559 = vpop.permute.xlu0 %5558
        %5560 = vrot.lane.b32.xlu0 %v5557, 126
        %v5561 = vpop.permute.xlu0 %5560
        %v5564 = vadd.f32 %v5543, %v5559
        %v5565 = vadd.f32 %v5544, %v5561
        %s5566 = sld [smem:[#allocation8 + $0xa8]]
        %v5567 = vstv %s5566
        %v5568 = vmul.f32 %v5567, %v5240
        %v5569 = vmul.f32 %v5567, %v5241
        %v5570 = vmul.f32 %v5567, %v5242
        %v5574 = vrot.slane %v5568, 3
        %v5575 = vrot.slane %v5569, 3
        %v5576 = vsel %vm606, %v5574, %v5575
        %v5577 = vrot.slane %v5570, 3
        %v5578 = vsel %vm606, %v5575, %v5577
        %5579 = vrot.lane.b32.xlu0 %v5576, 125
        %v5580 = vpop.permute.xlu0 %5579
        %5581 = vrot.lane.b32.xlu0 %v5578, 125
        %v5582 = vpop.permute.xlu0 %5581
        %v5585 = vadd.f32 %v5564, %v5580
        %v5586 = vadd.f32 %v5565, %v5582
        %s5587 = sld [smem:[#allocation8 + $0xa9]]
        %v5588 = vstv %s5587
        %v5589 = vmul.f32 %v5588, %v5240
        %v5590 = vmul.f32 %v5588, %v5241
        %v5591 = vmul.f32 %v5588, %v5242
        %v5595 = vrot.slane %v5589, 3
        %v5596 = vrot.slane %v5590, 3
        %v5597 = vsel %vm606, %v5595, %v5596
        %v5598 = vrot.slane %v5591, 3
        %v5599 = vsel %vm606, %v5596, %v5598
        %5600 = vrot.lane.b32.xlu0 %v5597, 124
        %v5601 = vpop.permute.xlu0 %5600
        %5602 = vrot.lane.b32.xlu0 %v5599, 124
        %v5603 = vpop.permute.xlu0 %5602
        %v5606 = vadd.f32 %v5585, %v5601
        %v5607 = vadd.f32 %v5586, %v5603
        %s5608 = sld [smem:[#allocation8 + $0xaa]]
        %v5609 = vstv %s5608
        %v5610 = vmul.f32 %v5609, %v5240
        %v5611 = vmul.f32 %v5609, %v5241
        %v5612 = vmul.f32 %v5609, %v5242
        %v5616 = vrot.slane %v5610, 4
        %v5617 = vrot.slane %v5611, 4
        %v5618 = vsel %vm708, %v5616, %v5617
        %v5619 = vrot.slane %v5612, 4
        %v5620 = vsel %vm708, %v5617, %v5619
        %v5623 = vadd.f32 %v5606, %v5618
        %v5624 = vadd.f32 %v5607, %v5620
        %s5625 = sld [smem:[#allocation8 + $0xab]]
        %v5626 = vstv %s5625
        %v5627 = vmul.f32 %v5626, %v5240
        %v5628 = vmul.f32 %v5626, %v5241
        %v5629 = vmul.f32 %v5626, %v5242
        %v5633 = vrot.slane %v5627, 4
        %v5634 = vrot.slane %v5628, 4
        %v5635 = vsel %vm708, %v5633, %v5634
        %v5636 = vrot.slane %v5629, 4
        %v5637 = vsel %vm708, %v5634, %v5636
        %5638 = vrot.lane.b32.xlu0 %v5635, 127
        %v5639 = vpop.permute.xlu0 %5638
        %5640 = vrot.lane.b32.xlu0 %v5637, 127
        %v5641 = vpop.permute.xlu0 %5640
        %v5644 = vadd.f32 %v5623, %v5639
        %v5645 = vadd.f32 %v5624, %v5641
        %s5646 = sld [smem:[#allocation8 + $0xac]]
        %v5647 = vstv %s5646
        %v5648 = vmul.f32 %v5647, %v5240
        %v5649 = vmul.f32 %v5647, %v5241
        %v5650 = vmul.f32 %v5647, %v5242
        %v5654 = vrot.slane %v5648, 4
        %v5655 = vrot.slane %v5649, 4
        %v5656 = vsel %vm708, %v5654, %v5655
        %v5657 = vrot.slane %v5650, 4
        %v5658 = vsel %vm708, %v5655, %v5657
        %5659 = vrot.lane.b32.xlu0 %v5656, 126
        %v5660 = vpop.permute.xlu0 %5659
        %5661 = vrot.lane.b32.xlu0 %v5658, 126
        %v5662 = vpop.permute.xlu0 %5661
        %v5665 = vadd.f32 %v5644, %v5660
        %v5666 = vadd.f32 %v5645, %v5662
        %s5667 = sld [smem:[#allocation8 + $0xad]]
        %v5668 = vstv %s5667
        %v5669 = vmul.f32 %v5668, %v5240
        %v5670 = vmul.f32 %v5668, %v5241
        %v5671 = vmul.f32 %v5668, %v5242
        %v5675 = vrot.slane %v5669, 4
        %v5676 = vrot.slane %v5670, 4
        %v5677 = vsel %vm708, %v5675, %v5676
        %v5678 = vrot.slane %v5671, 4
        %v5679 = vsel %vm708, %v5676, %v5678
        %5680 = vrot.lane.b32.xlu0 %v5677, 125
        %v5681 = vpop.permute.xlu0 %5680
        %5682 = vrot.lane.b32.xlu0 %v5679, 125
        %v5683 = vpop.permute.xlu0 %5682
        %v5686 = vadd.f32 %v5665, %v5681
        %v5687 = vadd.f32 %v5666, %v5683
        %s5688 = sld [smem:[#allocation8 + $0xae]]
        %v5689 = vstv %s5688
        %v5690 = vmul.f32 %v5689, %v5240
        %v5691 = vmul.f32 %v5689, %v5241
        %v5692 = vmul.f32 %v5689, %v5242
        %v5696 = vrot.slane %v5690, 4
        %v5697 = vrot.slane %v5691, 4
        %v5698 = vsel %vm708, %v5696, %v5697
        %v5699 = vrot.slane %v5692, 4
        %v5700 = vsel %vm708, %v5697, %v5699
        %5701 = vrot.lane.b32.xlu0 %v5698, 124
        %v5702 = vpop.permute.xlu0 %5701
        %5703 = vrot.lane.b32.xlu0 %v5700, 124
        %v5704 = vpop.permute.xlu0 %5703
        %v5707 = vadd.f32 %v5686, %v5702
        %v5708 = vadd.f32 %v5687, %v5704
        %v5709 = vtanh.pop %v5707
        %v5710 = vtanh.pop %v5708
        %v5711 = vmul.f32 %v5709, 0.5
        %v5712 = vmul.f32 %v5710, 0.5
        %v5713 = vadd.f32 %v5711, 0.5
        %v5714 = vadd.f32 %v5712, 0.5
        %v5715 = vround.ne.pseudo %v5713
        %v5716 = vround.ne.pseudo %v5714
        %v5717 = vrcp.pop 0.5
        %v5718 = vmul.f32 0.5, %v5717
        %v5719 = vsub.f32 1.0, %v5718
        %v5720 = vmul.f32 %v5717, %v5719
        %v5721 = vadd.f32 %v5717, %v5720
        %vm5722 = vweird.f32 %v5717
        %v5723 = vsel %vm5722, %v5717, %v5721
        %v5724 = vmul.f32 %v5715, %v5723
        %v5725 = vmul.f32 %v5716, %v5723
        %v5726 = vsub.f32 %v5724, 1.0
        %v5727 = vsub.f32 %v5725, 1.0
        %vm5728 = vcmask 130048
        %5729 = vst.msk [vmem:[%s257] sm:$0xff] %vm5728, %v5726
        %5730 = vst.msk [vmem:[%s257 + $0x8] sm:$0xff] %vm5728, %v5727
        %s5731 = sand.u32 %s121, 1
        %s5732 = scalar_lea.sflag [#allocation5], %s5731
        %s5733 = sand.u32 %s121, 1
        %s5734 = smul.addr %s5733, 16
        %s5735 = scalar_lea.vmem [#allocation12], %s5734
        // Predicated region
        $region53: #{tpu_custom_call.1} parent=35 // pred_check
          %p5736 = pneg %p131
        $region54: #{tpu_custom_call.1} parent=35 // pred_check_branch
          %5738 = sbr.rel (%p5736) target = $region56
        $region55: #{tpu_custom_call.1} parent=35 // pred_region
          %5740 = vsyncadd %s5732, 0
          %s5741 = smul.addr %s24, 2
          %s5742 = smul.addr %s5741, 8
          %s5743 = scalar_lea.hbm %s4, %s5742
          %s5744 = sshll.u32 %s5735, 4
          %s5745 = int_to_ptr.vmem [resolvable:$true] %s5744
          %s5746 = sshll.u32 %s5743, 4
          %s5747 = int_to_ptr.hbm [resolvable:$true] %s5746
          %5752 = dma.vmem_to_hbm [thread:$0]  %s5745, 256, %s5747, %s5732, 128, 128, 8
        $region56: #{tpu_custom_call.1} parent=35 // pred_fallthru
          _
      $region36: #{tpu_custom_call.1} parent=5 // pred_fallthru
        _
      %p5753 = scmp.le.s32.totalorder 2, %s19
      // Predicated region
      $region57: #{tpu_custom_call.1} parent=5 // pred_check
        %p5754 = pneg %p5753
      $region58: #{tpu_custom_call.1} parent=5 // pred_check_branch
        %5756 = sbr.rel (%p5754) target = $region60
      $region59: #{tpu_custom_call.1} parent=5 // pred_region
        %s5757 = ssub.s32 %s19, 2
        // Predicated region
        $region61: #{tpu_custom_call.1} parent=59 // pred_check
          %p5758 = pneg %p137
        $region62: #{tpu_custom_call.1} parent=59 // pred_check_branch
          %5760 = sbr.rel (%p5758) target = $region64
        $region63: #{tpu_custom_call.1} parent=59 // pred_region
          %s5761 = sand.u32 %s122, 1
          %s5762 = scalar_lea.sflag [#allocation5], %s5761
          %s5763 = sand.u32 %s122, 1
          %s5764 = smul.addr %s5763, 16
          %s5765 = scalar_lea.vmem [#allocation12], %s5764
          %5767 = dma.done %s5762, 256
        $region64: #{tpu_custom_call.1} parent=59 // pred_fallthru
          _
      $region60: #{tpu_custom_call.1} parent=5 // pred_fallthru
        _
    $region6: #{tpu_custom_call.1} parent=1 // loop_footer
      %s23 = sadd.s32 1, %s19
    $region7: #{tpu_custom_call.1} parent=1 // loop_footer_branch
      %18 = sbr.rel target = $region3
    $region8: #{tpu_custom_call.1} parent=1 // loop_exit
      _
    %5768 = vsyncpa [#allocation4], 1
    %s5769 = scalar_lea.sflag [#allocation4], 1
    %5770 = vsyncpa %s5769, 1
    %5771 = vsyncpa [#allocation5], 1
    %s5772 = scalar_lea.sflag [#allocation5], 1
    %5773 = vsyncpa %s5772, 1
    %5774 = vsyncpa [#allocation6], 1
    %s5775 = scalar_lea.sflag [#allocation6], 1
    %5776 = vsyncpa %s5775, 1
    %5777 = vsyncpa [#allocation9], 1
    %5778 = vsyncpa [#allocation7], 1
    %s5779 = scalar_lea.sflag [#allocation7], 1
    %5780 = vsyncpa %s5779, 1

</llo_original>
